<compile_context>
chip_gen: v7x
topology: tpu7x:2x2x1
jax: 0.10.0
libtpu: 0.0.40
codegen_flags: <defaults>
</compile_context>

<pallas_src>
import functools

import jax
import jax.numpy as jnp
from jax import lax
from jax.experimental import pallas as pl
from jax.experimental.pallas import tpu as pltpu


def _basic_block_kernel(x_ref, w1_ref, w2_ref, b1_ref, b2_ref, o_ref,
                        xb_ref, mid_ref, *,
                        H, W, Wp, Cp, TM, num_tiles, Mpad):
    """One batch element per grid step.

    x_ref  : (1, Mpad, Cp) f32  zero-padded, row-flattened NHWC input
    w1/w2  : (9, Cp, Cp)   bf16 conv weights (BN scale folded), tap = dy*3+dx
    b1/b2  : (1, Cp)       f32  folded BN biases
    o_ref  : (1, M, Cp)    f32  output over the padded-width row layout
    xb_ref : (Mpad, Cp)    bf16 scratch (input cast once for the MXU)
    mid_ref: (Mpad, Cp)    bf16 scratch (padded mid activation, conv2 input)
    """
    f32 = jnp.float32
    bf16 = jnp.bfloat16
    M = TM * num_tiles              # = H * Wp
    mid_lo = Wp + 1                 # first interior row of the padded mid
    mid_hi = mid_lo + M             # one past the last row written below

    # Cast the whole input tile to bf16 once (MXU operand); HBM is read once
    # in f32 so the residual add below keeps full precision.
    xb_ref[...] = x_ref[0].astype(bf16)

    # Zero only the small halo regions of the mid buffer; the interior
    # [mid_lo, mid_hi) is fully overwritten by the conv1 loop every step.
    mid_ref[pl.ds(0, mid_lo), :] = jnp.zeros((mid_lo, Cp), bf16)
    mid_ref[pl.ds(mid_hi, Mpad - mid_hi), :] = jnp.zeros((Mpad - mid_hi, Cp), bf16)

    # Column-validity mask within a tile (TM is a multiple of Wp, so the
    # pattern is identical for every tile).  Needed so the horizontal-padding
    # columns of the mid activation stay exactly zero for conv2.  Computed
    # once, hoisted out of the tile loops.
    col = lax.broadcasted_iota(jnp.int32, (TM, Cp), 0) % Wp
    valid = col < W

    b1 = b1_ref[...]
    b2 = b2_ref[...]

    # ---- conv1 (BN1 scale folded) + bias + relu -> mid (bf16) --------------
    for t in range(num_tiles):
        r0 = t * TM
        acc = jnp.zeros((TM, Cp), f32)
        for dy in range(3):
            for dx in range(3):
                off = dy * Wp + dx
                win = xb_ref[pl.ds(r0 + off, TM), :]
                acc = acc + jnp.dot(win, w1_ref[dy * 3 + dx],
                                    preferred_element_type=f32)
        h = jnp.maximum(acc + b1, 0.0)
        h = jnp.where(valid, h, 0.0)
        mid_ref[pl.ds(mid_lo + r0, TM), :] = h.astype(bf16)

    # ---- conv2 (BN2 scale folded) + bias + residual + relu -> out ----------
    for t in range(num_tiles):
        r0 = t * TM
        acc = jnp.zeros((TM, Cp), f32)
        for dy in range(3):
            for dx in range(3):
                off = dy * Wp + dx
                win = mid_ref[pl.ds(r0 + off, TM), :]
                acc = acc + jnp.dot(win, w2_ref[dy * 3 + dx],
                                    preferred_element_type=f32)
        identity = x_ref[0, pl.ds(mid_lo + r0, TM), :]
        o_ref[0, pl.ds(r0, TM), :] = jnp.maximum(acc + b2 + identity, 0.0)


def basic_block_pallas(x_nchw, w1, w2, bn1, bn2, eps=1e-5):
    """x_nchw: (N, C, H, W) f32.  w1/w2: (C, C, 3, 3) (PyTorch OIHW).
    bn1/bn2: dicts with gamma, beta, mean, var of shape (C,)."""
    N, C, H, W = x_nchw.shape
    Hp, Wp = H + 2, W + 2
    Cp = max(128, ((C + 127) // 128) * 128)        # lane-dense channel padding
    M = H * Wp                                     # rows computed per image
    Mpad = ((Hp * Wp + 2 + 7) // 8) * 8            # flat rows (+2 for last tap)

    # Spatial tile: TM = R * Wp with R | H.  Cap at 256 flat rows so the f32
    # accumulator (TM x Cp) stays comfortably inside the vreg budget.
    R = 1
    for r in range(1, H + 1):
        if H % r == 0 and Wp * r <= 256:
            R = r
    TM = Wp * R
    num_tiles = M // TM

    # layout: NCHW -> NHWC, zero halo + zero channel padding, flatten rows.
    x = jnp.transpose(x_nchw, (0, 2, 3, 1)).astype(jnp.float32)
    x_p = jnp.pad(x, ((0, 0), (1, 1), (1, 1), (0, Cp - C)))
    x_flat = x_p.reshape(N, Hp * Wp, Cp)
    x_flat = jnp.pad(x_flat, ((0, 0), (0, Mpad - Hp * Wp), (0, 0)))

    def fold(w, bn):
        scale = bn["gamma"] / jnp.sqrt(bn["var"] + eps)              # (C,)
        bias = bn["beta"] - bn["mean"] * scale                       # (C,)
        wk = jnp.transpose(w, (2, 3, 1, 0)).astype(jnp.float32) * scale
        wk = jnp.pad(wk, ((0, 0), (0, 0), (0, Cp - C), (0, Cp - C)))
        wk = wk.reshape(9, Cp, Cp).astype(jnp.bfloat16)
        b = jnp.pad(bias, (0, Cp - C)).reshape(1, Cp).astype(jnp.float32)
        return wk, b

    w1_k, b1 = fold(w1, bn1)
    w2_k, b2 = fold(w2, bn2)

    kernel = functools.partial(_basic_block_kernel, H=H, W=W, Wp=Wp, Cp=Cp,
                               TM=TM, num_tiles=num_tiles, Mpad=Mpad)

    out_flat = pl.pallas_call(
        kernel,
        out_shape=jax.ShapeDtypeStruct((N, M, Cp), jnp.float32),
        grid_spec=pltpu.PrefetchScalarGridSpec(
            num_scalar_prefetch=0,
            grid=(N,),
            in_specs=[
                pl.BlockSpec((1, Mpad, Cp), lambda n: (n, 0, 0)),
                # Constant block index -> weights/biases DMA'd once, stay
                # resident in VMEM across the batch grid.
                pl.BlockSpec((9, Cp, Cp), lambda n: (0, 0, 0)),
                pl.BlockSpec((9, Cp, Cp), lambda n: (0, 0, 0)),
                pl.BlockSpec((1, Cp), lambda n: (0, 0)),
                pl.BlockSpec((1, Cp), lambda n: (0, 0)),
            ],
            out_specs=pl.BlockSpec((1, M, Cp), lambda n: (n, 0, 0)),
            scratch_shapes=[
                pltpu.VMEM((Mpad, Cp), jnp.bfloat16),   # bf16 input copy
                pltpu.VMEM((Mpad, Cp), jnp.bfloat16),   # padded mid activation
            ],
        ),
        compiler_params=pltpu.CompilerParams(
            dimension_semantics=("parallel",),
            vmem_limit_bytes=32 * 1024 * 1024),
    )(x_flat, w1_k, w2_k, b1, b2)

    # Extract valid interior columns / channels and return NCHW.
    out_nhwc = out_flat.reshape(N, H, Wp, Cp)[:, :, :W, :C]
    return jnp.transpose(out_nhwc, (0, 3, 1, 2))


def basic_block_reference(x_nchw, w1, w2, bn1, bn2, eps=1e-5):
    """Pure-JAX f32 reference (NCHW, lax.conv) for validation."""
    def conv3x3(x, w):
        return lax.conv_general_dilated(
            x, w, window_strides=(1, 1), padding=((1, 1), (1, 1)),
            dimension_numbers=("NCHW", "OIHW", "NCHW"))

    def bn(x, p):
        s = (p["gamma"] / jnp.sqrt(p["var"] + eps)).reshape(1, -1, 1, 1)
        b = (p["beta"] - p["mean"] * p["gamma"] / jnp.sqrt(p["var"] + eps)
             ).reshape(1, -1, 1, 1)
        return x * s + b

    out = jax.nn.relu(bn(conv3x3(x_nchw, w1), bn1))
    out = bn(conv3x3(out, w2), bn2)
    return jax.nn.relu(out + x_nchw)


if __name__ == "__main__":
    key = jax.random.PRNGKey(0)
    N, C, H, W = 2, 4, 16, 16  # inplanes = planes = 4, stride = 1

    k = jax.random.split(key, 8)
    x = jax.random.normal(k[0], (N, C, H, W), dtype=jnp.float32)
    w1 = 0.1 * jax.random.normal(k[1], (C, C, 3, 3), dtype=jnp.float32)
    w2 = 0.1 * jax.random.normal(k[2], (C, C, 3, 3), dtype=jnp.float32)
    bn1 = dict(gamma=1.0 + 0.1 * jax.random.normal(k[3], (C,)),
               beta=0.1 * jax.random.normal(k[4], (C,)),
               mean=0.1 * jax.random.normal(k[5], (C,)),
               var=jnp.abs(jax.random.normal(k[6], (C,))) + 0.5)
    bn2 = dict(gamma=1.0 + 0.1 * jax.random.normal(k[7], (C,)),
               beta=jnp.zeros((C,)),
               mean=jnp.zeros((C,)),
               var=jnp.ones((C,)))

    out = jax.block_until_ready(basic_block_pallas(x, w1, w2, bn1, bn2))
    ref = jax.block_until_ready(basic_block_reference(x, w1, w2, bn1, bn2))

    assert out.shape == (N, C, H, W)
    # bf16 MXU operands (f32 accumulation) -> slightly looser tolerance.
    err = float(jnp.abs(out - ref).max())
    assert jnp.allclose(out, ref, atol=3e-2, rtol=3e-2), err
    print("KERNEL_OK")
</pallas_src>

<mosaic_0001>
module attributes {stable_mosaic.version = 11 : i64} {
  func.func @_basic_block_kernel(%arg0: i32, %arg1: memref<1x328x128xf32, #tpu.memory_space<vmem>>, %arg2: memref<9x128x128xbf16, #tpu.memory_space<vmem>>, %arg3: memref<9x128x128xbf16, #tpu.memory_space<vmem>>, %arg4: memref<1x128xf32, #tpu.memory_space<vmem>>, %arg5: memref<1x128xf32, #tpu.memory_space<vmem>>, %arg6: memref<1x288x128xf32, #tpu.memory_space<vmem>>, %arg7: memref<328x128xbf16, #tpu.memory_space<vmem>>, %arg8: memref<328x128xbf16, #tpu.memory_space<vmem>>) attributes {dimension_semantics = [#tpu.dimension_semantics<parallel>], iteration_bounds = array<i64: 2>, scalar_prefetch = 0 : i64, scratch_operands = 2 : i64, tpu.core_type = #tpu.core_type<tc>, window_params = [{transform_indices = @transform_0, window_bounds = array<i64: 1, 328, 128>}, {pipeline_mode = #tpu.pipeline_mode<synchronous>, transform_indices = @transform_1, window_bounds = array<i64: 9, 128, 128>}, {pipeline_mode = #tpu.pipeline_mode<synchronous>, transform_indices = @transform_2, window_bounds = array<i64: 9, 128, 128>}, {pipeline_mode = #tpu.pipeline_mode<synchronous>, transform_indices = @transform_3, window_bounds = array<i64: 1, 128>}, {pipeline_mode = #tpu.pipeline_mode<synchronous>, transform_indices = @transform_4, window_bounds = array<i64: 1, 128>}, {transform_indices = @transform_5, window_bounds = array<i64: 1, 288, 128>}]} {
    %c0 = arith.constant 0 : index
    %c0_0 = arith.constant 0 : index
    %c0_1 = arith.constant 0 : index
    %0 = vector.load %arg1[%c0, %c0_0, %c0_1] : memref<1x328x128xf32, #tpu.memory_space<vmem>>, vector<1x328x128xf32>
    %1 = vector.shape_cast %0 : vector<1x328x128xf32> to vector<328x128xf32>
    %2 = arith.truncf %1 : vector<328x128xf32> to vector<328x128xbf16>
    %c0_2 = arith.constant 0 : index
    %c0_3 = arith.constant 0 : index
    %3 = vector.load %arg7[%c0_2, %c0_3] : memref<328x128xbf16, #tpu.memory_space<vmem>>, vector<328x128xbf16>
    tpu.vector_store %arg7[%c0_2, %c0_3], %2 {strides = array<i32>} : memref<328x128xbf16, #tpu.memory_space<vmem>>, vector<328x128xbf16>,
    %cst = arith.constant 0.000000e+00 : bf16
    %4 = vector.broadcast %cst : bf16 to vector<19x128xbf16>
    %c0_4 = arith.constant 0 : index
    %c0_5 = arith.constant 0 : index
    %5 = vector.load %arg8[%c0_4, %c0_5] : memref<328x128xbf16, #tpu.memory_space<vmem>>, vector<19x128xbf16>
    tpu.vector_store %arg8[%c0_4, %c0_5], %4 {strides = array<i32>} : memref<328x128xbf16, #tpu.memory_space<vmem>>, vector<19x128xbf16>,
    %cst_6 = arith.constant 0.000000e+00 : bf16
    %6 = vector.broadcast %cst_6 : bf16 to vector<21x128xbf16>
    %c307 = arith.constant 307 : index
    %c0_7 = arith.constant 0 : index
    %7 = vector.load %arg8[%c307, %c0_7] : memref<328x128xbf16, #tpu.memory_space<vmem>>, vector<21x128xbf16>
    tpu.vector_store %arg8[%c307, %c0_7], %6 {strides = array<i32>} : memref<328x128xbf16, #tpu.memory_space<vmem>>, vector<21x128xbf16>,
    %8 = tpu.iota {dimensions = array<i32: 0>} : vector<144x128xi32>
    %c18_i32 = arith.constant 18 : i32
    %c0_i32 = arith.constant 0 : i32
    %9 = arith.cmpi eq, %c18_i32, %c0_i32 : i32
    %c1_i32 = arith.constant 1 : i32
    %10 = arith.select %9, %c1_i32, %c18_i32 : i32
    %11 = vector.broadcast %10 : i32 to vector<144x128xi32>
    %12 = arith.remsi %8, %11 : vector<144x128xi32>
    %c0_i32_8 = arith.constant 0 : i32
    %13 = vector.broadcast %c0_i32_8 : i32 to vector<144x128xi32>
    %14 = arith.cmpi ne, %12, %13 : vector<144x128xi32>
    %c0_i32_9 = arith.constant 0 : i32
    %15 = vector.broadcast %c0_i32_9 : i32 to vector<144x128xi32>
    %16 = arith.cmpi slt, %12, %15 : vector<144x128xi32>
    %c0_i32_10 = arith.constant 0 : i32
    %17 = arith.cmpi slt, %10, %c0_i32_10 : i32
    %18 = vector.broadcast %17 : i1 to vector<144x128xi1>
    %19 = vector.broadcast %18 : vector<144x128xi1> to vector<144x128xi1>
    %20 = arith.xori %16, %19 : vector<144x128xi1>
    %21 = arith.andi %20, %14 : vector<144x128xi1>
    %22 = vector.broadcast %10 : i32 to vector<144x128xi32>
    %23 = arith.addi %12, %22 : vector<144x128xi32>
    %24 = arith.select %21, %23, %12 : vector<144x128xi1>, vector<144x128xi32>
    %c16_i32 = arith.constant 16 : i32
    %25 = vector.broadcast %c16_i32 : i32 to vector<144x128xi32>
    %26 = arith.cmpi slt, %24, %25 : vector<144x128xi32>
    %c0_11 = arith.constant 0 : index
    %c0_12 = arith.constant 0 : index
    %27 = vector.load %arg4[%c0_11, %c0_12] : memref<1x128xf32, #tpu.memory_space<vmem>>, vector<1x128xf32>
    %c0_13 = arith.constant 0 : index
    %c0_14 = arith.constant 0 : index
    %28 = vector.load %arg5[%c0_13, %c0_14] : memref<1x128xf32, #tpu.memory_space<vmem>>, vector<1x128xf32>
    %cst_15 = arith.constant 0.000000e+00 : f32
    %29 = vector.broadcast %cst_15 : f32 to vector<144x128xf32>
    %c0_16 = arith.constant 0 : index
    %c0_17 = arith.constant 0 : index
    %30 = vector.load %arg7[%c0_16, %c0_17] : memref<328x128xbf16, #tpu.memory_space<vmem>>, vector<144x128xbf16>
    %c0_18 = arith.constant 0 : index
    %c0_19 = arith.constant 0 : index
    %c0_20 = arith.constant 0 : index
    %31 = vector.load %arg2[%c0_18, %c0_19, %c0_20] : memref<9x128x128xbf16, #tpu.memory_space<vmem>>, vector<1x128x128xbf16>
    %32 = vector.shape_cast %31 : vector<1x128x128xbf16> to vector<128x128xbf16>
    %cst_21 = arith.constant dense<0.000000e+00> : vector<144x128xf32>
    %33 = tpu.matmul %30, %32, %cst_21 {dimension_numbers = #tpu.dot_dimension_numbers<[1], [0], [0], [1], [0, 0, 1, 1], [], []>} : vector<144x128xbf16>, vector<128x128xbf16>, vector<144x128xf32> -> vector<144x128xf32>
    %34 = arith.addf %29, %33 : vector<144x128xf32>
    %c1 = arith.constant 1 : index
    %c0_22 = arith.constant 0 : index
    %35 = vector.load %arg7[%c1, %c0_22] : memref<328x128xbf16, #tpu.memory_space<vmem>>, vector<144x128xbf16>
    %c1_23 = arith.constant 1 : index
    %c0_24 = arith.constant 0 : index
    %c0_25 = arith.constant 0 : index
    %36 = vector.load %arg2[%c1_23, %c0_24, %c0_25] : memref<9x128x128xbf16, #tpu.memory_space<vmem>>, vector<1x128x128xbf16>
    %37 = vector.shape_cast %36 : vector<1x128x128xbf16> to vector<128x128xbf16>
    %cst_26 = arith.constant dense<0.000000e+00> : vector<144x128xf32>
    %38 = tpu.matmul %35, %37, %cst_26 {dimension_numbers = #tpu.dot_dimension_numbers<[1], [0], [0], [1], [0, 0, 1, 1], [], []>} : vector<144x128xbf16>, vector<128x128xbf16>, vector<144x128xf32> -> vector<144x128xf32>
    %39 = arith.addf %34, %38 : vector<144x128xf32>
    %c2 = arith.constant 2 : index
    %c0_27 = arith.constant 0 : index
    %40 = vector.load %arg7[%c2, %c0_27] : memref<328x128xbf16, #tpu.memory_space<vmem>>, vector<144x128xbf16>
    %c2_28 = arith.constant 2 : index
    %c0_29 = arith.constant 0 : index
    %c0_30 = arith.constant 0 : index
    %41 = vector.load %arg2[%c2_28, %c0_29, %c0_30] : memref<9x128x128xbf16, #tpu.memory_space<vmem>>, vector<1x128x128xbf16>
    %42 = vector.shape_cast %41 : vector<1x128x128xbf16> to vector<128x128xbf16>
    %cst_31 = arith.constant dense<0.000000e+00> : vector<144x128xf32>
    %43 = tpu.matmul %40, %42, %cst_31 {dimension_numbers = #tpu.dot_dimension_numbers<[1], [0], [0], [1], [0, 0, 1, 1], [], []>} : vector<144x128xbf16>, vector<128x128xbf16>, vector<144x128xf32> -> vector<144x128xf32>
    %44 = arith.addf %39, %43 : vector<144x128xf32>
    %c18 = arith.constant 18 : index
    %c0_32 = arith.constant 0 : index
    %45 = vector.load %arg7[%c18, %c0_32] : memref<328x128xbf16, #tpu.memory_space<vmem>>, vector<144x128xbf16>
    %c3 = arith.constant 3 : index
    %c0_33 = arith.constant 0 : index
    %c0_34 = arith.constant 0 : index
    %46 = vector.load %arg2[%c3, %c0_33, %c0_34] : memref<9x128x128xbf16, #tpu.memory_space<vmem>>, vector<1x128x128xbf16>
    %47 = vector.shape_cast %46 : vector<1x128x128xbf16> to vector<128x128xbf16>
    %cst_35 = arith.constant dense<0.000000e+00> : vector<144x128xf32>
    %48 = tpu.matmul %45, %47, %cst_35 {dimension_numbers = #tpu.dot_dimension_numbers<[1], [0], [0], [1], [0, 0, 1, 1], [], []>} : vector<144x128xbf16>, vector<128x128xbf16>, vector<144x128xf32> -> vector<144x128xf32>
    %49 = arith.addf %44, %48 : vector<144x128xf32>
    %c19 = arith.constant 19 : index
    %c0_36 = arith.constant 0 : index
    %50 = vector.load %arg7[%c19, %c0_36] : memref<328x128xbf16, #tpu.memory_space<vmem>>, vector<144x128xbf16>
    %c4 = arith.constant 4 : index
    %c0_37 = arith.constant 0 : index
    %c0_38 = arith.constant 0 : index
    %51 = vector.load %arg2[%c4, %c0_37, %c0_38] : memref<9x128x128xbf16, #tpu.memory_space<vmem>>, vector<1x128x128xbf16>
    %52 = vector.shape_cast %51 : vector<1x128x128xbf16> to vector<128x128xbf16>
    %cst_39 = arith.constant dense<0.000000e+00> : vector<144x128xf32>
    %53 = tpu.matmul %50, %52, %cst_39 {dimension_numbers = #tpu.dot_dimension_numbers<[1], [0], [0], [1], [0, 0, 1, 1], [], []>} : vector<144x128xbf16>, vector<128x128xbf16>, vector<144x128xf32> -> vector<144x128xf32>
    %54 = arith.addf %49, %53 : vector<144x128xf32>
    %c20 = arith.constant 20 : index
    %c0_40 = arith.constant 0 : index
    %55 = vector.load %arg7[%c20, %c0_40] : memref<328x128xbf16, #tpu.memory_space<vmem>>, vector<144x128xbf16>
    %c5 = arith.constant 5 : index
    %c0_41 = arith.constant 0 : index
    %c0_42 = arith.constant 0 : index
    %56 = vector.load %arg2[%c5, %c0_41, %c0_42] : memref<9x128x128xbf16, #tpu.memory_space<vmem>>, vector<1x128x128xbf16>
    %57 = vector.shape_cast %56 : vector<1x128x128xbf16> to vector<128x128xbf16>
    %cst_43 = arith.constant dense<0.000000e+00> : vector<144x128xf32>
    %58 = tpu.matmul %55, %57, %cst_43 {dimension_numbers = #tpu.dot_dimension_numbers<[1], [0], [0], [1], [0, 0, 1, 1], [], []>} : vector<144x128xbf16>, vector<128x128xbf16>, vector<144x128xf32> -> vector<144x128xf32>
    %59 = arith.addf %54, %58 : vector<144x128xf32>
    %c36 = arith.constant 36 : index
    %c0_44 = arith.constant 0 : index
    %60 = vector.load %arg7[%c36, %c0_44] : memref<328x128xbf16, #tpu.memory_space<vmem>>, vector<144x128xbf16>
    %c6 = arith.constant 6 : index
    %c0_45 = arith.constant 0 : index
    %c0_46 = arith.constant 0 : index
    %61 = vector.load %arg2[%c6, %c0_45, %c0_46] : memref<9x128x128xbf16, #tpu.memory_space<vmem>>, vector<1x128x128xbf16>
    %62 = vector.shape_cast %61 : vector<1x128x128xbf16> to vector<128x128xbf16>
    %cst_47 = arith.constant dense<0.000000e+00> : vector<144x128xf32>
    %63 = tpu.matmul %60, %62, %cst_47 {dimension_numbers = #tpu.dot_dimension_numbers<[1], [0], [0], [1], [0, 0, 1, 1], [], []>} : vector<144x128xbf16>, vector<128x128xbf16>, vector<144x128xf32> -> vector<144x128xf32>
    %64 = arith.addf %59, %63 : vector<144x128xf32>
    %c37 = arith.constant 37 : index
    %c0_48 = arith.constant 0 : index
    %65 = vector.load %arg7[%c37, %c0_48] : memref<328x128xbf16, #tpu.memory_space<vmem>>, vector<144x128xbf16>
    %c7 = arith.constant 7 : index
    %c0_49 = arith.constant 0 : index
    %c0_50 = arith.constant 0 : index
    %66 = vector.load %arg2[%c7, %c0_49, %c0_50] : memref<9x128x128xbf16, #tpu.memory_space<vmem>>, vector<1x128x128xbf16>
    %67 = vector.shape_cast %66 : vector<1x128x128xbf16> to vector<128x128xbf16>
    %cst_51 = arith.constant dense<0.000000e+00> : vector<144x128xf32>
    %68 = tpu.matmul %65, %67, %cst_51 {dimension_numbers = #tpu.dot_dimension_numbers<[1], [0], [0], [1], [0, 0, 1, 1], [], []>} : vector<144x128xbf16>, vector<128x128xbf16>, vector<144x128xf32> -> vector<144x128xf32>
    %69 = arith.addf %64, %68 : vector<144x128xf32>
    %c38 = arith.constant 38 : index
    %c0_52 = arith.constant 0 : index
    %70 = vector.load %arg7[%c38, %c0_52] : memref<328x128xbf16, #tpu.memory_space<vmem>>, vector<144x128xbf16>
    %c8 = arith.constant 8 : index
    %c0_53 = arith.constant 0 : index
    %c0_54 = arith.constant 0 : index
    %71 = vector.load %arg2[%c8, %c0_53, %c0_54] : memref<9x128x128xbf16, #tpu.memory_space<vmem>>, vector<1x128x128xbf16>
    %72 = vector.shape_cast %71 : vector<1x128x128xbf16> to vector<128x128xbf16>
    %cst_55 = arith.constant dense<0.000000e+00> : vector<144x128xf32>
    %73 = tpu.matmul %70, %72, %cst_55 {dimension_numbers = #tpu.dot_dimension_numbers<[1], [0], [0], [1], [0, 0, 1, 1], [], []>} : vector<144x128xbf16>, vector<128x128xbf16>, vector<144x128xf32> -> vector<144x128xf32>
    %74 = arith.addf %69, %73 : vector<144x128xf32>
    %75 = vector.broadcast %27 : vector<1x128xf32> to vector<144x128xf32>
    %76 = arith.addf %74, %75 : vector<144x128xf32>
    %cst_56 = arith.constant 0.000000e+00 : f32
    %77 = vector.broadcast %cst_56 : f32 to vector<144x128xf32>
    %78 = arith.maximumf %76, %77 : vector<144x128xf32>
    %cst_57 = arith.constant 0.000000e+00 : f32
    %79 = vector.broadcast %cst_57 : f32 to vector<144x128xf32>
    %80 = arith.select %26, %78, %79 : vector<144x128xi1>, vector<144x128xf32>
    %81 = arith.truncf %80 : vector<144x128xf32> to vector<144x128xbf16>
    %c19_58 = arith.constant 19 : index
    %c0_59 = arith.constant 0 : index
    %82 = vector.load %arg8[%c19_58, %c0_59] : memref<328x128xbf16, #tpu.memory_space<vmem>>, vector<144x128xbf16>
    tpu.vector_store %arg8[%c19_58, %c0_59], %81 {strides = array<i32>} : memref<328x128xbf16, #tpu.memory_space<vmem>>, vector<144x128xbf16>,
    %cst_60 = arith.constant 0.000000e+00 : f32
    %83 = vector.broadcast %cst_60 : f32 to vector<144x128xf32>
    %c144 = arith.constant 144 : index
    %c0_61 = arith.constant 0 : index
    %84 = vector.load %arg7[%c144, %c0_61] : memref<328x128xbf16, #tpu.memory_space<vmem>>, vector<144x128xbf16>
    %c0_62 = arith.constant 0 : index
    %c0_63 = arith.constant 0 : index
    %c0_64 = arith.constant 0 : index
    %85 = vector.load %arg2[%c0_62, %c0_63, %c0_64] : memref<9x128x128xbf16, #tpu.memory_space<vmem>>, vector<1x128x128xbf16>
    %86 = vector.shape_cast %85 : vector<1x128x128xbf16> to vector<128x128xbf16>
    %cst_65 = arith.constant dense<0.000000e+00> : vector<144x128xf32>
    %87 = tpu.matmul %84, %86, %cst_65 {dimension_numbers = #tpu.dot_dimension_numbers<[1], [0], [0], [1], [0, 0, 1, 1], [], []>} : vector<144x128xbf16>, vector<128x128xbf16>, vector<144x128xf32> -> vector<144x128xf32>
    %88 = arith.addf %83, %87 : vector<144x128xf32>
    %c145 = arith.constant 145 : index
    %c0_66 = arith.constant 0 : index
    %89 = vector.load %arg7[%c145, %c0_66] : memref<328x128xbf16, #tpu.memory_space<vmem>>, vector<144x128xbf16>
    %c1_67 = arith.constant 1 : index
    %c0_68 = arith.constant 0 : index
    %c0_69 = arith.constant 0 : index
    %90 = vector.load %arg2[%c1_67, %c0_68, %c0_69] : memref<9x128x128xbf16, #tpu.memory_space<vmem>>, vector<1x128x128xbf16>
    %91 = vector.shape_cast %90 : vector<1x128x128xbf16> to vector<128x128xbf16>
    %cst_70 = arith.constant dense<0.000000e+00> : vector<144x128xf32>
    %92 = tpu.matmul %89, %91, %cst_70 {dimension_numbers = #tpu.dot_dimension_numbers<[1], [0], [0], [1], [0, 0, 1, 1], [], []>} : vector<144x128xbf16>, vector<128x128xbf16>, vector<144x128xf32> -> vector<144x128xf32>
    %93 = arith.addf %88, %92 : vector<144x128xf32>
    %c146 = arith.constant 146 : index
    %c0_71 = arith.constant 0 : index
    %94 = vector.load %arg7[%c146, %c0_71] : memref<328x128xbf16, #tpu.memory_space<vmem>>, vector<144x128xbf16>
    %c2_72 = arith.constant 2 : index
    %c0_73 = arith.constant 0 : index
    %c0_74 = arith.constant 0 : index
    %95 = vector.load %arg2[%c2_72, %c0_73, %c0_74] : memref<9x128x128xbf16, #tpu.memory_space<vmem>>, vector<1x128x128xbf16>
    %96 = vector.shape_cast %95 : vector<1x128x128xbf16> to vector<128x128xbf16>
    %cst_75 = arith.constant dense<0.000000e+00> : vector<144x128xf32>
    %97 = tpu.matmul %94, %96, %cst_75 {dimension_numbers = #tpu.dot_dimension_numbers<[1], [0], [0], [1], [0, 0, 1, 1], [], []>} : vector<144x128xbf16>, vector<128x128xbf16>, vector<144x128xf32> -> vector<144x128xf32>
    %98 = arith.addf %93, %97 : vector<144x128xf32>
    %c162 = arith.constant 162 : index
    %c0_76 = arith.constant 0 : index
    %99 = vector.load %arg7[%c162, %c0_76] : memref<328x128xbf16, #tpu.memory_space<vmem>>, vector<144x128xbf16>
    %c3_77 = arith.constant 3 : index
    %c0_78 = arith.constant 0 : index
    %c0_79 = arith.constant 0 : index
    %100 = vector.load %arg2[%c3_77, %c0_78, %c0_79] : memref<9x128x128xbf16, #tpu.memory_space<vmem>>, vector<1x128x128xbf16>
    %101 = vector.shape_cast %100 : vector<1x128x128xbf16> to vector<128x128xbf16>
    %cst_80 = arith.constant dense<0.000000e+00> : vector<144x128xf32>
    %102 = tpu.matmul %99, %101, %cst_80 {dimension_numbers = #tpu.dot_dimension_numbers<[1], [0], [0], [1], [0, 0, 1, 1], [], []>} : vector<144x128xbf16>, vector<128x128xbf16>, vector<144x128xf32> -> vector<144x128xf32>
    %103 = arith.addf %98, %102 : vector<144x128xf32>
    %c163 = arith.constant 163 : index
    %c0_81 = arith.constant 0 : index
    %104 = vector.load %arg7[%c163, %c0_81] : memref<328x128xbf16, #tpu.memory_space<vmem>>, vector<144x128xbf16>
    %c4_82 = arith.constant 4 : index
    %c0_83 = arith.constant 0 : index
    %c0_84 = arith.constant 0 : index
    %105 = vector.load %arg2[%c4_82, %c0_83, %c0_84] : memref<9x128x128xbf16, #tpu.memory_space<vmem>>, vector<1x128x128xbf16>
    %106 = vector.shape_cast %105 : vector<1x128x128xbf16> to vector<128x128xbf16>
    %cst_85 = arith.constant dense<0.000000e+00> : vector<144x128xf32>
    %107 = tpu.matmul %104, %106, %cst_85 {dimension_numbers = #tpu.dot_dimension_numbers<[1], [0], [0], [1], [0, 0, 1, 1], [], []>} : vector<144x128xbf16>, vector<128x128xbf16>, vector<144x128xf32> -> vector<144x128xf32>
    %108 = arith.addf %103, %107 : vector<144x128xf32>
    %c164 = arith.constant 164 : index
    %c0_86 = arith.constant 0 : index
    %109 = vector.load %arg7[%c164, %c0_86] : memref<328x128xbf16, #tpu.memory_space<vmem>>, vector<144x128xbf16>
    %c5_87 = arith.constant 5 : index
    %c0_88 = arith.constant 0 : index
    %c0_89 = arith.constant 0 : index
    %110 = vector.load %arg2[%c5_87, %c0_88, %c0_89] : memref<9x128x128xbf16, #tpu.memory_space<vmem>>, vector<1x128x128xbf16>
    %111 = vector.shape_cast %110 : vector<1x128x128xbf16> to vector<128x128xbf16>
    %cst_90 = arith.constant dense<0.000000e+00> : vector<144x128xf32>
    %112 = tpu.matmul %109, %111, %cst_90 {dimension_numbers = #tpu.dot_dimension_numbers<[1], [0], [0], [1], [0, 0, 1, 1], [], []>} : vector<144x128xbf16>, vector<128x128xbf16>, vector<144x128xf32> -> vector<144x128xf32>
    %113 = arith.addf %108, %112 : vector<144x128xf32>
    %c180 = arith.constant 180 : index
    %c0_91 = arith.constant 0 : index
    %114 = vector.load %arg7[%c180, %c0_91] : memref<328x128xbf16, #tpu.memory_space<vmem>>, vector<144x128xbf16>
    %c6_92 = arith.constant 6 : index
    %c0_93 = arith.constant 0 : index
    %c0_94 = arith.constant 0 : index
    %115 = vector.load %arg2[%c6_92, %c0_93, %c0_94] : memref<9x128x128xbf16, #tpu.memory_space<vmem>>, vector<1x128x128xbf16>
    %116 = vector.shape_cast %115 : vector<1x128x128xbf16> to vector<128x128xbf16>
    %cst_95 = arith.constant dense<0.000000e+00> : vector<144x128xf32>
    %117 = tpu.matmul %114, %116, %cst_95 {dimension_numbers = #tpu.dot_dimension_numbers<[1], [0], [0], [1], [0, 0, 1, 1], [], []>} : vector<144x128xbf16>, vector<128x128xbf16>, vector<144x128xf32> -> vector<144x128xf32>
    %118 = arith.addf %113, %117 : vector<144x128xf32>
    %c181 = arith.constant 181 : index
    %c0_96 = arith.constant 0 : index
    %119 = vector.load %arg7[%c181, %c0_96] : memref<328x128xbf16, #tpu.memory_space<vmem>>, vector<144x128xbf16>
    %c7_97 = arith.constant 7 : index
    %c0_98 = arith.constant 0 : index
    %c0_99 = arith.constant 0 : index
    %120 = vector.load %arg2[%c7_97, %c0_98, %c0_99] : memref<9x128x128xbf16, #tpu.memory_space<vmem>>, vector<1x128x128xbf16>
    %121 = vector.shape_cast %120 : vector<1x128x128xbf16> to vector<128x128xbf16>
    %cst_100 = arith.constant dense<0.000000e+00> : vector<144x128xf32>
    %122 = tpu.matmul %119, %121, %cst_100 {dimension_numbers = #tpu.dot_dimension_numbers<[1], [0], [0], [1], [0, 0, 1, 1], [], []>} : vector<144x128xbf16>, vector<128x128xbf16>, vector<144x128xf32> -> vector<144x128xf32>
    %123 = arith.addf %118, %122 : vector<144x128xf32>
    %c182 = arith.constant 182 : index
    %c0_101 = arith.constant 0 : index
    %124 = vector.load %arg7[%c182, %c0_101] : memref<328x128xbf16, #tpu.memory_space<vmem>>, vector<144x128xbf16>
    %c8_102 = arith.constant 8 : index
    %c0_103 = arith.constant 0 : index
    %c0_104 = arith.constant 0 : index
    %125 = vector.load %arg2[%c8_102, %c0_103, %c0_104] : memref<9x128x128xbf16, #tpu.memory_space<vmem>>, vector<1x128x128xbf16>
    %126 = vector.shape_cast %125 : vector<1x128x128xbf16> to vector<128x128xbf16>
    %cst_105 = arith.constant dense<0.000000e+00> : vector<144x128xf32>
    %127 = tpu.matmul %124, %126, %cst_105 {dimension_numbers = #tpu.dot_dimension_numbers<[1], [0], [0], [1], [0, 0, 1, 1], [], []>} : vector<144x128xbf16>, vector<128x128xbf16>, vector<144x128xf32> -> vector<144x128xf32>
    %128 = arith.addf %123, %127 : vector<144x128xf32>
    %129 = vector.broadcast %27 : vector<1x128xf32> to vector<144x128xf32>
    %130 = arith.addf %128, %129 : vector<144x128xf32>
    %cst_106 = arith.constant 0.000000e+00 : f32
    %131 = vector.broadcast %cst_106 : f32 to vector<144x128xf32>
    %132 = arith.maximumf %130, %131 : vector<144x128xf32>
    %cst_107 = arith.constant 0.000000e+00 : f32
    %133 = vector.broadcast %cst_107 : f32 to vector<144x128xf32>
    %134 = arith.select %26, %132, %133 : vector<144x128xi1>, vector<144x128xf32>
    %135 = arith.truncf %134 : vector<144x128xf32> to vector<144x128xbf16>
    %c163_108 = arith.constant 163 : index
    %c0_109 = arith.constant 0 : index
    %136 = vector.load %arg8[%c163_108, %c0_109] : memref<328x128xbf16, #tpu.memory_space<vmem>>, vector<144x128xbf16>
    tpu.vector_store %arg8[%c163_108, %c0_109], %135 {strides = array<i32>} : memref<328x128xbf16, #tpu.memory_space<vmem>>, vector<144x128xbf16>,
    %cst_110 = arith.constant 0.000000e+00 : f32
    %137 = vector.broadcast %cst_110 : f32 to vector<144x128xf32>
    %c0_111 = arith.constant 0 : index
    %c0_112 = arith.constant 0 : index
    %138 = vector.load %arg8[%c0_111, %c0_112] : memref<328x128xbf16, #tpu.memory_space<vmem>>, vector<144x128xbf16>
    %c0_113 = arith.constant 0 : index
    %c0_114 = arith.constant 0 : index
    %c0_115 = arith.constant 0 : index
    %139 = vector.load %arg3[%c0_113, %c0_114, %c0_115] : memref<9x128x128xbf16, #tpu.memory_space<vmem>>, vector<1x128x128xbf16>
    %140 = vector.shape_cast %139 : vector<1x128x128xbf16> to vector<128x128xbf16>
    %cst_116 = arith.constant dense<0.000000e+00> : vector<144x128xf32>
    %141 = tpu.matmul %138, %140, %cst_116 {dimension_numbers = #tpu.dot_dimension_numbers<[1], [0], [0], [1], [0, 0, 1, 1], [], []>} : vector<144x128xbf16>, vector<128x128xbf16>, vector<144x128xf32> -> vector<144x128xf32>
    %142 = arith.addf %137, %141 : vector<144x128xf32>
    %c1_117 = arith.constant 1 : index
    %c0_118 = arith.constant 0 : index
    %143 = vector.load %arg8[%c1_117, %c0_118] : memref<328x128xbf16, #tpu.memory_space<vmem>>, vector<144x128xbf16>
    %c1_119 = arith.constant 1 : index
    %c0_120 = arith.constant 0 : index
    %c0_121 = arith.constant 0 : index
    %144 = vector.load %arg3[%c1_119, %c0_120, %c0_121] : memref<9x128x128xbf16, #tpu.memory_space<vmem>>, vector<1x128x128xbf16>
    %145 = vector.shape_cast %144 : vector<1x128x128xbf16> to vector<128x128xbf16>
    %cst_122 = arith.constant dense<0.000000e+00> : vector<144x128xf32>
    %146 = tpu.matmul %143, %145, %cst_122 {dimension_numbers = #tpu.dot_dimension_numbers<[1], [0], [0], [1], [0, 0, 1, 1], [], []>} : vector<144x128xbf16>, vector<128x128xbf16>, vector<144x128xf32> -> vector<144x128xf32>
    %147 = arith.addf %142, %146 : vector<144x128xf32>
    %c2_123 = arith.constant 2 : index
    %c0_124 = arith.constant 0 : index
    %148 = vector.load %arg8[%c2_123, %c0_124] : memref<328x128xbf16, #tpu.memory_space<vmem>>, vector<144x128xbf16>
    %c2_125 = arith.constant 2 : index
    %c0_126 = arith.constant 0 : index
    %c0_127 = arith.constant 0 : index
    %149 = vector.load %arg3[%c2_125, %c0_126, %c0_127] : memref<9x128x128xbf16, #tpu.memory_space<vmem>>, vector<1x128x128xbf16>
    %150 = vector.shape_cast %149 : vector<1x128x128xbf16> to vector<128x128xbf16>
    %cst_128 = arith.constant dense<0.000000e+00> : vector<144x128xf32>
    %151 = tpu.matmul %148, %150, %cst_128 {dimension_numbers = #tpu.dot_dimension_numbers<[1], [0], [0], [1], [0, 0, 1, 1], [], []>} : vector<144x128xbf16>, vector<128x128xbf16>, vector<144x128xf32> -> vector<144x128xf32>
    %152 = arith.addf %147, %151 : vector<144x128xf32>
    %c18_129 = arith.constant 18 : index
    %c0_130 = arith.constant 0 : index
    %153 = vector.load %arg8[%c18_129, %c0_130] : memref<328x128xbf16, #tpu.memory_space<vmem>>, vector<144x128xbf16>
    %c3_131 = arith.constant 3 : index
    %c0_132 = arith.constant 0 : index
    %c0_133 = arith.constant 0 : index
    %154 = vector.load %arg3[%c3_131, %c0_132, %c0_133] : memref<9x128x128xbf16, #tpu.memory_space<vmem>>, vector<1x128x128xbf16>
    %155 = vector.shape_cast %154 : vector<1x128x128xbf16> to vector<128x128xbf16>
    %cst_134 = arith.constant dense<0.000000e+00> : vector<144x128xf32>
    %156 = tpu.matmul %153, %155, %cst_134 {dimension_numbers = #tpu.dot_dimension_numbers<[1], [0], [0], [1], [0, 0, 1, 1], [], []>} : vector<144x128xbf16>, vector<128x128xbf16>, vector<144x128xf32> -> vector<144x128xf32>
    %157 = arith.addf %152, %156 : vector<144x128xf32>
    %c19_135 = arith.constant 19 : index
    %c0_136 = arith.constant 0 : index
    %158 = vector.load %arg8[%c19_135, %c0_136] : memref<328x128xbf16, #tpu.memory_space<vmem>>, vector<144x128xbf16>
    %c4_137 = arith.constant 4 : index
    %c0_138 = arith.constant 0 : index
    %c0_139 = arith.constant 0 : index
    %159 = vector.load %arg3[%c4_137, %c0_138, %c0_139] : memref<9x128x128xbf16, #tpu.memory_space<vmem>>, vector<1x128x128xbf16>
    %160 = vector.shape_cast %159 : vector<1x128x128xbf16> to vector<128x128xbf16>
    %cst_140 = arith.constant dense<0.000000e+00> : vector<144x128xf32>
    %161 = tpu.matmul %158, %160, %cst_140 {dimension_numbers = #tpu.dot_dimension_numbers<[1], [0], [0], [1], [0, 0, 1, 1], [], []>} : vector<144x128xbf16>, vector<128x128xbf16>, vector<144x128xf32> -> vector<144x128xf32>
    %162 = arith.addf %157, %161 : vector<144x128xf32>
    %c20_141 = arith.constant 20 : index
    %c0_142 = arith.constant 0 : index
    %163 = vector.load %arg8[%c20_141, %c0_142] : memref<328x128xbf16, #tpu.memory_space<vmem>>, vector<144x128xbf16>
    %c5_143 = arith.constant 5 : index
    %c0_144 = arith.constant 0 : index
    %c0_145 = arith.constant 0 : index
    %164 = vector.load %arg3[%c5_143, %c0_144, %c0_145] : memref<9x128x128xbf16, #tpu.memory_space<vmem>>, vector<1x128x128xbf16>
    %165 = vector.shape_cast %164 : vector<1x128x128xbf16> to vector<128x128xbf16>
    %cst_146 = arith.constant dense<0.000000e+00> : vector<144x128xf32>
    %166 = tpu.matmul %163, %165, %cst_146 {dimension_numbers = #tpu.dot_dimension_numbers<[1], [0], [0], [1], [0, 0, 1, 1], [], []>} : vector<144x128xbf16>, vector<128x128xbf16>, vector<144x128xf32> -> vector<144x128xf32>
    %167 = arith.addf %162, %166 : vector<144x128xf32>
    %c36_147 = arith.constant 36 : index
    %c0_148 = arith.constant 0 : index
    %168 = vector.load %arg8[%c36_147, %c0_148] : memref<328x128xbf16, #tpu.memory_space<vmem>>, vector<144x128xbf16>
    %c6_149 = arith.constant 6 : index
    %c0_150 = arith.constant 0 : index
    %c0_151 = arith.constant 0 : index
    %169 = vector.load %arg3[%c6_149, %c0_150, %c0_151] : memref<9x128x128xbf16, #tpu.memory_space<vmem>>, vector<1x128x128xbf16>
    %170 = vector.shape_cast %169 : vector<1x128x128xbf16> to vector<128x128xbf16>
    %cst_152 = arith.constant dense<0.000000e+00> : vector<144x128xf32>
    %171 = tpu.matmul %168, %170, %cst_152 {dimension_numbers = #tpu.dot_dimension_numbers<[1], [0], [0], [1], [0, 0, 1, 1], [], []>} : vector<144x128xbf16>, vector<128x128xbf16>, vector<144x128xf32> -> vector<144x128xf32>
    %172 = arith.addf %167, %171 : vector<144x128xf32>
    %c37_153 = arith.constant 37 : index
    %c0_154 = arith.constant 0 : index
    %173 = vector.load %arg8[%c37_153, %c0_154] : memref<328x128xbf16, #tpu.memory_space<vmem>>, vector<144x128xbf16>
    %c7_155 = arith.constant 7 : index
    %c0_156 = arith.constant 0 : index
    %c0_157 = arith.constant 0 : index
    %174 = vector.load %arg3[%c7_155, %c0_156, %c0_157] : memref<9x128x128xbf16, #tpu.memory_space<vmem>>, vector<1x128x128xbf16>
    %175 = vector.shape_cast %174 : vector<1x128x128xbf16> to vector<128x128xbf16>
    %cst_158 = arith.constant dense<0.000000e+00> : vector<144x128xf32>
    %176 = tpu.matmul %173, %175, %cst_158 {dimension_numbers = #tpu.dot_dimension_numbers<[1], [0], [0], [1], [0, 0, 1, 1], [], []>} : vector<144x128xbf16>, vector<128x128xbf16>, vector<144x128xf32> -> vector<144x128xf32>
    %177 = arith.addf %172, %176 : vector<144x128xf32>
    %c38_159 = arith.constant 38 : index
    %c0_160 = arith.constant 0 : index
    %178 = vector.load %arg8[%c38_159, %c0_160] : memref<328x128xbf16, #tpu.memory_space<vmem>>, vector<144x128xbf16>
    %c8_161 = arith.constant 8 : index
    %c0_162 = arith.constant 0 : index
    %c0_163 = arith.constant 0 : index
    %179 = vector.load %arg3[%c8_161, %c0_162, %c0_163] : memref<9x128x128xbf16, #tpu.memory_space<vmem>>, vector<1x128x128xbf16>
    %180 = vector.shape_cast %179 : vector<1x128x128xbf16> to vector<128x128xbf16>
    %cst_164 = arith.constant dense<0.000000e+00> : vector<144x128xf32>
    %181 = tpu.matmul %178, %180, %cst_164 {dimension_numbers = #tpu.dot_dimension_numbers<[1], [0], [0], [1], [0, 0, 1, 1], [], []>} : vector<144x128xbf16>, vector<128x128xbf16>, vector<144x128xf32> -> vector<144x128xf32>
    %182 = arith.addf %177, %181 : vector<144x128xf32>
    %c0_165 = arith.constant 0 : index
    %c19_166 = arith.constant 19 : index
    %c0_167 = arith.constant 0 : index
    %183 = vector.load %arg1[%c0_165, %c19_166, %c0_167] : memref<1x328x128xf32, #tpu.memory_space<vmem>>, vector<1x144x128xf32>
    %184 = vector.shape_cast %183 : vector<1x144x128xf32> to vector<144x128xf32>
    %185 = vector.broadcast %28 : vector<1x128xf32> to vector<144x128xf32>
    %186 = arith.addf %182, %185 : vector<144x128xf32>
    %187 = arith.addf %186, %184 : vector<144x128xf32>
    %cst_168 = arith.constant 0.000000e+00 : f32
    %188 = vector.broadcast %cst_168 : f32 to vector<144x128xf32>
    %189 = arith.maximumf %187, %188 : vector<144x128xf32>
    %c0_169 = arith.constant 0 : index
    %c0_170 = arith.constant 0 : index
    %c0_171 = arith.constant 0 : index
    %190 = vector.load %arg6[%c0_169, %c0_170, %c0_171] : memref<1x288x128xf32, #tpu.memory_space<vmem>>, vector<1x144x128xf32>
    %191 = vector.shape_cast %190 : vector<1x144x128xf32> to vector<144x128xf32>
    %192 = vector.shape_cast %189 : vector<144x128xf32> to vector<1x144x128xf32>
    tpu.vector_store %arg6[%c0_169, %c0_170, %c0_171], %192 {strides = array<i32>} : memref<1x288x128xf32, #tpu.memory_space<vmem>>, vector<1x144x128xf32>,
    %cst_172 = arith.constant 0.000000e+00 : f32
    %193 = vector.broadcast %cst_172 : f32 to vector<144x128xf32>
    %c144_173 = arith.constant 144 : index
    %c0_174 = arith.constant 0 : index
    %194 = vector.load %arg8[%c144_173, %c0_174] : memref<328x128xbf16, #tpu.memory_space<vmem>>, vector<144x128xbf16>
    %c0_175 = arith.constant 0 : index
    %c0_176 = arith.constant 0 : index
    %c0_177 = arith.constant 0 : index
    %195 = vector.load %arg3[%c0_175, %c0_176, %c0_177] : memref<9x128x128xbf16, #tpu.memory_space<vmem>>, vector<1x128x128xbf16>
    %196 = vector.shape_cast %195 : vector<1x128x128xbf16> to vector<128x128xbf16>
    %cst_178 = arith.constant dense<0.000000e+00> : vector<144x128xf32>
    %197 = tpu.matmul %194, %196, %cst_178 {dimension_numbers = #tpu.dot_dimension_numbers<[1], [0], [0], [1], [0, 0, 1, 1], [], []>} : vector<144x128xbf16>, vector<128x128xbf16>, vector<144x128xf32> -> vector<144x128xf32>
    %198 = arith.addf %193, %197 : vector<144x128xf32>
    %c145_179 = arith.constant 145 : index
    %c0_180 = arith.constant 0 : index
    %199 = vector.load %arg8[%c145_179, %c0_180] : memref<328x128xbf16, #tpu.memory_space<vmem>>, vector<144x128xbf16>
    %c1_181 = arith.constant 1 : index
    %c0_182 = arith.constant 0 : index
    %c0_183 = arith.constant 0 : index
    %200 = vector.load %arg3[%c1_181, %c0_182, %c0_183] : memref<9x128x128xbf16, #tpu.memory_space<vmem>>, vector<1x128x128xbf16>
    %201 = vector.shape_cast %200 : vector<1x128x128xbf16> to vector<128x128xbf16>
    %cst_184 = arith.constant dense<0.000000e+00> : vector<144x128xf32>
    %202 = tpu.matmul %199, %201, %cst_184 {dimension_numbers = #tpu.dot_dimension_numbers<[1], [0], [0], [1], [0, 0, 1, 1], [], []>} : vector<144x128xbf16>, vector<128x128xbf16>, vector<144x128xf32> -> vector<144x128xf32>
    %203 = arith.addf %198, %202 : vector<144x128xf32>
    %c146_185 = arith.constant 146 : index
    %c0_186 = arith.constant 0 : index
    %204 = vector.load %arg8[%c146_185, %c0_186] : memref<328x128xbf16, #tpu.memory_space<vmem>>, vector<144x128xbf16>
    %c2_187 = arith.constant 2 : index
    %c0_188 = arith.constant 0 : index
    %c0_189 = arith.constant 0 : index
    %205 = vector.load %arg3[%c2_187, %c0_188, %c0_189] : memref<9x128x128xbf16, #tpu.memory_space<vmem>>, vector<1x128x128xbf16>
    %206 = vector.shape_cast %205 : vector<1x128x128xbf16> to vector<128x128xbf16>
    %cst_190 = arith.constant dense<0.000000e+00> : vector<144x128xf32>
    %207 = tpu.matmul %204, %206, %cst_190 {dimension_numbers = #tpu.dot_dimension_numbers<[1], [0], [0], [1], [0, 0, 1, 1], [], []>} : vector<144x128xbf16>, vector<128x128xbf16>, vector<144x128xf32> -> vector<144x128xf32>
    %208 = arith.addf %203, %207 : vector<144x128xf32>
    %c162_191 = arith.constant 162 : index
    %c0_192 = arith.constant 0 : index
    %209 = vector.load %arg8[%c162_191, %c0_192] : memref<328x128xbf16, #tpu.memory_space<vmem>>, vector<144x128xbf16>
    %c3_193 = arith.constant 3 : index
    %c0_194 = arith.constant 0 : index
    %c0_195 = arith.constant 0 : index
    %210 = vector.load %arg3[%c3_193, %c0_194, %c0_195] : memref<9x128x128xbf16, #tpu.memory_space<vmem>>, vector<1x128x128xbf16>
    %211 = vector.shape_cast %210 : vector<1x128x128xbf16> to vector<128x128xbf16>
    %cst_196 = arith.constant dense<0.000000e+00> : vector<144x128xf32>
    %212 = tpu.matmul %209, %211, %cst_196 {dimension_numbers = #tpu.dot_dimension_numbers<[1], [0], [0], [1], [0, 0, 1, 1], [], []>} : vector<144x128xbf16>, vector<128x128xbf16>, vector<144x128xf32> -> vector<144x128xf32>
    %213 = arith.addf %208, %212 : vector<144x128xf32>
    %c163_197 = arith.constant 163 : index
    %c0_198 = arith.constant 0 : index
    %214 = vector.load %arg8[%c163_197, %c0_198] : memref<328x128xbf16, #tpu.memory_space<vmem>>, vector<144x128xbf16>
    %c4_199 = arith.constant 4 : index
    %c0_200 = arith.constant 0 : index
    %c0_201 = arith.constant 0 : index
    %215 = vector.load %arg3[%c4_199, %c0_200, %c0_201] : memref<9x128x128xbf16, #tpu.memory_space<vmem>>, vector<1x128x128xbf16>
    %216 = vector.shape_cast %215 : vector<1x128x128xbf16> to vector<128x128xbf16>
    %cst_202 = arith.constant dense<0.000000e+00> : vector<144x128xf32>
    %217 = tpu.matmul %214, %216, %cst_202 {dimension_numbers = #tpu.dot_dimension_numbers<[1], [0], [0], [1], [0, 0, 1, 1], [], []>} : vector<144x128xbf16>, vector<128x128xbf16>, vector<144x128xf32> -> vector<144x128xf32>
    %218 = arith.addf %213, %217 : vector<144x128xf32>
    %c164_203 = arith.constant 164 : index
    %c0_204 = arith.constant 0 : index
    %219 = vector.load %arg8[%c164_203, %c0_204] : memref<328x128xbf16, #tpu.memory_space<vmem>>, vector<144x128xbf16>
    %c5_205 = arith.constant 5 : index
    %c0_206 = arith.constant 0 : index
    %c0_207 = arith.constant 0 : index
    %220 = vector.load %arg3[%c5_205, %c0_206, %c0_207] : memref<9x128x128xbf16, #tpu.memory_space<vmem>>, vector<1x128x128xbf16>
    %221 = vector.shape_cast %220 : vector<1x128x128xbf16> to vector<128x128xbf16>
    %cst_208 = arith.constant dense<0.000000e+00> : vector<144x128xf32>
    %222 = tpu.matmul %219, %221, %cst_208 {dimension_numbers = #tpu.dot_dimension_numbers<[1], [0], [0], [1], [0, 0, 1, 1], [], []>} : vector<144x128xbf16>, vector<128x128xbf16>, vector<144x128xf32> -> vector<144x128xf32>
    %223 = arith.addf %218, %222 : vector<144x128xf32>
    %c180_209 = arith.constant 180 : index
    %c0_210 = arith.constant 0 : index
    %224 = vector.load %arg8[%c180_209, %c0_210] : memref<328x128xbf16, #tpu.memory_space<vmem>>, vector<144x128xbf16>
    %c6_211 = arith.constant 6 : index
    %c0_212 = arith.constant 0 : index
    %c0_213 = arith.constant 0 : index
    %225 = vector.load %arg3[%c6_211, %c0_212, %c0_213] : memref<9x128x128xbf16, #tpu.memory_space<vmem>>, vector<1x128x128xbf16>
    %226 = vector.shape_cast %225 : vector<1x128x128xbf16> to vector<128x128xbf16>
    %cst_214 = arith.constant dense<0.000000e+00> : vector<144x128xf32>
    %227 = tpu.matmul %224, %226, %cst_214 {dimension_numbers = #tpu.dot_dimension_numbers<[1], [0], [0], [1], [0, 0, 1, 1], [], []>} : vector<144x128xbf16>, vector<128x128xbf16>, vector<144x128xf32> -> vector<144x128xf32>
    %228 = arith.addf %223, %227 : vector<144x128xf32>
    %c181_215 = arith.constant 181 : index
    %c0_216 = arith.constant 0 : index
    %229 = vector.load %arg8[%c181_215, %c0_216] : memref<328x128xbf16, #tpu.memory_space<vmem>>, vector<144x128xbf16>
    %c7_217 = arith.constant 7 : index
    %c0_218 = arith.constant 0 : index
    %c0_219 = arith.constant 0 : index
    %230 = vector.load %arg3[%c7_217, %c0_218, %c0_219] : memref<9x128x128xbf16, #tpu.memory_space<vmem>>, vector<1x128x128xbf16>
    %231 = vector.shape_cast %230 : vector<1x128x128xbf16> to vector<128x128xbf16>
    %cst_220 = arith.constant dense<0.000000e+00> : vector<144x128xf32>
    %232 = tpu.matmul %229, %231, %cst_220 {dimension_numbers = #tpu.dot_dimension_numbers<[1], [0], [0], [1], [0, 0, 1, 1], [], []>} : vector<144x128xbf16>, vector<128x128xbf16>, vector<144x128xf32> -> vector<144x128xf32>
    %233 = arith.addf %228, %232 : vector<144x128xf32>
    %c182_221 = arith.constant 182 : index
    %c0_222 = arith.constant 0 : index
    %234 = vector.load %arg8[%c182_221, %c0_222] : memref<328x128xbf16, #tpu.memory_space<vmem>>, vector<144x128xbf16>
    %c8_223 = arith.constant 8 : index
    %c0_224 = arith.constant 0 : index
    %c0_225 = arith.constant 0 : index
    %235 = vector.load %arg3[%c8_223, %c0_224, %c0_225] : memref<9x128x128xbf16, #tpu.memory_space<vmem>>, vector<1x128x128xbf16>
    %236 = vector.shape_cast %235 : vector<1x128x128xbf16> to vector<128x128xbf16>
    %cst_226 = arith.constant dense<0.000000e+00> : vector<144x128xf32>
    %237 = tpu.matmul %234, %236, %cst_226 {dimension_numbers = #tpu.dot_dimension_numbers<[1], [0], [0], [1], [0, 0, 1, 1], [], []>} : vector<144x128xbf16>, vector<128x128xbf16>, vector<144x128xf32> -> vector<144x128xf32>
    %238 = arith.addf %233, %237 : vector<144x128xf32>
    %c0_227 = arith.constant 0 : index
    %c163_228 = arith.constant 163 : index
    %c0_229 = arith.constant 0 : index
    %239 = vector.load %arg1[%c0_227, %c163_228, %c0_229] : memref<1x328x128xf32, #tpu.memory_space<vmem>>, vector<1x144x128xf32>
    %240 = vector.shape_cast %239 : vector<1x144x128xf32> to vector<144x128xf32>
    %241 = vector.broadcast %28 : vector<1x128xf32> to vector<144x128xf32>
    %242 = arith.addf %238, %241 : vector<144x128xf32>
    %243 = arith.addf %242, %240 : vector<144x128xf32>
    %cst_230 = arith.constant 0.000000e+00 : f32
    %244 = vector.broadcast %cst_230 : f32 to vector<144x128xf32>
    %245 = arith.maximumf %243, %244 : vector<144x128xf32>
    %c0_231 = arith.constant 0 : index
    %c144_232 = arith.constant 144 : index
    %c0_233 = arith.constant 0 : index
    %246 = vector.load %arg6[%c0_231, %c144_232, %c0_233] : memref<1x288x128xf32, #tpu.memory_space<vmem>>, vector<1x144x128xf32>
    %247 = vector.shape_cast %246 : vector<1x144x128xf32> to vector<144x128xf32>
    %248 = vector.shape_cast %245 : vector<144x128xf32> to vector<1x144x128xf32>
    tpu.vector_store %arg6[%c0_231, %c144_232, %c0_233], %248 {strides = array<i32>} : memref<1x288x128xf32, #tpu.memory_space<vmem>>, vector<1x144x128xf32>,
    return
  }
  func.func @transform_0(%arg0: i32) -> (i32, i32, i32) {
    %c0_i32 = arith.constant 0 : i32
    %c0_i32_0 = arith.constant 0 : i32
    %c0_i32_1 = arith.constant 0 : i32
    return %arg0, %c0_i32, %c0_i32_0 : i32, i32, i32
  }
  func.func @transform_1(%arg0: i32) -> (i32, i32, i32) {
    %c0_i32 = arith.constant 0 : i32
    %c0_i32_0 = arith.constant 0 : i32
    %c0_i32_1 = arith.constant 0 : i32
    %c0_i32_2 = arith.constant 0 : i32
    return %c0_i32, %c0_i32_0, %c0_i32_1 : i32, i32, i32
  }
  func.func @transform_2(%arg0: i32) -> (i32, i32, i32) {
    %c0_i32 = arith.constant 0 : i32
    %c0_i32_0 = arith.constant 0 : i32
    %c0_i32_1 = arith.constant 0 : i32
    %c0_i32_2 = arith.constant 0 : i32
    return %c0_i32, %c0_i32_0, %c0_i32_1 : i32, i32, i32
  }
  func.func @transform_3(%arg0: i32) -> (i32, i32) {
    %c0_i32 = arith.constant 0 : i32
    %c0_i32_0 = arith.constant 0 : i32
    %c0_i32_1 = arith.constant 0 : i32
    return %c0_i32, %c0_i32_0 : i32, i32
  }
  func.func @transform_4(%arg0: i32) -> (i32, i32) {
    %c0_i32 = arith.constant 0 : i32
    %c0_i32_0 = arith.constant 0 : i32
    %c0_i32_1 = arith.constant 0 : i32
    return %c0_i32, %c0_i32_0 : i32, i32
  }
  func.func @transform_5(%arg0: i32) -> (i32, i32, i32) {
    %c0_i32 = arith.constant 0 : i32
    %c0_i32_0 = arith.constant 0 : i32
    %c0_i32_1 = arith.constant 0 : i32
    return %arg0, %c0_i32, %c0_i32_0 : i32, i32, i32
  }
}

</mosaic_0001>

<llo_original>
// kernel: tpu_custom_call.1
$region0: #{tpu_custom_call.1}
  #allocation0 [shape = 'u32[]', space=smem, size = 0x4, offset = 0x4, fixed_abs, tag = 'smem constant byte address 0x4 - core index']
  #allocation1 [shape = 'u32[144,128]{1,0:T(1,128)}', space=vmem, size = 0x12000, scoped, tag = 'internal scratch']
  #allocation2 [shape = 'bf16[328,128]{1,0:T(8,128)(2,1)}', space=vmem, size = 0x14800, scoped, tag = 'scratch operand']
  #allocation3 [shape = 'bf16[328,128]{1,0:T(8,128)(2,1)}', space=vmem, size = 0x14800, scoped, tag = 'scratch operand']
  %s0 = inlined_call_operand.hbm [shape: f32[2,328,128], index: 0, kind: input, shape index: {}]
  %s1 = inlined_call_operand.hbm [shape: bf16[9,128,128], index: 1, kind: input, shape index: {}]
  %s2 = inlined_call_operand.hbm [shape: bf16[9,128,128], index: 2, kind: input, shape index: {}]
  %s3 = inlined_call_operand.vmem [shape: f32[1,128], index: 3, kind: input, shape index: {}]
  %s4 = inlined_call_operand.vmem [shape: f32[1,128], index: 4, kind: input, shape index: {}]
  %s5 = inlined_call_operand.hbm [shape: f32[2,288,128], index: 5, kind: output, shape index: {}]
  %s6 = sld [smem:[#allocation0]]
  $region65: #{tpu_custom_call.1} parent=0
    _
  %s8 = ssub.s32 1, %s6
  %s9 = scalar_select 0, %s8, %s6
  $region1: #{tpu_custom_call.1} parent=0
    #allocation4 [shape = 'u8[335872]{0}', space=vmem, size = 0x52000, scoped, tag = 'input window, operand 0']
    #allocation5 [shape = 's32[2]{0}', space=sflag, size = 0x8, scoped, tag = 'scoped memory for tpu_custom_call.1']
    #allocation6 [shape = 's32[2]{0}', space=sflag, size = 0x8, scoped, tag = 'scoped memory for tpu_custom_call.1']
    #allocation7 [shape = 'u8[294912]{0}', space=vmem, size = 0x48000, scoped, tag = 'input window, operand 1, single buffered']
    #allocation8 [shape = 's32[1]{0}', space=sflag, size = 0x4, scoped, tag = 'scoped memory for tpu_custom_call.1']
    #allocation9 [shape = 'u8[294912]{0}', space=vmem, size = 0x48000, scoped, tag = 'input window, operand 2, single buffered']
    #allocation10 [shape = 'u8[294912]{0}', space=vmem, size = 0x48000, scoped, tag = 'output window, operand 0']
    %10 = vsyncpa [#allocation5], 0
    %s11 = scalar_lea.sflag [#allocation5], 1
    %12 = vsyncpa %s11, 0
    %13 = vsyncpa [#allocation8], 0
    %14 = vsyncpa [#allocation6], 0
    %s15 = scalar_lea.sflag [#allocation6], 1
    %16 = vsyncpa %s15, 0
    loop: start=0, step=1, limit=4
    $region2: #{tpu_custom_call.1} parent=1 // loop_pre_header
      _
    $region3: #{tpu_custom_call.1} parent=1 // loop_header
      %s18 = sphi 0, %s22
      %p19 = scmp.ge.s32.totalorder %s18, 4
      %s28 = sphi 0, %s30
      %s31 = sphi 0, %s28
      %s32 = sphi 0, %s31
      %s48 = sphi 0, %s32
      %s52 = sphi 0, %s52
      %s54 = sphi 0, %s52
      %s55 = sphi 0, %s54
      %s69 = sphi 0, %s55
      %s73 = sphi 0, %s73
      %s75 = sphi 0, %s73
      %s76 = sphi 0, %s75
      %s90 = sphi 0, %s76
      %s94 = sphi 0, %s94
      %s96 = sphi 0, %s94
      %s97 = sphi 0, %s96
      %s111 = sphi 0, %s97
      %s115 = sphi 0, %s115
      %s117 = sphi 0, %s115
      %s118 = sphi 0, %s117
      %s132 = sphi 0, %s118
      %s138 = sphi 0, %s140
      %s141 = sphi 0, %s138
      %s142 = sphi 0, %s141
      %s158 = sphi 0, %s142
    $region4: #{tpu_custom_call.1} parent=1 // loop_header_branch
      %21 = sbr.rel (%p19) target = $region8
    $region5: #{tpu_custom_call.1} parent=1 // loop_body
      %s23 = ssub.s32 %s18, 1
      %s24 = ssub.s32 %s18, 2
      %s25 = sadd.s32 %s18, 1
      %s26 = ssub.s32 %s18, %s25
      %p27 = scmp.eq.s32.totalorder %s26, 0
      %s29 = sadd.s32 %s28, 1
      %s30 = scalar_select %p27, %s28, %s29
      %p33 = pneg %p27
      %p34 = scmp.eq.s32.totalorder %s18, 1
      %p35 = por %p33, %p34
      %p36 = scmp.ne.s32.totalorder %s28, %s31
      %p37 = scmp.eq.s32.totalorder %s18, 0
      %p38 = por %p36, %p37
      %p39 = scmp.ne.s32.totalorder %s28, %s31
      %p40 = scmp.eq.s32.totalorder %s23, 1
      %p41 = por %p39, %p40
      %p42 = scmp.ne.s32.totalorder %s31, %s32
      %p43 = scmp.eq.s32.totalorder %s23, 0
      %p44 = por %p42, %p43
      %p45 = scmp.ne.s32.totalorder %s31, %s32
      %p46 = scmp.eq.s32.totalorder %s24, 1
      %p47 = por %p45, %p46
      %p49 = scmp.ne.s32.totalorder %s32, %s48
      %p50 = scmp.eq.s32.totalorder %s24, 0
      %p51 = por %p49, %p50
      %s53 = sadd.s32 %s52, 1
      %p56 = scmp.eq.s32.totalorder %s18, 1
      %p57 = scmp.ne.s32.totalorder %s52, %s54
      %p58 = scmp.eq.s32.totalorder %s18, 0
      %p59 = por %p57, %p58
      %p60 = scmp.ne.s32.totalorder %s52, %s54
      %p61 = scmp.eq.s32.totalorder %s23, 1
      %p62 = por %p60, %p61
      %p63 = scmp.ne.s32.totalorder %s54, %s55
      %p64 = scmp.eq.s32.totalorder %s23, 0
      %p65 = por %p63, %p64
      %p66 = scmp.ne.s32.totalorder %s54, %s55
      %p67 = scmp.eq.s32.totalorder %s24, 1
      %p68 = por %p66, %p67
      %p70 = scmp.ne.s32.totalorder %s55, %s69
      %p71 = scmp.eq.s32.totalorder %s24, 0
      %p72 = por %p70, %p71
      %s74 = sadd.s32 %s73, 1
      %p77 = scmp.eq.s32.totalorder %s18, 1
      %p78 = scmp.ne.s32.totalorder %s73, %s75
      %p79 = scmp.eq.s32.totalorder %s18, 0
      %p80 = por %p78, %p79
      %p81 = scmp.ne.s32.totalorder %s73, %s75
      %p82 = scmp.eq.s32.totalorder %s23, 1
      %p83 = por %p81, %p82
      %p84 = scmp.ne.s32.totalorder %s75, %s76
      %p85 = scmp.eq.s32.totalorder %s23, 0
      %p86 = por %p84, %p85
      %p87 = scmp.ne.s32.totalorder %s75, %s76
      %p88 = scmp.eq.s32.totalorder %s24, 1
      %p89 = por %p87, %p88
      %p91 = scmp.ne.s32.totalorder %s76, %s90
      %p92 = scmp.eq.s32.totalorder %s24, 0
      %p93 = por %p91, %p92
      %s95 = sadd.s32 %s94, 1
      %p98 = scmp.eq.s32.totalorder %s18, 1
      %p99 = scmp.ne.s32.totalorder %s94, %s96
      %p100 = scmp.eq.s32.totalorder %s18, 0
      %p101 = por %p99, %p100
      %p102 = scmp.ne.s32.totalorder %s94, %s96
      %p103 = scmp.eq.s32.totalorder %s23, 1
      %p104 = por %p102, %p103
      %p105 = scmp.ne.s32.totalorder %s96, %s97
      %p106 = scmp.eq.s32.totalorder %s23, 0
      %p107 = por %p105, %p106
      %p108 = scmp.ne.s32.totalorder %s96, %s97
      %p109 = scmp.eq.s32.totalorder %s24, 1
      %p110 = por %p108, %p109
      %p112 = scmp.ne.s32.totalorder %s97, %s111
      %p113 = scmp.eq.s32.totalorder %s24, 0
      %p114 = por %p112, %p113
      %s116 = sadd.s32 %s115, 1
      %p119 = scmp.eq.s32.totalorder %s18, 1
      %p120 = scmp.ne.s32.totalorder %s115, %s117
      %p121 = scmp.eq.s32.totalorder %s18, 0
      %p122 = por %p120, %p121
      %p123 = scmp.ne.s32.totalorder %s115, %s117
      %p124 = scmp.eq.s32.totalorder %s23, 1
      %p125 = por %p123, %p124
      %p126 = scmp.ne.s32.totalorder %s117, %s118
      %p127 = scmp.eq.s32.totalorder %s23, 0
      %p128 = por %p126, %p127
      %p129 = scmp.ne.s32.totalorder %s117, %s118
      %p130 = scmp.eq.s32.totalorder %s24, 1
      %p131 = por %p129, %p130
      %p133 = scmp.ne.s32.totalorder %s118, %s132
      %p134 = scmp.eq.s32.totalorder %s24, 0
      %p135 = por %p133, %p134
      %s136 = ssub.s32 %s18, %s25
      %p137 = scmp.eq.s32.totalorder %s136, 0
      %s139 = sadd.s32 %s138, 1
      %s140 = scalar_select %p137, %s138, %s139
      %p143 = pneg %p137
      %p144 = scmp.eq.s32.totalorder %s18, 1
      %p145 = por %p143, %p144
      %p146 = scmp.ne.s32.totalorder %s138, %s141
      %p147 = scmp.eq.s32.totalorder %s18, 0
      %p148 = por %p146, %p147
      %p149 = scmp.ne.s32.totalorder %s138, %s141
      %p150 = scmp.eq.s32.totalorder %s23, 1
      %p151 = por %p149, %p150
      %p152 = scmp.ne.s32.totalorder %s141, %s142
      %p153 = scmp.eq.s32.totalorder %s23, 0
      %p154 = por %p152, %p153
      %p155 = scmp.ne.s32.totalorder %s141, %s142
      %p156 = scmp.eq.s32.totalorder %s24, 1
      %p157 = por %p155, %p156
      %p159 = scmp.ne.s32.totalorder %s142, %s158
      %p160 = scmp.eq.s32.totalorder %s24, 0
      %p161 = por %p159, %p160
      %p162 = scmp.le.s32.totalorder 1, %s18
      %p163 = scmp.lt.s32.totalorder %s18, 3
      %p164 = pnand %p162, %p163
      %p165 = pneg %p164
      // Predicated region
      $region9: #{tpu_custom_call.1} parent=5 // pred_check
        _
      $region10: #{tpu_custom_call.1} parent=5 // pred_check_branch
        %167 = sbr.rel (%p164) target = $region12
      $region11: #{tpu_custom_call.1} parent=5 // pred_region
        %s168 = ssub.s32 %s18, 1
        // Predicated region
        $region13: #{tpu_custom_call.1} parent=11 // pred_check
          %p169 = pneg %p65
        $region14: #{tpu_custom_call.1} parent=11 // pred_check_branch
          %171 = sbr.rel (%p169) target = $region16
        $region15: #{tpu_custom_call.1} parent=11 // pred_region
          %s173 = ssub.s32 9216, 9216
          %174 = vsyncadd [#allocation8], %s173
          %s175 = sshll.u32 [#allocation7], 4
          %s176 = int_to_ptr.vmem [resolvable:$true] %s175
          %181 = dma.hbm_to_vmem [thread:$0]  %s1, 9216, %s176, [#allocation8], 64, 64, 4
        $region16: #{tpu_custom_call.1} parent=11 // pred_fallthru
          _
        // Predicated region
        $region17: #{tpu_custom_call.1} parent=11 // pred_check
          %p182 = pneg %p86
        $region18: #{tpu_custom_call.1} parent=11 // pred_check_branch
          %184 = sbr.rel (%p182) target = $region20
        $region19: #{tpu_custom_call.1} parent=11 // pred_region
          %s186 = ssub.s32 9216, 9216
          %187 = vsyncadd [#allocation8], %s186
          %s188 = sshll.u32 [#allocation9], 4
          %s189 = int_to_ptr.vmem [resolvable:$true] %s188
          %194 = dma.hbm_to_vmem [thread:$0]  %s2, 9216, %s189, [#allocation8], 64, 64, 4
        $region20: #{tpu_custom_call.1} parent=11 // pred_fallthru
          _
        // Predicated region
        $region21: #{tpu_custom_call.1} parent=11 // pred_check
          %p195 = pneg %p107
        $region22: #{tpu_custom_call.1} parent=11 // pred_check_branch
          %197 = sbr.rel (%p195) target = $region24
        $region23: #{tpu_custom_call.1} parent=11 // pred_region
          _
        $region24: #{tpu_custom_call.1} parent=11 // pred_fallthru
          _
        // Predicated region
        $region25: #{tpu_custom_call.1} parent=11 // pred_check
          %p198 = pneg %p128
        $region26: #{tpu_custom_call.1} parent=11 // pred_check_branch
          %200 = sbr.rel (%p198) target = $region28
        $region27: #{tpu_custom_call.1} parent=11 // pred_region
          _
        $region28: #{tpu_custom_call.1} parent=11 // pred_fallthru
          _
      $region12: #{tpu_custom_call.1} parent=5 // pred_fallthru
        _
      %p201 = scmp.lt.s32.totalorder %s18, 2
      // Predicated region
      $region29: #{tpu_custom_call.1} parent=5 // pred_check
        %p202 = pneg %p201
      $region30: #{tpu_custom_call.1} parent=5 // pred_check_branch
        %204 = sbr.rel (%p202) target = $region32
      $region31: #{tpu_custom_call.1} parent=5 // pred_region
        // Predicated region
        $region33: #{tpu_custom_call.1} parent=31 // pred_check
          %p205 = pneg %p38
        $region34: #{tpu_custom_call.1} parent=31 // pred_check_branch
          %207 = sbr.rel (%p205) target = $region36
        $region35: #{tpu_custom_call.1} parent=31 // pred_region
          %s208 = sand.u32 %s28, 1
          %s209 = scalar_lea.sflag [#allocation5], %s208
          %s210 = sand.u32 %s28, 1
          %s211 = smul.addr %s210, 328
          %s212 = scalar_lea.vmem [#allocation4], %s211
          %s214 = ssub.s32 5248, 5248
          %215 = vsyncadd %s209, %s214
          %s216 = smul.addr %s18, 41
          %s217 = smul.addr %s216, 128
          %s218 = scalar_lea.hbm %s0, %s217
          %s219 = sshll.u32 %s212, 4
          %s220 = int_to_ptr.vmem [resolvable:$true] %s219
          %225 = dma.hbm_to_vmem [thread:$0]  %s218, 5248, %s220, %s209, 128, 128, 8
        $region36: #{tpu_custom_call.1} parent=31 // pred_fallthru
          _
      $region32: #{tpu_custom_call.1} parent=5 // pred_fallthru
        _
      %p226 = scmp.le.s32.totalorder 1, %s18
      %p227 = scmp.lt.s32.totalorder %s18, 3
      %p228 = pnand %p226, %p227
      %p229 = pneg %p228
      // Predicated region
      $region37: #{tpu_custom_call.1} parent=5 // pred_check
        _
      $region38: #{tpu_custom_call.1} parent=5 // pred_check_branch
        %231 = sbr.rel (%p228) target = $region40
      $region39: #{tpu_custom_call.1} parent=5 // pred_region
        %s232 = ssub.s32 %s18, 1
        %s233 = sand.u32 %s31, 1
        %s234 = scalar_lea.sflag [#allocation5], %s233
        %s235 = sand.u32 %s31, 1
        %s236 = smul.addr %s235, 328
        %s237 = scalar_lea.vmem [#allocation4], %s236
        // Predicated region
        $region41: #{tpu_custom_call.1} parent=39 // pred_check
          %p238 = pneg %p44
        $region42: #{tpu_custom_call.1} parent=39 // pred_check_branch
          %240 = sbr.rel (%p238) target = $region44
        $region43: #{tpu_custom_call.1} parent=39 // pred_region
          %241 = dma.done %s234, 5248
        $region44: #{tpu_custom_call.1} parent=39 // pred_fallthru
          _
        // Predicated region
        $region45: #{tpu_custom_call.1} parent=39 // pred_check
          %p242 = pneg %p65
        $region46: #{tpu_custom_call.1} parent=39 // pred_check_branch
          %244 = sbr.rel (%p242) target = $region48
        $region47: #{tpu_custom_call.1} parent=39 // pred_region
          %245 = dma.done [#allocation8], 9216
        $region48: #{tpu_custom_call.1} parent=39 // pred_fallthru
          _
        // Predicated region
        $region49: #{tpu_custom_call.1} parent=39 // pred_check
          %p246 = pneg %p86
        $region50: #{tpu_custom_call.1} parent=39 // pred_check_branch
          %248 = sbr.rel (%p246) target = $region52
        $region51: #{tpu_custom_call.1} parent=39 // pred_region
          %249 = dma.done [#allocation8], 9216
        $region52: #{tpu_custom_call.1} parent=39 // pred_fallthru
          _
        %s250 = sand.u32 %s31, 1
        %s251 = scalar_lea.sflag [#allocation5], %s250
        %s252 = sand.u32 %s31, 1
        %s253 = smul.addr %s252, 328
        %s254 = scalar_lea.vmem [#allocation4], %s253
        %p255 = pneg %p44
        %p256 = pneg %p41
        %p257 = pneg %p65
        %p258 = pneg %p62
        %p259 = pneg %p86
        %p260 = pneg %p83
        %p261 = pneg %p107
        %p262 = pneg %p104
        %p263 = pneg %p128
        %p264 = pneg %p125
        %p265 = pneg %p154
        %p266 = pneg %p151
        %s267 = sand.u32 %s141, 1
        %s268 = scalar_lea.sflag [#allocation6], %s267
        %s269 = sand.u32 %s141, 1
        %s270 = smul.addr %s269, 288
        %s271 = scalar_lea.vmem [#allocation10], %s270
        %v273 = vld [vmem:[%s237] sm:$0xff]
        %v274 = vld [vmem:[%s237 + $0x8] sm:$0xff]
        %v275 = vld [vmem:[%s237 + $0x10] sm:$0xff]
        %v276 = vld [vmem:[%s237 + $0x18] sm:$0xff]
        %v277 = vld [vmem:[%s237 + $0x20] sm:$0xff]
        %v278 = vld [vmem:[%s237 + $0x28] sm:$0xff]
        %v279 = vld [vmem:[%s237 + $0x30] sm:$0xff]
        %v280 = vld [vmem:[%s237 + $0x38] sm:$0xff]
        %v281 = vld [vmem:[%s237 + $0x40] sm:$0xff]
        %v282 = vld [vmem:[%s237 + $0x48] sm:$0xff]
        %v283 = vld [vmem:[%s237 + $0x50] sm:$0xff]
        %v284 = vld [vmem:[%s237 + $0x58] sm:$0xff]
        %v285 = vld [vmem:[%s237 + $0x60] sm:$0xff]
        %v286 = vld [vmem:[%s237 + $0x68] sm:$0xff]
        %v287 = vld [vmem:[%s237 + $0x70] sm:$0xff]
        %v288 = vld [vmem:[%s237 + $0x78] sm:$0xff]
        %v289 = vld [vmem:[%s237 + $0x80] sm:$0xff]
        %v290 = vld [vmem:[%s237 + $0x88] sm:$0xff]
        %v291 = vld [vmem:[%s237 + $0x90] sm:$0xff]
        %v292 = vld [vmem:[%s237 + $0x98] sm:$0xff]
        %v293 = vld [vmem:[%s237 + $0xa0] sm:$0xff]
        %v294 = vld [vmem:[%s237 + $0xa8] sm:$0xff]
        %v295 = vld [vmem:[%s237 + $0xb0] sm:$0xff]
        %v296 = vld [vmem:[%s237 + $0xb8] sm:$0xff]
        %v297 = vld [vmem:[%s237 + $0xc0] sm:$0xff]
        %v298 = vld [vmem:[%s237 + $0xc8] sm:$0xff]
        %v299 = vld [vmem:[%s237 + $0xd0] sm:$0xff]
        %v300 = vld [vmem:[%s237 + $0xd8] sm:$0xff]
        %v301 = vld [vmem:[%s237 + $0xe0] sm:$0xff]
        %v302 = vld [vmem:[%s237 + $0xe8] sm:$0xff]
        %v303 = vld [vmem:[%s237 + $0xf0] sm:$0xff]
        %v304 = vld [vmem:[%s237 + $0xf8] sm:$0xff]
        %v305 = vld [vmem:[%s237 + $0x100] sm:$0xff]
        %v306 = vld [vmem:[%s237 + $0x108] sm:$0xff]
        %v307 = vld [vmem:[%s237 + $0x110] sm:$0xff]
        %v308 = vld [vmem:[%s237 + $0x118] sm:$0xff]
        %v309 = vld [vmem:[%s237 + $0x120] sm:$0xff]
        %v310 = vld [vmem:[%s237 + $0x128] sm:$0xff]
        %v311 = vld [vmem:[%s237 + $0x130] sm:$0xff]
        %v312 = vld [vmem:[%s237 + $0x138] sm:$0xff]
        %v313 = vld [vmem:[%s237 + $0x140] sm:$0xff]
        %v314 = vpack.c.bf16 %v274, %v273
        %v315 = vpack.c.bf16 %v276, %v275
        %v316 = vpack.c.bf16 %v278, %v277
        %v317 = vpack.c.bf16 %v280, %v279
        %v318 = vpack.c.bf16 %v282, %v281
        %v319 = vpack.c.bf16 %v284, %v283
        %v320 = vpack.c.bf16 %v286, %v285
        %v321 = vpack.c.bf16 %v288, %v287
        %v322 = vpack.c.bf16 %v290, %v289
        %v323 = vpack.c.bf16 %v292, %v291
        %v324 = vpack.c.bf16 %v294, %v293
        %v325 = vpack.c.bf16 %v296, %v295
        %v326 = vpack.c.bf16 %v298, %v297
        %v327 = vpack.c.bf16 %v300, %v299
        %v328 = vpack.c.bf16 %v302, %v301
        %v329 = vpack.c.bf16 %v304, %v303
        %v330 = vpack.c.bf16 %v306, %v305
        %v331 = vpack.c.bf16 %v308, %v307
        %v332 = vpack.c.bf16 %v310, %v309
        %v333 = vpack.c.bf16 %v312, %v311
        %v334 = vpack.c.bf16 %v313, %v313
        %v356 = vunpack.c.l.b16 %v314
        %v357 = vunpack.c.h.b16 %v314
        %v358 = vunpack.c.l.b16 %v315
        %v359 = vunpack.c.h.b16 %v315
        %v360 = vunpack.c.l.b16 %v316
        %v361 = vunpack.c.h.b16 %v316
        %v362 = vunpack.c.l.b16 %v317
        %v363 = vunpack.c.h.b16 %v317
        %v364 = vunpack.c.l.b16 %v318
        %v365 = vunpack.c.h.b16 %v318
        %v366 = vunpack.c.l.b16 %v319
        %v367 = vunpack.c.h.b16 %v319
        %v368 = vunpack.c.l.b16 %v320
        %v369 = vunpack.c.h.b16 %v320
        %v370 = vunpack.c.l.b16 %v321
        %v371 = vunpack.c.h.b16 %v321
        %v372 = vunpack.c.l.b16 %v322
        %v373 = vunpack.c.h.b16 %v322
        %v374 = vunpack.c.l.b16 %v323
        %v375 = vunpack.c.h.b16 %v323
        %v376 = vunpack.c.l.b16 %v324
        %v377 = vunpack.c.h.b16 %v324
        %v378 = vunpack.c.l.b16 %v325
        %v379 = vunpack.c.h.b16 %v325
        %v380 = vunpack.c.l.b16 %v326
        %v381 = vunpack.c.h.b16 %v326
        %v382 = vunpack.c.l.b16 %v327
        %v383 = vunpack.c.h.b16 %v327
        %v384 = vunpack.c.l.b16 %v328
        %v385 = vunpack.c.h.b16 %v328
        %v386 = vunpack.c.l.b16 %v329
        %v387 = vunpack.c.h.b16 %v329
        %v388 = vunpack.c.l.b16 %v330
        %v389 = vunpack.c.h.b16 %v330
        %v390 = vunpack.c.l.b16 %v331
        %v391 = vunpack.c.h.b16 %v331
        %v392 = vunpack.c.l.b16 %v332
        %v393 = vunpack.c.h.b16 %v332
        %v394 = vunpack.c.l.b16 %v333
        %v395 = vunpack.c.h.b16 %v333
        %v396 = vunpack.c.l.b16 %v334
        %v397 = vpack.c.b16 %v356, %v356
        %v398 = vpack.c.b16 %v357, %v357
        %v399 = vpack.c.b16 %v358, %v358
        %v400 = vpack.c.b16 %v359, %v359
        %v401 = vpack.c.b16 %v360, %v360
        %v402 = vpack.c.b16 %v361, %v361
        %v403 = vpack.c.b16 %v362, %v362
        %v404 = vpack.c.b16 %v363, %v363
        %v405 = vpack.c.b16 %v364, %v364
        %v406 = vpack.c.b16 %v365, %v365
        %v407 = vpack.c.b16 %v366, %v366
        %v408 = vpack.c.b16 %v367, %v367
        %v409 = vpack.c.b16 %v368, %v368
        %v410 = vpack.c.b16 %v369, %v369
        %v411 = vpack.c.b16 %v370, %v370
        %v412 = vpack.c.b16 %v371, %v371
        %v413 = vpack.c.b16 %v372, %v372
        %v414 = vpack.c.b16 %v373, %v373
        %v415 = vpack.c.b16 %v374, %v374
        %v416 = vpack.c.b16 %v375, %v375
        %v417 = vpack.c.b16 %v376, %v376
        %v418 = vpack.c.b16 %v377, %v377
        %v419 = vpack.c.b16 %v378, %v378
        %v420 = vpack.c.b16 %v379, %v379
        %v421 = vpack.c.b16 %v380, %v380
        %v422 = vpack.c.b16 %v381, %v381
        %v423 = vpack.c.b16 %v382, %v382
        %v424 = vpack.c.b16 %v383, %v383
        %v425 = vpack.c.b16 %v384, %v384
        %v426 = vpack.c.b16 %v385, %v385
        %v427 = vpack.c.b16 %v386, %v386
        %v428 = vpack.c.b16 %v387, %v387
        %v429 = vpack.c.b16 %v388, %v388
        %v430 = vpack.c.b16 %v389, %v389
        %v431 = vpack.c.b16 %v390, %v390
        %v432 = vpack.c.b16 %v391, %v391
        %v433 = vpack.c.b16 %v392, %v392
        %v434 = vpack.c.b16 %v393, %v393
        %v435 = vpack.c.b16 %v394, %v394
        %v436 = vpack.c.b16 %v395, %v395
        %v437 = vpack.c.b16 %v396, %v396
        %479 = vst [vmem:[#allocation2] sm:$0xf] %v397
        %480 = vst [vmem:[#allocation2 + $0x4] sm:$0xf] %v398
        %481 = vst [vmem:[#allocation2 + $0x8] sm:$0xf] %v399
        %482 = vst [vmem:[#allocation2 + $0xc] sm:$0xf] %v400
        %483 = vst [vmem:[#allocation2 + $0x10] sm:$0xf] %v401
        %484 = vst [vmem:[#allocation2 + $0x14] sm:$0xf] %v402
        %485 = vst [vmem:[#allocation2 + $0x18] sm:$0xf] %v403
        %486 = vst [vmem:[#allocation2 + $0x1c] sm:$0xf] %v404
        %487 = vst [vmem:[#allocation2 + $0x20] sm:$0xf] %v405
        %488 = vst [vmem:[#allocation2 + $0x24] sm:$0xf] %v406
        %489 = vst [vmem:[#allocation2 + $0x28] sm:$0xf] %v407
        %490 = vst [vmem:[#allocation2 + $0x2c] sm:$0xf] %v408
        %491 = vst [vmem:[#allocation2 + $0x30] sm:$0xf] %v409
        %492 = vst [vmem:[#allocation2 + $0x34] sm:$0xf] %v410
        %493 = vst [vmem:[#allocation2 + $0x38] sm:$0xf] %v411
        %494 = vst [vmem:[#allocation2 + $0x3c] sm:$0xf] %v412
        %495 = vst [vmem:[#allocation2 + $0x40] sm:$0xf] %v413
        %496 = vst [vmem:[#allocation2 + $0x44] sm:$0xf] %v414
        %497 = vst [vmem:[#allocation2 + $0x48] sm:$0xf] %v415
        %498 = vst [vmem:[#allocation2 + $0x4c] sm:$0xf] %v416
        %499 = vst [vmem:[#allocation2 + $0x50] sm:$0xf] %v417
        %500 = vst [vmem:[#allocation2 + $0x54] sm:$0xf] %v418
        %501 = vst [vmem:[#allocation2 + $0x58] sm:$0xf] %v419
        %502 = vst [vmem:[#allocation2 + $0x5c] sm:$0xf] %v420
        %503 = vst [vmem:[#allocation2 + $0x60] sm:$0xf] %v421
        %504 = vst [vmem:[#allocation2 + $0x64] sm:$0xf] %v422
        %505 = vst [vmem:[#allocation2 + $0x68] sm:$0xf] %v423
        %506 = vst [vmem:[#allocation2 + $0x6c] sm:$0xf] %v424
        %507 = vst [vmem:[#allocation2 + $0x70] sm:$0xf] %v425
        %508 = vst [vmem:[#allocation2 + $0x74] sm:$0xf] %v426
        %509 = vst [vmem:[#allocation2 + $0x78] sm:$0xf] %v427
        %510 = vst [vmem:[#allocation2 + $0x7c] sm:$0xf] %v428
        %511 = vst [vmem:[#allocation2 + $0x80] sm:$0xf] %v429
        %512 = vst [vmem:[#allocation2 + $0x84] sm:$0xf] %v430
        %513 = vst [vmem:[#allocation2 + $0x88] sm:$0xf] %v431
        %514 = vst [vmem:[#allocation2 + $0x8c] sm:$0xf] %v432
        %515 = vst [vmem:[#allocation2 + $0x90] sm:$0xf] %v433
        %516 = vst [vmem:[#allocation2 + $0x94] sm:$0xf] %v434
        %517 = vst [vmem:[#allocation2 + $0x98] sm:$0xf] %v435
        %518 = vst [vmem:[#allocation2 + $0x9c] sm:$0xf] %v436
        %519 = vst [vmem:[#allocation2 + $0xa0] sm:$0xf] %v437
        %520 = vst [vmem:[#allocation3] sm:$0xf] 0
        %521 = vst [vmem:[#allocation3 + $0x4] sm:$0xf] 0
        %vm522 = vcmask 1041408
        %vm523 = vsmask.f32 1280
        %vm524 = vmand %vm522, %vm523
        %v525 = vld [vmem:[#allocation3 + $0x8] sm:$0x3]
        %v526 = vsel %vm524, 0, %v525
        %527 = vst [vmem:[#allocation3 + $0x8] sm:$0x3] %v526
        %vm528 = vcmask 1043457
        %vm529 = vsmask.f32 7942
        %vm530 = vmand %vm528, %vm529
        %v531 = vld [vmem:[#allocation3 + $0x98] sm:$0xe]
        %v532 = vsel %vm530, 0, %v531
        %533 = vst [vmem:[#allocation3 + $0x98] sm:$0xe] %v532
        %534 = vst [vmem:[#allocation3 + $0x9c] sm:$0xf] 0
        %535 = vst [vmem:[#allocation3 + $0xa0] sm:$0xf] 0
        %v536 = vlaneseq
        %v537 = vshrl.u32 %v536, 7
        %v538 = vadd.s32 %v537, 8
        %v539 = vadd.s32 %v537, 16
        %v540 = vadd.s32 %v537, 24
        %v541 = vadd.s32 %v537, 32
        %v542 = vadd.s32 %v537, 40
        %v543 = vadd.s32 %v537, 48
        %v544 = vadd.s32 %v537, 56
        %v545 = vadd.s32 %v537, 64
        %v546 = vadd.s32 %v537, 72
        %v547 = vadd.s32 %v537, 80
        %v548 = vadd.s32 %v537, 88
        %v549 = vadd.s32 %v537, 96
        %v550 = vadd.s32 %v537, 104
        %v551 = vadd.s32 %v537, 112
        %v552 = vadd.s32 %v537, 120
        %v553 = vadd.s32 %v537, 128
        %v554 = vadd.s32 %v537, 136
        %vm555 = vcmp.lt.s32.totalorder %v537, 0
        %v556 = vsub.s32 0, %v537
        %v557 = vsel %vm555, %v556, %v537
        %v558 = vmul.u32.u64.compose %v557, 3817748708
        %v559 = vextract.low.u32 %v558
        %v560 = vextract.high.u32 %v558
        %v561 = vshrl.u32 %v560, 4
        %v562 = vmul.u32 %v561, 18
        %v563 = vsub.s32 %v557, %v562
        %v564 = vsub.s32 0, %v563
        %v565 = vsel %vm555, %v564, %v563
        %vm566 = vcmp.lt.s32.totalorder %v538, 0
        %v567 = vsub.s32 0, %v538
        %v568 = vsel %vm566, %v567, %v538
        %v569 = vmul.u32.u64.compose %v568, 3817748708
        %v570 = vextract.low.u32 %v569
        %v571 = vextract.high.u32 %v569
        %v572 = vshrl.u32 %v571, 4
        %v573 = vmul.u32 %v572, 18
        %v574 = vsub.s32 %v568, %v573
        %v575 = vsub.s32 0, %v574
        %v576 = vsel %vm566, %v575, %v574
        %vm577 = vcmp.lt.s32.totalorder %v539, 0
        %v578 = vsub.s32 0, %v539
        %v579 = vsel %vm577, %v578, %v539
        %v580 = vmul.u32.u64.compose %v579, 3817748708
        %v581 = vextract.low.u32 %v580
        %v582 = vextract.high.u32 %v580
        %v583 = vshrl.u32 %v582, 4
        %v584 = vmul.u32 %v583, 18
        %v585 = vsub.s32 %v579, %v584
        %v586 = vsub.s32 0, %v585
        %v587 = vsel %vm577, %v586, %v585
        %vm588 = vcmp.lt.s32.totalorder %v540, 0
        %v589 = vsub.s32 0, %v540
        %v590 = vsel %vm588, %v589, %v540
        %v591 = vmul.u32.u64.compose %v590, 3817748708
        %v592 = vextract.low.u32 %v591
        %v593 = vextract.high.u32 %v591
        %v594 = vshrl.u32 %v593, 4
        %v595 = vmul.u32 %v594, 18
        %v596 = vsub.s32 %v590, %v595
        %v597 = vsub.s32 0, %v596
        %v598 = vsel %vm588, %v597, %v596
        %vm599 = vcmp.lt.s32.totalorder %v541, 0
        %v600 = vsub.s32 0, %v541
        %v601 = vsel %vm599, %v600, %v541
        %v602 = vmul.u32.u64.compose %v601, 3817748708
        %v603 = vextract.low.u32 %v602
        %v604 = vextract.high.u32 %v602
        %v605 = vshrl.u32 %v604, 4
        %v606 = vmul.u32 %v605, 18
        %v607 = vsub.s32 %v601, %v606
        %v608 = vsub.s32 0, %v607
        %v609 = vsel %vm599, %v608, %v607
        %vm610 = vcmp.lt.s32.totalorder %v542, 0
        %v611 = vsub.s32 0, %v542
        %v612 = vsel %vm610, %v611, %v542
        %v613 = vmul.u32.u64.compose %v612, 3817748708
        %v614 = vextract.low.u32 %v613
        %v615 = vextract.high.u32 %v613
        %v616 = vshrl.u32 %v615, 4
        %v617 = vmul.u32 %v616, 18
        %v618 = vsub.s32 %v612, %v617
        %v619 = vsub.s32 0, %v618
        %v620 = vsel %vm610, %v619, %v618
        %vm621 = vcmp.lt.s32.totalorder %v543, 0
        %v622 = vsub.s32 0, %v543
        %v623 = vsel %vm621, %v622, %v543
        %v624 = vmul.u32.u64.compose %v623, 3817748708
        %v625 = vextract.low.u32 %v624
        %v626 = vextract.high.u32 %v624
        %v627 = vshrl.u32 %v626, 4
        %v628 = vmul.u32 %v627, 18
        %v629 = vsub.s32 %v623, %v628
        %v630 = vsub.s32 0, %v629
        %v631 = vsel %vm621, %v630, %v629
        %vm632 = vcmp.lt.s32.totalorder %v544, 0
        %v633 = vsub.s32 0, %v544
        %v634 = vsel %vm632, %v633, %v544
        %v635 = vmul.u32.u64.compose %v634, 3817748708
        %v636 = vextract.low.u32 %v635
        %v637 = vextract.high.u32 %v635
        %v638 = vshrl.u32 %v637, 4
        %v639 = vmul.u32 %v638, 18
        %v640 = vsub.s32 %v634, %v639
        %v641 = vsub.s32 0, %v640
        %v642 = vsel %vm632, %v641, %v640
        %vm643 = vcmp.lt.s32.totalorder %v545, 0
        %v644 = vsub.s32 0, %v545
        %v645 = vsel %vm643, %v644, %v545
        %v646 = vmul.u32.u64.compose %v645, 3817748708
        %v647 = vextract.low.u32 %v646
        %v648 = vextract.high.u32 %v646
        %v649 = vshrl.u32 %v648, 4
        %v650 = vmul.u32 %v649, 18
        %v651 = vsub.s32 %v645, %v650
        %v652 = vsub.s32 0, %v651
        %v653 = vsel %vm643, %v652, %v651
        %vm654 = vcmp.lt.s32.totalorder %v546, 0
        %v655 = vsub.s32 0, %v546
        %v656 = vsel %vm654, %v655, %v546
        %v657 = vmul.u32.u64.compose %v656, 3817748708
        %v658 = vextract.low.u32 %v657
        %v659 = vextract.high.u32 %v657
        %v660 = vshrl.u32 %v659, 4
        %v661 = vmul.u32 %v660, 18
        %v662 = vsub.s32 %v656, %v661
        %v663 = vsub.s32 0, %v662
        %v664 = vsel %vm654, %v663, %v662
        %vm665 = vcmp.lt.s32.totalorder %v547, 0
        %v666 = vsub.s32 0, %v547
        %v667 = vsel %vm665, %v666, %v547
        %v668 = vmul.u32.u64.compose %v667, 3817748708
        %v669 = vextract.low.u32 %v668
        %v670 = vextract.high.u32 %v668
        %v671 = vshrl.u32 %v670, 4
        %v672 = vmul.u32 %v671, 18
        %v673 = vsub.s32 %v667, %v672
        %v674 = vsub.s32 0, %v673
        %v675 = vsel %vm665, %v674, %v673
        %vm676 = vcmp.lt.s32.totalorder %v548, 0
        %v677 = vsub.s32 0, %v548
        %v678 = vsel %vm676, %v677, %v548
        %v679 = vmul.u32.u64.compose %v678, 3817748708
        %v680 = vextract.low.u32 %v679
        %v681 = vextract.high.u32 %v679
        %v682 = vshrl.u32 %v681, 4
        %v683 = vmul.u32 %v682, 18
        %v684 = vsub.s32 %v678, %v683
        %v685 = vsub.s32 0, %v684
        %v686 = vsel %vm676, %v685, %v684
        %vm687 = vcmp.lt.s32.totalorder %v549, 0
        %v688 = vsub.s32 0, %v549
        %v689 = vsel %vm687, %v688, %v549
        %v690 = vmul.u32.u64.compose %v689, 3817748708
        %v691 = vextract.low.u32 %v690
        %v692 = vextract.high.u32 %v690
        %v693 = vshrl.u32 %v692, 4
        %v694 = vmul.u32 %v693, 18
        %v695 = vsub.s32 %v689, %v694
        %v696 = vsub.s32 0, %v695
        %v697 = vsel %vm687, %v696, %v695
        %vm698 = vcmp.lt.s32.totalorder %v550, 0
        %v699 = vsub.s32 0, %v550
        %v700 = vsel %vm698, %v699, %v550
        %v701 = vmul.u32.u64.compose %v700, 3817748708
        %v702 = vextract.low.u32 %v701
        %v703 = vextract.high.u32 %v701
        %v704 = vshrl.u32 %v703, 4
        %v705 = vmul.u32 %v704, 18
        %v706 = vsub.s32 %v700, %v705
        %v707 = vsub.s32 0, %v706
        %v708 = vsel %vm698, %v707, %v706
        %vm709 = vcmp.lt.s32.totalorder %v551, 0
        %v710 = vsub.s32 0, %v551
        %v711 = vsel %vm709, %v710, %v551
        %v712 = vmul.u32.u64.compose %v711, 3817748708
        %v713 = vextract.low.u32 %v712
        %v714 = vextract.high.u32 %v712
        %v715 = vshrl.u32 %v714, 4
        %v716 = vmul.u32 %v715, 18
        %v717 = vsub.s32 %v711, %v716
        %v718 = vsub.s32 0, %v717
        %v719 = vsel %vm709, %v718, %v717
        %vm720 = vcmp.lt.s32.totalorder %v552, 0
        %v721 = vsub.s32 0, %v552
        %v722 = vsel %vm720, %v721, %v552
        %v723 = vmul.u32.u64.compose %v722, 3817748708
        %v724 = vextract.low.u32 %v723
        %v725 = vextract.high.u32 %v723
        %v726 = vshrl.u32 %v725, 4
        %v727 = vmul.u32 %v726, 18
        %v728 = vsub.s32 %v722, %v727
        %v729 = vsub.s32 0, %v728
        %v730 = vsel %vm720, %v729, %v728
        %vm731 = vcmp.lt.s32.totalorder %v553, 0
        %v732 = vsub.s32 0, %v553
        %v733 = vsel %vm731, %v732, %v553
        %v734 = vmul.u32.u64.compose %v733, 3817748708
        %v735 = vextract.low.u32 %v734
        %v736 = vextract.high.u32 %v734
        %v737 = vshrl.u32 %v736, 4
        %v738 = vmul.u32 %v737, 18
        %v739 = vsub.s32 %v733, %v738
        %v740 = vsub.s32 0, %v739
        %v741 = vsel %vm731, %v740, %v739
        %vm742 = vcmp.lt.s32.totalorder %v554, 0
        %v743 = vsub.s32 0, %v554
        %v744 = vsel %vm742, %v743, %v554
        %v745 = vmul.u32.u64.compose %v744, 3817748708
        %v746 = vextract.low.u32 %v745
        %v747 = vextract.high.u32 %v745
        %v748 = vshrl.u32 %v747, 4
        %v749 = vmul.u32 %v748, 18
        %v750 = vsub.s32 %v744, %v749
        %v751 = vsub.s32 0, %v750
        %v752 = vsel %vm742, %v751, %v750
        %vm753 = vcmp.ne.s32.totalorder %v565, 0
        %vm754 = vcmp.ne.s32.totalorder %v576, 0
        %vm755 = vcmp.ne.s32.totalorder %v587, 0
        %vm756 = vcmp.ne.s32.totalorder %v598, 0
        %vm757 = vcmp.ne.s32.totalorder %v609, 0
        %vm758 = vcmp.ne.s32.totalorder %v620, 0
        %vm759 = vcmp.ne.s32.totalorder %v631, 0
        %vm760 = vcmp.ne.s32.totalorder %v642, 0
        %vm761 = vcmp.ne.s32.totalorder %v653, 0
        %vm762 = vcmp.ne.s32.totalorder %v664, 0
        %vm763 = vcmp.ne.s32.totalorder %v675, 0
        %vm764 = vcmp.ne.s32.totalorder %v686, 0
        %vm765 = vcmp.ne.s32.totalorder %v697, 0
        %vm766 = vcmp.ne.s32.totalorder %v708, 0
        %vm767 = vcmp.ne.s32.totalorder %v719, 0
        %vm768 = vcmp.ne.s32.totalorder %v730, 0
        %vm769 = vcmp.ne.s32.totalorder %v741, 0
        %vm770 = vcmp.ne.s32.totalorder %v752, 0
        %vm771 = vcmp.lt.s32.totalorder %v565, 0
        %vm772 = vcmp.lt.s32.totalorder %v576, 0
        %vm773 = vcmp.lt.s32.totalorder %v587, 0
        %vm774 = vcmp.lt.s32.totalorder %v598, 0
        %vm775 = vcmp.lt.s32.totalorder %v609, 0
        %vm776 = vcmp.lt.s32.totalorder %v620, 0
        %vm777 = vcmp.lt.s32.totalorder %v631, 0
        %vm778 = vcmp.lt.s32.totalorder %v642, 0
        %vm779 = vcmp.lt.s32.totalorder %v653, 0
        %vm780 = vcmp.lt.s32.totalorder %v664, 0
        %vm781 = vcmp.lt.s32.totalorder %v675, 0
        %vm782 = vcmp.lt.s32.totalorder %v686, 0
        %vm783 = vcmp.lt.s32.totalorder %v697, 0
        %vm784 = vcmp.lt.s32.totalorder %v708, 0
        %vm785 = vcmp.lt.s32.totalorder %v719, 0
        %vm786 = vcmp.lt.s32.totalorder %v730, 0
        %vm787 = vcmp.lt.s32.totalorder %v741, 0
        %vm788 = vcmp.lt.s32.totalorder %v752, 0
        %vm789 = vmand %vm771, %vm753
        %vm790 = vmand %vm772, %vm754
        %vm791 = vmand %vm773, %vm755
        %vm792 = vmand %vm774, %vm756
        %vm793 = vmand %vm775, %vm757
        %vm794 = vmand %vm776, %vm758
        %vm795 = vmand %vm777, %vm759
        %vm796 = vmand %vm778, %vm760
        %vm797 = vmand %vm779, %vm761
        %vm798 = vmand %vm780, %vm762
        %vm799 = vmand %vm781, %vm763
        %vm800 = vmand %vm782, %vm764
        %vm801 = vmand %vm783, %vm765
        %vm802 = vmand %vm784, %vm766
        %vm803 = vmand %vm785, %vm767
        %vm804 = vmand %vm786, %vm768
        %vm805 = vmand %vm787, %vm769
        %vm806 = vmand %vm788, %vm770
        %v807 = vadd.s32 %v565, 18
        %v808 = vadd.s32 %v576, 18
        %v809 = vadd.s32 %v587, 18
        %v810 = vadd.s32 %v598, 18
        %v811 = vadd.s32 %v609, 18
        %v812 = vadd.s32 %v620, 18
        %v813 = vadd.s32 %v631, 18
        %v814 = vadd.s32 %v642, 18
        %v815 = vadd.s32 %v653, 18
        %v816 = vadd.s32 %v664, 18
        %v817 = vadd.s32 %v675, 18
        %v818 = vadd.s32 %v686, 18
        %v819 = vadd.s32 %v697, 18
        %v820 = vadd.s32 %v708, 18
        %v821 = vadd.s32 %v719, 18
        %v822 = vadd.s32 %v730, 18
        %v823 = vadd.s32 %v741, 18
        %v824 = vadd.s32 %v752, 18
        %v825 = vsel %vm789, %v807, %v565
        %v826 = vsel %vm790, %v808, %v576
        %v827 = vsel %vm791, %v809, %v587
        %v828 = vsel %vm792, %v810, %v598
        %v829 = vsel %vm793, %v811, %v609
        %v830 = vsel %vm794, %v812, %v620
        %v831 = vsel %vm795, %v813, %v631
        %v832 = vsel %vm796, %v814, %v642
        %v833 = vsel %vm797, %v815, %v653
        %v834 = vsel %vm798, %v816, %v664
        %v835 = vsel %vm799, %v817, %v675
        %v836 = vsel %vm800, %v818, %v686
        %v837 = vsel %vm801, %v819, %v697
        %v838 = vsel %vm802, %v820, %v708
        %v839 = vsel %vm803, %v821, %v719
        %v840 = vsel %vm804, %v822, %v730
        %v841 = vsel %vm805, %v823, %v741
        %v842 = vsel %vm806, %v824, %v752
        %vm843 = vcmp.lt.s32.totalorder %v825, 16
        %vm844 = vcmp.lt.s32.totalorder %v826, 16
        %vm845 = vcmp.lt.s32.totalorder %v827, 16
        %vm846 = vcmp.lt.s32.totalorder %v828, 16
        %vm847 = vcmp.lt.s32.totalorder %v829, 16
        %vm848 = vcmp.lt.s32.totalorder %v830, 16
        %vm849 = vcmp.lt.s32.totalorder %v831, 16
        %vm850 = vcmp.lt.s32.totalorder %v832, 16
        %vm851 = vcmp.lt.s32.totalorder %v833, 16
        %vm852 = vcmp.lt.s32.totalorder %v834, 16
        %vm853 = vcmp.lt.s32.totalorder %v835, 16
        %vm854 = vcmp.lt.s32.totalorder %v836, 16
        %vm855 = vcmp.lt.s32.totalorder %v837, 16
        %vm856 = vcmp.lt.s32.totalorder %v838, 16
        %vm857 = vcmp.lt.s32.totalorder %v839, 16
        %vm858 = vcmp.lt.s32.totalorder %v840, 16
        %vm859 = vcmp.lt.s32.totalorder %v841, 16
        %vm860 = vcmp.lt.s32.totalorder %v842, 16
        %v861 = vld [vmem:[%s3] sm:$0x1]
        %v862 = vld [vmem:[%s4] sm:$0x1]
        %v863 = vld [vmem:[#allocation2] sm:$0xf]
        %v864 = vld [vmem:[#allocation2 + $0x4] sm:$0xf]
        %v865 = vld [vmem:[#allocation2 + $0x8] sm:$0xf]
        %v866 = vld [vmem:[#allocation2 + $0xc] sm:$0xf]
        %v867 = vld [vmem:[#allocation2 + $0x10] sm:$0xf]
        %v868 = vld [vmem:[#allocation2 + $0x14] sm:$0xf]
        %v869 = vld [vmem:[#allocation2 + $0x18] sm:$0xf]
        %v870 = vld [vmem:[#allocation2 + $0x1c] sm:$0xf]
        %v871 = vld [vmem:[#allocation2 + $0x20] sm:$0xf]
        %v872 = vld [vmem:[#allocation2 + $0x24] sm:$0xf]
        %v873 = vld [vmem:[#allocation2 + $0x28] sm:$0xf]
        %v874 = vld [vmem:[#allocation2 + $0x2c] sm:$0xf]
        %v875 = vld [vmem:[#allocation2 + $0x30] sm:$0xf]
        %v876 = vld [vmem:[#allocation2 + $0x34] sm:$0xf]
        %v877 = vld [vmem:[#allocation2 + $0x38] sm:$0xf]
        %v878 = vld [vmem:[#allocation2 + $0x3c] sm:$0xf]
        %v879 = vld [vmem:[#allocation2 + $0x40] sm:$0xf]
        %v880 = vld [vmem:[#allocation2 + $0x44] sm:$0xf]
        %v881 = vld [vmem:[#allocation7] sm:$0xf]
        %v882 = vld [vmem:[#allocation7 + $0x4] sm:$0xf]
        %v883 = vld [vmem:[#allocation7 + $0x8] sm:$0xf]
        %v884 = vld [vmem:[#allocation7 + $0xc] sm:$0xf]
        %v885 = vld [vmem:[#allocation7 + $0x10] sm:$0xf]
        %v886 = vld [vmem:[#allocation7 + $0x14] sm:$0xf]
        %v887 = vld [vmem:[#allocation7 + $0x18] sm:$0xf]
        %v888 = vld [vmem:[#allocation7 + $0x1c] sm:$0xf]
        %v889 = vld [vmem:[#allocation7 + $0x20] sm:$0xf]
        %v890 = vld [vmem:[#allocation7 + $0x24] sm:$0xf]
        %v891 = vld [vmem:[#allocation7 + $0x28] sm:$0xf]
        %v892 = vld [vmem:[#allocation7 + $0x2c] sm:$0xf]
        %v893 = vld [vmem:[#allocation7 + $0x30] sm:$0xf]
        %v894 = vld [vmem:[#allocation7 + $0x34] sm:$0xf]
        %v895 = vld [vmem:[#allocation7 + $0x38] sm:$0xf]
        %v896 = vld [vmem:[#allocation7 + $0x3c] sm:$0xf]
        %v897 = vld [vmem:[#allocation2 + $0x48] sm:$0x1]
        %s898 = scalar_lea.vmem [#allocation7], 64
        %v899 = vld [vmem:[%s898] sm:$0xf]
        %v900 = vld [vmem:[%s898 + $0x4] sm:$0xf]
        %v901 = vld [vmem:[%s898 + $0x8] sm:$0xf]
        %v902 = vld [vmem:[%s898 + $0xc] sm:$0xf]
        %v903 = vld [vmem:[%s898 + $0x10] sm:$0xf]
        %v904 = vld [vmem:[%s898 + $0x14] sm:$0xf]
        %v905 = vld [vmem:[%s898 + $0x18] sm:$0xf]
        %v906 = vld [vmem:[%s898 + $0x1c] sm:$0xf]
        %v907 = vld [vmem:[%s898 + $0x20] sm:$0xf]
        %v908 = vld [vmem:[%s898 + $0x24] sm:$0xf]
        %v909 = vld [vmem:[%s898 + $0x28] sm:$0xf]
        %v910 = vld [vmem:[%s898 + $0x2c] sm:$0xf]
        %v911 = vld [vmem:[%s898 + $0x30] sm:$0xf]
        %v912 = vld [vmem:[%s898 + $0x34] sm:$0xf]
        %v913 = vld [vmem:[%s898 + $0x38] sm:$0xf]
        %v914 = vld [vmem:[%s898 + $0x3c] sm:$0xf]
        %v934 = vunpack.c.l.b16 %v863
        %v935 = vunpack.c.l.b16 %v864
        %v936 = vunpack.c.l.b16 %v865
        %v937 = vunpack.c.l.b16 %v866
        %v938 = vunpack.c.l.b16 %v867
        %v939 = vunpack.c.l.b16 %v868
        %v940 = vunpack.c.l.b16 %v869
        %v941 = vunpack.c.l.b16 %v870
        %v942 = vunpack.c.l.b16 %v871
        %v943 = vunpack.c.l.b16 %v872
        %v944 = vunpack.c.l.b16 %v873
        %v945 = vunpack.c.l.b16 %v874
        %v946 = vunpack.c.l.b16 %v875
        %v947 = vunpack.c.l.b16 %v876
        %v948 = vunpack.c.l.b16 %v877
        %v949 = vunpack.c.l.b16 %v878
        %v950 = vunpack.c.l.b16 %v879
        %v951 = vunpack.c.l.b16 %v880
        %v952 = vunpack.c.l.b16 %v897
        %v953 = vpack.c.b16 %v935, %v934
        %v954 = vpack.c.b16 %v937, %v936
        %v955 = vpack.c.b16 %v939, %v938
        %v956 = vpack.c.b16 %v941, %v940
        %v957 = vpack.c.b16 %v943, %v942
        %v958 = vpack.c.b16 %v945, %v944
        %v959 = vpack.c.b16 %v947, %v946
        %v960 = vpack.c.b16 %v949, %v948
        %v961 = vpack.c.b16 %v951, %v950
        %v962 = vpack.c.b16 %v952, %v952
        %vm963 = vsmask.f32 7424
        %v965 = vshrl.u32 %v953, 16
        %v967 = vshll.u32 %v953, 16
        %v969 = vrot.slane %v967, 1
        %v970 = vor.u32 %v965, %v969
        %v972 = vshll.u32 %v954, 16
        %v974 = vrot.slane %v972, 1
        %v975 = vsel %vm963, %v970, %v974
        %v976 = vshrl.u32 %v954, 16
        %v978 = vor.u32 %v976, %v974
        %v980 = vshll.u32 %v955, 16
        %v982 = vrot.slane %v980, 1
        %v983 = vsel %vm963, %v978, %v982
        %v984 = vshrl.u32 %v955, 16
        %v986 = vor.u32 %v984, %v982
        %v988 = vshll.u32 %v956, 16
        %v990 = vrot.slane %v988, 1
        %v991 = vsel %vm963, %v986, %v990
        %v992 = vshrl.u32 %v956, 16
        %v994 = vor.u32 %v992, %v990
        %v996 = vshll.u32 %v957, 16
        %v998 = vrot.slane %v996, 1
        %v999 = vsel %vm963, %v994, %v998
        %v1000 = vshrl.u32 %v957, 16
        %v1002 = vor.u32 %v1000, %v998
        %v1004 = vshll.u32 %v958, 16
        %v1006 = vrot.slane %v1004, 1
        %v1007 = vsel %vm963, %v1002, %v1006
        %v1008 = vshrl.u32 %v958, 16
        %v1010 = vor.u32 %v1008, %v1006
        %v1012 = vshll.u32 %v959, 16
        %v1014 = vrot.slane %v1012, 1
        %v1015 = vsel %vm963, %v1010, %v1014
        %v1016 = vshrl.u32 %v959, 16
        %v1018 = vor.u32 %v1016, %v1014
        %v1020 = vshll.u32 %v960, 16
        %v1022 = vrot.slane %v1020, 1
        %v1023 = vsel %vm963, %v1018, %v1022
        %v1024 = vshrl.u32 %v960, 16
        %v1026 = vor.u32 %v1024, %v1022
        %v1028 = vshll.u32 %v961, 16
        %v1030 = vrot.slane %v1028, 1
        %v1031 = vsel %vm963, %v1026, %v1030
        %v1032 = vshrl.u32 %v961, 16
        %v1034 = vor.u32 %v1032, %v1030
        %v1036 = vshll.u32 %v962, 16
        %v1038 = vrot.slane %v1036, 1
        %v1039 = vsel %vm963, %v1034, %v1038
        %v1065 = vunpack.c.l.b16 %v899
        %v1066 = vunpack.c.l.b16 %v900
        %v1067 = vunpack.c.l.b16 %v901
        %v1068 = vunpack.c.l.b16 %v902
        %v1069 = vunpack.c.l.b16 %v903
        %v1070 = vunpack.c.l.b16 %v904
        %v1071 = vunpack.c.l.b16 %v905
        %v1072 = vunpack.c.l.b16 %v906
        %v1073 = vunpack.c.l.b16 %v907
        %v1074 = vunpack.c.l.b16 %v908
        %v1075 = vunpack.c.l.b16 %v909
        %v1076 = vunpack.c.l.b16 %v910
        %v1077 = vunpack.c.l.b16 %v911
        %v1078 = vunpack.c.l.b16 %v912
        %v1079 = vunpack.c.l.b16 %v913
        %v1080 = vunpack.c.l.b16 %v914
        %v1081 = vpack.c.b16 %v1066, %v1065
        %v1082 = vpack.c.b16 %v1068, %v1067
        %v1083 = vpack.c.b16 %v1070, %v1069
        %v1084 = vpack.c.b16 %v1072, %v1071
        %v1085 = vpack.c.b16 %v1074, %v1073
        %v1086 = vpack.c.b16 %v1076, %v1075
        %v1087 = vpack.c.b16 %v1078, %v1077
        %v1088 = vpack.c.b16 %v1080, %v1079
        %1097 = vmatprep.subr.bf16.mxu0 0
        %1098 = vmatpush1.bf16.msra.mxu0 %v1081
        %1099 = vmatprep.subr.bf16.mxu0 0
        %1100 = vmatpush1.bf16.msra.mxu0 %v1082
        %1101 = vmatprep.subr.bf16.mxu0 0
        %1102 = vmatpush1.bf16.msra.mxu0 %v1083
        %1103 = vmatprep.subr.bf16.mxu0 0
        %1104 = vmatpush1.bf16.msra.mxu0 %v1084
        %1105 = vmatprep.subr.bf16.mxu0 0
        %1106 = vmatpush1.bf16.msra.mxu0 %v1085
        %1107 = vmatprep.subr.bf16.mxu0 0
        %1108 = vmatpush1.bf16.msra.mxu0 %v1086
        %1109 = vmatprep.subr.bf16.mxu0 0
        %1110 = vmatpush1.bf16.msra.mxu0 %v1087
        %1111 = vmatprep.subr.bf16.mxu0 0
        %1112 = vmatpush1.bf16.msra.mxu0 %v1088
        %1113 = vmatprep.subr.bf16.mxu0 0
        %1114 = vmatpush1.bf16.msra.mxu0 0
        %1115 = vmatprep.subr.bf16.mxu0 0
        %1116 = vmatpush1.bf16.msra.mxu0 0
        %1117 = vmatprep.subr.bf16.mxu0 0
        %1118 = vmatpush1.bf16.msra.mxu0 0
        %1119 = vmatprep.subr.bf16.mxu0 0
        %1120 = vmatpush1.bf16.msra.mxu0 0
        %1121 = vmatprep.subr.bf16.mxu0 0
        %1122 = vmatpush1.bf16.msra.mxu0 0
        %1123 = vmatprep.subr.bf16.mxu0 0
        %1124 = vmatpush1.bf16.msra.mxu0 0
        %1125 = vmatprep.subr.bf16.mxu0 0
        %1126 = vmatpush1.bf16.msra.mxu0 0
        %1127 = vmatprep.subr.bf16.mxu0 0
        %1128 = vmatpush1.bf16.msra.mxu0 0
        %1129 = vmatprep.mubr.bf16.mxu0 0
        %1130 = vmatmul.mubr.bf16.gmra.mrb[0].mxu0 %v975
        %v1131 = vpop.f32.mrb[0].mxu0
        %v1132 = vadd.f32 0.0, %v1131
        %v1133 = vpop.f32.mrb[0].mxu0
        %v1134 = vpop.f32.mrb[0].mxu0
        %v1135 = vadd.f32 0.0, %v1134
        %v1136 = vpop.f32.mrb[0].mxu0
        %1137 = vmatprep.mubr.bf16.mxu0 0
        %1138 = vmatmul.mubr.bf16.gmra.mrb[0].mxu0 %v983
        %v1139 = vpop.f32.mrb[0].mxu0
        %v1140 = vadd.f32 0.0, %v1139
        %v1141 = vpop.f32.mrb[0].mxu0
        %v1142 = vpop.f32.mrb[0].mxu0
        %v1143 = vadd.f32 0.0, %v1142
        %v1144 = vpop.f32.mrb[0].mxu0
        %1145 = vmatprep.mubr.bf16.mxu0 0
        %1146 = vmatmul.mubr.bf16.gmra.mrb[0].mxu0 %v991
        %v1147 = vpop.f32.mrb[0].mxu0
        %v1148 = vadd.f32 0.0, %v1147
        %v1149 = vpop.f32.mrb[0].mxu0
        %v1150 = vpop.f32.mrb[0].mxu0
        %v1151 = vadd.f32 0.0, %v1150
        %v1152 = vpop.f32.mrb[0].mxu0
        %1153 = vmatprep.mubr.bf16.mxu0 0
        %1154 = vmatmul.mubr.bf16.gmra.mrb[0].mxu0 %v999
        %v1155 = vpop.f32.mrb[0].mxu0
        %v1156 = vadd.f32 0.0, %v1155
        %v1157 = vpop.f32.mrb[0].mxu0
        %v1158 = vpop.f32.mrb[0].mxu0
        %v1159 = vadd.f32 0.0, %v1158
        %v1160 = vpop.f32.mrb[0].mxu0
        %1161 = vmatprep.mubr.bf16.mxu0 0
        %1162 = vmatmul.mubr.bf16.gmra.mrb[0].mxu0 %v1007
        %v1163 = vpop.f32.mrb[0].mxu0
        %v1164 = vadd.f32 0.0, %v1163
        %v1165 = vpop.f32.mrb[0].mxu0
        %v1166 = vpop.f32.mrb[0].mxu0
        %v1167 = vadd.f32 0.0, %v1166
        %v1168 = vpop.f32.mrb[0].mxu0
        %1169 = vmatprep.mubr.bf16.mxu0 0
        %1170 = vmatmul.mubr.bf16.gmra.mrb[0].mxu0 %v1015
        %v1171 = vpop.f32.mrb[0].mxu0
        %v1172 = vadd.f32 0.0, %v1171
        %v1173 = vpop.f32.mrb[0].mxu0
        %v1174 = vpop.f32.mrb[0].mxu0
        %v1175 = vadd.f32 0.0, %v1174
        %v1176 = vpop.f32.mrb[0].mxu0
        %1177 = vmatprep.mubr.bf16.mxu0 0
        %1178 = vmatmul.mubr.bf16.gmra.mrb[0].mxu0 %v1023
        %v1179 = vpop.f32.mrb[0].mxu0
        %v1180 = vadd.f32 0.0, %v1179
        %v1181 = vpop.f32.mrb[0].mxu0
        %v1182 = vpop.f32.mrb[0].mxu0
        %v1183 = vadd.f32 0.0, %v1182
        %v1184 = vpop.f32.mrb[0].mxu0
        %1185 = vmatprep.mubr.bf16.mxu0 0
        %1186 = vmatmul.mubr.bf16.gmra.mrb[0].mxu0 %v1031
        %v1187 = vpop.f32.mrb[0].mxu0
        %v1188 = vadd.f32 0.0, %v1187
        %v1189 = vpop.f32.mrb[0].mxu0
        %v1190 = vpop.f32.mrb[0].mxu0
        %v1191 = vadd.f32 0.0, %v1190
        %v1192 = vpop.f32.mrb[0].mxu0
        %1193 = vmatprep.mubr.bf16.mxu0 0
        %1194 = vmatmul.mubr.bf16.gmra.mrb[0].mxu0 %v1039
        %v1195 = vpop.f32.mrb[0].mxu0
        %v1196 = vadd.f32 0.0, %v1195
        %v1197 = vpop.f32.mrb[0].mxu0
        %v1198 = vpop.f32.mrb[0].mxu0
        %v1199 = vadd.f32 0.0, %v1198
        %v1200 = vpop.f32.mrb[0].mxu0
        %1201 = vdwg.mxu0
        %v1227 = vunpack.c.l.b16 %v881
        %v1228 = vunpack.c.l.b16 %v882
        %v1229 = vunpack.c.l.b16 %v883
        %v1230 = vunpack.c.l.b16 %v884
        %v1231 = vunpack.c.l.b16 %v885
        %v1232 = vunpack.c.l.b16 %v886
        %v1233 = vunpack.c.l.b16 %v887
        %v1234 = vunpack.c.l.b16 %v888
        %v1235 = vunpack.c.l.b16 %v889
        %v1236 = vunpack.c.l.b16 %v890
        %v1237 = vunpack.c.l.b16 %v891
        %v1238 = vunpack.c.l.b16 %v892
        %v1239 = vunpack.c.l.b16 %v893
        %v1240 = vunpack.c.l.b16 %v894
        %v1241 = vunpack.c.l.b16 %v895
        %v1242 = vunpack.c.l.b16 %v896
        %v1243 = vpack.c.b16 %v1228, %v1227
        %v1244 = vpack.c.b16 %v1230, %v1229
        %v1245 = vpack.c.b16 %v1232, %v1231
        %v1246 = vpack.c.b16 %v1234, %v1233
        %v1247 = vpack.c.b16 %v1236, %v1235
        %v1248 = vpack.c.b16 %v1238, %v1237
        %v1249 = vpack.c.b16 %v1240, %v1239
        %v1250 = vpack.c.b16 %v1242, %v1241
        %1259 = vmatprep.subr.bf16.mxu0 0
        %1260 = vmatpush1.bf16.msra.mxu0 %v1243
        %1261 = vmatprep.subr.bf16.mxu0 0
        %1262 = vmatpush1.bf16.msra.mxu0 %v1244
        %1263 = vmatprep.subr.bf16.mxu0 0
        %1264 = vmatpush1.bf16.msra.mxu0 %v1245
        %1265 = vmatprep.subr.bf16.mxu0 0
        %1266 = vmatpush1.bf16.msra.mxu0 %v1246
        %1267 = vmatprep.subr.bf16.mxu0 0
        %1268 = vmatpush1.bf16.msra.mxu0 %v1247
        %1269 = vmatprep.subr.bf16.mxu0 0
        %1270 = vmatpush1.bf16.msra.mxu0 %v1248
        %1271 = vmatprep.subr.bf16.mxu0 0
        %1272 = vmatpush1.bf16.msra.mxu0 %v1249
        %1273 = vmatprep.subr.bf16.mxu0 0
        %1274 = vmatpush1.bf16.msra.mxu0 %v1250
        %1275 = vmatprep.subr.bf16.mxu0 0
        %1276 = vmatpush1.bf16.msra.mxu0 0
        %1277 = vmatprep.subr.bf16.mxu0 0
        %1278 = vmatpush1.bf16.msra.mxu0 0
        %1279 = vmatprep.subr.bf16.mxu0 0
        %1280 = vmatpush1.bf16.msra.mxu0 0
        %1281 = vmatprep.subr.bf16.mxu0 0
        %1282 = vmatpush1.bf16.msra.mxu0 0
        %1283 = vmatprep.subr.bf16.mxu0 0
        %1284 = vmatpush1.bf16.msra.mxu0 0
        %1285 = vmatprep.subr.bf16.mxu0 0
        %1286 = vmatpush1.bf16.msra.mxu0 0
        %1287 = vmatprep.subr.bf16.mxu0 0
        %1288 = vmatpush1.bf16.msra.mxu0 0
        %1289 = vmatprep.subr.bf16.mxu0 0
        %1290 = vmatpush1.bf16.msra.mxu0 0
        %1291 = vmatprep.mubr.bf16.mxu0 0
        %1292 = vmatmul.mubr.bf16.gmra.mrb[0].mxu0 %v953
        %v1293 = vpop.f32.mrb[0].mxu0
        %v1294 = vadd.f32 %v1132, %v1293
        %v1295 = vpop.f32.mrb[0].mxu0
        %v1296 = vpop.f32.mrb[0].mxu0
        %v1297 = vadd.f32 %v1135, %v1296
        %v1298 = vpop.f32.mrb[0].mxu0
        %1299 = vmatprep.mubr.bf16.mxu0 0
        %1300 = vmatmul.mubr.bf16.gmra.mrb[0].mxu0 %v954
        %v1301 = vpop.f32.mrb[0].mxu0
        %v1302 = vadd.f32 %v1140, %v1301
        %v1303 = vpop.f32.mrb[0].mxu0
        %v1304 = vpop.f32.mrb[0].mxu0
        %v1305 = vadd.f32 %v1143, %v1304
        %v1306 = vpop.f32.mrb[0].mxu0
        %1307 = vmatprep.mubr.bf16.mxu0 0
        %1308 = vmatmul.mubr.bf16.gmra.mrb[0].mxu0 %v955
        %v1309 = vpop.f32.mrb[0].mxu0
        %v1310 = vadd.f32 %v1148, %v1309
        %v1311 = vpop.f32.mrb[0].mxu0
        %v1312 = vpop.f32.mrb[0].mxu0
        %v1313 = vadd.f32 %v1151, %v1312
        %v1314 = vpop.f32.mrb[0].mxu0
        %1315 = vmatprep.mubr.bf16.mxu0 0
        %1316 = vmatmul.mubr.bf16.gmra.mrb[0].mxu0 %v956
        %v1317 = vpop.f32.mrb[0].mxu0
        %v1318 = vadd.f32 %v1156, %v1317
        %v1319 = vpop.f32.mrb[0].mxu0
        %v1320 = vpop.f32.mrb[0].mxu0
        %v1321 = vadd.f32 %v1159, %v1320
        %v1322 = vpop.f32.mrb[0].mxu0
        %1323 = vmatprep.mubr.bf16.mxu0 0
        %1324 = vmatmul.mubr.bf16.gmra.mrb[0].mxu0 %v957
        %v1325 = vpop.f32.mrb[0].mxu0
        %v1326 = vadd.f32 %v1164, %v1325
        %v1327 = vpop.f32.mrb[0].mxu0
        %v1328 = vpop.f32.mrb[0].mxu0
        %v1329 = vadd.f32 %v1167, %v1328
        %v1330 = vpop.f32.mrb[0].mxu0
        %1331 = vmatprep.mubr.bf16.mxu0 0
        %1332 = vmatmul.mubr.bf16.gmra.mrb[0].mxu0 %v958
        %v1333 = vpop.f32.mrb[0].mxu0
        %v1334 = vadd.f32 %v1172, %v1333
        %v1335 = vpop.f32.mrb[0].mxu0
        %v1336 = vpop.f32.mrb[0].mxu0
        %v1337 = vadd.f32 %v1175, %v1336
        %v1338 = vpop.f32.mrb[0].mxu0
        %1339 = vmatprep.mubr.bf16.mxu0 0
        %1340 = vmatmul.mubr.bf16.gmra.mrb[0].mxu0 %v959
        %v1341 = vpop.f32.mrb[0].mxu0
        %v1342 = vadd.f32 %v1180, %v1341
        %v1343 = vpop.f32.mrb[0].mxu0
        %v1344 = vpop.f32.mrb[0].mxu0
        %v1345 = vadd.f32 %v1183, %v1344
        %v1346 = vpop.f32.mrb[0].mxu0
        %1347 = vmatprep.mubr.bf16.mxu0 0
        %1348 = vmatmul.mubr.bf16.gmra.mrb[0].mxu0 %v960
        %v1349 = vpop.f32.mrb[0].mxu0
        %v1350 = vadd.f32 %v1188, %v1349
        %v1351 = vpop.f32.mrb[0].mxu0
        %v1352 = vpop.f32.mrb[0].mxu0
        %v1353 = vadd.f32 %v1191, %v1352
        %v1354 = vpop.f32.mrb[0].mxu0
        %1355 = vmatprep.mubr.bf16.mxu0 0
        %1356 = vmatmul.mubr.bf16.gmra.mrb[0].mxu0 %v961
        %v1357 = vpop.f32.mrb[0].mxu0
        %v1358 = vadd.f32 %v1196, %v1357
        %v1359 = vpop.f32.mrb[0].mxu0
        %v1360 = vpop.f32.mrb[0].mxu0
        %v1361 = vadd.f32 %v1199, %v1360
        %v1362 = vpop.f32.mrb[0].mxu0
        %1363 = vdwg.mxu0
        %v1364 = vld [vmem:[#allocation2] sm:$0xe]
        %s1365 = scalar_lea.vmem [#allocation7], 128
        %v1366 = vld [vmem:[%s1365] sm:$0xf]
        %v1367 = vld [vmem:[%s1365 + $0x4] sm:$0xf]
        %v1368 = vld [vmem:[%s1365 + $0x8] sm:$0xf]
        %v1369 = vld [vmem:[%s1365 + $0xc] sm:$0xf]
        %v1370 = vld [vmem:[%s1365 + $0x10] sm:$0xf]
        %v1371 = vld [vmem:[%s1365 + $0x14] sm:$0xf]
        %v1372 = vld [vmem:[%s1365 + $0x18] sm:$0xf]
        %v1373 = vld [vmem:[%s1365 + $0x1c] sm:$0xf]
        %v1374 = vld [vmem:[%s1365 + $0x20] sm:$0xf]
        %v1375 = vld [vmem:[%s1365 + $0x24] sm:$0xf]
        %v1376 = vld [vmem:[%s1365 + $0x28] sm:$0xf]
        %v1377 = vld [vmem:[%s1365 + $0x2c] sm:$0xf]
        %v1378 = vld [vmem:[%s1365 + $0x30] sm:$0xf]
        %v1379 = vld [vmem:[%s1365 + $0x34] sm:$0xf]
        %v1380 = vld [vmem:[%s1365 + $0x38] sm:$0xf]
        %v1381 = vld [vmem:[%s1365 + $0x3c] sm:$0xf]
        %v1383 = vunpack.c.l.b16 %v1364
        %v1384 = vpack.c.b16 %v935, %v1383
        %vm1385 = vcmask 1046528
        %v1386 = vrot.slane %v1384, 1
        %v1387 = vrot.slane %v954, 1
        %v1388 = vsel %vm1385, %v1386, %v1387
        %v1389 = vrot.slane %v955, 1
        %v1390 = vsel %vm1385, %v1387, %v1389
        %v1391 = vrot.slane %v956, 1
        %v1392 = vsel %vm1385, %v1389, %v1391
        %v1393 = vrot.slane %v957, 1
        %v1394 = vsel %vm1385, %v1391, %v1393
        %v1395 = vrot.slane %v958, 1
        %v1396 = vsel %vm1385, %v1393, %v1395
        %v1397 = vrot.slane %v959, 1
        %v1398 = vsel %vm1385, %v1395, %v1397
        %v1399 = vrot.slane %v960, 1
        %v1400 = vsel %vm1385, %v1397, %v1399
        %v1401 = vrot.slane %v961, 1
        %v1402 = vsel %vm1385, %v1399, %v1401
        %v1403 = vrot.slane %v962, 1
        %v1404 = vsel %vm1385, %v1401, %v1403
        %v1430 = vunpack.c.l.b16 %v1366
        %v1431 = vunpack.c.l.b16 %v1367
        %v1432 = vunpack.c.l.b16 %v1368
        %v1433 = vunpack.c.l.b16 %v1369
        %v1434 = vunpack.c.l.b16 %v1370
        %v1435 = vunpack.c.l.b16 %v1371
        %v1436 = vunpack.c.l.b16 %v1372
        %v1437 = vunpack.c.l.b16 %v1373
        %v1438 = vunpack.c.l.b16 %v1374
        %v1439 = vunpack.c.l.b16 %v1375
        %v1440 = vunpack.c.l.b16 %v1376
        %v1441 = vunpack.c.l.b16 %v1377
        %v1442 = vunpack.c.l.b16 %v1378
        %v1443 = vunpack.c.l.b16 %v1379
        %v1444 = vunpack.c.l.b16 %v1380
        %v1445 = vunpack.c.l.b16 %v1381
        %v1446 = vpack.c.b16 %v1431, %v1430
        %v1447 = vpack.c.b16 %v1433, %v1432
        %v1448 = vpack.c.b16 %v1435, %v1434
        %v1449 = vpack.c.b16 %v1437, %v1436
        %v1450 = vpack.c.b16 %v1439, %v1438
        %v1451 = vpack.c.b16 %v1441, %v1440
        %v1452 = vpack.c.b16 %v1443, %v1442
        %v1453 = vpack.c.b16 %v1445, %v1444
        %1462 = vmatprep.subr.bf16.mxu0 0
        %1463 = vmatpush1.bf16.msra.mxu0 %v1446
        %1464 = vmatprep.subr.bf16.mxu0 0
        %1465 = vmatpush1.bf16.msra.mxu0 %v1447
        %1466 = vmatprep.subr.bf16.mxu0 0
        %1467 = vmatpush1.bf16.msra.mxu0 %v1448
        %1468 = vmatprep.subr.bf16.mxu0 0
        %1469 = vmatpush1.bf16.msra.mxu0 %v1449
        %1470 = vmatprep.subr.bf16.mxu0 0
        %1471 = vmatpush1.bf16.msra.mxu0 %v1450
        %1472 = vmatprep.subr.bf16.mxu0 0
        %1473 = vmatpush1.bf16.msra.mxu0 %v1451
        %1474 = vmatprep.subr.bf16.mxu0 0
        %1475 = vmatpush1.bf16.msra.mxu0 %v1452
        %1476 = vmatprep.subr.bf16.mxu0 0
        %1477 = vmatpush1.bf16.msra.mxu0 %v1453
        %1478 = vmatprep.subr.bf16.mxu0 0
        %1479 = vmatpush1.bf16.msra.mxu0 0
        %1480 = vmatprep.subr.bf16.mxu0 0
        %1481 = vmatpush1.bf16.msra.mxu0 0
        %1482 = vmatprep.subr.bf16.mxu0 0
        %1483 = vmatpush1.bf16.msra.mxu0 0
        %1484 = vmatprep.subr.bf16.mxu0 0
        %1485 = vmatpush1.bf16.msra.mxu0 0
        %1486 = vmatprep.subr.bf16.mxu0 0
        %1487 = vmatpush1.bf16.msra.mxu0 0
        %1488 = vmatprep.subr.bf16.mxu0 0
        %1489 = vmatpush1.bf16.msra.mxu0 0
        %1490 = vmatprep.subr.bf16.mxu0 0
        %1491 = vmatpush1.bf16.msra.mxu0 0
        %1492 = vmatprep.subr.bf16.mxu0 0
        %1493 = vmatpush1.bf16.msra.mxu0 0
        %1494 = vmatprep.mubr.bf16.mxu0 0
        %1495 = vmatmul.mubr.bf16.gmra.mrb[0].mxu0 %v1388
        %v1496 = vpop.f32.mrb[0].mxu0
        %v1497 = vadd.f32 0.0, %v1496
        %v1498 = vpop.f32.mrb[0].mxu0
        %v1499 = vpop.f32.mrb[0].mxu0
        %v1500 = vadd.f32 0.0, %v1499
        %v1501 = vpop.f32.mrb[0].mxu0
        %1502 = vmatprep.mubr.bf16.mxu0 0
        %1503 = vmatmul.mubr.bf16.gmra.mrb[0].mxu0 %v1390
        %v1504 = vpop.f32.mrb[0].mxu0
        %v1505 = vadd.f32 0.0, %v1504
        %v1506 = vpop.f32.mrb[0].mxu0
        %v1507 = vpop.f32.mrb[0].mxu0
        %v1508 = vadd.f32 0.0, %v1507
        %v1509 = vpop.f32.mrb[0].mxu0
        %1510 = vmatprep.mubr.bf16.mxu0 0
        %1511 = vmatmul.mubr.bf16.gmra.mrb[0].mxu0 %v1392
        %v1512 = vpop.f32.mrb[0].mxu0
        %v1513 = vadd.f32 0.0, %v1512
        %v1514 = vpop.f32.mrb[0].mxu0
        %v1515 = vpop.f32.mrb[0].mxu0
        %v1516 = vadd.f32 0.0, %v1515
        %v1517 = vpop.f32.mrb[0].mxu0
        %1518 = vmatprep.mubr.bf16.mxu0 0
        %1519 = vmatmul.mubr.bf16.gmra.mrb[0].mxu0 %v1394
        %v1520 = vpop.f32.mrb[0].mxu0
        %v1521 = vadd.f32 0.0, %v1520
        %v1522 = vpop.f32.mrb[0].mxu0
        %v1523 = vpop.f32.mrb[0].mxu0
        %v1524 = vadd.f32 0.0, %v1523
        %v1525 = vpop.f32.mrb[0].mxu0
        %1526 = vmatprep.mubr.bf16.mxu0 0
        %1527 = vmatmul.mubr.bf16.gmra.mrb[0].mxu0 %v1396
        %v1528 = vpop.f32.mrb[0].mxu0
        %v1529 = vadd.f32 0.0, %v1528
        %v1530 = vpop.f32.mrb[0].mxu0
        %v1531 = vpop.f32.mrb[0].mxu0
        %v1532 = vadd.f32 0.0, %v1531
        %v1533 = vpop.f32.mrb[0].mxu0
        %1534 = vmatprep.mubr.bf16.mxu0 0
        %1535 = vmatmul.mubr.bf16.gmra.mrb[0].mxu0 %v1398
        %v1536 = vpop.f32.mrb[0].mxu0
        %v1537 = vadd.f32 0.0, %v1536
        %v1538 = vpop.f32.mrb[0].mxu0
        %v1539 = vpop.f32.mrb[0].mxu0
        %v1540 = vadd.f32 0.0, %v1539
        %v1541 = vpop.f32.mrb[0].mxu0
        %1542 = vmatprep.mubr.bf16.mxu0 0
        %1543 = vmatmul.mubr.bf16.gmra.mrb[0].mxu0 %v1400
        %v1544 = vpop.f32.mrb[0].mxu0
        %v1545 = vadd.f32 0.0, %v1544
        %v1546 = vpop.f32.mrb[0].mxu0
        %v1547 = vpop.f32.mrb[0].mxu0
        %v1548 = vadd.f32 0.0, %v1547
        %v1549 = vpop.f32.mrb[0].mxu0
        %1550 = vmatprep.mubr.bf16.mxu0 0
        %1551 = vmatmul.mubr.bf16.gmra.mrb[0].mxu0 %v1402
        %v1552 = vpop.f32.mrb[0].mxu0
        %v1553 = vadd.f32 0.0, %v1552
        %v1554 = vpop.f32.mrb[0].mxu0
        %v1555 = vpop.f32.mrb[0].mxu0
        %v1556 = vadd.f32 0.0, %v1555
        %v1557 = vpop.f32.mrb[0].mxu0
        %1558 = vmatprep.mubr.bf16.mxu0 0
        %1559 = vmatmul.mubr.bf16.gmra.mrb[0].mxu0 %v1404
        %v1560 = vpop.f32.mrb[0].mxu0
        %v1561 = vadd.f32 0.0, %v1560
        %v1562 = vpop.f32.mrb[0].mxu0
        %v1563 = vpop.f32.mrb[0].mxu0
        %v1564 = vadd.f32 0.0, %v1563
        %v1565 = vpop.f32.mrb[0].mxu0
        %1566 = vdwg.mxu0
        %v1567 = vadd.f32 %v1294, %v1497
        %v1568 = vadd.f32 %v1297, %v1500
        %v1569 = vadd.f32 %v1302, %v1505
        %v1570 = vadd.f32 %v1305, %v1508
        %v1571 = vadd.f32 %v1310, %v1513
        %v1572 = vadd.f32 %v1313, %v1516
        %v1573 = vadd.f32 %v1318, %v1521
        %v1574 = vadd.f32 %v1321, %v1524
        %v1575 = vadd.f32 %v1326, %v1529
        %v1576 = vadd.f32 %v1329, %v1532
        %v1577 = vadd.f32 %v1334, %v1537
        %v1578 = vadd.f32 %v1337, %v1540
        %v1579 = vadd.f32 %v1342, %v1545
        %v1580 = vadd.f32 %v1345, %v1548
        %v1581 = vadd.f32 %v1350, %v1553
        %v1582 = vadd.f32 %v1353, %v1556
        %v1583 = vadd.f32 %v1358, %v1561
        %v1584 = vadd.f32 %v1361, %v1564
        %v1585 = vld [vmem:[#allocation2 + $0x8] sm:$0xe]
        %v1586 = vld [vmem:[#allocation2 + $0xc] sm:$0xf]
        %v1587 = vld [vmem:[#allocation2 + $0x10] sm:$0xf]
        %v1588 = vld [vmem:[#allocation2 + $0x14] sm:$0xf]
        %v1589 = vld [vmem:[#allocation2 + $0x18] sm:$0xf]
        %v1590 = vld [vmem:[#allocation2 + $0x1c] sm:$0xf]
        %v1591 = vld [vmem:[#allocation2 + $0x20] sm:$0xf]
        %v1592 = vld [vmem:[#allocation2 + $0x24] sm:$0xf]
        %v1593 = vld [vmem:[#allocation2 + $0x28] sm:$0xf]
        %v1594 = vld [vmem:[#allocation2 + $0x2c] sm:$0xf]
        %v1595 = vld [vmem:[#allocation2 + $0x30] sm:$0xf]
        %v1596 = vld [vmem:[#allocation2 + $0x34] sm:$0xf]
        %v1597 = vld [vmem:[#allocation2 + $0x38] sm:$0xf]
        %v1598 = vld [vmem:[#allocation2 + $0x3c] sm:$0xf]
        %v1599 = vld [vmem:[#allocation2 + $0x40] sm:$0xf]
        %v1600 = vld [vmem:[#allocation2 + $0x44] sm:$0xf]
        %v1601 = vld [vmem:[#allocation2 + $0x48] sm:$0xf]
        %v1602 = vld [vmem:[#allocation2 + $0x4c] sm:$0xf]
        %v1603 = vld [vmem:[#allocation2 + $0x50] sm:$0x1]
        %s1604 = scalar_lea.vmem [#allocation7], 192
        %v1605 = vld [vmem:[%s1604] sm:$0xf]
        %v1606 = vld [vmem:[%s1604 + $0x4] sm:$0xf]
        %v1607 = vld [vmem:[%s1604 + $0x8] sm:$0xf]
        %v1608 = vld [vmem:[%s1604 + $0xc] sm:$0xf]
        %v1609 = vld [vmem:[%s1604 + $0x10] sm:$0xf]
        %v1610 = vld [vmem:[%s1604 + $0x14] sm:$0xf]
        %v1611 = vld [vmem:[%s1604 + $0x18] sm:$0xf]
        %v1612 = vld [vmem:[%s1604 + $0x1c] sm:$0xf]
        %v1613 = vld [vmem:[%s1604 + $0x20] sm:$0xf]
        %v1614 = vld [vmem:[%s1604 + $0x24] sm:$0xf]
        %v1615 = vld [vmem:[%s1604 + $0x28] sm:$0xf]
        %v1616 = vld [vmem:[%s1604 + $0x2c] sm:$0xf]
        %v1617 = vld [vmem:[%s1604 + $0x30] sm:$0xf]
        %v1618 = vld [vmem:[%s1604 + $0x34] sm:$0xf]
        %v1619 = vld [vmem:[%s1604 + $0x38] sm:$0xf]
        %v1620 = vld [vmem:[%s1604 + $0x3c] sm:$0xf]
        %v1640 = vunpack.c.l.b16 %v1585
        %v1641 = vunpack.c.l.b16 %v1586
        %v1642 = vunpack.c.l.b16 %v1587
        %v1643 = vunpack.c.l.b16 %v1588
        %v1644 = vunpack.c.l.b16 %v1589
        %v1645 = vunpack.c.l.b16 %v1590
        %v1646 = vunpack.c.l.b16 %v1591
        %v1647 = vunpack.c.l.b16 %v1592
        %v1648 = vunpack.c.l.b16 %v1593
        %v1649 = vunpack.c.l.b16 %v1594
        %v1650 = vunpack.c.l.b16 %v1595
        %v1651 = vunpack.c.l.b16 %v1596
        %v1652 = vunpack.c.l.b16 %v1597
        %v1653 = vunpack.c.l.b16 %v1598
        %v1654 = vunpack.c.l.b16 %v1599
        %v1655 = vunpack.c.l.b16 %v1600
        %v1656 = vunpack.c.l.b16 %v1601
        %v1657 = vunpack.c.l.b16 %v1602
        %v1658 = vunpack.c.l.b16 %v1603
        %v1659 = vpack.c.b16 %v1641, %v1640
        %v1660 = vpack.c.b16 %v1643, %v1642
        %v1661 = vpack.c.b16 %v1645, %v1644
        %v1662 = vpack.c.b16 %v1647, %v1646
        %v1663 = vpack.c.b16 %v1649, %v1648
        %v1664 = vpack.c.b16 %v1651, %v1650
        %v1665 = vpack.c.b16 %v1653, %v1652
        %v1666 = vpack.c.b16 %v1655, %v1654
        %v1667 = vpack.c.b16 %v1657, %v1656
        %v1668 = vpack.c.b16 %v1658, %v1658
        %v1669 = vrot.slane %v1659, 1
        %v1670 = vrot.slane %v1660, 1
        %v1671 = vsel %vm1385, %v1669, %v1670
        %v1672 = vrot.slane %v1661, 1
        %v1673 = vsel %vm1385, %v1670, %v1672
        %v1674 = vrot.slane %v1662, 1
        %v1675 = vsel %vm1385, %v1672, %v1674
        %v1676 = vrot.slane %v1663, 1
        %v1677 = vsel %vm1385, %v1674, %v1676
        %v1678 = vrot.slane %v1664, 1
        %v1679 = vsel %vm1385, %v1676, %v1678
        %v1680 = vrot.slane %v1665, 1
        %v1681 = vsel %vm1385, %v1678, %v1680
        %v1682 = vrot.slane %v1666, 1
        %v1683 = vsel %vm1385, %v1680, %v1682
        %v1684 = vrot.slane %v1667, 1
        %v1685 = vsel %vm1385, %v1682, %v1684
        %v1686 = vrot.slane %v1668, 1
        %v1687 = vsel %vm1385, %v1684, %v1686
        %v1713 = vunpack.c.l.b16 %v1605
        %v1714 = vunpack.c.l.b16 %v1606
        %v1715 = vunpack.c.l.b16 %v1607
        %v1716 = vunpack.c.l.b16 %v1608
        %v1717 = vunpack.c.l.b16 %v1609
        %v1718 = vunpack.c.l.b16 %v1610
        %v1719 = vunpack.c.l.b16 %v1611
        %v1720 = vunpack.c.l.b16 %v1612
        %v1721 = vunpack.c.l.b16 %v1613
        %v1722 = vunpack.c.l.b16 %v1614
        %v1723 = vunpack.c.l.b16 %v1615
        %v1724 = vunpack.c.l.b16 %v1616
        %v1725 = vunpack.c.l.b16 %v1617
        %v1726 = vunpack.c.l.b16 %v1618
        %v1727 = vunpack.c.l.b16 %v1619
        %v1728 = vunpack.c.l.b16 %v1620
        %v1729 = vpack.c.b16 %v1714, %v1713
        %v1730 = vpack.c.b16 %v1716, %v1715
        %v1731 = vpack.c.b16 %v1718, %v1717
        %v1732 = vpack.c.b16 %v1720, %v1719
        %v1733 = vpack.c.b16 %v1722, %v1721
        %v1734 = vpack.c.b16 %v1724, %v1723
        %v1735 = vpack.c.b16 %v1726, %v1725
        %v1736 = vpack.c.b16 %v1728, %v1727
        %1745 = vmatprep.subr.bf16.mxu0 0
        %1746 = vmatpush1.bf16.msra.mxu0 %v1729
        %1747 = vmatprep.subr.bf16.mxu0 0
        %1748 = vmatpush1.bf16.msra.mxu0 %v1730
        %1749 = vmatprep.subr.bf16.mxu0 0
        %1750 = vmatpush1.bf16.msra.mxu0 %v1731
        %1751 = vmatprep.subr.bf16.mxu0 0
        %1752 = vmatpush1.bf16.msra.mxu0 %v1732
        %1753 = vmatprep.subr.bf16.mxu0 0
        %1754 = vmatpush1.bf16.msra.mxu0 %v1733
        %1755 = vmatprep.subr.bf16.mxu0 0
        %1756 = vmatpush1.bf16.msra.mxu0 %v1734
        %1757 = vmatprep.subr.bf16.mxu0 0
        %1758 = vmatpush1.bf16.msra.mxu0 %v1735
        %1759 = vmatprep.subr.bf16.mxu0 0
        %1760 = vmatpush1.bf16.msra.mxu0 %v1736
        %1761 = vmatprep.subr.bf16.mxu0 0
        %1762 = vmatpush1.bf16.msra.mxu0 0
        %1763 = vmatprep.subr.bf16.mxu0 0
        %1764 = vmatpush1.bf16.msra.mxu0 0
        %1765 = vmatprep.subr.bf16.mxu0 0
        %1766 = vmatpush1.bf16.msra.mxu0 0
        %1767 = vmatprep.subr.bf16.mxu0 0
        %1768 = vmatpush1.bf16.msra.mxu0 0
        %1769 = vmatprep.subr.bf16.mxu0 0
        %1770 = vmatpush1.bf16.msra.mxu0 0
        %1771 = vmatprep.subr.bf16.mxu0 0
        %1772 = vmatpush1.bf16.msra.mxu0 0
        %1773 = vmatprep.subr.bf16.mxu0 0
        %1774 = vmatpush1.bf16.msra.mxu0 0
        %1775 = vmatprep.subr.bf16.mxu0 0
        %1776 = vmatpush1.bf16.msra.mxu0 0
        %1777 = vmatprep.mubr.bf16.mxu0 0
        %1778 = vmatmul.mubr.bf16.gmra.mrb[0].mxu0 %v1671
        %v1779 = vpop.f32.mrb[0].mxu0
        %v1780 = vadd.f32 0.0, %v1779
        %v1781 = vpop.f32.mrb[0].mxu0
        %v1782 = vpop.f32.mrb[0].mxu0
        %v1783 = vadd.f32 0.0, %v1782
        %v1784 = vpop.f32.mrb[0].mxu0
        %1785 = vmatprep.mubr.bf16.mxu0 0
        %1786 = vmatmul.mubr.bf16.gmra.mrb[0].mxu0 %v1673
        %v1787 = vpop.f32.mrb[0].mxu0
        %v1788 = vadd.f32 0.0, %v1787
        %v1789 = vpop.f32.mrb[0].mxu0
        %v1790 = vpop.f32.mrb[0].mxu0
        %v1791 = vadd.f32 0.0, %v1790
        %v1792 = vpop.f32.mrb[0].mxu0
        %1793 = vmatprep.mubr.bf16.mxu0 0
        %1794 = vmatmul.mubr.bf16.gmra.mrb[0].mxu0 %v1675
        %v1795 = vpop.f32.mrb[0].mxu0
        %v1796 = vadd.f32 0.0, %v1795
        %v1797 = vpop.f32.mrb[0].mxu0
        %v1798 = vpop.f32.mrb[0].mxu0
        %v1799 = vadd.f32 0.0, %v1798
        %v1800 = vpop.f32.mrb[0].mxu0
        %1801 = vmatprep.mubr.bf16.mxu0 0
        %1802 = vmatmul.mubr.bf16.gmra.mrb[0].mxu0 %v1677
        %v1803 = vpop.f32.mrb[0].mxu0
        %v1804 = vadd.f32 0.0, %v1803
        %v1805 = vpop.f32.mrb[0].mxu0
        %v1806 = vpop.f32.mrb[0].mxu0
        %v1807 = vadd.f32 0.0, %v1806
        %v1808 = vpop.f32.mrb[0].mxu0
        %1809 = vmatprep.mubr.bf16.mxu0 0
        %1810 = vmatmul.mubr.bf16.gmra.mrb[0].mxu0 %v1679
        %v1811 = vpop.f32.mrb[0].mxu0
        %v1812 = vadd.f32 0.0, %v1811
        %v1813 = vpop.f32.mrb[0].mxu0
        %v1814 = vpop.f32.mrb[0].mxu0
        %v1815 = vadd.f32 0.0, %v1814
        %v1816 = vpop.f32.mrb[0].mxu0
        %1817 = vmatprep.mubr.bf16.mxu0 0
        %1818 = vmatmul.mubr.bf16.gmra.mrb[0].mxu0 %v1681
        %v1819 = vpop.f32.mrb[0].mxu0
        %v1820 = vadd.f32 0.0, %v1819
        %v1821 = vpop.f32.mrb[0].mxu0
        %v1822 = vpop.f32.mrb[0].mxu0
        %v1823 = vadd.f32 0.0, %v1822
        %v1824 = vpop.f32.mrb[0].mxu0
        %1825 = vmatprep.mubr.bf16.mxu0 0
        %1826 = vmatmul.mubr.bf16.gmra.mrb[0].mxu0 %v1683
        %v1827 = vpop.f32.mrb[0].mxu0
        %v1828 = vadd.f32 0.0, %v1827
        %v1829 = vpop.f32.mrb[0].mxu0
        %v1830 = vpop.f32.mrb[0].mxu0
        %v1831 = vadd.f32 0.0, %v1830
        %v1832 = vpop.f32.mrb[0].mxu0
        %1833 = vmatprep.mubr.bf16.mxu0 0
        %1834 = vmatmul.mubr.bf16.gmra.mrb[0].mxu0 %v1685
        %v1835 = vpop.f32.mrb[0].mxu0
        %v1836 = vadd.f32 0.0, %v1835
        %v1837 = vpop.f32.mrb[0].mxu0
        %v1838 = vpop.f32.mrb[0].mxu0
        %v1839 = vadd.f32 0.0, %v1838
        %v1840 = vpop.f32.mrb[0].mxu0
        %1841 = vmatprep.mubr.bf16.mxu0 0
        %1842 = vmatmul.mubr.bf16.gmra.mrb[0].mxu0 %v1687
        %v1843 = vpop.f32.mrb[0].mxu0
        %v1844 = vadd.f32 0.0, %v1843
        %v1845 = vpop.f32.mrb[0].mxu0
        %v1846 = vpop.f32.mrb[0].mxu0
        %v1847 = vadd.f32 0.0, %v1846
        %v1848 = vpop.f32.mrb[0].mxu0
        %1849 = vdwg.mxu0
        %v1850 = vadd.f32 %v1567, %v1780
        %v1851 = vadd.f32 %v1568, %v1783
        %v1852 = vadd.f32 %v1569, %v1788
        %v1853 = vadd.f32 %v1570, %v1791
        %v1854 = vadd.f32 %v1571, %v1796
        %v1855 = vadd.f32 %v1572, %v1799
        %v1856 = vadd.f32 %v1573, %v1804
        %v1857 = vadd.f32 %v1574, %v1807
        %v1858 = vadd.f32 %v1575, %v1812
        %v1859 = vadd.f32 %v1576, %v1815
        %v1860 = vadd.f32 %v1577, %v1820
        %v1861 = vadd.f32 %v1578, %v1823
        %v1862 = vadd.f32 %v1579, %v1828
        %v1863 = vadd.f32 %v1580, %v1831
        %v1864 = vadd.f32 %v1581, %v1836
        %v1865 = vadd.f32 %v1582, %v1839
        %v1866 = vadd.f32 %v1583, %v1844
        %v1867 = vadd.f32 %v1584, %v1847
        %v1868 = vld [vmem:[#allocation2 + $0x50] sm:$0x3]
        %s1869 = scalar_lea.vmem [#allocation7], 256
        %v1870 = vld [vmem:[%s1869] sm:$0xf]
        %v1871 = vld [vmem:[%s1869 + $0x4] sm:$0xf]
        %v1872 = vld [vmem:[%s1869 + $0x8] sm:$0xf]
        %v1873 = vld [vmem:[%s1869 + $0xc] sm:$0xf]
        %v1874 = vld [vmem:[%s1869 + $0x10] sm:$0xf]
        %v1875 = vld [vmem:[%s1869 + $0x14] sm:$0xf]
        %v1876 = vld [vmem:[%s1869 + $0x18] sm:$0xf]
        %v1877 = vld [vmem:[%s1869 + $0x1c] sm:$0xf]
        %v1878 = vld [vmem:[%s1869 + $0x20] sm:$0xf]
        %v1879 = vld [vmem:[%s1869 + $0x24] sm:$0xf]
        %v1880 = vld [vmem:[%s1869 + $0x28] sm:$0xf]
        %v1881 = vld [vmem:[%s1869 + $0x2c] sm:$0xf]
        %v1882 = vld [vmem:[%s1869 + $0x30] sm:$0xf]
        %v1883 = vld [vmem:[%s1869 + $0x34] sm:$0xf]
        %v1884 = vld [vmem:[%s1869 + $0x38] sm:$0xf]
        %v1885 = vld [vmem:[%s1869 + $0x3c] sm:$0xf]
        %v1887 = vunpack.c.l.b16 %v1868
        %v1888 = vpack.c.b16 %v1887, %v1887
        %vm1889 = vsmask.f32 6400
        %v1891 = vshrl.u32 %v1659, 16
        %v1893 = vrot.slane %v1891, 1
        %v1894 = vshll.u32 %v1659, 16
        %v1896 = vrot.slane %v1894, 2
        %v1897 = vor.u32 %v1893, %v1896
        %v1899 = vshrl.u32 %v1660, 16
        %v1901 = vrot.slane %v1899, 1
        %v1902 = vshll.u32 %v1660, 16
        %v1904 = vrot.slane %v1902, 2
        %v1905 = vor.u32 %v1901, %v1904
        %v1906 = vsel %vm1889, %v1897, %v1905
        %v1908 = vshrl.u32 %v1661, 16
        %v1910 = vrot.slane %v1908, 1
        %v1911 = vshll.u32 %v1661, 16
        %v1913 = vrot.slane %v1911, 2
        %v1914 = vor.u32 %v1910, %v1913
        %v1915 = vsel %vm1889, %v1905, %v1914
        %v1917 = vshrl.u32 %v1662, 16
        %v1919 = vrot.slane %v1917, 1
        %v1920 = vshll.u32 %v1662, 16
        %v1922 = vrot.slane %v1920, 2
        %v1923 = vor.u32 %v1919, %v1922
        %v1924 = vsel %vm1889, %v1914, %v1923
        %v1926 = vshrl.u32 %v1663, 16
        %v1928 = vrot.slane %v1926, 1
        %v1929 = vshll.u32 %v1663, 16
        %v1931 = vrot.slane %v1929, 2
        %v1932 = vor.u32 %v1928, %v1931
        %v1933 = vsel %vm1889, %v1923, %v1932
        %v1935 = vshrl.u32 %v1664, 16
        %v1937 = vrot.slane %v1935, 1
        %v1938 = vshll.u32 %v1664, 16
        %v1940 = vrot.slane %v1938, 2
        %v1941 = vor.u32 %v1937, %v1940
        %v1942 = vsel %vm1889, %v1932, %v1941
        %v1944 = vshrl.u32 %v1665, 16
        %v1946 = vrot.slane %v1944, 1
        %v1947 = vshll.u32 %v1665, 16
        %v1949 = vrot.slane %v1947, 2
        %v1950 = vor.u32 %v1946, %v1949
        %v1951 = vsel %vm1889, %v1941, %v1950
        %v1953 = vshrl.u32 %v1666, 16
        %v1955 = vrot.slane %v1953, 1
        %v1956 = vshll.u32 %v1666, 16
        %v1958 = vrot.slane %v1956, 2
        %v1959 = vor.u32 %v1955, %v1958
        %v1960 = vsel %vm1889, %v1950, %v1959
        %v1962 = vshrl.u32 %v1667, 16
        %v1964 = vrot.slane %v1962, 1
        %v1965 = vshll.u32 %v1667, 16
        %v1967 = vrot.slane %v1965, 2
        %v1968 = vor.u32 %v1964, %v1967
        %v1969 = vsel %vm1889, %v1959, %v1968
        %v1971 = vshrl.u32 %v1888, 16
        %v1973 = vrot.slane %v1971, 1
        %v1974 = vshll.u32 %v1888, 16
        %v1976 = vrot.slane %v1974, 2
        %v1977 = vor.u32 %v1973, %v1976
        %v1978 = vsel %vm1889, %v1968, %v1977
        %v2004 = vunpack.c.l.b16 %v1870
        %v2005 = vunpack.c.l.b16 %v1871
        %v2006 = vunpack.c.l.b16 %v1872
        %v2007 = vunpack.c.l.b16 %v1873
        %v2008 = vunpack.c.l.b16 %v1874
        %v2009 = vunpack.c.l.b16 %v1875
        %v2010 = vunpack.c.l.b16 %v1876
        %v2011 = vunpack.c.l.b16 %v1877
        %v2012 = vunpack.c.l.b16 %v1878
        %v2013 = vunpack.c.l.b16 %v1879
        %v2014 = vunpack.c.l.b16 %v1880
        %v2015 = vunpack.c.l.b16 %v1881
        %v2016 = vunpack.c.l.b16 %v1882
        %v2017 = vunpack.c.l.b16 %v1883
        %v2018 = vunpack.c.l.b16 %v1884
        %v2019 = vunpack.c.l.b16 %v1885
        %v2020 = vpack.c.b16 %v2005, %v2004
        %v2021 = vpack.c.b16 %v2007, %v2006
        %v2022 = vpack.c.b16 %v2009, %v2008
        %v2023 = vpack.c.b16 %v2011, %v2010
        %v2024 = vpack.c.b16 %v2013, %v2012
        %v2025 = vpack.c.b16 %v2015, %v2014
        %v2026 = vpack.c.b16 %v2017, %v2016
        %v2027 = vpack.c.b16 %v2019, %v2018
        %2036 = vmatprep.subr.bf16.mxu0 0
        %2037 = vmatpush1.bf16.msra.mxu0 %v2020
        %2038 = vmatprep.subr.bf16.mxu0 0
        %2039 = vmatpush1.bf16.msra.mxu0 %v2021
        %2040 = vmatprep.subr.bf16.mxu0 0
        %2041 = vmatpush1.bf16.msra.mxu0 %v2022
        %2042 = vmatprep.subr.bf16.mxu0 0
        %2043 = vmatpush1.bf16.msra.mxu0 %v2023
        %2044 = vmatprep.subr.bf16.mxu0 0
        %2045 = vmatpush1.bf16.msra.mxu0 %v2024
        %2046 = vmatprep.subr.bf16.mxu0 0
        %2047 = vmatpush1.bf16.msra.mxu0 %v2025
        %2048 = vmatprep.subr.bf16.mxu0 0
        %2049 = vmatpush1.bf16.msra.mxu0 %v2026
        %2050 = vmatprep.subr.bf16.mxu0 0
        %2051 = vmatpush1.bf16.msra.mxu0 %v2027
        %2052 = vmatprep.subr.bf16.mxu0 0
        %2053 = vmatpush1.bf16.msra.mxu0 0
        %2054 = vmatprep.subr.bf16.mxu0 0
        %2055 = vmatpush1.bf16.msra.mxu0 0
        %2056 = vmatprep.subr.bf16.mxu0 0
        %2057 = vmatpush1.bf16.msra.mxu0 0
        %2058 = vmatprep.subr.bf16.mxu0 0
        %2059 = vmatpush1.bf16.msra.mxu0 0
        %2060 = vmatprep.subr.bf16.mxu0 0
        %2061 = vmatpush1.bf16.msra.mxu0 0
        %2062 = vmatprep.subr.bf16.mxu0 0
        %2063 = vmatpush1.bf16.msra.mxu0 0
        %2064 = vmatprep.subr.bf16.mxu0 0
        %2065 = vmatpush1.bf16.msra.mxu0 0
        %2066 = vmatprep.subr.bf16.mxu0 0
        %2067 = vmatpush1.bf16.msra.mxu0 0
        %2068 = vmatprep.mubr.bf16.mxu0 0
        %2069 = vmatmul.mubr.bf16.gmra.mrb[0].mxu0 %v1906
        %v2070 = vpop.f32.mrb[0].mxu0
        %v2071 = vadd.f32 0.0, %v2070
        %v2072 = vpop.f32.mrb[0].mxu0
        %v2073 = vpop.f32.mrb[0].mxu0
        %v2074 = vadd.f32 0.0, %v2073
        %v2075 = vpop.f32.mrb[0].mxu0
        %2076 = vmatprep.mubr.bf16.mxu0 0
        %2077 = vmatmul.mubr.bf16.gmra.mrb[0].mxu0 %v1915
        %v2078 = vpop.f32.mrb[0].mxu0
        %v2079 = vadd.f32 0.0, %v2078
        %v2080 = vpop.f32.mrb[0].mxu0
        %v2081 = vpop.f32.mrb[0].mxu0
        %v2082 = vadd.f32 0.0, %v2081
        %v2083 = vpop.f32.mrb[0].mxu0
        %2084 = vmatprep.mubr.bf16.mxu0 0
        %2085 = vmatmul.mubr.bf16.gmra.mrb[0].mxu0 %v1924
        %v2086 = vpop.f32.mrb[0].mxu0
        %v2087 = vadd.f32 0.0, %v2086
        %v2088 = vpop.f32.mrb[0].mxu0
        %v2089 = vpop.f32.mrb[0].mxu0
        %v2090 = vadd.f32 0.0, %v2089
        %v2091 = vpop.f32.mrb[0].mxu0
        %2092 = vmatprep.mubr.bf16.mxu0 0
        %2093 = vmatmul.mubr.bf16.gmra.mrb[0].mxu0 %v1933
        %v2094 = vpop.f32.mrb[0].mxu0
        %v2095 = vadd.f32 0.0, %v2094
        %v2096 = vpop.f32.mrb[0].mxu0
        %v2097 = vpop.f32.mrb[0].mxu0
        %v2098 = vadd.f32 0.0, %v2097
        %v2099 = vpop.f32.mrb[0].mxu0
        %2100 = vmatprep.mubr.bf16.mxu0 0
        %2101 = vmatmul.mubr.bf16.gmra.mrb[0].mxu0 %v1942
        %v2102 = vpop.f32.mrb[0].mxu0
        %v2103 = vadd.f32 0.0, %v2102
        %v2104 = vpop.f32.mrb[0].mxu0
        %v2105 = vpop.f32.mrb[0].mxu0
        %v2106 = vadd.f32 0.0, %v2105
        %v2107 = vpop.f32.mrb[0].mxu0
        %2108 = vmatprep.mubr.bf16.mxu0 0
        %2109 = vmatmul.mubr.bf16.gmra.mrb[0].mxu0 %v1951
        %v2110 = vpop.f32.mrb[0].mxu0
        %v2111 = vadd.f32 0.0, %v2110
        %v2112 = vpop.f32.mrb[0].mxu0
        %v2113 = vpop.f32.mrb[0].mxu0
        %v2114 = vadd.f32 0.0, %v2113
        %v2115 = vpop.f32.mrb[0].mxu0
        %2116 = vmatprep.mubr.bf16.mxu0 0
        %2117 = vmatmul.mubr.bf16.gmra.mrb[0].mxu0 %v1960
        %v2118 = vpop.f32.mrb[0].mxu0
        %v2119 = vadd.f32 0.0, %v2118
        %v2120 = vpop.f32.mrb[0].mxu0
        %v2121 = vpop.f32.mrb[0].mxu0
        %v2122 = vadd.f32 0.0, %v2121
        %v2123 = vpop.f32.mrb[0].mxu0
        %2124 = vmatprep.mubr.bf16.mxu0 0
        %2125 = vmatmul.mubr.bf16.gmra.mrb[0].mxu0 %v1969
        %v2126 = vpop.f32.mrb[0].mxu0
        %v2127 = vadd.f32 0.0, %v2126
        %v2128 = vpop.f32.mrb[0].mxu0
        %v2129 = vpop.f32.mrb[0].mxu0
        %v2130 = vadd.f32 0.0, %v2129
        %v2131 = vpop.f32.mrb[0].mxu0
        %2132 = vmatprep.mubr.bf16.mxu0 0
        %2133 = vmatmul.mubr.bf16.gmra.mrb[0].mxu0 %v1978
        %v2134 = vpop.f32.mrb[0].mxu0
        %v2135 = vadd.f32 0.0, %v2134
        %v2136 = vpop.f32.mrb[0].mxu0
        %v2137 = vpop.f32.mrb[0].mxu0
        %v2138 = vadd.f32 0.0, %v2137
        %v2139 = vpop.f32.mrb[0].mxu0
        %2140 = vdwg.mxu0
        %v2141 = vadd.f32 %v1850, %v2071
        %v2142 = vadd.f32 %v1851, %v2074
        %v2143 = vadd.f32 %v1852, %v2079
        %v2144 = vadd.f32 %v1853, %v2082
        %v2145 = vadd.f32 %v1854, %v2087
        %v2146 = vadd.f32 %v1855, %v2090
        %v2147 = vadd.f32 %v1856, %v2095
        %v2148 = vadd.f32 %v1857, %v2098
        %v2149 = vadd.f32 %v1858, %v2103
        %v2150 = vadd.f32 %v1859, %v2106
        %v2151 = vadd.f32 %v1860, %v2111
        %v2152 = vadd.f32 %v1861, %v2114
        %v2153 = vadd.f32 %v1862, %v2119
        %v2154 = vadd.f32 %v1863, %v2122
        %v2155 = vadd.f32 %v1864, %v2127
        %v2156 = vadd.f32 %v1865, %v2130
        %v2157 = vadd.f32 %v1866, %v2135
        %v2158 = vadd.f32 %v1867, %v2138
        %v2159 = vld [vmem:[#allocation2 + $0x8] sm:$0xc]
        %s2160 = scalar_lea.vmem [#allocation7], 320
        %v2161 = vld [vmem:[%s2160] sm:$0xf]
        %v2162 = vld [vmem:[%s2160 + $0x4] sm:$0xf]
        %v2163 = vld [vmem:[%s2160 + $0x8] sm:$0xf]
        %v2164 = vld [vmem:[%s2160 + $0xc] sm:$0xf]
        %v2165 = vld [vmem:[%s2160 + $0x10] sm:$0xf]
        %v2166 = vld [vmem:[%s2160 + $0x14] sm:$0xf]
        %v2167 = vld [vmem:[%s2160 + $0x18] sm:$0xf]
        %v2168 = vld [vmem:[%s2160 + $0x1c] sm:$0xf]
        %v2169 = vld [vmem:[%s2160 + $0x20] sm:$0xf]
        %v2170 = vld [vmem:[%s2160 + $0x24] sm:$0xf]
        %v2171 = vld [vmem:[%s2160 + $0x28] sm:$0xf]
        %v2172 = vld [vmem:[%s2160 + $0x2c] sm:$0xf]
        %v2173 = vld [vmem:[%s2160 + $0x30] sm:$0xf]
        %v2174 = vld [vmem:[%s2160 + $0x34] sm:$0xf]
        %v2175 = vld [vmem:[%s2160 + $0x38] sm:$0xf]
        %v2176 = vld [vmem:[%s2160 + $0x3c] sm:$0xf]
        %v2178 = vunpack.c.l.b16 %v2159
        %v2179 = vpack.c.b16 %v1641, %v2178
        %vm2180 = vcmask 1045504
        %v2181 = vrot.slane %v2179, 2
        %v2182 = vrot.slane %v1660, 2
        %v2183 = vsel %vm2180, %v2181, %v2182
        %v2184 = vrot.slane %v1661, 2
        %v2185 = vsel %vm2180, %v2182, %v2184
        %v2186 = vrot.slane %v1662, 2
        %v2187 = vsel %vm2180, %v2184, %v2186
        %v2188 = vrot.slane %v1663, 2
        %v2189 = vsel %vm2180, %v2186, %v2188
        %v2190 = vrot.slane %v1664, 2
        %v2191 = vsel %vm2180, %v2188, %v2190
        %v2192 = vrot.slane %v1665, 2
        %v2193 = vsel %vm2180, %v2190, %v2192
        %v2194 = vrot.slane %v1666, 2
        %v2195 = vsel %vm2180, %v2192, %v2194
        %v2196 = vrot.slane %v1667, 2
        %v2197 = vsel %vm2180, %v2194, %v2196
        %v2198 = vrot.slane %v1888, 2
        %v2199 = vsel %vm2180, %v2196, %v2198
        %v2225 = vunpack.c.l.b16 %v2161
        %v2226 = vunpack.c.l.b16 %v2162
        %v2227 = vunpack.c.l.b16 %v2163
        %v2228 = vunpack.c.l.b16 %v2164
        %v2229 = vunpack.c.l.b16 %v2165
        %v2230 = vunpack.c.l.b16 %v2166
        %v2231 = vunpack.c.l.b16 %v2167
        %v2232 = vunpack.c.l.b16 %v2168
        %v2233 = vunpack.c.l.b16 %v2169
        %v2234 = vunpack.c.l.b16 %v2170
        %v2235 = vunpack.c.l.b16 %v2171
        %v2236 = vunpack.c.l.b16 %v2172
        %v2237 = vunpack.c.l.b16 %v2173
        %v2238 = vunpack.c.l.b16 %v2174
        %v2239 = vunpack.c.l.b16 %v2175
        %v2240 = vunpack.c.l.b16 %v2176
        %v2241 = vpack.c.b16 %v2226, %v2225
        %v2242 = vpack.c.b16 %v2228, %v2227
        %v2243 = vpack.c.b16 %v2230, %v2229
        %v2244 = vpack.c.b16 %v2232, %v2231
        %v2245 = vpack.c.b16 %v2234, %v2233
        %v2246 = vpack.c.b16 %v2236, %v2235
        %v2247 = vpack.c.b16 %v2238, %v2237
        %v2248 = vpack.c.b16 %v2240, %v2239
        %2257 = vmatprep.subr.bf16.mxu0 0
        %2258 = vmatpush1.bf16.msra.mxu0 %v2241
        %2259 = vmatprep.subr.bf16.mxu0 0
        %2260 = vmatpush1.bf16.msra.mxu0 %v2242
        %2261 = vmatprep.subr.bf16.mxu0 0
        %2262 = vmatpush1.bf16.msra.mxu0 %v2243
        %2263 = vmatprep.subr.bf16.mxu0 0
        %2264 = vmatpush1.bf16.msra.mxu0 %v2244
        %2265 = vmatprep.subr.bf16.mxu0 0
        %2266 = vmatpush1.bf16.msra.mxu0 %v2245
        %2267 = vmatprep.subr.bf16.mxu0 0
        %2268 = vmatpush1.bf16.msra.mxu0 %v2246
        %2269 = vmatprep.subr.bf16.mxu0 0
        %2270 = vmatpush1.bf16.msra.mxu0 %v2247
        %2271 = vmatprep.subr.bf16.mxu0 0
        %2272 = vmatpush1.bf16.msra.mxu0 %v2248
        %2273 = vmatprep.subr.bf16.mxu0 0
        %2274 = vmatpush1.bf16.msra.mxu0 0
        %2275 = vmatprep.subr.bf16.mxu0 0
        %2276 = vmatpush1.bf16.msra.mxu0 0
        %2277 = vmatprep.subr.bf16.mxu0 0
        %2278 = vmatpush1.bf16.msra.mxu0 0
        %2279 = vmatprep.subr.bf16.mxu0 0
        %2280 = vmatpush1.bf16.msra.mxu0 0
        %2281 = vmatprep.subr.bf16.mxu0 0
        %2282 = vmatpush1.bf16.msra.mxu0 0
        %2283 = vmatprep.subr.bf16.mxu0 0
        %2284 = vmatpush1.bf16.msra.mxu0 0
        %2285 = vmatprep.subr.bf16.mxu0 0
        %2286 = vmatpush1.bf16.msra.mxu0 0
        %2287 = vmatprep.subr.bf16.mxu0 0
        %2288 = vmatpush1.bf16.msra.mxu0 0
        %2289 = vmatprep.mubr.bf16.mxu0 0
        %2290 = vmatmul.mubr.bf16.gmra.mrb[0].mxu0 %v2183
        %v2291 = vpop.f32.mrb[0].mxu0
        %v2292 = vadd.f32 0.0, %v2291
        %v2293 = vpop.f32.mrb[0].mxu0
        %v2294 = vpop.f32.mrb[0].mxu0
        %v2295 = vadd.f32 0.0, %v2294
        %v2296 = vpop.f32.mrb[0].mxu0
        %2297 = vmatprep.mubr.bf16.mxu0 0
        %2298 = vmatmul.mubr.bf16.gmra.mrb[0].mxu0 %v2185
        %v2299 = vpop.f32.mrb[0].mxu0
        %v2300 = vadd.f32 0.0, %v2299
        %v2301 = vpop.f32.mrb[0].mxu0
        %v2302 = vpop.f32.mrb[0].mxu0
        %v2303 = vadd.f32 0.0, %v2302
        %v2304 = vpop.f32.mrb[0].mxu0
        %2305 = vmatprep.mubr.bf16.mxu0 0
        %2306 = vmatmul.mubr.bf16.gmra.mrb[0].mxu0 %v2187
        %v2307 = vpop.f32.mrb[0].mxu0
        %v2308 = vadd.f32 0.0, %v2307
        %v2309 = vpop.f32.mrb[0].mxu0
        %v2310 = vpop.f32.mrb[0].mxu0
        %v2311 = vadd.f32 0.0, %v2310
        %v2312 = vpop.f32.mrb[0].mxu0
        %2313 = vmatprep.mubr.bf16.mxu0 0
        %2314 = vmatmul.mubr.bf16.gmra.mrb[0].mxu0 %v2189
        %v2315 = vpop.f32.mrb[0].mxu0
        %v2316 = vadd.f32 0.0, %v2315
        %v2317 = vpop.f32.mrb[0].mxu0
        %v2318 = vpop.f32.mrb[0].mxu0
        %v2319 = vadd.f32 0.0, %v2318
        %v2320 = vpop.f32.mrb[0].mxu0
        %2321 = vmatprep.mubr.bf16.mxu0 0
        %2322 = vmatmul.mubr.bf16.gmra.mrb[0].mxu0 %v2191
        %v2323 = vpop.f32.mrb[0].mxu0
        %v2324 = vadd.f32 0.0, %v2323
        %v2325 = vpop.f32.mrb[0].mxu0
        %v2326 = vpop.f32.mrb[0].mxu0
        %v2327 = vadd.f32 0.0, %v2326
        %v2328 = vpop.f32.mrb[0].mxu0
        %2329 = vmatprep.mubr.bf16.mxu0 0
        %2330 = vmatmul.mubr.bf16.gmra.mrb[0].mxu0 %v2193
        %v2331 = vpop.f32.mrb[0].mxu0
        %v2332 = vadd.f32 0.0, %v2331
        %v2333 = vpop.f32.mrb[0].mxu0
        %v2334 = vpop.f32.mrb[0].mxu0
        %v2335 = vadd.f32 0.0, %v2334
        %v2336 = vpop.f32.mrb[0].mxu0
        %2337 = vmatprep.mubr.bf16.mxu0 0
        %2338 = vmatmul.mubr.bf16.gmra.mrb[0].mxu0 %v2195
        %v2339 = vpop.f32.mrb[0].mxu0
        %v2340 = vadd.f32 0.0, %v2339
        %v2341 = vpop.f32.mrb[0].mxu0
        %v2342 = vpop.f32.mrb[0].mxu0
        %v2343 = vadd.f32 0.0, %v2342
        %v2344 = vpop.f32.mrb[0].mxu0
        %2345 = vmatprep.mubr.bf16.mxu0 0
        %2346 = vmatmul.mubr.bf16.gmra.mrb[0].mxu0 %v2197
        %v2347 = vpop.f32.mrb[0].mxu0
        %v2348 = vadd.f32 0.0, %v2347
        %v2349 = vpop.f32.mrb[0].mxu0
        %v2350 = vpop.f32.mrb[0].mxu0
        %v2351 = vadd.f32 0.0, %v2350
        %v2352 = vpop.f32.mrb[0].mxu0
        %2353 = vmatprep.mubr.bf16.mxu0 0
        %2354 = vmatmul.mubr.bf16.gmra.mrb[0].mxu0 %v2199
        %v2355 = vpop.f32.mrb[0].mxu0
        %v2356 = vadd.f32 0.0, %v2355
        %v2357 = vpop.f32.mrb[0].mxu0
        %v2358 = vpop.f32.mrb[0].mxu0
        %v2359 = vadd.f32 0.0, %v2358
        %v2360 = vpop.f32.mrb[0].mxu0
        %2361 = vdwg.mxu0
        %v2362 = vadd.f32 %v2141, %v2292
        %v2363 = vadd.f32 %v2142, %v2295
        %v2364 = vadd.f32 %v2143, %v2300
        %v2365 = vadd.f32 %v2144, %v2303
        %v2366 = vadd.f32 %v2145, %v2308
        %v2367 = vadd.f32 %v2146, %v2311
        %v2368 = vadd.f32 %v2147, %v2316
        %v2369 = vadd.f32 %v2148, %v2319
        %v2370 = vadd.f32 %v2149, %v2324
        %v2371 = vadd.f32 %v2150, %v2327
        %v2372 = vadd.f32 %v2151, %v2332
        %v2373 = vadd.f32 %v2152, %v2335
        %v2374 = vadd.f32 %v2153, %v2340
        %v2375 = vadd.f32 %v2154, %v2343
        %v2376 = vadd.f32 %v2155, %v2348
        %v2377 = vadd.f32 %v2156, %v2351
        %v2378 = vadd.f32 %v2157, %v2356
        %v2379 = vadd.f32 %v2158, %v2359
        %v2380 = vld [vmem:[#allocation2 + $0x10] sm:$0xc]
        %v2381 = vld [vmem:[#allocation2 + $0x14] sm:$0xf]
        %v2382 = vld [vmem:[#allocation2 + $0x18] sm:$0xf]
        %v2383 = vld [vmem:[#allocation2 + $0x1c] sm:$0xf]
        %v2384 = vld [vmem:[#allocation2 + $0x20] sm:$0xf]
        %v2385 = vld [vmem:[#allocation2 + $0x24] sm:$0xf]
        %v2386 = vld [vmem:[#allocation2 + $0x28] sm:$0xf]
        %v2387 = vld [vmem:[#allocation2 + $0x2c] sm:$0xf]
        %v2388 = vld [vmem:[#allocation2 + $0x30] sm:$0xf]
        %v2389 = vld [vmem:[#allocation2 + $0x34] sm:$0xf]
        %v2390 = vld [vmem:[#allocation2 + $0x38] sm:$0xf]
        %v2391 = vld [vmem:[#allocation2 + $0x3c] sm:$0xf]
        %v2392 = vld [vmem:[#allocation2 + $0x40] sm:$0xf]
        %v2393 = vld [vmem:[#allocation2 + $0x44] sm:$0xf]
        %v2394 = vld [vmem:[#allocation2 + $0x48] sm:$0xf]
        %v2395 = vld [vmem:[#allocation2 + $0x4c] sm:$0xf]
        %v2396 = vld [vmem:[#allocation2 + $0x50] sm:$0xf]
        %v2397 = vld [vmem:[#allocation2 + $0x54] sm:$0xf]
        %v2398 = vld [vmem:[#allocation2 + $0x58] sm:$0x3]
        %s2399 = scalar_lea.vmem [#allocation7], 384
        %v2400 = vld [vmem:[%s2399] sm:$0xf]
        %v2401 = vld [vmem:[%s2399 + $0x4] sm:$0xf]
        %v2402 = vld [vmem:[%s2399 + $0x8] sm:$0xf]
        %v2403 = vld [vmem:[%s2399 + $0xc] sm:$0xf]
        %v2404 = vld [vmem:[%s2399 + $0x10] sm:$0xf]
        %v2405 = vld [vmem:[%s2399 + $0x14] sm:$0xf]
        %v2406 = vld [vmem:[%s2399 + $0x18] sm:$0xf]
        %v2407 = vld [vmem:[%s2399 + $0x1c] sm:$0xf]
        %v2408 = vld [vmem:[%s2399 + $0x20] sm:$0xf]
        %v2409 = vld [vmem:[%s2399 + $0x24] sm:$0xf]
        %v2410 = vld [vmem:[%s2399 + $0x28] sm:$0xf]
        %v2411 = vld [vmem:[%s2399 + $0x2c] sm:$0xf]
        %v2412 = vld [vmem:[%s2399 + $0x30] sm:$0xf]
        %v2413 = vld [vmem:[%s2399 + $0x34] sm:$0xf]
        %v2414 = vld [vmem:[%s2399 + $0x38] sm:$0xf]
        %v2415 = vld [vmem:[%s2399 + $0x3c] sm:$0xf]
        %v2435 = vunpack.c.l.b16 %v2380
        %v2436 = vunpack.c.l.b16 %v2381
        %v2437 = vunpack.c.l.b16 %v2382
        %v2438 = vunpack.c.l.b16 %v2383
        %v2439 = vunpack.c.l.b16 %v2384
        %v2440 = vunpack.c.l.b16 %v2385
        %v2441 = vunpack.c.l.b16 %v2386
        %v2442 = vunpack.c.l.b16 %v2387
        %v2443 = vunpack.c.l.b16 %v2388
        %v2444 = vunpack.c.l.b16 %v2389
        %v2445 = vunpack.c.l.b16 %v2390
        %v2446 = vunpack.c.l.b16 %v2391
        %v2447 = vunpack.c.l.b16 %v2392
        %v2448 = vunpack.c.l.b16 %v2393
        %v2449 = vunpack.c.l.b16 %v2394
        %v2450 = vunpack.c.l.b16 %v2395
        %v2451 = vunpack.c.l.b16 %v2396
        %v2452 = vunpack.c.l.b16 %v2397
        %v2453 = vunpack.c.l.b16 %v2398
        %v2454 = vpack.c.b16 %v2436, %v2435
        %v2455 = vpack.c.b16 %v2438, %v2437
        %v2456 = vpack.c.b16 %v2440, %v2439
        %v2457 = vpack.c.b16 %v2442, %v2441
        %v2458 = vpack.c.b16 %v2444, %v2443
        %v2459 = vpack.c.b16 %v2446, %v2445
        %v2460 = vpack.c.b16 %v2448, %v2447
        %v2461 = vpack.c.b16 %v2450, %v2449
        %v2462 = vpack.c.b16 %v2452, %v2451
        %v2463 = vpack.c.b16 %v2453, %v2453
        %v2464 = vrot.slane %v2454, 2
        %v2465 = vrot.slane %v2455, 2
        %v2466 = vsel %vm2180, %v2464, %v2465
        %v2467 = vrot.slane %v2456, 2
        %v2468 = vsel %vm2180, %v2465, %v2467
        %v2469 = vrot.slane %v2457, 2
        %v2470 = vsel %vm2180, %v2467, %v2469
        %v2471 = vrot.slane %v2458, 2
        %v2472 = vsel %vm2180, %v2469, %v2471
        %v2473 = vrot.slane %v2459, 2
        %v2474 = vsel %vm2180, %v2471, %v2473
        %v2475 = vrot.slane %v2460, 2
        %v2476 = vsel %vm2180, %v2473, %v2475
        %v2477 = vrot.slane %v2461, 2
        %v2478 = vsel %vm2180, %v2475, %v2477
        %v2479 = vrot.slane %v2462, 2
        %v2480 = vsel %vm2180, %v2477, %v2479
        %v2481 = vrot.slane %v2463, 2
        %v2482 = vsel %vm2180, %v2479, %v2481
        %v2508 = vunpack.c.l.b16 %v2400
        %v2509 = vunpack.c.l.b16 %v2401
        %v2510 = vunpack.c.l.b16 %v2402
        %v2511 = vunpack.c.l.b16 %v2403
        %v2512 = vunpack.c.l.b16 %v2404
        %v2513 = vunpack.c.l.b16 %v2405
        %v2514 = vunpack.c.l.b16 %v2406
        %v2515 = vunpack.c.l.b16 %v2407
        %v2516 = vunpack.c.l.b16 %v2408
        %v2517 = vunpack.c.l.b16 %v2409
        %v2518 = vunpack.c.l.b16 %v2410
        %v2519 = vunpack.c.l.b16 %v2411
        %v2520 = vunpack.c.l.b16 %v2412
        %v2521 = vunpack.c.l.b16 %v2413
        %v2522 = vunpack.c.l.b16 %v2414
        %v2523 = vunpack.c.l.b16 %v2415
        %v2524 = vpack.c.b16 %v2509, %v2508
        %v2525 = vpack.c.b16 %v2511, %v2510
        %v2526 = vpack.c.b16 %v2513, %v2512
        %v2527 = vpack.c.b16 %v2515, %v2514
        %v2528 = vpack.c.b16 %v2517, %v2516
        %v2529 = vpack.c.b16 %v2519, %v2518
        %v2530 = vpack.c.b16 %v2521, %v2520
        %v2531 = vpack.c.b16 %v2523, %v2522
        %2540 = vmatprep.subr.bf16.mxu0 0
        %2541 = vmatpush1.bf16.msra.mxu0 %v2524
        %2542 = vmatprep.subr.bf16.mxu0 0
        %2543 = vmatpush1.bf16.msra.mxu0 %v2525
        %2544 = vmatprep.subr.bf16.mxu0 0
        %2545 = vmatpush1.bf16.msra.mxu0 %v2526
        %2546 = vmatprep.subr.bf16.mxu0 0
        %2547 = vmatpush1.bf16.msra.mxu0 %v2527
        %2548 = vmatprep.subr.bf16.mxu0 0
        %2549 = vmatpush1.bf16.msra.mxu0 %v2528
        %2550 = vmatprep.subr.bf16.mxu0 0
        %2551 = vmatpush1.bf16.msra.mxu0 %v2529
        %2552 = vmatprep.subr.bf16.mxu0 0
        %2553 = vmatpush1.bf16.msra.mxu0 %v2530
        %2554 = vmatprep.subr.bf16.mxu0 0
        %2555 = vmatpush1.bf16.msra.mxu0 %v2531
        %2556 = vmatprep.subr.bf16.mxu0 0
        %2557 = vmatpush1.bf16.msra.mxu0 0
        %2558 = vmatprep.subr.bf16.mxu0 0
        %2559 = vmatpush1.bf16.msra.mxu0 0
        %2560 = vmatprep.subr.bf16.mxu0 0
        %2561 = vmatpush1.bf16.msra.mxu0 0
        %2562 = vmatprep.subr.bf16.mxu0 0
        %2563 = vmatpush1.bf16.msra.mxu0 0
        %2564 = vmatprep.subr.bf16.mxu0 0
        %2565 = vmatpush1.bf16.msra.mxu0 0
        %2566 = vmatprep.subr.bf16.mxu0 0
        %2567 = vmatpush1.bf16.msra.mxu0 0
        %2568 = vmatprep.subr.bf16.mxu0 0
        %2569 = vmatpush1.bf16.msra.mxu0 0
        %2570 = vmatprep.subr.bf16.mxu0 0
        %2571 = vmatpush1.bf16.msra.mxu0 0
        %2572 = vmatprep.mubr.bf16.mxu0 0
        %2573 = vmatmul.mubr.bf16.gmra.mrb[0].mxu0 %v2466
        %v2574 = vpop.f32.mrb[0].mxu0
        %v2575 = vadd.f32 0.0, %v2574
        %v2576 = vpop.f32.mrb[0].mxu0
        %v2577 = vpop.f32.mrb[0].mxu0
        %v2578 = vadd.f32 0.0, %v2577
        %v2579 = vpop.f32.mrb[0].mxu0
        %2580 = vmatprep.mubr.bf16.mxu0 0
        %2581 = vmatmul.mubr.bf16.gmra.mrb[0].mxu0 %v2468
        %v2582 = vpop.f32.mrb[0].mxu0
        %v2583 = vadd.f32 0.0, %v2582
        %v2584 = vpop.f32.mrb[0].mxu0
        %v2585 = vpop.f32.mrb[0].mxu0
        %v2586 = vadd.f32 0.0, %v2585
        %v2587 = vpop.f32.mrb[0].mxu0
        %2588 = vmatprep.mubr.bf16.mxu0 0
        %2589 = vmatmul.mubr.bf16.gmra.mrb[0].mxu0 %v2470
        %v2590 = vpop.f32.mrb[0].mxu0
        %v2591 = vadd.f32 0.0, %v2590
        %v2592 = vpop.f32.mrb[0].mxu0
        %v2593 = vpop.f32.mrb[0].mxu0
        %v2594 = vadd.f32 0.0, %v2593
        %v2595 = vpop.f32.mrb[0].mxu0
        %2596 = vmatprep.mubr.bf16.mxu0 0
        %2597 = vmatmul.mubr.bf16.gmra.mrb[0].mxu0 %v2472
        %v2598 = vpop.f32.mrb[0].mxu0
        %v2599 = vadd.f32 0.0, %v2598
        %v2600 = vpop.f32.mrb[0].mxu0
        %v2601 = vpop.f32.mrb[0].mxu0
        %v2602 = vadd.f32 0.0, %v2601
        %v2603 = vpop.f32.mrb[0].mxu0
        %2604 = vmatprep.mubr.bf16.mxu0 0
        %2605 = vmatmul.mubr.bf16.gmra.mrb[0].mxu0 %v2474
        %v2606 = vpop.f32.mrb[0].mxu0
        %v2607 = vadd.f32 0.0, %v2606
        %v2608 = vpop.f32.mrb[0].mxu0
        %v2609 = vpop.f32.mrb[0].mxu0
        %v2610 = vadd.f32 0.0, %v2609
        %v2611 = vpop.f32.mrb[0].mxu0
        %2612 = vmatprep.mubr.bf16.mxu0 0
        %2613 = vmatmul.mubr.bf16.gmra.mrb[0].mxu0 %v2476
        %v2614 = vpop.f32.mrb[0].mxu0
        %v2615 = vadd.f32 0.0, %v2614
        %v2616 = vpop.f32.mrb[0].mxu0
        %v2617 = vpop.f32.mrb[0].mxu0
        %v2618 = vadd.f32 0.0, %v2617
        %v2619 = vpop.f32.mrb[0].mxu0
        %2620 = vmatprep.mubr.bf16.mxu0 0
        %2621 = vmatmul.mubr.bf16.gmra.mrb[0].mxu0 %v2478
        %v2622 = vpop.f32.mrb[0].mxu0
        %v2623 = vadd.f32 0.0, %v2622
        %v2624 = vpop.f32.mrb[0].mxu0
        %v2625 = vpop.f32.mrb[0].mxu0
        %v2626 = vadd.f32 0.0, %v2625
        %v2627 = vpop.f32.mrb[0].mxu0
        %2628 = vmatprep.mubr.bf16.mxu0 0
        %2629 = vmatmul.mubr.bf16.gmra.mrb[0].mxu0 %v2480
        %v2630 = vpop.f32.mrb[0].mxu0
        %v2631 = vadd.f32 0.0, %v2630
        %v2632 = vpop.f32.mrb[0].mxu0
        %v2633 = vpop.f32.mrb[0].mxu0
        %v2634 = vadd.f32 0.0, %v2633
        %v2635 = vpop.f32.mrb[0].mxu0
        %2636 = vmatprep.mubr.bf16.mxu0 0
        %2637 = vmatmul.mubr.bf16.gmra.mrb[0].mxu0 %v2482
        %v2638 = vpop.f32.mrb[0].mxu0
        %v2639 = vadd.f32 0.0, %v2638
        %v2640 = vpop.f32.mrb[0].mxu0
        %v2641 = vpop.f32.mrb[0].mxu0
        %v2642 = vadd.f32 0.0, %v2641
        %v2643 = vpop.f32.mrb[0].mxu0
        %2644 = vdwg.mxu0
        %v2645 = vadd.f32 %v2362, %v2575
        %v2646 = vadd.f32 %v2363, %v2578
        %v2647 = vadd.f32 %v2364, %v2583
        %v2648 = vadd.f32 %v2365, %v2586
        %v2649 = vadd.f32 %v2366, %v2591
        %v2650 = vadd.f32 %v2367, %v2594
        %v2651 = vadd.f32 %v2368, %v2599
        %v2652 = vadd.f32 %v2369, %v2602
        %v2653 = vadd.f32 %v2370, %v2607
        %v2654 = vadd.f32 %v2371, %v2610
        %v2655 = vadd.f32 %v2372, %v2615
        %v2656 = vadd.f32 %v2373, %v2618
        %v2657 = vadd.f32 %v2374, %v2623
        %v2658 = vadd.f32 %v2375, %v2626
        %v2659 = vadd.f32 %v2376, %v2631
        %v2660 = vadd.f32 %v2377, %v2634
        %v2661 = vadd.f32 %v2378, %v2639
        %v2662 = vadd.f32 %v2379, %v2642
        %v2663 = vld [vmem:[#allocation2 + $0x58] sm:$0x7]
        %s2664 = scalar_lea.vmem [#allocation7], 448
        %v2665 = vld [vmem:[%s2664] sm:$0xf]
        %v2666 = vld [vmem:[%s2664 + $0x4] sm:$0xf]
        %v2667 = vld [vmem:[%s2664 + $0x8] sm:$0xf]
        %v2668 = vld [vmem:[%s2664 + $0xc] sm:$0xf]
        %v2669 = vld [vmem:[%s2664 + $0x10] sm:$0xf]
        %v2670 = vld [vmem:[%s2664 + $0x14] sm:$0xf]
        %v2671 = vld [vmem:[%s2664 + $0x18] sm:$0xf]
        %v2672 = vld [vmem:[%s2664 + $0x1c] sm:$0xf]
        %v2673 = vld [vmem:[%s2664 + $0x20] sm:$0xf]
        %v2674 = vld [vmem:[%s2664 + $0x24] sm:$0xf]
        %v2675 = vld [vmem:[%s2664 + $0x28] sm:$0xf]
        %v2676 = vld [vmem:[%s2664 + $0x2c] sm:$0xf]
        %v2677 = vld [vmem:[%s2664 + $0x30] sm:$0xf]
        %v2678 = vld [vmem:[%s2664 + $0x34] sm:$0xf]
        %v2679 = vld [vmem:[%s2664 + $0x38] sm:$0xf]
        %v2680 = vld [vmem:[%s2664 + $0x3c] sm:$0xf]
        %v2682 = vunpack.c.l.b16 %v2663
        %v2683 = vpack.c.b16 %v2682, %v2682
        %vm2684 = vsmask.f32 5376
        %v2686 = vshrl.u32 %v2454, 16
        %v2688 = vrot.slane %v2686, 2
        %v2689 = vshll.u32 %v2454, 16
        %v2691 = vrot.slane %v2689, 3
        %v2692 = vor.u32 %v2688, %v2691
        %v2694 = vshrl.u32 %v2455, 16
        %v2696 = vrot.slane %v2694, 2
        %v2697 = vshll.u32 %v2455, 16
        %v2699 = vrot.slane %v2697, 3
        %v2700 = vor.u32 %v2696, %v2699
        %v2701 = vsel %vm2684, %v2692, %v2700
        %v2703 = vshrl.u32 %v2456, 16
        %v2705 = vrot.slane %v2703, 2
        %v2706 = vshll.u32 %v2456, 16
        %v2708 = vrot.slane %v2706, 3
        %v2709 = vor.u32 %v2705, %v2708
        %v2710 = vsel %vm2684, %v2700, %v2709
        %v2712 = vshrl.u32 %v2457, 16
        %v2714 = vrot.slane %v2712, 2
        %v2715 = vshll.u32 %v2457, 16
        %v2717 = vrot.slane %v2715, 3
        %v2718 = vor.u32 %v2714, %v2717
        %v2719 = vsel %vm2684, %v2709, %v2718
        %v2721 = vshrl.u32 %v2458, 16
        %v2723 = vrot.slane %v2721, 2
        %v2724 = vshll.u32 %v2458, 16
        %v2726 = vrot.slane %v2724, 3
        %v2727 = vor.u32 %v2723, %v2726
        %v2728 = vsel %vm2684, %v2718, %v2727
        %v2730 = vshrl.u32 %v2459, 16
        %v2732 = vrot.slane %v2730, 2
        %v2733 = vshll.u32 %v2459, 16
        %v2735 = vrot.slane %v2733, 3
        %v2736 = vor.u32 %v2732, %v2735
        %v2737 = vsel %vm2684, %v2727, %v2736
        %v2739 = vshrl.u32 %v2460, 16
        %v2741 = vrot.slane %v2739, 2
        %v2742 = vshll.u32 %v2460, 16
        %v2744 = vrot.slane %v2742, 3
        %v2745 = vor.u32 %v2741, %v2744
        %v2746 = vsel %vm2684, %v2736, %v2745
        %v2748 = vshrl.u32 %v2461, 16
        %v2750 = vrot.slane %v2748, 2
        %v2751 = vshll.u32 %v2461, 16
        %v2753 = vrot.slane %v2751, 3
        %v2754 = vor.u32 %v2750, %v2753
        %v2755 = vsel %vm2684, %v2745, %v2754
        %v2757 = vshrl.u32 %v2462, 16
        %v2759 = vrot.slane %v2757, 2
        %v2760 = vshll.u32 %v2462, 16
        %v2762 = vrot.slane %v2760, 3
        %v2763 = vor.u32 %v2759, %v2762
        %v2764 = vsel %vm2684, %v2754, %v2763
        %v2766 = vshrl.u32 %v2683, 16
        %v2768 = vrot.slane %v2766, 2
        %v2769 = vshll.u32 %v2683, 16
        %v2771 = vrot.slane %v2769, 3
        %v2772 = vor.u32 %v2768, %v2771
        %v2773 = vsel %vm2684, %v2763, %v2772
        %v2799 = vunpack.c.l.b16 %v2665
        %v2800 = vunpack.c.l.b16 %v2666
        %v2801 = vunpack.c.l.b16 %v2667
        %v2802 = vunpack.c.l.b16 %v2668
        %v2803 = vunpack.c.l.b16 %v2669
        %v2804 = vunpack.c.l.b16 %v2670
        %v2805 = vunpack.c.l.b16 %v2671
        %v2806 = vunpack.c.l.b16 %v2672
        %v2807 = vunpack.c.l.b16 %v2673
        %v2808 = vunpack.c.l.b16 %v2674
        %v2809 = vunpack.c.l.b16 %v2675
        %v2810 = vunpack.c.l.b16 %v2676
        %v2811 = vunpack.c.l.b16 %v2677
        %v2812 = vunpack.c.l.b16 %v2678
        %v2813 = vunpack.c.l.b16 %v2679
        %v2814 = vunpack.c.l.b16 %v2680
        %v2815 = vpack.c.b16 %v2800, %v2799
        %v2816 = vpack.c.b16 %v2802, %v2801
        %v2817 = vpack.c.b16 %v2804, %v2803
        %v2818 = vpack.c.b16 %v2806, %v2805
        %v2819 = vpack.c.b16 %v2808, %v2807
        %v2820 = vpack.c.b16 %v2810, %v2809
        %v2821 = vpack.c.b16 %v2812, %v2811
        %v2822 = vpack.c.b16 %v2814, %v2813
        %2831 = vmatprep.subr.bf16.mxu0 0
        %2832 = vmatpush1.bf16.msra.mxu0 %v2815
        %2833 = vmatprep.subr.bf16.mxu0 0
        %2834 = vmatpush1.bf16.msra.mxu0 %v2816
        %2835 = vmatprep.subr.bf16.mxu0 0
        %2836 = vmatpush1.bf16.msra.mxu0 %v2817
        %2837 = vmatprep.subr.bf16.mxu0 0
        %2838 = vmatpush1.bf16.msra.mxu0 %v2818
        %2839 = vmatprep.subr.bf16.mxu0 0
        %2840 = vmatpush1.bf16.msra.mxu0 %v2819
        %2841 = vmatprep.subr.bf16.mxu0 0
        %2842 = vmatpush1.bf16.msra.mxu0 %v2820
        %2843 = vmatprep.subr.bf16.mxu0 0
        %2844 = vmatpush1.bf16.msra.mxu0 %v2821
        %2845 = vmatprep.subr.bf16.mxu0 0
        %2846 = vmatpush1.bf16.msra.mxu0 %v2822
        %2847 = vmatprep.subr.bf16.mxu0 0
        %2848 = vmatpush1.bf16.msra.mxu0 0
        %2849 = vmatprep.subr.bf16.mxu0 0
        %2850 = vmatpush1.bf16.msra.mxu0 0
        %2851 = vmatprep.subr.bf16.mxu0 0
        %2852 = vmatpush1.bf16.msra.mxu0 0
        %2853 = vmatprep.subr.bf16.mxu0 0
        %2854 = vmatpush1.bf16.msra.mxu0 0
        %2855 = vmatprep.subr.bf16.mxu0 0
        %2856 = vmatpush1.bf16.msra.mxu0 0
        %2857 = vmatprep.subr.bf16.mxu0 0
        %2858 = vmatpush1.bf16.msra.mxu0 0
        %2859 = vmatprep.subr.bf16.mxu0 0
        %2860 = vmatpush1.bf16.msra.mxu0 0
        %2861 = vmatprep.subr.bf16.mxu0 0
        %2862 = vmatpush1.bf16.msra.mxu0 0
        %2863 = vmatprep.mubr.bf16.mxu0 0
        %2864 = vmatmul.mubr.bf16.gmra.mrb[0].mxu0 %v2701
        %v2865 = vpop.f32.mrb[0].mxu0
        %v2866 = vadd.f32 0.0, %v2865
        %v2867 = vpop.f32.mrb[0].mxu0
        %v2868 = vpop.f32.mrb[0].mxu0
        %v2869 = vadd.f32 0.0, %v2868
        %v2870 = vpop.f32.mrb[0].mxu0
        %2871 = vmatprep.mubr.bf16.mxu0 0
        %2872 = vmatmul.mubr.bf16.gmra.mrb[0].mxu0 %v2710
        %v2873 = vpop.f32.mrb[0].mxu0
        %v2874 = vadd.f32 0.0, %v2873
        %v2875 = vpop.f32.mrb[0].mxu0
        %v2876 = vpop.f32.mrb[0].mxu0
        %v2877 = vadd.f32 0.0, %v2876
        %v2878 = vpop.f32.mrb[0].mxu0
        %2879 = vmatprep.mubr.bf16.mxu0 0
        %2880 = vmatmul.mubr.bf16.gmra.mrb[0].mxu0 %v2719
        %v2881 = vpop.f32.mrb[0].mxu0
        %v2882 = vadd.f32 0.0, %v2881
        %v2883 = vpop.f32.mrb[0].mxu0
        %v2884 = vpop.f32.mrb[0].mxu0
        %v2885 = vadd.f32 0.0, %v2884
        %v2886 = vpop.f32.mrb[0].mxu0
        %2887 = vmatprep.mubr.bf16.mxu0 0
        %2888 = vmatmul.mubr.bf16.gmra.mrb[0].mxu0 %v2728
        %v2889 = vpop.f32.mrb[0].mxu0
        %v2890 = vadd.f32 0.0, %v2889
        %v2891 = vpop.f32.mrb[0].mxu0
        %v2892 = vpop.f32.mrb[0].mxu0
        %v2893 = vadd.f32 0.0, %v2892
        %v2894 = vpop.f32.mrb[0].mxu0
        %2895 = vmatprep.mubr.bf16.mxu0 0
        %2896 = vmatmul.mubr.bf16.gmra.mrb[0].mxu0 %v2737
        %v2897 = vpop.f32.mrb[0].mxu0
        %v2898 = vadd.f32 0.0, %v2897
        %v2899 = vpop.f32.mrb[0].mxu0
        %v2900 = vpop.f32.mrb[0].mxu0
        %v2901 = vadd.f32 0.0, %v2900
        %v2902 = vpop.f32.mrb[0].mxu0
        %2903 = vmatprep.mubr.bf16.mxu0 0
        %2904 = vmatmul.mubr.bf16.gmra.mrb[0].mxu0 %v2746
        %v2905 = vpop.f32.mrb[0].mxu0
        %v2906 = vadd.f32 0.0, %v2905
        %v2907 = vpop.f32.mrb[0].mxu0
        %v2908 = vpop.f32.mrb[0].mxu0
        %v2909 = vadd.f32 0.0, %v2908
        %v2910 = vpop.f32.mrb[0].mxu0
        %2911 = vmatprep.mubr.bf16.mxu0 0
        %2912 = vmatmul.mubr.bf16.gmra.mrb[0].mxu0 %v2755
        %v2913 = vpop.f32.mrb[0].mxu0
        %v2914 = vadd.f32 0.0, %v2913
        %v2915 = vpop.f32.mrb[0].mxu0
        %v2916 = vpop.f32.mrb[0].mxu0
        %v2917 = vadd.f32 0.0, %v2916
        %v2918 = vpop.f32.mrb[0].mxu0
        %2919 = vmatprep.mubr.bf16.mxu0 0
        %2920 = vmatmul.mubr.bf16.gmra.mrb[0].mxu0 %v2764
        %v2921 = vpop.f32.mrb[0].mxu0
        %v2922 = vadd.f32 0.0, %v2921
        %v2923 = vpop.f32.mrb[0].mxu0
        %v2924 = vpop.f32.mrb[0].mxu0
        %v2925 = vadd.f32 0.0, %v2924
        %v2926 = vpop.f32.mrb[0].mxu0
        %2927 = vmatprep.mubr.bf16.mxu0 0
        %2928 = vmatmul.mubr.bf16.gmra.mrb[0].mxu0 %v2773
        %v2929 = vpop.f32.mrb[0].mxu0
        %v2930 = vadd.f32 0.0, %v2929
        %v2931 = vpop.f32.mrb[0].mxu0
        %v2932 = vpop.f32.mrb[0].mxu0
        %v2933 = vadd.f32 0.0, %v2932
        %v2934 = vpop.f32.mrb[0].mxu0
        %2935 = vdwg.mxu0
        %v2936 = vadd.f32 %v2645, %v2866
        %v2937 = vadd.f32 %v2646, %v2869
        %v2938 = vadd.f32 %v2647, %v2874
        %v2939 = vadd.f32 %v2648, %v2877
        %v2940 = vadd.f32 %v2649, %v2882
        %v2941 = vadd.f32 %v2650, %v2885
        %v2942 = vadd.f32 %v2651, %v2890
        %v2943 = vadd.f32 %v2652, %v2893
        %v2944 = vadd.f32 %v2653, %v2898
        %v2945 = vadd.f32 %v2654, %v2901
        %v2946 = vadd.f32 %v2655, %v2906
        %v2947 = vadd.f32 %v2656, %v2909
        %v2948 = vadd.f32 %v2657, %v2914
        %v2949 = vadd.f32 %v2658, %v2917
        %v2950 = vadd.f32 %v2659, %v2922
        %v2951 = vadd.f32 %v2660, %v2925
        %v2952 = vadd.f32 %v2661, %v2930
        %v2953 = vadd.f32 %v2662, %v2933
        %v2954 = vld [vmem:[#allocation2 + $0x10] sm:$0x8]
        %s2955 = scalar_lea.vmem [#allocation7], 512
        %v2956 = vld [vmem:[%s2955] sm:$0xf]
        %v2957 = vld [vmem:[%s2955 + $0x4] sm:$0xf]
        %v2958 = vld [vmem:[%s2955 + $0x8] sm:$0xf]
        %v2959 = vld [vmem:[%s2955 + $0xc] sm:$0xf]
        %v2960 = vld [vmem:[%s2955 + $0x10] sm:$0xf]
        %v2961 = vld [vmem:[%s2955 + $0x14] sm:$0xf]
        %v2962 = vld [vmem:[%s2955 + $0x18] sm:$0xf]
        %v2963 = vld [vmem:[%s2955 + $0x1c] sm:$0xf]
        %v2964 = vld [vmem:[%s2955 + $0x20] sm:$0xf]
        %v2965 = vld [vmem:[%s2955 + $0x24] sm:$0xf]
        %v2966 = vld [vmem:[%s2955 + $0x28] sm:$0xf]
        %v2967 = vld [vmem:[%s2955 + $0x2c] sm:$0xf]
        %v2968 = vld [vmem:[%s2955 + $0x30] sm:$0xf]
        %v2969 = vld [vmem:[%s2955 + $0x34] sm:$0xf]
        %v2970 = vld [vmem:[%s2955 + $0x38] sm:$0xf]
        %v2971 = vld [vmem:[%s2955 + $0x3c] sm:$0xf]
        %v2973 = vunpack.c.l.b16 %v2954
        %v2974 = vpack.c.b16 %v2436, %v2973
        %vm2975 = vcmask 1044480
        %v2976 = vrot.slane %v2974, 3
        %v2977 = vrot.slane %v2455, 3
        %v2978 = vsel %vm2975, %v2976, %v2977
        %v2979 = vrot.slane %v2456, 3
        %v2980 = vsel %vm2975, %v2977, %v2979
        %v2981 = vrot.slane %v2457, 3
        %v2982 = vsel %vm2975, %v2979, %v2981
        %v2983 = vrot.slane %v2458, 3
        %v2984 = vsel %vm2975, %v2981, %v2983
        %v2985 = vrot.slane %v2459, 3
        %v2986 = vsel %vm2975, %v2983, %v2985
        %v2987 = vrot.slane %v2460, 3
        %v2988 = vsel %vm2975, %v2985, %v2987
        %v2989 = vrot.slane %v2461, 3
        %v2990 = vsel %vm2975, %v2987, %v2989
        %v2991 = vrot.slane %v2462, 3
        %v2992 = vsel %vm2975, %v2989, %v2991
        %v2993 = vrot.slane %v2683, 3
        %v2994 = vsel %vm2975, %v2991, %v2993
        %v3020 = vunpack.c.l.b16 %v2956
        %v3021 = vunpack.c.l.b16 %v2957
        %v3022 = vunpack.c.l.b16 %v2958
        %v3023 = vunpack.c.l.b16 %v2959
        %v3024 = vunpack.c.l.b16 %v2960
        %v3025 = vunpack.c.l.b16 %v2961
        %v3026 = vunpack.c.l.b16 %v2962
        %v3027 = vunpack.c.l.b16 %v2963
        %v3028 = vunpack.c.l.b16 %v2964
        %v3029 = vunpack.c.l.b16 %v2965
        %v3030 = vunpack.c.l.b16 %v2966
        %v3031 = vunpack.c.l.b16 %v2967
        %v3032 = vunpack.c.l.b16 %v2968
        %v3033 = vunpack.c.l.b16 %v2969
        %v3034 = vunpack.c.l.b16 %v2970
        %v3035 = vunpack.c.l.b16 %v2971
        %v3036 = vpack.c.b16 %v3021, %v3020
        %v3037 = vpack.c.b16 %v3023, %v3022
        %v3038 = vpack.c.b16 %v3025, %v3024
        %v3039 = vpack.c.b16 %v3027, %v3026
        %v3040 = vpack.c.b16 %v3029, %v3028
        %v3041 = vpack.c.b16 %v3031, %v3030
        %v3042 = vpack.c.b16 %v3033, %v3032
        %v3043 = vpack.c.b16 %v3035, %v3034
        %3052 = vmatprep.subr.bf16.mxu0 0
        %3053 = vmatpush1.bf16.msra.mxu0 %v3036
        %3054 = vmatprep.subr.bf16.mxu0 0
        %3055 = vmatpush1.bf16.msra.mxu0 %v3037
        %3056 = vmatprep.subr.bf16.mxu0 0
        %3057 = vmatpush1.bf16.msra.mxu0 %v3038
        %3058 = vmatprep.subr.bf16.mxu0 0
        %3059 = vmatpush1.bf16.msra.mxu0 %v3039
        %3060 = vmatprep.subr.bf16.mxu0 0
        %3061 = vmatpush1.bf16.msra.mxu0 %v3040
        %3062 = vmatprep.subr.bf16.mxu0 0
        %3063 = vmatpush1.bf16.msra.mxu0 %v3041
        %3064 = vmatprep.subr.bf16.mxu0 0
        %3065 = vmatpush1.bf16.msra.mxu0 %v3042
        %3066 = vmatprep.subr.bf16.mxu0 0
        %3067 = vmatpush1.bf16.msra.mxu0 %v3043
        %3068 = vmatprep.subr.bf16.mxu0 0
        %3069 = vmatpush1.bf16.msra.mxu0 0
        %3070 = vmatprep.subr.bf16.mxu0 0
        %3071 = vmatpush1.bf16.msra.mxu0 0
        %3072 = vmatprep.subr.bf16.mxu0 0
        %3073 = vmatpush1.bf16.msra.mxu0 0
        %3074 = vmatprep.subr.bf16.mxu0 0
        %3075 = vmatpush1.bf16.msra.mxu0 0
        %3076 = vmatprep.subr.bf16.mxu0 0
        %3077 = vmatpush1.bf16.msra.mxu0 0
        %3078 = vmatprep.subr.bf16.mxu0 0
        %3079 = vmatpush1.bf16.msra.mxu0 0
        %3080 = vmatprep.subr.bf16.mxu0 0
        %3081 = vmatpush1.bf16.msra.mxu0 0
        %3082 = vmatprep.subr.bf16.mxu0 0
        %3083 = vmatpush1.bf16.msra.mxu0 0
        %3084 = vmatprep.mubr.bf16.mxu0 0
        %3085 = vmatmul.mubr.bf16.gmra.mrb[0].mxu0 %v2978
        %v3086 = vpop.f32.mrb[0].mxu0
        %v3087 = vadd.f32 0.0, %v3086
        %v3088 = vpop.f32.mrb[0].mxu0
        %v3089 = vpop.f32.mrb[0].mxu0
        %v3090 = vadd.f32 0.0, %v3089
        %v3091 = vpop.f32.mrb[0].mxu0
        %3092 = vmatprep.mubr.bf16.mxu0 0
        %3093 = vmatmul.mubr.bf16.gmra.mrb[0].mxu0 %v2980
        %v3094 = vpop.f32.mrb[0].mxu0
        %v3095 = vadd.f32 0.0, %v3094
        %v3096 = vpop.f32.mrb[0].mxu0
        %v3097 = vpop.f32.mrb[0].mxu0
        %v3098 = vadd.f32 0.0, %v3097
        %v3099 = vpop.f32.mrb[0].mxu0
        %3100 = vmatprep.mubr.bf16.mxu0 0
        %3101 = vmatmul.mubr.bf16.gmra.mrb[0].mxu0 %v2982
        %v3102 = vpop.f32.mrb[0].mxu0
        %v3103 = vadd.f32 0.0, %v3102
        %v3104 = vpop.f32.mrb[0].mxu0
        %v3105 = vpop.f32.mrb[0].mxu0
        %v3106 = vadd.f32 0.0, %v3105
        %v3107 = vpop.f32.mrb[0].mxu0
        %3108 = vmatprep.mubr.bf16.mxu0 0
        %3109 = vmatmul.mubr.bf16.gmra.mrb[0].mxu0 %v2984
        %v3110 = vpop.f32.mrb[0].mxu0
        %v3111 = vadd.f32 0.0, %v3110
        %v3112 = vpop.f32.mrb[0].mxu0
        %v3113 = vpop.f32.mrb[0].mxu0
        %v3114 = vadd.f32 0.0, %v3113
        %v3115 = vpop.f32.mrb[0].mxu0
        %3116 = vmatprep.mubr.bf16.mxu0 0
        %3117 = vmatmul.mubr.bf16.gmra.mrb[0].mxu0 %v2986
        %v3118 = vpop.f32.mrb[0].mxu0
        %v3119 = vadd.f32 0.0, %v3118
        %v3120 = vpop.f32.mrb[0].mxu0
        %v3121 = vpop.f32.mrb[0].mxu0
        %v3122 = vadd.f32 0.0, %v3121
        %v3123 = vpop.f32.mrb[0].mxu0
        %3124 = vmatprep.mubr.bf16.mxu0 0
        %3125 = vmatmul.mubr.bf16.gmra.mrb[0].mxu0 %v2988
        %v3126 = vpop.f32.mrb[0].mxu0
        %v3127 = vadd.f32 0.0, %v3126
        %v3128 = vpop.f32.mrb[0].mxu0
        %v3129 = vpop.f32.mrb[0].mxu0
        %v3130 = vadd.f32 0.0, %v3129
        %v3131 = vpop.f32.mrb[0].mxu0
        %3132 = vmatprep.mubr.bf16.mxu0 0
        %3133 = vmatmul.mubr.bf16.gmra.mrb[0].mxu0 %v2990
        %v3134 = vpop.f32.mrb[0].mxu0
        %v3135 = vadd.f32 0.0, %v3134
        %v3136 = vpop.f32.mrb[0].mxu0
        %v3137 = vpop.f32.mrb[0].mxu0
        %v3138 = vadd.f32 0.0, %v3137
        %v3139 = vpop.f32.mrb[0].mxu0
        %3140 = vmatprep.mubr.bf16.mxu0 0
        %3141 = vmatmul.mubr.bf16.gmra.mrb[0].mxu0 %v2992
        %v3142 = vpop.f32.mrb[0].mxu0
        %v3143 = vadd.f32 0.0, %v3142
        %v3144 = vpop.f32.mrb[0].mxu0
        %v3145 = vpop.f32.mrb[0].mxu0
        %v3146 = vadd.f32 0.0, %v3145
        %v3147 = vpop.f32.mrb[0].mxu0
        %3148 = vmatprep.mubr.bf16.mxu0 0
        %3149 = vmatmul.mubr.bf16.gmra.mrb[0].mxu0 %v2994
        %v3150 = vpop.f32.mrb[0].mxu0
        %v3151 = vadd.f32 0.0, %v3150
        %v3152 = vpop.f32.mrb[0].mxu0
        %v3153 = vpop.f32.mrb[0].mxu0
        %v3154 = vadd.f32 0.0, %v3153
        %v3155 = vpop.f32.mrb[0].mxu0
        %3156 = vdwg.mxu0
        %v3157 = vadd.f32 %v2936, %v3087
        %v3158 = vadd.f32 %v2937, %v3090
        %v3159 = vadd.f32 %v2938, %v3095
        %v3160 = vadd.f32 %v2939, %v3098
        %v3161 = vadd.f32 %v2940, %v3103
        %v3162 = vadd.f32 %v2941, %v3106
        %v3163 = vadd.f32 %v2942, %v3111
        %v3164 = vadd.f32 %v2943, %v3114
        %v3165 = vadd.f32 %v2944, %v3119
        %v3166 = vadd.f32 %v2945, %v3122
        %v3167 = vadd.f32 %v2946, %v3127
        %v3168 = vadd.f32 %v2947, %v3130
        %v3169 = vadd.f32 %v2948, %v3135
        %v3170 = vadd.f32 %v2949, %v3138
        %v3171 = vadd.f32 %v2950, %v3143
        %v3172 = vadd.f32 %v2951, %v3146
        %v3173 = vadd.f32 %v2952, %v3151
        %v3174 = vadd.f32 %v2953, %v3154
        %v3176 = vlaneseq
        %v3177 = vshrl.u32 %v3176, 7
        %v3178 = vsub.s32 0, %v3177
        %v3179 = vrot.slane %v861, %v3178
        %v3181 = vadd.f32 %v3157, %v3179
        %v3182 = vadd.f32 %v3158, %v3179
        %v3183 = vadd.f32 %v3159, %v3179
        %v3184 = vadd.f32 %v3160, %v3179
        %v3185 = vadd.f32 %v3161, %v3179
        %v3186 = vadd.f32 %v3162, %v3179
        %v3187 = vadd.f32 %v3163, %v3179
        %v3188 = vadd.f32 %v3164, %v3179
        %v3189 = vadd.f32 %v3165, %v3179
        %v3190 = vadd.f32 %v3166, %v3179
        %v3191 = vadd.f32 %v3167, %v3179
        %v3192 = vadd.f32 %v3168, %v3179
        %v3193 = vadd.f32 %v3169, %v3179
        %v3194 = vadd.f32 %v3170, %v3179
        %v3195 = vadd.f32 %v3171, %v3179
        %v3196 = vadd.f32 %v3172, %v3179
        %v3197 = vadd.f32 %v3173, %v3179
        %v3198 = vadd.f32 %v3174, %v3179
        %v3199 = vmax.f32 %v3181, 0.0
        %v3200 = vmax.f32 %v3182, 0.0
        %v3201 = vmax.f32 %v3183, 0.0
        %v3202 = vmax.f32 %v3184, 0.0
        %v3203 = vmax.f32 %v3185, 0.0
        %v3204 = vmax.f32 %v3186, 0.0
        %v3205 = vmax.f32 %v3187, 0.0
        %v3206 = vmax.f32 %v3188, 0.0
        %v3207 = vmax.f32 %v3189, 0.0
        %v3208 = vmax.f32 %v3190, 0.0
        %v3209 = vmax.f32 %v3191, 0.0
        %v3210 = vmax.f32 %v3192, 0.0
        %v3211 = vmax.f32 %v3193, 0.0
        %v3212 = vmax.f32 %v3194, 0.0
        %v3213 = vmax.f32 %v3195, 0.0
        %v3214 = vmax.f32 %v3196, 0.0
        %v3215 = vmax.f32 %v3197, 0.0
        %v3216 = vmax.f32 %v3198, 0.0
        %v3217 = vsel %vm843, %v3199, 0.0
        %v3218 = vsel %vm844, %v3200, 0.0
        %v3219 = vsel %vm845, %v3201, 0.0
        %v3220 = vsel %vm846, %v3202, 0.0
        %v3221 = vsel %vm847, %v3203, 0.0
        %v3222 = vsel %vm848, %v3204, 0.0
        %v3223 = vsel %vm849, %v3205, 0.0
        %v3224 = vsel %vm850, %v3206, 0.0
        %v3225 = vsel %vm851, %v3207, 0.0
        %v3226 = vsel %vm852, %v3208, 0.0
        %v3227 = vsel %vm853, %v3209, 0.0
        %v3228 = vsel %vm854, %v3210, 0.0
        %v3229 = vsel %vm855, %v3211, 0.0
        %v3230 = vsel %vm856, %v3212, 0.0
        %v3231 = vsel %vm857, %v3213, 0.0
        %v3232 = vsel %vm858, %v3214, 0.0
        %v3233 = vsel %vm859, %v3215, 0.0
        %v3234 = vsel %vm860, %v3216, 0.0
        %v3235 = vpack.c.bf16 %v3218, %v3217
        %v3236 = vpack.c.bf16 %v3220, %v3219
        %v3237 = vpack.c.bf16 %v3222, %v3221
        %v3238 = vpack.c.bf16 %v3224, %v3223
        %v3239 = vpack.c.bf16 %v3226, %v3225
        %v3240 = vpack.c.bf16 %v3228, %v3227
        %v3241 = vpack.c.bf16 %v3230, %v3229
        %v3242 = vpack.c.bf16 %v3232, %v3231
        %v3243 = vpack.c.bf16 %v3234, %v3233
        %v3253 = vunpack.c.l.b16 %v3235
        %v3254 = vunpack.c.h.b16 %v3235
        %v3255 = vunpack.c.l.b16 %v3236
        %v3256 = vunpack.c.h.b16 %v3236
        %v3257 = vunpack.c.l.b16 %v3237
        %v3258 = vunpack.c.h.b16 %v3237
        %v3259 = vunpack.c.l.b16 %v3238
        %v3260 = vunpack.c.h.b16 %v3238
        %v3261 = vunpack.c.l.b16 %v3239
        %v3262 = vunpack.c.h.b16 %v3239
        %v3263 = vunpack.c.l.b16 %v3240
        %v3264 = vunpack.c.h.b16 %v3240
        %v3265 = vunpack.c.l.b16 %v3241
        %v3266 = vunpack.c.h.b16 %v3241
        %v3267 = vunpack.c.l.b16 %v3242
        %v3268 = vunpack.c.h.b16 %v3242
        %v3269 = vunpack.c.l.b16 %v3243
        %v3270 = vunpack.c.h.b16 %v3243
        %v3271 = vpack.c.b16 %v3253, %v3253
        %v3272 = vpack.c.b16 %v3254, %v3254
        %v3273 = vpack.c.b16 %v3255, %v3255
        %v3274 = vpack.c.b16 %v3256, %v3256
        %v3275 = vpack.c.b16 %v3257, %v3257
        %v3276 = vpack.c.b16 %v3258, %v3258
        %v3277 = vpack.c.b16 %v3259, %v3259
        %v3278 = vpack.c.b16 %v3260, %v3260
        %v3279 = vpack.c.b16 %v3261, %v3261
        %v3280 = vpack.c.b16 %v3262, %v3262
        %v3281 = vpack.c.b16 %v3263, %v3263
        %v3282 = vpack.c.b16 %v3264, %v3264
        %v3283 = vpack.c.b16 %v3265, %v3265
        %v3284 = vpack.c.b16 %v3266, %v3266
        %v3285 = vpack.c.b16 %v3267, %v3267
        %v3286 = vpack.c.b16 %v3268, %v3268
        %v3287 = vpack.c.b16 %v3269, %v3269
        %v3288 = vpack.c.b16 %v3270, %v3270
        %vm3289 = vsmask.f32 5392
        %vm3290 = vmor %vm523, %vm3289
        %v3292 = vshrl.u32 %v3271, 16
        %v3294 = vrot.slane %v3292, 6
        %v3295 = vshll.u32 %v3271, 16
        %v3297 = vrot.slane %v3295, 7
        %v3298 = vor.u32 %v3294, %v3297
        %v3299 = vrot.slane %v3298, 4
        %v3301 = vshrl.u32 %v3272, 16
        %v3303 = vrot.slane %v3301, 6
        %v3304 = vshll.u32 %v3272, 16
        %v3306 = vrot.slane %v3304, 7
        %v3307 = vor.u32 %v3303, %v3306
        %v3308 = vsel %vm3290, %v3299, %v3307
        %v3309 = vrot.slane %v3307, 4
        %v3311 = vshrl.u32 %v3273, 16
        %v3313 = vrot.slane %v3311, 6
        %v3314 = vshll.u32 %v3273, 16
        %v3316 = vrot.slane %v3314, 7
        %v3317 = vor.u32 %v3313, %v3316
        %v3318 = vsel %vm3290, %v3309, %v3317
        %v3319 = vrot.slane %v3317, 4
        %v3321 = vshrl.u32 %v3274, 16
        %v3323 = vrot.slane %v3321, 6
        %v3324 = vshll.u32 %v3274, 16
        %v3326 = vrot.slane %v3324, 7
        %v3327 = vor.u32 %v3323, %v3326
        %v3328 = vsel %vm3290, %v3319, %v3327
        %v3329 = vrot.slane %v3327, 4
        %v3331 = vshrl.u32 %v3275, 16
        %v3333 = vrot.slane %v3331, 6
        %v3334 = vshll.u32 %v3275, 16
        %v3336 = vrot.slane %v3334, 7
        %v3337 = vor.u32 %v3333, %v3336
        %v3338 = vsel %vm3290, %v3329, %v3337
        %v3339 = vrot.slane %v3337, 4
        %v3341 = vshrl.u32 %v3276, 16
        %v3343 = vrot.slane %v3341, 6
        %v3344 = vshll.u32 %v3276, 16
        %v3346 = vrot.slane %v3344, 7
        %v3347 = vor.u32 %v3343, %v3346
        %v3348 = vsel %vm3290, %v3339, %v3347
        %v3349 = vrot.slane %v3347, 4
        %v3351 = vshrl.u32 %v3277, 16
        %v3353 = vrot.slane %v3351, 6
        %v3354 = vshll.u32 %v3277, 16
        %v3356 = vrot.slane %v3354, 7
        %v3357 = vor.u32 %v3353, %v3356
        %v3358 = vsel %vm3290, %v3349, %v3357
        %v3359 = vrot.slane %v3357, 4
        %v3361 = vshrl.u32 %v3278, 16
        %v3363 = vrot.slane %v3361, 6
        %v3364 = vshll.u32 %v3278, 16
        %v3366 = vrot.slane %v3364, 7
        %v3367 = vor.u32 %v3363, %v3366
        %v3368 = vsel %vm3290, %v3359, %v3367
        %v3369 = vrot.slane %v3367, 4
        %v3371 = vshrl.u32 %v3279, 16
        %v3373 = vrot.slane %v3371, 6
        %v3374 = vshll.u32 %v3279, 16
        %v3376 = vrot.slane %v3374, 7
        %v3377 = vor.u32 %v3373, %v3376
        %v3378 = vsel %vm3290, %v3369, %v3377
        %v3379 = vrot.slane %v3377, 4
        %v3381 = vshrl.u32 %v3280, 16
        %v3383 = vrot.slane %v3381, 6
        %v3384 = vshll.u32 %v3280, 16
        %v3386 = vrot.slane %v3384, 7
        %v3387 = vor.u32 %v3383, %v3386
        %v3388 = vsel %vm3290, %v3379, %v3387
        %v3389 = vrot.slane %v3387, 4
        %v3391 = vshrl.u32 %v3281, 16
        %v3393 = vrot.slane %v3391, 6
        %v3394 = vshll.u32 %v3281, 16
        %v3396 = vrot.slane %v3394, 7
        %v3397 = vor.u32 %v3393, %v3396
        %v3398 = vsel %vm3290, %v3389, %v3397
        %v3399 = vrot.slane %v3397, 4
        %v3401 = vshrl.u32 %v3282, 16
        %v3403 = vrot.slane %v3401, 6
        %v3404 = vshll.u32 %v3282, 16
        %v3406 = vrot.slane %v3404, 7
        %v3407 = vor.u32 %v3403, %v3406
        %v3408 = vsel %vm3290, %v3399, %v3407
        %v3409 = vrot.slane %v3407, 4
        %v3411 = vshrl.u32 %v3283, 16
        %v3413 = vrot.slane %v3411, 6
        %v3414 = vshll.u32 %v3283, 16
        %v3416 = vrot.slane %v3414, 7
        %v3417 = vor.u32 %v3413, %v3416
        %v3418 = vsel %vm3290, %v3409, %v3417
        %v3419 = vrot.slane %v3417, 4
        %v3421 = vshrl.u32 %v3284, 16
        %v3423 = vrot.slane %v3421, 6
        %v3424 = vshll.u32 %v3284, 16
        %v3426 = vrot.slane %v3424, 7
        %v3427 = vor.u32 %v3423, %v3426
        %v3428 = vsel %vm3290, %v3419, %v3427
        %v3429 = vrot.slane %v3427, 4
        %v3431 = vshrl.u32 %v3285, 16
        %v3433 = vrot.slane %v3431, 6
        %v3434 = vshll.u32 %v3285, 16
        %v3436 = vrot.slane %v3434, 7
        %v3437 = vor.u32 %v3433, %v3436
        %v3438 = vsel %vm3290, %v3429, %v3437
        %v3439 = vrot.slane %v3437, 4
        %v3441 = vshrl.u32 %v3286, 16
        %v3443 = vrot.slane %v3441, 6
        %v3444 = vshll.u32 %v3286, 16
        %v3446 = vrot.slane %v3444, 7
        %v3447 = vor.u32 %v3443, %v3446
        %v3448 = vsel %vm3290, %v3439, %v3447
        %v3449 = vrot.slane %v3447, 4
        %v3451 = vshrl.u32 %v3287, 16
        %v3453 = vrot.slane %v3451, 6
        %v3454 = vshll.u32 %v3287, 16
        %v3456 = vrot.slane %v3454, 7
        %v3457 = vor.u32 %v3453, %v3456
        %v3458 = vsel %vm3290, %v3449, %v3457
        %v3459 = vrot.slane %v3457, 4
        %v3461 = vshrl.u32 %v3288, 16
        %v3463 = vrot.slane %v3461, 6
        %v3464 = vshll.u32 %v3288, 16
        %v3466 = vrot.slane %v3464, 7
        %v3467 = vor.u32 %v3463, %v3466
        %v3468 = vsel %vm3290, %v3459, %v3467
        %v3469 = vrot.slane %v3467, 4
        %v3489 = vld [vmem:[#allocation3 + $0x8] sm:$0xe]
        %v3490 = vsel %vm530, %v3298, %v3489
        %3491 = vst [vmem:[#allocation3 + $0x8] sm:$0xe] %v3490
        %3492 = vst [vmem:[#allocation3 + $0xc] sm:$0xf] %v3308
        %3493 = vst [vmem:[#allocation3 + $0x10] sm:$0xf] %v3318
        %3494 = vst [vmem:[#allocation3 + $0x14] sm:$0xf] %v3328
        %3495 = vst [vmem:[#allocation3 + $0x18] sm:$0xf] %v3338
        %3496 = vst [vmem:[#allocation3 + $0x1c] sm:$0xf] %v3348
        %3497 = vst [vmem:[#allocation3 + $0x20] sm:$0xf] %v3358
        %3498 = vst [vmem:[#allocation3 + $0x24] sm:$0xf] %v3368
        %3499 = vst [vmem:[#allocation3 + $0x28] sm:$0xf] %v3378
        %3500 = vst [vmem:[#allocation3 + $0x2c] sm:$0xf] %v3388
        %3501 = vst [vmem:[#allocation3 + $0x30] sm:$0xf] %v3398
        %3502 = vst [vmem:[#allocation3 + $0x34] sm:$0xf] %v3408
        %3503 = vst [vmem:[#allocation3 + $0x38] sm:$0xf] %v3418
        %3504 = vst [vmem:[#allocation3 + $0x3c] sm:$0xf] %v3428
        %3505 = vst [vmem:[#allocation3 + $0x40] sm:$0xf] %v3438
        %3506 = vst [vmem:[#allocation3 + $0x44] sm:$0xf] %v3448
        %3507 = vst [vmem:[#allocation3 + $0x48] sm:$0xf] %v3458
        %3508 = vst [vmem:[#allocation3 + $0x4c] sm:$0xf] %v3468
        %v3509 = vld [vmem:[#allocation3 + $0x50] sm:$0x3]
        %v3510 = vsel %vm524, %v3469, %v3509
        %3511 = vst [vmem:[#allocation3 + $0x50] sm:$0x3] %v3510
        %v3512 = vld [vmem:[#allocation2 + $0x48] sm:$0xf]
        %v3513 = vld [vmem:[#allocation2 + $0x4c] sm:$0xf]
        %v3514 = vld [vmem:[#allocation2 + $0x50] sm:$0xf]
        %v3515 = vld [vmem:[#allocation2 + $0x54] sm:$0xf]
        %v3516 = vld [vmem:[#allocation2 + $0x58] sm:$0xf]
        %v3517 = vld [vmem:[#allocation2 + $0x5c] sm:$0xf]
        %v3518 = vld [vmem:[#allocation2 + $0x60] sm:$0xf]
        %v3519 = vld [vmem:[#allocation2 + $0x64] sm:$0xf]
        %v3520 = vld [vmem:[#allocation2 + $0x68] sm:$0xf]
        %v3521 = vld [vmem:[#allocation2 + $0x6c] sm:$0xf]
        %v3522 = vld [vmem:[#allocation2 + $0x70] sm:$0xf]
        %v3523 = vld [vmem:[#allocation2 + $0x74] sm:$0xf]
        %v3524 = vld [vmem:[#allocation2 + $0x78] sm:$0xf]
        %v3525 = vld [vmem:[#allocation2 + $0x7c] sm:$0xf]
        %v3526 = vld [vmem:[#allocation2 + $0x80] sm:$0xf]
        %v3527 = vld [vmem:[#allocation2 + $0x84] sm:$0xf]
        %v3528 = vld [vmem:[#allocation2 + $0x88] sm:$0xf]
        %v3529 = vld [vmem:[#allocation2 + $0x8c] sm:$0xf]
        %v3530 = vld [vmem:[#allocation7] sm:$0xf]
        %v3531 = vld [vmem:[#allocation7 + $0x4] sm:$0xf]
        %v3532 = vld [vmem:[#allocation7 + $0x8] sm:$0xf]
        %v3533 = vld [vmem:[#allocation7 + $0xc] sm:$0xf]
        %v3534 = vld [vmem:[#allocation7 + $0x10] sm:$0xf]
        %v3535 = vld [vmem:[#allocation7 + $0x14] sm:$0xf]
        %v3536 = vld [vmem:[#allocation7 + $0x18] sm:$0xf]
        %v3537 = vld [vmem:[#allocation7 + $0x1c] sm:$0xf]
        %v3538 = vld [vmem:[#allocation7 + $0x20] sm:$0xf]
        %v3539 = vld [vmem:[#allocation7 + $0x24] sm:$0xf]
        %v3540 = vld [vmem:[#allocation7 + $0x28] sm:$0xf]
        %v3541 = vld [vmem:[#allocation7 + $0x2c] sm:$0xf]
        %v3542 = vld [vmem:[#allocation7 + $0x30] sm:$0xf]
        %v3543 = vld [vmem:[#allocation7 + $0x34] sm:$0xf]
        %v3544 = vld [vmem:[#allocation7 + $0x38] sm:$0xf]
        %v3545 = vld [vmem:[#allocation7 + $0x3c] sm:$0xf]
        %v3546 = vld [vmem:[#allocation2 + $0x90] sm:$0x1]
        %v3547 = vld [vmem:[%s898] sm:$0xf]
        %v3548 = vld [vmem:[%s898 + $0x4] sm:$0xf]
        %v3549 = vld [vmem:[%s898 + $0x8] sm:$0xf]
        %v3550 = vld [vmem:[%s898 + $0xc] sm:$0xf]
        %v3551 = vld [vmem:[%s898 + $0x10] sm:$0xf]
        %v3552 = vld [vmem:[%s898 + $0x14] sm:$0xf]
        %v3553 = vld [vmem:[%s898 + $0x18] sm:$0xf]
        %v3554 = vld [vmem:[%s898 + $0x1c] sm:$0xf]
        %v3555 = vld [vmem:[%s898 + $0x20] sm:$0xf]
        %v3556 = vld [vmem:[%s898 + $0x24] sm:$0xf]
        %v3557 = vld [vmem:[%s898 + $0x28] sm:$0xf]
        %v3558 = vld [vmem:[%s898 + $0x2c] sm:$0xf]
        %v3559 = vld [vmem:[%s898 + $0x30] sm:$0xf]
        %v3560 = vld [vmem:[%s898 + $0x34] sm:$0xf]
        %v3561 = vld [vmem:[%s898 + $0x38] sm:$0xf]
        %v3562 = vld [vmem:[%s898 + $0x3c] sm:$0xf]
        %v3582 = vunpack.c.l.b16 %v3512
        %v3583 = vunpack.c.l.b16 %v3513
        %v3584 = vunpack.c.l.b16 %v3514
        %v3585 = vunpack.c.l.b16 %v3515
        %v3586 = vunpack.c.l.b16 %v3516
        %v3587 = vunpack.c.l.b16 %v3517
        %v3588 = vunpack.c.l.b16 %v3518
        %v3589 = vunpack.c.l.b16 %v3519
        %v3590 = vunpack.c.l.b16 %v3520
        %v3591 = vunpack.c.l.b16 %v3521
        %v3592 = vunpack.c.l.b16 %v3522
        %v3593 = vunpack.c.l.b16 %v3523
        %v3594 = vunpack.c.l.b16 %v3524
        %v3595 = vunpack.c.l.b16 %v3525
        %v3596 = vunpack.c.l.b16 %v3526
        %v3597 = vunpack.c.l.b16 %v3527
        %v3598 = vunpack.c.l.b16 %v3528
        %v3599 = vunpack.c.l.b16 %v3529
        %v3600 = vunpack.c.l.b16 %v3546
        %v3601 = vpack.c.b16 %v3583, %v3582
        %v3602 = vpack.c.b16 %v3585, %v3584
        %v3603 = vpack.c.b16 %v3587, %v3586
        %v3604 = vpack.c.b16 %v3589, %v3588
        %v3605 = vpack.c.b16 %v3591, %v3590
        %v3606 = vpack.c.b16 %v3593, %v3592
        %v3607 = vpack.c.b16 %v3595, %v3594
        %v3608 = vpack.c.b16 %v3597, %v3596
        %v3609 = vpack.c.b16 %v3599, %v3598
        %v3610 = vpack.c.b16 %v3600, %v3600
        %v3612 = vshrl.u32 %v3601, 16
        %v3614 = vshll.u32 %v3601, 16
        %v3616 = vrot.slane %v3614, 1
        %v3617 = vor.u32 %v3612, %v3616
        %v3619 = vshll.u32 %v3602, 16
        %v3621 = vrot.slane %v3619, 1
        %v3622 = vsel %vm963, %v3617, %v3621
        %v3623 = vshrl.u32 %v3602, 16
        %v3625 = vor.u32 %v3623, %v3621
        %v3627 = vshll.u32 %v3603, 16
        %v3629 = vrot.slane %v3627, 1
        %v3630 = vsel %vm963, %v3625, %v3629
        %v3631 = vshrl.u32 %v3603, 16
        %v3633 = vor.u32 %v3631, %v3629
        %v3635 = vshll.u32 %v3604, 16
        %v3637 = vrot.slane %v3635, 1
        %v3638 = vsel %vm963, %v3633, %v3637
        %v3639 = vshrl.u32 %v3604, 16
        %v3641 = vor.u32 %v3639, %v3637
        %v3643 = vshll.u32 %v3605, 16
        %v3645 = vrot.slane %v3643, 1
        %v3646 = vsel %vm963, %v3641, %v3645
        %v3647 = vshrl.u32 %v3605, 16
        %v3649 = vor.u32 %v3647, %v3645
        %v3651 = vshll.u32 %v3606, 16
        %v3653 = vrot.slane %v3651, 1
        %v3654 = vsel %vm963, %v3649, %v3653
        %v3655 = vshrl.u32 %v3606, 16
        %v3657 = vor.u32 %v3655, %v3653
        %v3659 = vshll.u32 %v3607, 16
        %v3661 = vrot.slane %v3659, 1
        %v3662 = vsel %vm963, %v3657, %v3661
        %v3663 = vshrl.u32 %v3607, 16
        %v3665 = vor.u32 %v3663, %v3661
        %v3667 = vshll.u32 %v3608, 16
        %v3669 = vrot.slane %v3667, 1
        %v3670 = vsel %vm963, %v3665, %v3669
        %v3671 = vshrl.u32 %v3608, 16
        %v3673 = vor.u32 %v3671, %v3669
        %v3675 = vshll.u32 %v3609, 16
        %v3677 = vrot.slane %v3675, 1
        %v3678 = vsel %vm963, %v3673, %v3677
        %v3679 = vshrl.u32 %v3609, 16
        %v3681 = vor.u32 %v3679, %v3677
        %v3683 = vshll.u32 %v3610, 16
        %v3685 = vrot.slane %v3683, 1
        %v3686 = vsel %vm963, %v3681, %v3685
        %v3712 = vunpack.c.l.b16 %v3547
        %v3713 = vunpack.c.l.b16 %v3548
        %v3714 = vunpack.c.l.b16 %v3549
        %v3715 = vunpack.c.l.b16 %v3550
        %v3716 = vunpack.c.l.b16 %v3551
        %v3717 = vunpack.c.l.b16 %v3552
        %v3718 = vunpack.c.l.b16 %v3553
        %v3719 = vunpack.c.l.b16 %v3554
        %v3720 = vunpack.c.l.b16 %v3555
        %v3721 = vunpack.c.l.b16 %v3556
        %v3722 = vunpack.c.l.b16 %v3557
        %v3723 = vunpack.c.l.b16 %v3558
        %v3724 = vunpack.c.l.b16 %v3559
        %v3725 = vunpack.c.l.b16 %v3560
        %v3726 = vunpack.c.l.b16 %v3561
        %v3727 = vunpack.c.l.b16 %v3562
        %v3728 = vpack.c.b16 %v3713, %v3712
        %v3729 = vpack.c.b16 %v3715, %v3714
        %v3730 = vpack.c.b16 %v3717, %v3716
        %v3731 = vpack.c.b16 %v3719, %v3718
        %v3732 = vpack.c.b16 %v3721, %v3720
        %v3733 = vpack.c.b16 %v3723, %v3722
        %v3734 = vpack.c.b16 %v3725, %v3724
        %v3735 = vpack.c.b16 %v3727, %v3726
        %3744 = vmatprep.subr.bf16.mxu0 0
        %3745 = vmatpush1.bf16.msra.mxu0 %v3728
        %3746 = vmatprep.subr.bf16.mxu0 0
        %3747 = vmatpush1.bf16.msra.mxu0 %v3729
        %3748 = vmatprep.subr.bf16.mxu0 0
        %3749 = vmatpush1.bf16.msra.mxu0 %v3730
        %3750 = vmatprep.subr.bf16.mxu0 0
        %3751 = vmatpush1.bf16.msra.mxu0 %v3731
        %3752 = vmatprep.subr.bf16.mxu0 0
        %3753 = vmatpush1.bf16.msra.mxu0 %v3732
        %3754 = vmatprep.subr.bf16.mxu0 0
        %3755 = vmatpush1.bf16.msra.mxu0 %v3733
        %3756 = vmatprep.subr.bf16.mxu0 0
        %3757 = vmatpush1.bf16.msra.mxu0 %v3734
        %3758 = vmatprep.subr.bf16.mxu0 0
        %3759 = vmatpush1.bf16.msra.mxu0 %v3735
        %3760 = vmatprep.subr.bf16.mxu0 0
        %3761 = vmatpush1.bf16.msra.mxu0 0
        %3762 = vmatprep.subr.bf16.mxu0 0
        %3763 = vmatpush1.bf16.msra.mxu0 0
        %3764 = vmatprep.subr.bf16.mxu0 0
        %3765 = vmatpush1.bf16.msra.mxu0 0
        %3766 = vmatprep.subr.bf16.mxu0 0
        %3767 = vmatpush1.bf16.msra.mxu0 0
        %3768 = vmatprep.subr.bf16.mxu0 0
        %3769 = vmatpush1.bf16.msra.mxu0 0
        %3770 = vmatprep.subr.bf16.mxu0 0
        %3771 = vmatpush1.bf16.msra.mxu0 0
        %3772 = vmatprep.subr.bf16.mxu0 0
        %3773 = vmatpush1.bf16.msra.mxu0 0
        %3774 = vmatprep.subr.bf16.mxu0 0
        %3775 = vmatpush1.bf16.msra.mxu0 0
        %3776 = vmatprep.mubr.bf16.mxu0 0
        %3777 = vmatmul.mubr.bf16.gmra.mrb[0].mxu0 %v3622
        %v3778 = vpop.f32.mrb[0].mxu0
        %v3779 = vadd.f32 0.0, %v3778
        %v3780 = vpop.f32.mrb[0].mxu0
        %v3781 = vpop.f32.mrb[0].mxu0
        %v3782 = vadd.f32 0.0, %v3781
        %v3783 = vpop.f32.mrb[0].mxu0
        %3784 = vmatprep.mubr.bf16.mxu0 0
        %3785 = vmatmul.mubr.bf16.gmra.mrb[0].mxu0 %v3630
        %v3786 = vpop.f32.mrb[0].mxu0
        %v3787 = vadd.f32 0.0, %v3786
        %v3788 = vpop.f32.mrb[0].mxu0
        %v3789 = vpop.f32.mrb[0].mxu0
        %v3790 = vadd.f32 0.0, %v3789
        %v3791 = vpop.f32.mrb[0].mxu0
        %3792 = vmatprep.mubr.bf16.mxu0 0
        %3793 = vmatmul.mubr.bf16.gmra.mrb[0].mxu0 %v3638
        %v3794 = vpop.f32.mrb[0].mxu0
        %v3795 = vadd.f32 0.0, %v3794
        %v3796 = vpop.f32.mrb[0].mxu0
        %v3797 = vpop.f32.mrb[0].mxu0
        %v3798 = vadd.f32 0.0, %v3797
        %v3799 = vpop.f32.mrb[0].mxu0
        %3800 = vmatprep.mubr.bf16.mxu0 0
        %3801 = vmatmul.mubr.bf16.gmra.mrb[0].mxu0 %v3646
        %v3802 = vpop.f32.mrb[0].mxu0
        %v3803 = vadd.f32 0.0, %v3802
        %v3804 = vpop.f32.mrb[0].mxu0
        %v3805 = vpop.f32.mrb[0].mxu0
        %v3806 = vadd.f32 0.0, %v3805
        %v3807 = vpop.f32.mrb[0].mxu0
        %3808 = vmatprep.mubr.bf16.mxu0 0
        %3809 = vmatmul.mubr.bf16.gmra.mrb[0].mxu0 %v3654
        %v3810 = vpop.f32.mrb[0].mxu0
        %v3811 = vadd.f32 0.0, %v3810
        %v3812 = vpop.f32.mrb[0].mxu0
        %v3813 = vpop.f32.mrb[0].mxu0
        %v3814 = vadd.f32 0.0, %v3813
        %v3815 = vpop.f32.mrb[0].mxu0
        %3816 = vmatprep.mubr.bf16.mxu0 0
        %3817 = vmatmul.mubr.bf16.gmra.mrb[0].mxu0 %v3662
        %v3818 = vpop.f32.mrb[0].mxu0
        %v3819 = vadd.f32 0.0, %v3818
        %v3820 = vpop.f32.mrb[0].mxu0
        %v3821 = vpop.f32.mrb[0].mxu0
        %v3822 = vadd.f32 0.0, %v3821
        %v3823 = vpop.f32.mrb[0].mxu0
        %3824 = vmatprep.mubr.bf16.mxu0 0
        %3825 = vmatmul.mubr.bf16.gmra.mrb[0].mxu0 %v3670
        %v3826 = vpop.f32.mrb[0].mxu0
        %v3827 = vadd.f32 0.0, %v3826
        %v3828 = vpop.f32.mrb[0].mxu0
        %v3829 = vpop.f32.mrb[0].mxu0
        %v3830 = vadd.f32 0.0, %v3829
        %v3831 = vpop.f32.mrb[0].mxu0
        %3832 = vmatprep.mubr.bf16.mxu0 0
        %3833 = vmatmul.mubr.bf16.gmra.mrb[0].mxu0 %v3678
        %v3834 = vpop.f32.mrb[0].mxu0
        %v3835 = vadd.f32 0.0, %v3834
        %v3836 = vpop.f32.mrb[0].mxu0
        %v3837 = vpop.f32.mrb[0].mxu0
        %v3838 = vadd.f32 0.0, %v3837
        %v3839 = vpop.f32.mrb[0].mxu0
        %3840 = vmatprep.mubr.bf16.mxu0 0
        %3841 = vmatmul.mubr.bf16.gmra.mrb[0].mxu0 %v3686
        %v3842 = vpop.f32.mrb[0].mxu0
        %v3843 = vadd.f32 0.0, %v3842
        %v3844 = vpop.f32.mrb[0].mxu0
        %v3845 = vpop.f32.mrb[0].mxu0
        %v3846 = vadd.f32 0.0, %v3845
        %v3847 = vpop.f32.mrb[0].mxu0
        %3848 = vdwg.mxu0
        %v3874 = vunpack.c.l.b16 %v3530
        %v3875 = vunpack.c.l.b16 %v3531
        %v3876 = vunpack.c.l.b16 %v3532
        %v3877 = vunpack.c.l.b16 %v3533
        %v3878 = vunpack.c.l.b16 %v3534
        %v3879 = vunpack.c.l.b16 %v3535
        %v3880 = vunpack.c.l.b16 %v3536
        %v3881 = vunpack.c.l.b16 %v3537
        %v3882 = vunpack.c.l.b16 %v3538
        %v3883 = vunpack.c.l.b16 %v3539
        %v3884 = vunpack.c.l.b16 %v3540
        %v3885 = vunpack.c.l.b16 %v3541
        %v3886 = vunpack.c.l.b16 %v3542
        %v3887 = vunpack.c.l.b16 %v3543
        %v3888 = vunpack.c.l.b16 %v3544
        %v3889 = vunpack.c.l.b16 %v3545
        %v3890 = vpack.c.b16 %v3875, %v3874
        %v3891 = vpack.c.b16 %v3877, %v3876
        %v3892 = vpack.c.b16 %v3879, %v3878
        %v3893 = vpack.c.b16 %v3881, %v3880
        %v3894 = vpack.c.b16 %v3883, %v3882
        %v3895 = vpack.c.b16 %v3885, %v3884
        %v3896 = vpack.c.b16 %v3887, %v3886
        %v3897 = vpack.c.b16 %v3889, %v3888
        %3906 = vmatprep.subr.bf16.mxu0 0
        %3907 = vmatpush1.bf16.msra.mxu0 %v3890
        %3908 = vmatprep.subr.bf16.mxu0 0
        %3909 = vmatpush1.bf16.msra.mxu0 %v3891
        %3910 = vmatprep.subr.bf16.mxu0 0
        %3911 = vmatpush1.bf16.msra.mxu0 %v3892
        %3912 = vmatprep.subr.bf16.mxu0 0
        %3913 = vmatpush1.bf16.msra.mxu0 %v3893
        %3914 = vmatprep.subr.bf16.mxu0 0
        %3915 = vmatpush1.bf16.msra.mxu0 %v3894
        %3916 = vmatprep.subr.bf16.mxu0 0
        %3917 = vmatpush1.bf16.msra.mxu0 %v3895
        %3918 = vmatprep.subr.bf16.mxu0 0
        %3919 = vmatpush1.bf16.msra.mxu0 %v3896
        %3920 = vmatprep.subr.bf16.mxu0 0
        %3921 = vmatpush1.bf16.msra.mxu0 %v3897
        %3922 = vmatprep.subr.bf16.mxu0 0
        %3923 = vmatpush1.bf16.msra.mxu0 0
        %3924 = vmatprep.subr.bf16.mxu0 0
        %3925 = vmatpush1.bf16.msra.mxu0 0
        %3926 = vmatprep.subr.bf16.mxu0 0
        %3927 = vmatpush1.bf16.msra.mxu0 0
        %3928 = vmatprep.subr.bf16.mxu0 0
        %3929 = vmatpush1.bf16.msra.mxu0 0
        %3930 = vmatprep.subr.bf16.mxu0 0
        %3931 = vmatpush1.bf16.msra.mxu0 0
        %3932 = vmatprep.subr.bf16.mxu0 0
        %3933 = vmatpush1.bf16.msra.mxu0 0
        %3934 = vmatprep.subr.bf16.mxu0 0
        %3935 = vmatpush1.bf16.msra.mxu0 0
        %3936 = vmatprep.subr.bf16.mxu0 0
        %3937 = vmatpush1.bf16.msra.mxu0 0
        %3938 = vmatprep.mubr.bf16.mxu0 0
        %3939 = vmatmul.mubr.bf16.gmra.mrb[0].mxu0 %v3601
        %v3940 = vpop.f32.mrb[0].mxu0
        %v3941 = vadd.f32 %v3779, %v3940
        %v3942 = vpop.f32.mrb[0].mxu0
        %v3943 = vpop.f32.mrb[0].mxu0
        %v3944 = vadd.f32 %v3782, %v3943
        %v3945 = vpop.f32.mrb[0].mxu0
        %3946 = vmatprep.mubr.bf16.mxu0 0
        %3947 = vmatmul.mubr.bf16.gmra.mrb[0].mxu0 %v3602
        %v3948 = vpop.f32.mrb[0].mxu0
        %v3949 = vadd.f32 %v3787, %v3948
        %v3950 = vpop.f32.mrb[0].mxu0
        %v3951 = vpop.f32.mrb[0].mxu0
        %v3952 = vadd.f32 %v3790, %v3951
        %v3953 = vpop.f32.mrb[0].mxu0
        %3954 = vmatprep.mubr.bf16.mxu0 0
        %3955 = vmatmul.mubr.bf16.gmra.mrb[0].mxu0 %v3603
        %v3956 = vpop.f32.mrb[0].mxu0
        %v3957 = vadd.f32 %v3795, %v3956
        %v3958 = vpop.f32.mrb[0].mxu0
        %v3959 = vpop.f32.mrb[0].mxu0
        %v3960 = vadd.f32 %v3798, %v3959
        %v3961 = vpop.f32.mrb[0].mxu0
        %3962 = vmatprep.mubr.bf16.mxu0 0
        %3963 = vmatmul.mubr.bf16.gmra.mrb[0].mxu0 %v3604
        %v3964 = vpop.f32.mrb[0].mxu0
        %v3965 = vadd.f32 %v3803, %v3964
        %v3966 = vpop.f32.mrb[0].mxu0
        %v3967 = vpop.f32.mrb[0].mxu0
        %v3968 = vadd.f32 %v3806, %v3967
        %v3969 = vpop.f32.mrb[0].mxu0
        %3970 = vmatprep.mubr.bf16.mxu0 0
        %3971 = vmatmul.mubr.bf16.gmra.mrb[0].mxu0 %v3605
        %v3972 = vpop.f32.mrb[0].mxu0
        %v3973 = vadd.f32 %v3811, %v3972
        %v3974 = vpop.f32.mrb[0].mxu0
        %v3975 = vpop.f32.mrb[0].mxu0
        %v3976 = vadd.f32 %v3814, %v3975
        %v3977 = vpop.f32.mrb[0].mxu0
        %3978 = vmatprep.mubr.bf16.mxu0 0
        %3979 = vmatmul.mubr.bf16.gmra.mrb[0].mxu0 %v3606
        %v3980 = vpop.f32.mrb[0].mxu0
        %v3981 = vadd.f32 %v3819, %v3980
        %v3982 = vpop.f32.mrb[0].mxu0
        %v3983 = vpop.f32.mrb[0].mxu0
        %v3984 = vadd.f32 %v3822, %v3983
        %v3985 = vpop.f32.mrb[0].mxu0
        %3986 = vmatprep.mubr.bf16.mxu0 0
        %3987 = vmatmul.mubr.bf16.gmra.mrb[0].mxu0 %v3607
        %v3988 = vpop.f32.mrb[0].mxu0
        %v3989 = vadd.f32 %v3827, %v3988
        %v3990 = vpop.f32.mrb[0].mxu0
        %v3991 = vpop.f32.mrb[0].mxu0
        %v3992 = vadd.f32 %v3830, %v3991
        %v3993 = vpop.f32.mrb[0].mxu0
        %3994 = vmatprep.mubr.bf16.mxu0 0
        %3995 = vmatmul.mubr.bf16.gmra.mrb[0].mxu0 %v3608
        %v3996 = vpop.f32.mrb[0].mxu0
        %v3997 = vadd.f32 %v3835, %v3996
        %v3998 = vpop.f32.mrb[0].mxu0
        %v3999 = vpop.f32.mrb[0].mxu0
        %v4000 = vadd.f32 %v3838, %v3999
        %v4001 = vpop.f32.mrb[0].mxu0
        %4002 = vmatprep.mubr.bf16.mxu0 0
        %4003 = vmatmul.mubr.bf16.gmra.mrb[0].mxu0 %v3609
        %v4004 = vpop.f32.mrb[0].mxu0
        %v4005 = vadd.f32 %v3843, %v4004
        %v4006 = vpop.f32.mrb[0].mxu0
        %v4007 = vpop.f32.mrb[0].mxu0
        %v4008 = vadd.f32 %v3846, %v4007
        %v4009 = vpop.f32.mrb[0].mxu0
        %4010 = vdwg.mxu0
        %v4011 = vld [vmem:[#allocation2 + $0x48] sm:$0xe]
        %v4012 = vld [vmem:[%s1365] sm:$0xf]
        %v4013 = vld [vmem:[%s1365 + $0x4] sm:$0xf]
        %v4014 = vld [vmem:[%s1365 + $0x8] sm:$0xf]
        %v4015 = vld [vmem:[%s1365 + $0xc] sm:$0xf]
        %v4016 = vld [vmem:[%s1365 + $0x10] sm:$0xf]
        %v4017 = vld [vmem:[%s1365 + $0x14] sm:$0xf]
        %v4018 = vld [vmem:[%s1365 + $0x18] sm:$0xf]
        %v4019 = vld [vmem:[%s1365 + $0x1c] sm:$0xf]
        %v4020 = vld [vmem:[%s1365 + $0x20] sm:$0xf]
        %v4021 = vld [vmem:[%s1365 + $0x24] sm:$0xf]
        %v4022 = vld [vmem:[%s1365 + $0x28] sm:$0xf]
        %v4023 = vld [vmem:[%s1365 + $0x2c] sm:$0xf]
        %v4024 = vld [vmem:[%s1365 + $0x30] sm:$0xf]
        %v4025 = vld [vmem:[%s1365 + $0x34] sm:$0xf]
        %v4026 = vld [vmem:[%s1365 + $0x38] sm:$0xf]
        %v4027 = vld [vmem:[%s1365 + $0x3c] sm:$0xf]
        %v4029 = vunpack.c.l.b16 %v4011
        %v4030 = vpack.c.b16 %v3583, %v4029
        %v4031 = vrot.slane %v4030, 1
        %v4032 = vrot.slane %v3602, 1
        %v4033 = vsel %vm1385, %v4031, %v4032
        %v4034 = vrot.slane %v3603, 1
        %v4035 = vsel %vm1385, %v4032, %v4034
        %v4036 = vrot.slane %v3604, 1
        %v4037 = vsel %vm1385, %v4034, %v4036
        %v4038 = vrot.slane %v3605, 1
        %v4039 = vsel %vm1385, %v4036, %v4038
        %v4040 = vrot.slane %v3606, 1
        %v4041 = vsel %vm1385, %v4038, %v4040
        %v4042 = vrot.slane %v3607, 1
        %v4043 = vsel %vm1385, %v4040, %v4042
        %v4044 = vrot.slane %v3608, 1
        %v4045 = vsel %vm1385, %v4042, %v4044
        %v4046 = vrot.slane %v3609, 1
        %v4047 = vsel %vm1385, %v4044, %v4046
        %v4048 = vrot.slane %v3610, 1
        %v4049 = vsel %vm1385, %v4046, %v4048
        %v4075 = vunpack.c.l.b16 %v4012
        %v4076 = vunpack.c.l.b16 %v4013
        %v4077 = vunpack.c.l.b16 %v4014
        %v4078 = vunpack.c.l.b16 %v4015
        %v4079 = vunpack.c.l.b16 %v4016
        %v4080 = vunpack.c.l.b16 %v4017
        %v4081 = vunpack.c.l.b16 %v4018
        %v4082 = vunpack.c.l.b16 %v4019
        %v4083 = vunpack.c.l.b16 %v4020
        %v4084 = vunpack.c.l.b16 %v4021
        %v4085 = vunpack.c.l.b16 %v4022
        %v4086 = vunpack.c.l.b16 %v4023
        %v4087 = vunpack.c.l.b16 %v4024
        %v4088 = vunpack.c.l.b16 %v4025
        %v4089 = vunpack.c.l.b16 %v4026
        %v4090 = vunpack.c.l.b16 %v4027
        %v4091 = vpack.c.b16 %v4076, %v4075
        %v4092 = vpack.c.b16 %v4078, %v4077
        %v4093 = vpack.c.b16 %v4080, %v4079
        %v4094 = vpack.c.b16 %v4082, %v4081
        %v4095 = vpack.c.b16 %v4084, %v4083
        %v4096 = vpack.c.b16 %v4086, %v4085
        %v4097 = vpack.c.b16 %v4088, %v4087
        %v4098 = vpack.c.b16 %v4090, %v4089
        %4107 = vmatprep.subr.bf16.mxu0 0
        %4108 = vmatpush1.bf16.msra.mxu0 %v4091
        %4109 = vmatprep.subr.bf16.mxu0 0
        %4110 = vmatpush1.bf16.msra.mxu0 %v4092
        %4111 = vmatprep.subr.bf16.mxu0 0
        %4112 = vmatpush1.bf16.msra.mxu0 %v4093
        %4113 = vmatprep.subr.bf16.mxu0 0
        %4114 = vmatpush1.bf16.msra.mxu0 %v4094
        %4115 = vmatprep.subr.bf16.mxu0 0
        %4116 = vmatpush1.bf16.msra.mxu0 %v4095
        %4117 = vmatprep.subr.bf16.mxu0 0
        %4118 = vmatpush1.bf16.msra.mxu0 %v4096
        %4119 = vmatprep.subr.bf16.mxu0 0
        %4120 = vmatpush1.bf16.msra.mxu0 %v4097
        %4121 = vmatprep.subr.bf16.mxu0 0
        %4122 = vmatpush1.bf16.msra.mxu0 %v4098
        %4123 = vmatprep.subr.bf16.mxu0 0
        %4124 = vmatpush1.bf16.msra.mxu0 0
        %4125 = vmatprep.subr.bf16.mxu0 0
        %4126 = vmatpush1.bf16.msra.mxu0 0
        %4127 = vmatprep.subr.bf16.mxu0 0
        %4128 = vmatpush1.bf16.msra.mxu0 0
        %4129 = vmatprep.subr.bf16.mxu0 0
        %4130 = vmatpush1.bf16.msra.mxu0 0
        %4131 = vmatprep.subr.bf16.mxu0 0
        %4132 = vmatpush1.bf16.msra.mxu0 0
        %4133 = vmatprep.subr.bf16.mxu0 0
        %4134 = vmatpush1.bf16.msra.mxu0 0
        %4135 = vmatprep.subr.bf16.mxu0 0
        %4136 = vmatpush1.bf16.msra.mxu0 0
        %4137 = vmatprep.subr.bf16.mxu0 0
        %4138 = vmatpush1.bf16.msra.mxu0 0
        %4139 = vmatprep.mubr.bf16.mxu0 0
        %4140 = vmatmul.mubr.bf16.gmra.mrb[0].mxu0 %v4033
        %v4141 = vpop.f32.mrb[0].mxu0
        %v4142 = vadd.f32 0.0, %v4141
        %v4143 = vpop.f32.mrb[0].mxu0
        %v4144 = vpop.f32.mrb[0].mxu0
        %v4145 = vadd.f32 0.0, %v4144
        %v4146 = vpop.f32.mrb[0].mxu0
        %4147 = vmatprep.mubr.bf16.mxu0 0
        %4148 = vmatmul.mubr.bf16.gmra.mrb[0].mxu0 %v4035
        %v4149 = vpop.f32.mrb[0].mxu0
        %v4150 = vadd.f32 0.0, %v4149
        %v4151 = vpop.f32.mrb[0].mxu0
        %v4152 = vpop.f32.mrb[0].mxu0
        %v4153 = vadd.f32 0.0, %v4152
        %v4154 = vpop.f32.mrb[0].mxu0
        %4155 = vmatprep.mubr.bf16.mxu0 0
        %4156 = vmatmul.mubr.bf16.gmra.mrb[0].mxu0 %v4037
        %v4157 = vpop.f32.mrb[0].mxu0
        %v4158 = vadd.f32 0.0, %v4157
        %v4159 = vpop.f32.mrb[0].mxu0
        %v4160 = vpop.f32.mrb[0].mxu0
        %v4161 = vadd.f32 0.0, %v4160
        %v4162 = vpop.f32.mrb[0].mxu0
        %4163 = vmatprep.mubr.bf16.mxu0 0
        %4164 = vmatmul.mubr.bf16.gmra.mrb[0].mxu0 %v4039
        %v4165 = vpop.f32.mrb[0].mxu0
        %v4166 = vadd.f32 0.0, %v4165
        %v4167 = vpop.f32.mrb[0].mxu0
        %v4168 = vpop.f32.mrb[0].mxu0
        %v4169 = vadd.f32 0.0, %v4168
        %v4170 = vpop.f32.mrb[0].mxu0
        %4171 = vmatprep.mubr.bf16.mxu0 0
        %4172 = vmatmul.mubr.bf16.gmra.mrb[0].mxu0 %v4041
        %v4173 = vpop.f32.mrb[0].mxu0
        %v4174 = vadd.f32 0.0, %v4173
        %v4175 = vpop.f32.mrb[0].mxu0
        %v4176 = vpop.f32.mrb[0].mxu0
        %v4177 = vadd.f32 0.0, %v4176
        %v4178 = vpop.f32.mrb[0].mxu0
        %4179 = vmatprep.mubr.bf16.mxu0 0
        %4180 = vmatmul.mubr.bf16.gmra.mrb[0].mxu0 %v4043
        %v4181 = vpop.f32.mrb[0].mxu0
        %v4182 = vadd.f32 0.0, %v4181
        %v4183 = vpop.f32.mrb[0].mxu0
        %v4184 = vpop.f32.mrb[0].mxu0
        %v4185 = vadd.f32 0.0, %v4184
        %v4186 = vpop.f32.mrb[0].mxu0
        %4187 = vmatprep.mubr.bf16.mxu0 0
        %4188 = vmatmul.mubr.bf16.gmra.mrb[0].mxu0 %v4045
        %v4189 = vpop.f32.mrb[0].mxu0
        %v4190 = vadd.f32 0.0, %v4189
        %v4191 = vpop.f32.mrb[0].mxu0
        %v4192 = vpop.f32.mrb[0].mxu0
        %v4193 = vadd.f32 0.0, %v4192
        %v4194 = vpop.f32.mrb[0].mxu0
        %4195 = vmatprep.mubr.bf16.mxu0 0
        %4196 = vmatmul.mubr.bf16.gmra.mrb[0].mxu0 %v4047
        %v4197 = vpop.f32.mrb[0].mxu0
        %v4198 = vadd.f32 0.0, %v4197
        %v4199 = vpop.f32.mrb[0].mxu0
        %v4200 = vpop.f32.mrb[0].mxu0
        %v4201 = vadd.f32 0.0, %v4200
        %v4202 = vpop.f32.mrb[0].mxu0
        %4203 = vmatprep.mubr.bf16.mxu0 0
        %4204 = vmatmul.mubr.bf16.gmra.mrb[0].mxu0 %v4049
        %v4205 = vpop.f32.mrb[0].mxu0
        %v4206 = vadd.f32 0.0, %v4205
        %v4207 = vpop.f32.mrb[0].mxu0
        %v4208 = vpop.f32.mrb[0].mxu0
        %v4209 = vadd.f32 0.0, %v4208
        %v4210 = vpop.f32.mrb[0].mxu0
        %4211 = vdwg.mxu0
        %v4212 = vadd.f32 %v3941, %v4142
        %v4213 = vadd.f32 %v3944, %v4145
        %v4214 = vadd.f32 %v3949, %v4150
        %v4215 = vadd.f32 %v3952, %v4153
        %v4216 = vadd.f32 %v3957, %v4158
        %v4217 = vadd.f32 %v3960, %v4161
        %v4218 = vadd.f32 %v3965, %v4166
        %v4219 = vadd.f32 %v3968, %v4169
        %v4220 = vadd.f32 %v3973, %v4174
        %v4221 = vadd.f32 %v3976, %v4177
        %v4222 = vadd.f32 %v3981, %v4182
        %v4223 = vadd.f32 %v3984, %v4185
        %v4224 = vadd.f32 %v3989, %v4190
        %v4225 = vadd.f32 %v3992, %v4193
        %v4226 = vadd.f32 %v3997, %v4198
        %v4227 = vadd.f32 %v4000, %v4201
        %v4228 = vadd.f32 %v4005, %v4206
        %v4229 = vadd.f32 %v4008, %v4209
        %v4230 = vld [vmem:[#allocation2 + $0x50] sm:$0xe]
        %v4231 = vld [vmem:[#allocation2 + $0x54] sm:$0xf]
        %v4232 = vld [vmem:[#allocation2 + $0x58] sm:$0xf]
        %v4233 = vld [vmem:[#allocation2 + $0x5c] sm:$0xf]
        %v4234 = vld [vmem:[#allocation2 + $0x60] sm:$0xf]
        %v4235 = vld [vmem:[#allocation2 + $0x64] sm:$0xf]
        %v4236 = vld [vmem:[#allocation2 + $0x68] sm:$0xf]
        %v4237 = vld [vmem:[#allocation2 + $0x6c] sm:$0xf]
        %v4238 = vld [vmem:[#allocation2 + $0x70] sm:$0xf]
        %v4239 = vld [vmem:[#allocation2 + $0x74] sm:$0xf]
        %v4240 = vld [vmem:[#allocation2 + $0x78] sm:$0xf]
        %v4241 = vld [vmem:[#allocation2 + $0x7c] sm:$0xf]
        %v4242 = vld [vmem:[#allocation2 + $0x80] sm:$0xf]
        %v4243 = vld [vmem:[#allocation2 + $0x84] sm:$0xf]
        %v4244 = vld [vmem:[#allocation2 + $0x88] sm:$0xf]
        %v4245 = vld [vmem:[#allocation2 + $0x8c] sm:$0xf]
        %v4246 = vld [vmem:[#allocation2 + $0x90] sm:$0xf]
        %v4247 = vld [vmem:[#allocation2 + $0x94] sm:$0xf]
        %v4248 = vld [vmem:[#allocation2 + $0x98] sm:$0x1]
        %v4249 = vld [vmem:[%s1604] sm:$0xf]
        %v4250 = vld [vmem:[%s1604 + $0x4] sm:$0xf]
        %v4251 = vld [vmem:[%s1604 + $0x8] sm:$0xf]
        %v4252 = vld [vmem:[%s1604 + $0xc] sm:$0xf]
        %v4253 = vld [vmem:[%s1604 + $0x10] sm:$0xf]
        %v4254 = vld [vmem:[%s1604 + $0x14] sm:$0xf]
        %v4255 = vld [vmem:[%s1604 + $0x18] sm:$0xf]
        %v4256 = vld [vmem:[%s1604 + $0x1c] sm:$0xf]
        %v4257 = vld [vmem:[%s1604 + $0x20] sm:$0xf]
        %v4258 = vld [vmem:[%s1604 + $0x24] sm:$0xf]
        %v4259 = vld [vmem:[%s1604 + $0x28] sm:$0xf]
        %v4260 = vld [vmem:[%s1604 + $0x2c] sm:$0xf]
        %v4261 = vld [vmem:[%s1604 + $0x30] sm:$0xf]
        %v4262 = vld [vmem:[%s1604 + $0x34] sm:$0xf]
        %v4263 = vld [vmem:[%s1604 + $0x38] sm:$0xf]
        %v4264 = vld [vmem:[%s1604 + $0x3c] sm:$0xf]
        %v4284 = vunpack.c.l.b16 %v4230
        %v4285 = vunpack.c.l.b16 %v4231
        %v4286 = vunpack.c.l.b16 %v4232
        %v4287 = vunpack.c.l.b16 %v4233
        %v4288 = vunpack.c.l.b16 %v4234
        %v4289 = vunpack.c.l.b16 %v4235
        %v4290 = vunpack.c.l.b16 %v4236
        %v4291 = vunpack.c.l.b16 %v4237
        %v4292 = vunpack.c.l.b16 %v4238
        %v4293 = vunpack.c.l.b16 %v4239
        %v4294 = vunpack.c.l.b16 %v4240
        %v4295 = vunpack.c.l.b16 %v4241
        %v4296 = vunpack.c.l.b16 %v4242
        %v4297 = vunpack.c.l.b16 %v4243
        %v4298 = vunpack.c.l.b16 %v4244
        %v4299 = vunpack.c.l.b16 %v4245
        %v4300 = vunpack.c.l.b16 %v4246
        %v4301 = vunpack.c.l.b16 %v4247
        %v4302 = vunpack.c.l.b16 %v4248
        %v4303 = vpack.c.b16 %v4285, %v4284
        %v4304 = vpack.c.b16 %v4287, %v4286
        %v4305 = vpack.c.b16 %v4289, %v4288
        %v4306 = vpack.c.b16 %v4291, %v4290
        %v4307 = vpack.c.b16 %v4293, %v4292
        %v4308 = vpack.c.b16 %v4295, %v4294
        %v4309 = vpack.c.b16 %v4297, %v4296
        %v4310 = vpack.c.b16 %v4299, %v4298
        %v4311 = vpack.c.b16 %v4301, %v4300
        %v4312 = vpack.c.b16 %v4302, %v4302
        %v4313 = vrot.slane %v4303, 1
        %v4314 = vrot.slane %v4304, 1
        %v4315 = vsel %vm1385, %v4313, %v4314
        %v4316 = vrot.slane %v4305, 1
        %v4317 = vsel %vm1385, %v4314, %v4316
        %v4318 = vrot.slane %v4306, 1
        %v4319 = vsel %vm1385, %v4316, %v4318
        %v4320 = vrot.slane %v4307, 1
        %v4321 = vsel %vm1385, %v4318, %v4320
        %v4322 = vrot.slane %v4308, 1
        %v4323 = vsel %vm1385, %v4320, %v4322
        %v4324 = vrot.slane %v4309, 1
        %v4325 = vsel %vm1385, %v4322, %v4324
        %v4326 = vrot.slane %v4310, 1
        %v4327 = vsel %vm1385, %v4324, %v4326
        %v4328 = vrot.slane %v4311, 1
        %v4329 = vsel %vm1385, %v4326, %v4328
        %v4330 = vrot.slane %v4312, 1
        %v4331 = vsel %vm1385, %v4328, %v4330
        %v4357 = vunpack.c.l.b16 %v4249
        %v4358 = vunpack.c.l.b16 %v4250
        %v4359 = vunpack.c.l.b16 %v4251
        %v4360 = vunpack.c.l.b16 %v4252
        %v4361 = vunpack.c.l.b16 %v4253
        %v4362 = vunpack.c.l.b16 %v4254
        %v4363 = vunpack.c.l.b16 %v4255
        %v4364 = vunpack.c.l.b16 %v4256
        %v4365 = vunpack.c.l.b16 %v4257
        %v4366 = vunpack.c.l.b16 %v4258
        %v4367 = vunpack.c.l.b16 %v4259
        %v4368 = vunpack.c.l.b16 %v4260
        %v4369 = vunpack.c.l.b16 %v4261
        %v4370 = vunpack.c.l.b16 %v4262
        %v4371 = vunpack.c.l.b16 %v4263
        %v4372 = vunpack.c.l.b16 %v4264
        %v4373 = vpack.c.b16 %v4358, %v4357
        %v4374 = vpack.c.b16 %v4360, %v4359
        %v4375 = vpack.c.b16 %v4362, %v4361
        %v4376 = vpack.c.b16 %v4364, %v4363
        %v4377 = vpack.c.b16 %v4366, %v4365
        %v4378 = vpack.c.b16 %v4368, %v4367
        %v4379 = vpack.c.b16 %v4370, %v4369
        %v4380 = vpack.c.b16 %v4372, %v4371
        %4389 = vmatprep.subr.bf16.mxu0 0
        %4390 = vmatpush1.bf16.msra.mxu0 %v4373
        %4391 = vmatprep.subr.bf16.mxu0 0
        %4392 = vmatpush1.bf16.msra.mxu0 %v4374
        %4393 = vmatprep.subr.bf16.mxu0 0
        %4394 = vmatpush1.bf16.msra.mxu0 %v4375
        %4395 = vmatprep.subr.bf16.mxu0 0
        %4396 = vmatpush1.bf16.msra.mxu0 %v4376
        %4397 = vmatprep.subr.bf16.mxu0 0
        %4398 = vmatpush1.bf16.msra.mxu0 %v4377
        %4399 = vmatprep.subr.bf16.mxu0 0
        %4400 = vmatpush1.bf16.msra.mxu0 %v4378
        %4401 = vmatprep.subr.bf16.mxu0 0
        %4402 = vmatpush1.bf16.msra.mxu0 %v4379
        %4403 = vmatprep.subr.bf16.mxu0 0
        %4404 = vmatpush1.bf16.msra.mxu0 %v4380
        %4405 = vmatprep.subr.bf16.mxu0 0
        %4406 = vmatpush1.bf16.msra.mxu0 0
        %4407 = vmatprep.subr.bf16.mxu0 0
        %4408 = vmatpush1.bf16.msra.mxu0 0
        %4409 = vmatprep.subr.bf16.mxu0 0
        %4410 = vmatpush1.bf16.msra.mxu0 0
        %4411 = vmatprep.subr.bf16.mxu0 0
        %4412 = vmatpush1.bf16.msra.mxu0 0
        %4413 = vmatprep.subr.bf16.mxu0 0
        %4414 = vmatpush1.bf16.msra.mxu0 0
        %4415 = vmatprep.subr.bf16.mxu0 0
        %4416 = vmatpush1.bf16.msra.mxu0 0
        %4417 = vmatprep.subr.bf16.mxu0 0
        %4418 = vmatpush1.bf16.msra.mxu0 0
        %4419 = vmatprep.subr.bf16.mxu0 0
        %4420 = vmatpush1.bf16.msra.mxu0 0
        %4421 = vmatprep.mubr.bf16.mxu0 0
        %4422 = vmatmul.mubr.bf16.gmra.mrb[0].mxu0 %v4315
        %v4423 = vpop.f32.mrb[0].mxu0
        %v4424 = vadd.f32 0.0, %v4423
        %v4425 = vpop.f32.mrb[0].mxu0
        %v4426 = vpop.f32.mrb[0].mxu0
        %v4427 = vadd.f32 0.0, %v4426
        %v4428 = vpop.f32.mrb[0].mxu0
        %4429 = vmatprep.mubr.bf16.mxu0 0
        %4430 = vmatmul.mubr.bf16.gmra.mrb[0].mxu0 %v4317
        %v4431 = vpop.f32.mrb[0].mxu0
        %v4432 = vadd.f32 0.0, %v4431
        %v4433 = vpop.f32.mrb[0].mxu0
        %v4434 = vpop.f32.mrb[0].mxu0
        %v4435 = vadd.f32 0.0, %v4434
        %v4436 = vpop.f32.mrb[0].mxu0
        %4437 = vmatprep.mubr.bf16.mxu0 0
        %4438 = vmatmul.mubr.bf16.gmra.mrb[0].mxu0 %v4319
        %v4439 = vpop.f32.mrb[0].mxu0
        %v4440 = vadd.f32 0.0, %v4439
        %v4441 = vpop.f32.mrb[0].mxu0
        %v4442 = vpop.f32.mrb[0].mxu0
        %v4443 = vadd.f32 0.0, %v4442
        %v4444 = vpop.f32.mrb[0].mxu0
        %4445 = vmatprep.mubr.bf16.mxu0 0
        %4446 = vmatmul.mubr.bf16.gmra.mrb[0].mxu0 %v4321
        %v4447 = vpop.f32.mrb[0].mxu0
        %v4448 = vadd.f32 0.0, %v4447
        %v4449 = vpop.f32.mrb[0].mxu0
        %v4450 = vpop.f32.mrb[0].mxu0
        %v4451 = vadd.f32 0.0, %v4450
        %v4452 = vpop.f32.mrb[0].mxu0
        %4453 = vmatprep.mubr.bf16.mxu0 0
        %4454 = vmatmul.mubr.bf16.gmra.mrb[0].mxu0 %v4323
        %v4455 = vpop.f32.mrb[0].mxu0
        %v4456 = vadd.f32 0.0, %v4455
        %v4457 = vpop.f32.mrb[0].mxu0
        %v4458 = vpop.f32.mrb[0].mxu0
        %v4459 = vadd.f32 0.0, %v4458
        %v4460 = vpop.f32.mrb[0].mxu0
        %4461 = vmatprep.mubr.bf16.mxu0 0
        %4462 = vmatmul.mubr.bf16.gmra.mrb[0].mxu0 %v4325
        %v4463 = vpop.f32.mrb[0].mxu0
        %v4464 = vadd.f32 0.0, %v4463
        %v4465 = vpop.f32.mrb[0].mxu0
        %v4466 = vpop.f32.mrb[0].mxu0
        %v4467 = vadd.f32 0.0, %v4466
        %v4468 = vpop.f32.mrb[0].mxu0
        %4469 = vmatprep.mubr.bf16.mxu0 0
        %4470 = vmatmul.mubr.bf16.gmra.mrb[0].mxu0 %v4327
        %v4471 = vpop.f32.mrb[0].mxu0
        %v4472 = vadd.f32 0.0, %v4471
        %v4473 = vpop.f32.mrb[0].mxu0
        %v4474 = vpop.f32.mrb[0].mxu0
        %v4475 = vadd.f32 0.0, %v4474
        %v4476 = vpop.f32.mrb[0].mxu0
        %4477 = vmatprep.mubr.bf16.mxu0 0
        %4478 = vmatmul.mubr.bf16.gmra.mrb[0].mxu0 %v4329
        %v4479 = vpop.f32.mrb[0].mxu0
        %v4480 = vadd.f32 0.0, %v4479
        %v4481 = vpop.f32.mrb[0].mxu0
        %v4482 = vpop.f32.mrb[0].mxu0
        %v4483 = vadd.f32 0.0, %v4482
        %v4484 = vpop.f32.mrb[0].mxu0
        %4485 = vmatprep.mubr.bf16.mxu0 0
        %4486 = vmatmul.mubr.bf16.gmra.mrb[0].mxu0 %v4331
        %v4487 = vpop.f32.mrb[0].mxu0
        %v4488 = vadd.f32 0.0, %v4487
        %v4489 = vpop.f32.mrb[0].mxu0
        %v4490 = vpop.f32.mrb[0].mxu0
        %v4491 = vadd.f32 0.0, %v4490
        %v4492 = vpop.f32.mrb[0].mxu0
        %4493 = vdwg.mxu0
        %v4494 = vadd.f32 %v4212, %v4424
        %v4495 = vadd.f32 %v4213, %v4427
        %v4496 = vadd.f32 %v4214, %v4432
        %v4497 = vadd.f32 %v4215, %v4435
        %v4498 = vadd.f32 %v4216, %v4440
        %v4499 = vadd.f32 %v4217, %v4443
        %v4500 = vadd.f32 %v4218, %v4448
        %v4501 = vadd.f32 %v4219, %v4451
        %v4502 = vadd.f32 %v4220, %v4456
        %v4503 = vadd.f32 %v4221, %v4459
        %v4504 = vadd.f32 %v4222, %v4464
        %v4505 = vadd.f32 %v4223, %v4467
        %v4506 = vadd.f32 %v4224, %v4472
        %v4507 = vadd.f32 %v4225, %v4475
        %v4508 = vadd.f32 %v4226, %v4480
        %v4509 = vadd.f32 %v4227, %v4483
        %v4510 = vadd.f32 %v4228, %v4488
        %v4511 = vadd.f32 %v4229, %v4491
        %v4512 = vld [vmem:[#allocation2 + $0x98] sm:$0x3]
        %v4513 = vld [vmem:[%s1869] sm:$0xf]
        %v4514 = vld [vmem:[%s1869 + $0x4] sm:$0xf]
        %v4515 = vld [vmem:[%s1869 + $0x8] sm:$0xf]
        %v4516 = vld [vmem:[%s1869 + $0xc] sm:$0xf]
        %v4517 = vld [vmem:[%s1869 + $0x10] sm:$0xf]
        %v4518 = vld [vmem:[%s1869 + $0x14] sm:$0xf]
        %v4519 = vld [vmem:[%s1869 + $0x18] sm:$0xf]
        %v4520 = vld [vmem:[%s1869 + $0x1c] sm:$0xf]
        %v4521 = vld [vmem:[%s1869 + $0x20] sm:$0xf]
        %v4522 = vld [vmem:[%s1869 + $0x24] sm:$0xf]
        %v4523 = vld [vmem:[%s1869 + $0x28] sm:$0xf]
        %v4524 = vld [vmem:[%s1869 + $0x2c] sm:$0xf]
        %v4525 = vld [vmem:[%s1869 + $0x30] sm:$0xf]
        %v4526 = vld [vmem:[%s1869 + $0x34] sm:$0xf]
        %v4527 = vld [vmem:[%s1869 + $0x38] sm:$0xf]
        %v4528 = vld [vmem:[%s1869 + $0x3c] sm:$0xf]
        %v4530 = vunpack.c.l.b16 %v4512
        %v4531 = vpack.c.b16 %v4530, %v4530
        %v4533 = vshrl.u32 %v4303, 16
        %v4535 = vrot.slane %v4533, 1
        %v4536 = vshll.u32 %v4303, 16
        %v4538 = vrot.slane %v4536, 2
        %v4539 = vor.u32 %v4535, %v4538
        %v4541 = vshrl.u32 %v4304, 16
        %v4543 = vrot.slane %v4541, 1
        %v4544 = vshll.u32 %v4304, 16
        %v4546 = vrot.slane %v4544, 2
        %v4547 = vor.u32 %v4543, %v4546
        %v4548 = vsel %vm1889, %v4539, %v4547
        %v4550 = vshrl.u32 %v4305, 16
        %v4552 = vrot.slane %v4550, 1
        %v4553 = vshll.u32 %v4305, 16
        %v4555 = vrot.slane %v4553, 2
        %v4556 = vor.u32 %v4552, %v4555
        %v4557 = vsel %vm1889, %v4547, %v4556
        %v4559 = vshrl.u32 %v4306, 16
        %v4561 = vrot.slane %v4559, 1
        %v4562 = vshll.u32 %v4306, 16
        %v4564 = vrot.slane %v4562, 2
        %v4565 = vor.u32 %v4561, %v4564
        %v4566 = vsel %vm1889, %v4556, %v4565
        %v4568 = vshrl.u32 %v4307, 16
        %v4570 = vrot.slane %v4568, 1
        %v4571 = vshll.u32 %v4307, 16
        %v4573 = vrot.slane %v4571, 2
        %v4574 = vor.u32 %v4570, %v4573
        %v4575 = vsel %vm1889, %v4565, %v4574
        %v4577 = vshrl.u32 %v4308, 16
        %v4579 = vrot.slane %v4577, 1
        %v4580 = vshll.u32 %v4308, 16
        %v4582 = vrot.slane %v4580, 2
        %v4583 = vor.u32 %v4579, %v4582
        %v4584 = vsel %vm1889, %v4574, %v4583
        %v4586 = vshrl.u32 %v4309, 16
        %v4588 = vrot.slane %v4586, 1
        %v4589 = vshll.u32 %v4309, 16
        %v4591 = vrot.slane %v4589, 2
        %v4592 = vor.u32 %v4588, %v4591
        %v4593 = vsel %vm1889, %v4583, %v4592
        %v4595 = vshrl.u32 %v4310, 16
        %v4597 = vrot.slane %v4595, 1
        %v4598 = vshll.u32 %v4310, 16
        %v4600 = vrot.slane %v4598, 2
        %v4601 = vor.u32 %v4597, %v4600
        %v4602 = vsel %vm1889, %v4592, %v4601
        %v4604 = vshrl.u32 %v4311, 16
        %v4606 = vrot.slane %v4604, 1
        %v4607 = vshll.u32 %v4311, 16
        %v4609 = vrot.slane %v4607, 2
        %v4610 = vor.u32 %v4606, %v4609
        %v4611 = vsel %vm1889, %v4601, %v4610
        %v4613 = vshrl.u32 %v4531, 16
        %v4615 = vrot.slane %v4613, 1
        %v4616 = vshll.u32 %v4531, 16
        %v4618 = vrot.slane %v4616, 2
        %v4619 = vor.u32 %v4615, %v4618
        %v4620 = vsel %vm1889, %v4610, %v4619
        %v4646 = vunpack.c.l.b16 %v4513
        %v4647 = vunpack.c.l.b16 %v4514
        %v4648 = vunpack.c.l.b16 %v4515
        %v4649 = vunpack.c.l.b16 %v4516
        %v4650 = vunpack.c.l.b16 %v4517
        %v4651 = vunpack.c.l.b16 %v4518
        %v4652 = vunpack.c.l.b16 %v4519
        %v4653 = vunpack.c.l.b16 %v4520
        %v4654 = vunpack.c.l.b16 %v4521
        %v4655 = vunpack.c.l.b16 %v4522
        %v4656 = vunpack.c.l.b16 %v4523
        %v4657 = vunpack.c.l.b16 %v4524
        %v4658 = vunpack.c.l.b16 %v4525
        %v4659 = vunpack.c.l.b16 %v4526
        %v4660 = vunpack.c.l.b16 %v4527
        %v4661 = vunpack.c.l.b16 %v4528
        %v4662 = vpack.c.b16 %v4647, %v4646
        %v4663 = vpack.c.b16 %v4649, %v4648
        %v4664 = vpack.c.b16 %v4651, %v4650
        %v4665 = vpack.c.b16 %v4653, %v4652
        %v4666 = vpack.c.b16 %v4655, %v4654
        %v4667 = vpack.c.b16 %v4657, %v4656
        %v4668 = vpack.c.b16 %v4659, %v4658
        %v4669 = vpack.c.b16 %v4661, %v4660
        %4678 = vmatprep.subr.bf16.mxu0 0
        %4679 = vmatpush1.bf16.msra.mxu0 %v4662
        %4680 = vmatprep.subr.bf16.mxu0 0
        %4681 = vmatpush1.bf16.msra.mxu0 %v4663
        %4682 = vmatprep.subr.bf16.mxu0 0
        %4683 = vmatpush1.bf16.msra.mxu0 %v4664
        %4684 = vmatprep.subr.bf16.mxu0 0
        %4685 = vmatpush1.bf16.msra.mxu0 %v4665
        %4686 = vmatprep.subr.bf16.mxu0 0
        %4687 = vmatpush1.bf16.msra.mxu0 %v4666
        %4688 = vmatprep.subr.bf16.mxu0 0
        %4689 = vmatpush1.bf16.msra.mxu0 %v4667
        %4690 = vmatprep.subr.bf16.mxu0 0
        %4691 = vmatpush1.bf16.msra.mxu0 %v4668
        %4692 = vmatprep.subr.bf16.mxu0 0
        %4693 = vmatpush1.bf16.msra.mxu0 %v4669
        %4694 = vmatprep.subr.bf16.mxu0 0
        %4695 = vmatpush1.bf16.msra.mxu0 0
        %4696 = vmatprep.subr.bf16.mxu0 0
        %4697 = vmatpush1.bf16.msra.mxu0 0
        %4698 = vmatprep.subr.bf16.mxu0 0
        %4699 = vmatpush1.bf16.msra.mxu0 0
        %4700 = vmatprep.subr.bf16.mxu0 0
        %4701 = vmatpush1.bf16.msra.mxu0 0
        %4702 = vmatprep.subr.bf16.mxu0 0
        %4703 = vmatpush1.bf16.msra.mxu0 0
        %4704 = vmatprep.subr.bf16.mxu0 0
        %4705 = vmatpush1.bf16.msra.mxu0 0
        %4706 = vmatprep.subr.bf16.mxu0 0
        %4707 = vmatpush1.bf16.msra.mxu0 0
        %4708 = vmatprep.subr.bf16.mxu0 0
        %4709 = vmatpush1.bf16.msra.mxu0 0
        %4710 = vmatprep.mubr.bf16.mxu0 0
        %4711 = vmatmul.mubr.bf16.gmra.mrb[0].mxu0 %v4548
        %v4712 = vpop.f32.mrb[0].mxu0
        %v4713 = vadd.f32 0.0, %v4712
        %v4714 = vpop.f32.mrb[0].mxu0
        %v4715 = vpop.f32.mrb[0].mxu0
        %v4716 = vadd.f32 0.0, %v4715
        %v4717 = vpop.f32.mrb[0].mxu0
        %4718 = vmatprep.mubr.bf16.mxu0 0
        %4719 = vmatmul.mubr.bf16.gmra.mrb[0].mxu0 %v4557
        %v4720 = vpop.f32.mrb[0].mxu0
        %v4721 = vadd.f32 0.0, %v4720
        %v4722 = vpop.f32.mrb[0].mxu0
        %v4723 = vpop.f32.mrb[0].mxu0
        %v4724 = vadd.f32 0.0, %v4723
        %v4725 = vpop.f32.mrb[0].mxu0
        %4726 = vmatprep.mubr.bf16.mxu0 0
        %4727 = vmatmul.mubr.bf16.gmra.mrb[0].mxu0 %v4566
        %v4728 = vpop.f32.mrb[0].mxu0
        %v4729 = vadd.f32 0.0, %v4728
        %v4730 = vpop.f32.mrb[0].mxu0
        %v4731 = vpop.f32.mrb[0].mxu0
        %v4732 = vadd.f32 0.0, %v4731
        %v4733 = vpop.f32.mrb[0].mxu0
        %4734 = vmatprep.mubr.bf16.mxu0 0
        %4735 = vmatmul.mubr.bf16.gmra.mrb[0].mxu0 %v4575
        %v4736 = vpop.f32.mrb[0].mxu0
        %v4737 = vadd.f32 0.0, %v4736
        %v4738 = vpop.f32.mrb[0].mxu0
        %v4739 = vpop.f32.mrb[0].mxu0
        %v4740 = vadd.f32 0.0, %v4739
        %v4741 = vpop.f32.mrb[0].mxu0
        %4742 = vmatprep.mubr.bf16.mxu0 0
        %4743 = vmatmul.mubr.bf16.gmra.mrb[0].mxu0 %v4584
        %v4744 = vpop.f32.mrb[0].mxu0
        %v4745 = vadd.f32 0.0, %v4744
        %v4746 = vpop.f32.mrb[0].mxu0
        %v4747 = vpop.f32.mrb[0].mxu0
        %v4748 = vadd.f32 0.0, %v4747
        %v4749 = vpop.f32.mrb[0].mxu0
        %4750 = vmatprep.mubr.bf16.mxu0 0
        %4751 = vmatmul.mubr.bf16.gmra.mrb[0].mxu0 %v4593
        %v4752 = vpop.f32.mrb[0].mxu0
        %v4753 = vadd.f32 0.0, %v4752
        %v4754 = vpop.f32.mrb[0].mxu0
        %v4755 = vpop.f32.mrb[0].mxu0
        %v4756 = vadd.f32 0.0, %v4755
        %v4757 = vpop.f32.mrb[0].mxu0
        %4758 = vmatprep.mubr.bf16.mxu0 0
        %4759 = vmatmul.mubr.bf16.gmra.mrb[0].mxu0 %v4602
        %v4760 = vpop.f32.mrb[0].mxu0
        %v4761 = vadd.f32 0.0, %v4760
        %v4762 = vpop.f32.mrb[0].mxu0
        %v4763 = vpop.f32.mrb[0].mxu0
        %v4764 = vadd.f32 0.0, %v4763
        %v4765 = vpop.f32.mrb[0].mxu0
        %4766 = vmatprep.mubr.bf16.mxu0 0
        %4767 = vmatmul.mubr.bf16.gmra.mrb[0].mxu0 %v4611
        %v4768 = vpop.f32.mrb[0].mxu0
        %v4769 = vadd.f32 0.0, %v4768
        %v4770 = vpop.f32.mrb[0].mxu0
        %v4771 = vpop.f32.mrb[0].mxu0
        %v4772 = vadd.f32 0.0, %v4771
        %v4773 = vpop.f32.mrb[0].mxu0
        %4774 = vmatprep.mubr.bf16.mxu0 0
        %4775 = vmatmul.mubr.bf16.gmra.mrb[0].mxu0 %v4620
        %v4776 = vpop.f32.mrb[0].mxu0
        %v4777 = vadd.f32 0.0, %v4776
        %v4778 = vpop.f32.mrb[0].mxu0
        %v4779 = vpop.f32.mrb[0].mxu0
        %v4780 = vadd.f32 0.0, %v4779
        %v4781 = vpop.f32.mrb[0].mxu0
        %4782 = vdwg.mxu0
        %v4783 = vadd.f32 %v4494, %v4713
        %v4784 = vadd.f32 %v4495, %v4716
        %v4785 = vadd.f32 %v4496, %v4721
        %v4786 = vadd.f32 %v4497, %v4724
        %v4787 = vadd.f32 %v4498, %v4729
        %v4788 = vadd.f32 %v4499, %v4732
        %v4789 = vadd.f32 %v4500, %v4737
        %v4790 = vadd.f32 %v4501, %v4740
        %v4791 = vadd.f32 %v4502, %v4745
        %v4792 = vadd.f32 %v4503, %v4748
        %v4793 = vadd.f32 %v4504, %v4753
        %v4794 = vadd.f32 %v4505, %v4756
        %v4795 = vadd.f32 %v4506, %v4761
        %v4796 = vadd.f32 %v4507, %v4764
        %v4797 = vadd.f32 %v4508, %v4769
        %v4798 = vadd.f32 %v4509, %v4772
        %v4799 = vadd.f32 %v4510, %v4777
        %v4800 = vadd.f32 %v4511, %v4780
        %v4801 = vld [vmem:[#allocation2 + $0x50] sm:$0xc]
        %v4802 = vld [vmem:[%s2160] sm:$0xf]
        %v4803 = vld [vmem:[%s2160 + $0x4] sm:$0xf]
        %v4804 = vld [vmem:[%s2160 + $0x8] sm:$0xf]
        %v4805 = vld [vmem:[%s2160 + $0xc] sm:$0xf]
        %v4806 = vld [vmem:[%s2160 + $0x10] sm:$0xf]
        %v4807 = vld [vmem:[%s2160 + $0x14] sm:$0xf]
        %v4808 = vld [vmem:[%s2160 + $0x18] sm:$0xf]
        %v4809 = vld [vmem:[%s2160 + $0x1c] sm:$0xf]
        %v4810 = vld [vmem:[%s2160 + $0x20] sm:$0xf]
        %v4811 = vld [vmem:[%s2160 + $0x24] sm:$0xf]
        %v4812 = vld [vmem:[%s2160 + $0x28] sm:$0xf]
        %v4813 = vld [vmem:[%s2160 + $0x2c] sm:$0xf]
        %v4814 = vld [vmem:[%s2160 + $0x30] sm:$0xf]
        %v4815 = vld [vmem:[%s2160 + $0x34] sm:$0xf]
        %v4816 = vld [vmem:[%s2160 + $0x38] sm:$0xf]
        %v4817 = vld [vmem:[%s2160 + $0x3c] sm:$0xf]
        %v4819 = vunpack.c.l.b16 %v4801
        %v4820 = vpack.c.b16 %v4285, %v4819
        %v4821 = vrot.slane %v4820, 2
        %v4822 = vrot.slane %v4304, 2
        %v4823 = vsel %vm2180, %v4821, %v4822
        %v4824 = vrot.slane %v4305, 2
        %v4825 = vsel %vm2180, %v4822, %v4824
        %v4826 = vrot.slane %v4306, 2
        %v4827 = vsel %vm2180, %v4824, %v4826
        %v4828 = vrot.slane %v4307, 2
        %v4829 = vsel %vm2180, %v4826, %v4828
        %v4830 = vrot.slane %v4308, 2
        %v4831 = vsel %vm2180, %v4828, %v4830
        %v4832 = vrot.slane %v4309, 2
        %v4833 = vsel %vm2180, %v4830, %v4832
        %v4834 = vrot.slane %v4310, 2
        %v4835 = vsel %vm2180, %v4832, %v4834
        %v4836 = vrot.slane %v4311, 2
        %v4837 = vsel %vm2180, %v4834, %v4836
        %v4838 = vrot.slane %v4531, 2
        %v4839 = vsel %vm2180, %v4836, %v4838
        %v4865 = vunpack.c.l.b16 %v4802
        %v4866 = vunpack.c.l.b16 %v4803
        %v4867 = vunpack.c.l.b16 %v4804
        %v4868 = vunpack.c.l.b16 %v4805
        %v4869 = vunpack.c.l.b16 %v4806
        %v4870 = vunpack.c.l.b16 %v4807
        %v4871 = vunpack.c.l.b16 %v4808
        %v4872 = vunpack.c.l.b16 %v4809
        %v4873 = vunpack.c.l.b16 %v4810
        %v4874 = vunpack.c.l.b16 %v4811
        %v4875 = vunpack.c.l.b16 %v4812
        %v4876 = vunpack.c.l.b16 %v4813
        %v4877 = vunpack.c.l.b16 %v4814
        %v4878 = vunpack.c.l.b16 %v4815
        %v4879 = vunpack.c.l.b16 %v4816
        %v4880 = vunpack.c.l.b16 %v4817
        %v4881 = vpack.c.b16 %v4866, %v4865
        %v4882 = vpack.c.b16 %v4868, %v4867
        %v4883 = vpack.c.b16 %v4870, %v4869
        %v4884 = vpack.c.b16 %v4872, %v4871
        %v4885 = vpack.c.b16 %v4874, %v4873
        %v4886 = vpack.c.b16 %v4876, %v4875
        %v4887 = vpack.c.b16 %v4878, %v4877
        %v4888 = vpack.c.b16 %v4880, %v4879
        %4897 = vmatprep.subr.bf16.mxu0 0
        %4898 = vmatpush1.bf16.msra.mxu0 %v4881
        %4899 = vmatprep.subr.bf16.mxu0 0
        %4900 = vmatpush1.bf16.msra.mxu0 %v4882
        %4901 = vmatprep.subr.bf16.mxu0 0
        %4902 = vmatpush1.bf16.msra.mxu0 %v4883
        %4903 = vmatprep.subr.bf16.mxu0 0
        %4904 = vmatpush1.bf16.msra.mxu0 %v4884
        %4905 = vmatprep.subr.bf16.mxu0 0
        %4906 = vmatpush1.bf16.msra.mxu0 %v4885
        %4907 = vmatprep.subr.bf16.mxu0 0
        %4908 = vmatpush1.bf16.msra.mxu0 %v4886
        %4909 = vmatprep.subr.bf16.mxu0 0
        %4910 = vmatpush1.bf16.msra.mxu0 %v4887
        %4911 = vmatprep.subr.bf16.mxu0 0
        %4912 = vmatpush1.bf16.msra.mxu0 %v4888
        %4913 = vmatprep.subr.bf16.mxu0 0
        %4914 = vmatpush1.bf16.msra.mxu0 0
        %4915 = vmatprep.subr.bf16.mxu0 0
        %4916 = vmatpush1.bf16.msra.mxu0 0
        %4917 = vmatprep.subr.bf16.mxu0 0
        %4918 = vmatpush1.bf16.msra.mxu0 0
        %4919 = vmatprep.subr.bf16.mxu0 0
        %4920 = vmatpush1.bf16.msra.mxu0 0
        %4921 = vmatprep.subr.bf16.mxu0 0
        %4922 = vmatpush1.bf16.msra.mxu0 0
        %4923 = vmatprep.subr.bf16.mxu0 0
        %4924 = vmatpush1.bf16.msra.mxu0 0
        %4925 = vmatprep.subr.bf16.mxu0 0
        %4926 = vmatpush1.bf16.msra.mxu0 0
        %4927 = vmatprep.subr.bf16.mxu0 0
        %4928 = vmatpush1.bf16.msra.mxu0 0
        %4929 = vmatprep.mubr.bf16.mxu0 0
        %4930 = vmatmul.mubr.bf16.gmra.mrb[0].mxu0 %v4823
        %v4931 = vpop.f32.mrb[0].mxu0
        %v4932 = vadd.f32 0.0, %v4931
        %v4933 = vpop.f32.mrb[0].mxu0
        %v4934 = vpop.f32.mrb[0].mxu0
        %v4935 = vadd.f32 0.0, %v4934
        %v4936 = vpop.f32.mrb[0].mxu0
        %4937 = vmatprep.mubr.bf16.mxu0 0
        %4938 = vmatmul.mubr.bf16.gmra.mrb[0].mxu0 %v4825
        %v4939 = vpop.f32.mrb[0].mxu0
        %v4940 = vadd.f32 0.0, %v4939
        %v4941 = vpop.f32.mrb[0].mxu0
        %v4942 = vpop.f32.mrb[0].mxu0
        %v4943 = vadd.f32 0.0, %v4942
        %v4944 = vpop.f32.mrb[0].mxu0
        %4945 = vmatprep.mubr.bf16.mxu0 0
        %4946 = vmatmul.mubr.bf16.gmra.mrb[0].mxu0 %v4827
        %v4947 = vpop.f32.mrb[0].mxu0
        %v4948 = vadd.f32 0.0, %v4947
        %v4949 = vpop.f32.mrb[0].mxu0
        %v4950 = vpop.f32.mrb[0].mxu0
        %v4951 = vadd.f32 0.0, %v4950
        %v4952 = vpop.f32.mrb[0].mxu0
        %4953 = vmatprep.mubr.bf16.mxu0 0
        %4954 = vmatmul.mubr.bf16.gmra.mrb[0].mxu0 %v4829
        %v4955 = vpop.f32.mrb[0].mxu0
        %v4956 = vadd.f32 0.0, %v4955
        %v4957 = vpop.f32.mrb[0].mxu0
        %v4958 = vpop.f32.mrb[0].mxu0
        %v4959 = vadd.f32 0.0, %v4958
        %v4960 = vpop.f32.mrb[0].mxu0
        %4961 = vmatprep.mubr.bf16.mxu0 0
        %4962 = vmatmul.mubr.bf16.gmra.mrb[0].mxu0 %v4831
        %v4963 = vpop.f32.mrb[0].mxu0
        %v4964 = vadd.f32 0.0, %v4963
        %v4965 = vpop.f32.mrb[0].mxu0
        %v4966 = vpop.f32.mrb[0].mxu0
        %v4967 = vadd.f32 0.0, %v4966
        %v4968 = vpop.f32.mrb[0].mxu0
        %4969 = vmatprep.mubr.bf16.mxu0 0
        %4970 = vmatmul.mubr.bf16.gmra.mrb[0].mxu0 %v4833
        %v4971 = vpop.f32.mrb[0].mxu0
        %v4972 = vadd.f32 0.0, %v4971
        %v4973 = vpop.f32.mrb[0].mxu0
        %v4974 = vpop.f32.mrb[0].mxu0
        %v4975 = vadd.f32 0.0, %v4974
        %v4976 = vpop.f32.mrb[0].mxu0
        %4977 = vmatprep.mubr.bf16.mxu0 0
        %4978 = vmatmul.mubr.bf16.gmra.mrb[0].mxu0 %v4835
        %v4979 = vpop.f32.mrb[0].mxu0
        %v4980 = vadd.f32 0.0, %v4979
        %v4981 = vpop.f32.mrb[0].mxu0
        %v4982 = vpop.f32.mrb[0].mxu0
        %v4983 = vadd.f32 0.0, %v4982
        %v4984 = vpop.f32.mrb[0].mxu0
        %4985 = vmatprep.mubr.bf16.mxu0 0
        %4986 = vmatmul.mubr.bf16.gmra.mrb[0].mxu0 %v4837
        %v4987 = vpop.f32.mrb[0].mxu0
        %v4988 = vadd.f32 0.0, %v4987
        %v4989 = vpop.f32.mrb[0].mxu0
        %v4990 = vpop.f32.mrb[0].mxu0
        %v4991 = vadd.f32 0.0, %v4990
        %v4992 = vpop.f32.mrb[0].mxu0
        %4993 = vmatprep.mubr.bf16.mxu0 0
        %4994 = vmatmul.mubr.bf16.gmra.mrb[0].mxu0 %v4839
        %v4995 = vpop.f32.mrb[0].mxu0
        %v4996 = vadd.f32 0.0, %v4995
        %v4997 = vpop.f32.mrb[0].mxu0
        %v4998 = vpop.f32.mrb[0].mxu0
        %v4999 = vadd.f32 0.0, %v4998
        %v5000 = vpop.f32.mrb[0].mxu0
        %5001 = vdwg.mxu0
        %v5002 = vadd.f32 %v4783, %v4932
        %v5003 = vadd.f32 %v4784, %v4935
        %v5004 = vadd.f32 %v4785, %v4940
        %v5005 = vadd.f32 %v4786, %v4943
        %v5006 = vadd.f32 %v4787, %v4948
        %v5007 = vadd.f32 %v4788, %v4951
        %v5008 = vadd.f32 %v4789, %v4956
        %v5009 = vadd.f32 %v4790, %v4959
        %v5010 = vadd.f32 %v4791, %v4964
        %v5011 = vadd.f32 %v4792, %v4967
        %v5012 = vadd.f32 %v4793, %v4972
        %v5013 = vadd.f32 %v4794, %v4975
        %v5014 = vadd.f32 %v4795, %v4980
        %v5015 = vadd.f32 %v4796, %v4983
        %v5016 = vadd.f32 %v4797, %v4988
        %v5017 = vadd.f32 %v4798, %v4991
        %v5018 = vadd.f32 %v4799, %v4996
        %v5019 = vadd.f32 %v4800, %v4999
        %v5020 = vld [vmem:[#allocation2 + $0x58] sm:$0xc]
        %v5021 = vld [vmem:[#allocation2 + $0x5c] sm:$0xf]
        %v5022 = vld [vmem:[#allocation2 + $0x60] sm:$0xf]
        %v5023 = vld [vmem:[#allocation2 + $0x64] sm:$0xf]
        %v5024 = vld [vmem:[#allocation2 + $0x68] sm:$0xf]
        %v5025 = vld [vmem:[#allocation2 + $0x6c] sm:$0xf]
        %v5026 = vld [vmem:[#allocation2 + $0x70] sm:$0xf]
        %v5027 = vld [vmem:[#allocation2 + $0x74] sm:$0xf]
        %v5028 = vld [vmem:[#allocation2 + $0x78] sm:$0xf]
        %v5029 = vld [vmem:[#allocation2 + $0x7c] sm:$0xf]
        %v5030 = vld [vmem:[#allocation2 + $0x80] sm:$0xf]
        %v5031 = vld [vmem:[#allocation2 + $0x84] sm:$0xf]
        %v5032 = vld [vmem:[#allocation2 + $0x88] sm:$0xf]
        %v5033 = vld [vmem:[#allocation2 + $0x8c] sm:$0xf]
        %v5034 = vld [vmem:[#allocation2 + $0x90] sm:$0xf]
        %v5035 = vld [vmem:[#allocation2 + $0x94] sm:$0xf]
        %v5036 = vld [vmem:[#allocation2 + $0x98] sm:$0xf]
        %v5037 = vld [vmem:[#allocation2 + $0x9c] sm:$0xf]
        %v5038 = vld [vmem:[#allocation2 + $0xa0] sm:$0x3]
        %v5039 = vld [vmem:[%s2399] sm:$0xf]
        %v5040 = vld [vmem:[%s2399 + $0x4] sm:$0xf]
        %v5041 = vld [vmem:[%s2399 + $0x8] sm:$0xf]
        %v5042 = vld [vmem:[%s2399 + $0xc] sm:$0xf]
        %v5043 = vld [vmem:[%s2399 + $0x10] sm:$0xf]
        %v5044 = vld [vmem:[%s2399 + $0x14] sm:$0xf]
        %v5045 = vld [vmem:[%s2399 + $0x18] sm:$0xf]
        %v5046 = vld [vmem:[%s2399 + $0x1c] sm:$0xf]
        %v5047 = vld [vmem:[%s2399 + $0x20] sm:$0xf]
        %v5048 = vld [vmem:[%s2399 + $0x24] sm:$0xf]
        %v5049 = vld [vmem:[%s2399 + $0x28] sm:$0xf]
        %v5050 = vld [vmem:[%s2399 + $0x2c] sm:$0xf]
        %v5051 = vld [vmem:[%s2399 + $0x30] sm:$0xf]
        %v5052 = vld [vmem:[%s2399 + $0x34] sm:$0xf]
        %v5053 = vld [vmem:[%s2399 + $0x38] sm:$0xf]
        %v5054 = vld [vmem:[%s2399 + $0x3c] sm:$0xf]
        %v5074 = vunpack.c.l.b16 %v5020
        %v5075 = vunpack.c.l.b16 %v5021
        %v5076 = vunpack.c.l.b16 %v5022
        %v5077 = vunpack.c.l.b16 %v5023
        %v5078 = vunpack.c.l.b16 %v5024
        %v5079 = vunpack.c.l.b16 %v5025
        %v5080 = vunpack.c.l.b16 %v5026
        %v5081 = vunpack.c.l.b16 %v5027
        %v5082 = vunpack.c.l.b16 %v5028
        %v5083 = vunpack.c.l.b16 %v5029
        %v5084 = vunpack.c.l.b16 %v5030
        %v5085 = vunpack.c.l.b16 %v5031
        %v5086 = vunpack.c.l.b16 %v5032
        %v5087 = vunpack.c.l.b16 %v5033
        %v5088 = vunpack.c.l.b16 %v5034
        %v5089 = vunpack.c.l.b16 %v5035
        %v5090 = vunpack.c.l.b16 %v5036
        %v5091 = vunpack.c.l.b16 %v5037
        %v5092 = vunpack.c.l.b16 %v5038
        %v5093 = vpack.c.b16 %v5075, %v5074
        %v5094 = vpack.c.b16 %v5077, %v5076
        %v5095 = vpack.c.b16 %v5079, %v5078
        %v5096 = vpack.c.b16 %v5081, %v5080
        %v5097 = vpack.c.b16 %v5083, %v5082
        %v5098 = vpack.c.b16 %v5085, %v5084
        %v5099 = vpack.c.b16 %v5087, %v5086
        %v5100 = vpack.c.b16 %v5089, %v5088
        %v5101 = vpack.c.b16 %v5091, %v5090
        %v5102 = vpack.c.b16 %v5092, %v5092
        %v5103 = vrot.slane %v5093, 2
        %v5104 = vrot.slane %v5094, 2
        %v5105 = vsel %vm2180, %v5103, %v5104
        %v5106 = vrot.slane %v5095, 2
        %v5107 = vsel %vm2180, %v5104, %v5106
        %v5108 = vrot.slane %v5096, 2
        %v5109 = vsel %vm2180, %v5106, %v5108
        %v5110 = vrot.slane %v5097, 2
        %v5111 = vsel %vm2180, %v5108, %v5110
        %v5112 = vrot.slane %v5098, 2
        %v5113 = vsel %vm2180, %v5110, %v5112
        %v5114 = vrot.slane %v5099, 2
        %v5115 = vsel %vm2180, %v5112, %v5114
        %v5116 = vrot.slane %v5100, 2
        %v5117 = vsel %vm2180, %v5114, %v5116
        %v5118 = vrot.slane %v5101, 2
        %v5119 = vsel %vm2180, %v5116, %v5118
        %v5120 = vrot.slane %v5102, 2
        %v5121 = vsel %vm2180, %v5118, %v5120
        %v5147 = vunpack.c.l.b16 %v5039
        %v5148 = vunpack.c.l.b16 %v5040
        %v5149 = vunpack.c.l.b16 %v5041
        %v5150 = vunpack.c.l.b16 %v5042
        %v5151 = vunpack.c.l.b16 %v5043
        %v5152 = vunpack.c.l.b16 %v5044
        %v5153 = vunpack.c.l.b16 %v5045
        %v5154 = vunpack.c.l.b16 %v5046
        %v5155 = vunpack.c.l.b16 %v5047
        %v5156 = vunpack.c.l.b16 %v5048
        %v5157 = vunpack.c.l.b16 %v5049
        %v5158 = vunpack.c.l.b16 %v5050
        %v5159 = vunpack.c.l.b16 %v5051
        %v5160 = vunpack.c.l.b16 %v5052
        %v5161 = vunpack.c.l.b16 %v5053
        %v5162 = vunpack.c.l.b16 %v5054
        %v5163 = vpack.c.b16 %v5148, %v5147
        %v5164 = vpack.c.b16 %v5150, %v5149
        %v5165 = vpack.c.b16 %v5152, %v5151
        %v5166 = vpack.c.b16 %v5154, %v5153
        %v5167 = vpack.c.b16 %v5156, %v5155
        %v5168 = vpack.c.b16 %v5158, %v5157
        %v5169 = vpack.c.b16 %v5160, %v5159
        %v5170 = vpack.c.b16 %v5162, %v5161
        %5179 = vmatprep.subr.bf16.mxu0 0
        %5180 = vmatpush1.bf16.msra.mxu0 %v5163
        %5181 = vmatprep.subr.bf16.mxu0 0
        %5182 = vmatpush1.bf16.msra.mxu0 %v5164
        %5183 = vmatprep.subr.bf16.mxu0 0
        %5184 = vmatpush1.bf16.msra.mxu0 %v5165
        %5185 = vmatprep.subr.bf16.mxu0 0
        %5186 = vmatpush1.bf16.msra.mxu0 %v5166
        %5187 = vmatprep.subr.bf16.mxu0 0
        %5188 = vmatpush1.bf16.msra.mxu0 %v5167
        %5189 = vmatprep.subr.bf16.mxu0 0
        %5190 = vmatpush1.bf16.msra.mxu0 %v5168
        %5191 = vmatprep.subr.bf16.mxu0 0
        %5192 = vmatpush1.bf16.msra.mxu0 %v5169
        %5193 = vmatprep.subr.bf16.mxu0 0
        %5194 = vmatpush1.bf16.msra.mxu0 %v5170
        %5195 = vmatprep.subr.bf16.mxu0 0
        %5196 = vmatpush1.bf16.msra.mxu0 0
        %5197 = vmatprep.subr.bf16.mxu0 0
        %5198 = vmatpush1.bf16.msra.mxu0 0
        %5199 = vmatprep.subr.bf16.mxu0 0
        %5200 = vmatpush1.bf16.msra.mxu0 0
        %5201 = vmatprep.subr.bf16.mxu0 0
        %5202 = vmatpush1.bf16.msra.mxu0 0
        %5203 = vmatprep.subr.bf16.mxu0 0
        %5204 = vmatpush1.bf16.msra.mxu0 0
        %5205 = vmatprep.subr.bf16.mxu0 0
        %5206 = vmatpush1.bf16.msra.mxu0 0
        %5207 = vmatprep.subr.bf16.mxu0 0
        %5208 = vmatpush1.bf16.msra.mxu0 0
        %5209 = vmatprep.subr.bf16.mxu0 0
        %5210 = vmatpush1.bf16.msra.mxu0 0
        %5211 = vmatprep.mubr.bf16.mxu0 0
        %5212 = vmatmul.mubr.bf16.gmra.mrb[0].mxu0 %v5105
        %v5213 = vpop.f32.mrb[0].mxu0
        %v5214 = vadd.f32 0.0, %v5213
        %v5215 = vpop.f32.mrb[0].mxu0
        %v5216 = vpop.f32.mrb[0].mxu0
        %v5217 = vadd.f32 0.0, %v5216
        %v5218 = vpop.f32.mrb[0].mxu0
        %5219 = vmatprep.mubr.bf16.mxu0 0
        %5220 = vmatmul.mubr.bf16.gmra.mrb[0].mxu0 %v5107
        %v5221 = vpop.f32.mrb[0].mxu0
        %v5222 = vadd.f32 0.0, %v5221
        %v5223 = vpop.f32.mrb[0].mxu0
        %v5224 = vpop.f32.mrb[0].mxu0
        %v5225 = vadd.f32 0.0, %v5224
        %v5226 = vpop.f32.mrb[0].mxu0
        %5227 = vmatprep.mubr.bf16.mxu0 0
        %5228 = vmatmul.mubr.bf16.gmra.mrb[0].mxu0 %v5109
        %v5229 = vpop.f32.mrb[0].mxu0
        %v5230 = vadd.f32 0.0, %v5229
        %v5231 = vpop.f32.mrb[0].mxu0
        %v5232 = vpop.f32.mrb[0].mxu0
        %v5233 = vadd.f32 0.0, %v5232
        %v5234 = vpop.f32.mrb[0].mxu0
        %5235 = vmatprep.mubr.bf16.mxu0 0
        %5236 = vmatmul.mubr.bf16.gmra.mrb[0].mxu0 %v5111
        %v5237 = vpop.f32.mrb[0].mxu0
        %v5238 = vadd.f32 0.0, %v5237
        %v5239 = vpop.f32.mrb[0].mxu0
        %v5240 = vpop.f32.mrb[0].mxu0
        %v5241 = vadd.f32 0.0, %v5240
        %v5242 = vpop.f32.mrb[0].mxu0
        %5243 = vmatprep.mubr.bf16.mxu0 0
        %5244 = vmatmul.mubr.bf16.gmra.mrb[0].mxu0 %v5113
        %v5245 = vpop.f32.mrb[0].mxu0
        %v5246 = vadd.f32 0.0, %v5245
        %v5247 = vpop.f32.mrb[0].mxu0
        %v5248 = vpop.f32.mrb[0].mxu0
        %v5249 = vadd.f32 0.0, %v5248
        %v5250 = vpop.f32.mrb[0].mxu0
        %5251 = vmatprep.mubr.bf16.mxu0 0
        %5252 = vmatmul.mubr.bf16.gmra.mrb[0].mxu0 %v5115
        %v5253 = vpop.f32.mrb[0].mxu0
        %v5254 = vadd.f32 0.0, %v5253
        %v5255 = vpop.f32.mrb[0].mxu0
        %v5256 = vpop.f32.mrb[0].mxu0
        %v5257 = vadd.f32 0.0, %v5256
        %v5258 = vpop.f32.mrb[0].mxu0
        %5259 = vmatprep.mubr.bf16.mxu0 0
        %5260 = vmatmul.mubr.bf16.gmra.mrb[0].mxu0 %v5117
        %v5261 = vpop.f32.mrb[0].mxu0
        %v5262 = vadd.f32 0.0, %v5261
        %v5263 = vpop.f32.mrb[0].mxu0
        %v5264 = vpop.f32.mrb[0].mxu0
        %v5265 = vadd.f32 0.0, %v5264
        %v5266 = vpop.f32.mrb[0].mxu0
        %5267 = vmatprep.mubr.bf16.mxu0 0
        %5268 = vmatmul.mubr.bf16.gmra.mrb[0].mxu0 %v5119
        %v5269 = vpop.f32.mrb[0].mxu0
        %v5270 = vadd.f32 0.0, %v5269
        %v5271 = vpop.f32.mrb[0].mxu0
        %v5272 = vpop.f32.mrb[0].mxu0
        %v5273 = vadd.f32 0.0, %v5272
        %v5274 = vpop.f32.mrb[0].mxu0
        %5275 = vmatprep.mubr.bf16.mxu0 0
        %5276 = vmatmul.mubr.bf16.gmra.mrb[0].mxu0 %v5121
        %v5277 = vpop.f32.mrb[0].mxu0
        %v5278 = vadd.f32 0.0, %v5277
        %v5279 = vpop.f32.mrb[0].mxu0
        %v5280 = vpop.f32.mrb[0].mxu0
        %v5281 = vadd.f32 0.0, %v5280
        %v5282 = vpop.f32.mrb[0].mxu0
        %5283 = vdwg.mxu0
        %v5284 = vadd.f32 %v5002, %v5214
        %v5285 = vadd.f32 %v5003, %v5217
        %v5286 = vadd.f32 %v5004, %v5222
        %v5287 = vadd.f32 %v5005, %v5225
        %v5288 = vadd.f32 %v5006, %v5230
        %v5289 = vadd.f32 %v5007, %v5233
        %v5290 = vadd.f32 %v5008, %v5238
        %v5291 = vadd.f32 %v5009, %v5241
        %v5292 = vadd.f32 %v5010, %v5246
        %v5293 = vadd.f32 %v5011, %v5249
        %v5294 = vadd.f32 %v5012, %v5254
        %v5295 = vadd.f32 %v5013, %v5257
        %v5296 = vadd.f32 %v5014, %v5262
        %v5297 = vadd.f32 %v5015, %v5265
        %v5298 = vadd.f32 %v5016, %v5270
        %v5299 = vadd.f32 %v5017, %v5273
        %v5300 = vadd.f32 %v5018, %v5278
        %v5301 = vadd.f32 %v5019, %v5281
        %v5302 = vld [vmem:[#allocation2 + $0xa0] sm:$0x7]
        %v5303 = vld [vmem:[%s2664] sm:$0xf]
        %v5304 = vld [vmem:[%s2664 + $0x4] sm:$0xf]
        %v5305 = vld [vmem:[%s2664 + $0x8] sm:$0xf]
        %v5306 = vld [vmem:[%s2664 + $0xc] sm:$0xf]
        %v5307 = vld [vmem:[%s2664 + $0x10] sm:$0xf]
        %v5308 = vld [vmem:[%s2664 + $0x14] sm:$0xf]
        %v5309 = vld [vmem:[%s2664 + $0x18] sm:$0xf]
        %v5310 = vld [vmem:[%s2664 + $0x1c] sm:$0xf]
        %v5311 = vld [vmem:[%s2664 + $0x20] sm:$0xf]
        %v5312 = vld [vmem:[%s2664 + $0x24] sm:$0xf]
        %v5313 = vld [vmem:[%s2664 + $0x28] sm:$0xf]
        %v5314 = vld [vmem:[%s2664 + $0x2c] sm:$0xf]
        %v5315 = vld [vmem:[%s2664 + $0x30] sm:$0xf]
        %v5316 = vld [vmem:[%s2664 + $0x34] sm:$0xf]
        %v5317 = vld [vmem:[%s2664 + $0x38] sm:$0xf]
        %v5318 = vld [vmem:[%s2664 + $0x3c] sm:$0xf]
        %v5320 = vunpack.c.l.b16 %v5302
        %v5321 = vpack.c.b16 %v5320, %v5320
        %v5323 = vshrl.u32 %v5093, 16
        %v5325 = vrot.slane %v5323, 2
        %v5326 = vshll.u32 %v5093, 16
        %v5328 = vrot.slane %v5326, 3
        %v5329 = vor.u32 %v5325, %v5328
        %v5331 = vshrl.u32 %v5094, 16
        %v5333 = vrot.slane %v5331, 2
        %v5334 = vshll.u32 %v5094, 16
        %v5336 = vrot.slane %v5334, 3
        %v5337 = vor.u32 %v5333, %v5336
        %v5338 = vsel %vm2684, %v5329, %v5337
        %v5340 = vshrl.u32 %v5095, 16
        %v5342 = vrot.slane %v5340, 2
        %v5343 = vshll.u32 %v5095, 16
        %v5345 = vrot.slane %v5343, 3
        %v5346 = vor.u32 %v5342, %v5345
        %v5347 = vsel %vm2684, %v5337, %v5346
        %v5349 = vshrl.u32 %v5096, 16
        %v5351 = vrot.slane %v5349, 2
        %v5352 = vshll.u32 %v5096, 16
        %v5354 = vrot.slane %v5352, 3
        %v5355 = vor.u32 %v5351, %v5354
        %v5356 = vsel %vm2684, %v5346, %v5355
        %v5358 = vshrl.u32 %v5097, 16
        %v5360 = vrot.slane %v5358, 2
        %v5361 = vshll.u32 %v5097, 16
        %v5363 = vrot.slane %v5361, 3
        %v5364 = vor.u32 %v5360, %v5363
        %v5365 = vsel %vm2684, %v5355, %v5364
        %v5367 = vshrl.u32 %v5098, 16
        %v5369 = vrot.slane %v5367, 2
        %v5370 = vshll.u32 %v5098, 16
        %v5372 = vrot.slane %v5370, 3
        %v5373 = vor.u32 %v5369, %v5372
        %v5374 = vsel %vm2684, %v5364, %v5373
        %v5376 = vshrl.u32 %v5099, 16
        %v5378 = vrot.slane %v5376, 2
        %v5379 = vshll.u32 %v5099, 16
        %v5381 = vrot.slane %v5379, 3
        %v5382 = vor.u32 %v5378, %v5381
        %v5383 = vsel %vm2684, %v5373, %v5382
        %v5385 = vshrl.u32 %v5100, 16
        %v5387 = vrot.slane %v5385, 2
        %v5388 = vshll.u32 %v5100, 16
        %v5390 = vrot.slane %v5388, 3
        %v5391 = vor.u32 %v5387, %v5390
        %v5392 = vsel %vm2684, %v5382, %v5391
        %v5394 = vshrl.u32 %v5101, 16
        %v5396 = vrot.slane %v5394, 2
        %v5397 = vshll.u32 %v5101, 16
        %v5399 = vrot.slane %v5397, 3
        %v5400 = vor.u32 %v5396, %v5399
        %v5401 = vsel %vm2684, %v5391, %v5400
        %v5403 = vshrl.u32 %v5321, 16
        %v5405 = vrot.slane %v5403, 2
        %v5406 = vshll.u32 %v5321, 16
        %v5408 = vrot.slane %v5406, 3
        %v5409 = vor.u32 %v5405, %v5408
        %v5410 = vsel %vm2684, %v5400, %v5409
        %v5436 = vunpack.c.l.b16 %v5303
        %v5437 = vunpack.c.l.b16 %v5304
        %v5438 = vunpack.c.l.b16 %v5305
        %v5439 = vunpack.c.l.b16 %v5306
        %v5440 = vunpack.c.l.b16 %v5307
        %v5441 = vunpack.c.l.b16 %v5308
        %v5442 = vunpack.c.l.b16 %v5309
        %v5443 = vunpack.c.l.b16 %v5310
        %v5444 = vunpack.c.l.b16 %v5311
        %v5445 = vunpack.c.l.b16 %v5312
        %v5446 = vunpack.c.l.b16 %v5313
        %v5447 = vunpack.c.l.b16 %v5314
        %v5448 = vunpack.c.l.b16 %v5315
        %v5449 = vunpack.c.l.b16 %v5316
        %v5450 = vunpack.c.l.b16 %v5317
        %v5451 = vunpack.c.l.b16 %v5318
        %v5452 = vpack.c.b16 %v5437, %v5436
        %v5453 = vpack.c.b16 %v5439, %v5438
        %v5454 = vpack.c.b16 %v5441, %v5440
        %v5455 = vpack.c.b16 %v5443, %v5442
        %v5456 = vpack.c.b16 %v5445, %v5444
        %v5457 = vpack.c.b16 %v5447, %v5446
        %v5458 = vpack.c.b16 %v5449, %v5448
        %v5459 = vpack.c.b16 %v5451, %v5450
        %5468 = vmatprep.subr.bf16.mxu0 0
        %5469 = vmatpush1.bf16.msra.mxu0 %v5452
        %5470 = vmatprep.subr.bf16.mxu0 0
        %5471 = vmatpush1.bf16.msra.mxu0 %v5453
        %5472 = vmatprep.subr.bf16.mxu0 0
        %5473 = vmatpush1.bf16.msra.mxu0 %v5454
        %5474 = vmatprep.subr.bf16.mxu0 0
        %5475 = vmatpush1.bf16.msra.mxu0 %v5455
        %5476 = vmatprep.subr.bf16.mxu0 0
        %5477 = vmatpush1.bf16.msra.mxu0 %v5456
        %5478 = vmatprep.subr.bf16.mxu0 0
        %5479 = vmatpush1.bf16.msra.mxu0 %v5457
        %5480 = vmatprep.subr.bf16.mxu0 0
        %5481 = vmatpush1.bf16.msra.mxu0 %v5458
        %5482 = vmatprep.subr.bf16.mxu0 0
        %5483 = vmatpush1.bf16.msra.mxu0 %v5459
        %5484 = vmatprep.subr.bf16.mxu0 0
        %5485 = vmatpush1.bf16.msra.mxu0 0
        %5486 = vmatprep.subr.bf16.mxu0 0
        %5487 = vmatpush1.bf16.msra.mxu0 0
        %5488 = vmatprep.subr.bf16.mxu0 0
        %5489 = vmatpush1.bf16.msra.mxu0 0
        %5490 = vmatprep.subr.bf16.mxu0 0
        %5491 = vmatpush1.bf16.msra.mxu0 0
        %5492 = vmatprep.subr.bf16.mxu0 0
        %5493 = vmatpush1.bf16.msra.mxu0 0
        %5494 = vmatprep.subr.bf16.mxu0 0
        %5495 = vmatpush1.bf16.msra.mxu0 0
        %5496 = vmatprep.subr.bf16.mxu0 0
        %5497 = vmatpush1.bf16.msra.mxu0 0
        %5498 = vmatprep.subr.bf16.mxu0 0
        %5499 = vmatpush1.bf16.msra.mxu0 0
        %5500 = vmatprep.mubr.bf16.mxu0 0
        %5501 = vmatmul.mubr.bf16.gmra.mrb[0].mxu0 %v5338
        %v5502 = vpop.f32.mrb[0].mxu0
        %v5503 = vadd.f32 0.0, %v5502
        %v5504 = vpop.f32.mrb[0].mxu0
        %v5505 = vpop.f32.mrb[0].mxu0
        %v5506 = vadd.f32 0.0, %v5505
        %v5507 = vpop.f32.mrb[0].mxu0
        %5508 = vmatprep.mubr.bf16.mxu0 0
        %5509 = vmatmul.mubr.bf16.gmra.mrb[0].mxu0 %v5347
        %v5510 = vpop.f32.mrb[0].mxu0
        %v5511 = vadd.f32 0.0, %v5510
        %v5512 = vpop.f32.mrb[0].mxu0
        %v5513 = vpop.f32.mrb[0].mxu0
        %v5514 = vadd.f32 0.0, %v5513
        %v5515 = vpop.f32.mrb[0].mxu0
        %5516 = vmatprep.mubr.bf16.mxu0 0
        %5517 = vmatmul.mubr.bf16.gmra.mrb[0].mxu0 %v5356
        %v5518 = vpop.f32.mrb[0].mxu0
        %v5519 = vadd.f32 0.0, %v5518
        %v5520 = vpop.f32.mrb[0].mxu0
        %v5521 = vpop.f32.mrb[0].mxu0
        %v5522 = vadd.f32 0.0, %v5521
        %v5523 = vpop.f32.mrb[0].mxu0
        %5524 = vmatprep.mubr.bf16.mxu0 0
        %5525 = vmatmul.mubr.bf16.gmra.mrb[0].mxu0 %v5365
        %v5526 = vpop.f32.mrb[0].mxu0
        %v5527 = vadd.f32 0.0, %v5526
        %v5528 = vpop.f32.mrb[0].mxu0
        %v5529 = vpop.f32.mrb[0].mxu0
        %v5530 = vadd.f32 0.0, %v5529
        %v5531 = vpop.f32.mrb[0].mxu0
        %5532 = vmatprep.mubr.bf16.mxu0 0
        %5533 = vmatmul.mubr.bf16.gmra.mrb[0].mxu0 %v5374
        %v5534 = vpop.f32.mrb[0].mxu0
        %v5535 = vadd.f32 0.0, %v5534
        %v5536 = vpop.f32.mrb[0].mxu0
        %v5537 = vpop.f32.mrb[0].mxu0
        %v5538 = vadd.f32 0.0, %v5537
        %v5539 = vpop.f32.mrb[0].mxu0
        %5540 = vmatprep.mubr.bf16.mxu0 0
        %5541 = vmatmul.mubr.bf16.gmra.mrb[0].mxu0 %v5383
        %v5542 = vpop.f32.mrb[0].mxu0
        %v5543 = vadd.f32 0.0, %v5542
        %v5544 = vpop.f32.mrb[0].mxu0
        %v5545 = vpop.f32.mrb[0].mxu0
        %v5546 = vadd.f32 0.0, %v5545
        %v5547 = vpop.f32.mrb[0].mxu0
        %5548 = vmatprep.mubr.bf16.mxu0 0
        %5549 = vmatmul.mubr.bf16.gmra.mrb[0].mxu0 %v5392
        %v5550 = vpop.f32.mrb[0].mxu0
        %v5551 = vadd.f32 0.0, %v5550
        %v5552 = vpop.f32.mrb[0].mxu0
        %v5553 = vpop.f32.mrb[0].mxu0
        %v5554 = vadd.f32 0.0, %v5553
        %v5555 = vpop.f32.mrb[0].mxu0
        %5556 = vmatprep.mubr.bf16.mxu0 0
        %5557 = vmatmul.mubr.bf16.gmra.mrb[0].mxu0 %v5401
        %v5558 = vpop.f32.mrb[0].mxu0
        %v5559 = vadd.f32 0.0, %v5558
        %v5560 = vpop.f32.mrb[0].mxu0
        %v5561 = vpop.f32.mrb[0].mxu0
        %v5562 = vadd.f32 0.0, %v5561
        %v5563 = vpop.f32.mrb[0].mxu0
        %5564 = vmatprep.mubr.bf16.mxu0 0
        %5565 = vmatmul.mubr.bf16.gmra.mrb[0].mxu0 %v5410
        %v5566 = vpop.f32.mrb[0].mxu0
        %v5567 = vadd.f32 0.0, %v5566
        %v5568 = vpop.f32.mrb[0].mxu0
        %v5569 = vpop.f32.mrb[0].mxu0
        %v5570 = vadd.f32 0.0, %v5569
        %v5571 = vpop.f32.mrb[0].mxu0
        %5572 = vdwg.mxu0
        %v5573 = vadd.f32 %v5284, %v5503
        %v5574 = vadd.f32 %v5285, %v5506
        %v5575 = vadd.f32 %v5286, %v5511
        %v5576 = vadd.f32 %v5287, %v5514
        %v5577 = vadd.f32 %v5288, %v5519
        %v5578 = vadd.f32 %v5289, %v5522
        %v5579 = vadd.f32 %v5290, %v5527
        %v5580 = vadd.f32 %v5291, %v5530
        %v5581 = vadd.f32 %v5292, %v5535
        %v5582 = vadd.f32 %v5293, %v5538
        %v5583 = vadd.f32 %v5294, %v5543
        %v5584 = vadd.f32 %v5295, %v5546
        %v5585 = vadd.f32 %v5296, %v5551
        %v5586 = vadd.f32 %v5297, %v5554
        %v5587 = vadd.f32 %v5298, %v5559
        %v5588 = vadd.f32 %v5299, %v5562
        %v5589 = vadd.f32 %v5300, %v5567
        %v5590 = vadd.f32 %v5301, %v5570
        %v5591 = vld [vmem:[#allocation2 + $0x58] sm:$0x8]
        %v5592 = vld [vmem:[%s2955] sm:$0xf]
        %v5593 = vld [vmem:[%s2955 + $0x4] sm:$0xf]
        %v5594 = vld [vmem:[%s2955 + $0x8] sm:$0xf]
        %v5595 = vld [vmem:[%s2955 + $0xc] sm:$0xf]
        %v5596 = vld [vmem:[%s2955 + $0x10] sm:$0xf]
        %v5597 = vld [vmem:[%s2955 + $0x14] sm:$0xf]
        %v5598 = vld [vmem:[%s2955 + $0x18] sm:$0xf]
        %v5599 = vld [vmem:[%s2955 + $0x1c] sm:$0xf]
        %v5600 = vld [vmem:[%s2955 + $0x20] sm:$0xf]
        %v5601 = vld [vmem:[%s2955 + $0x24] sm:$0xf]
        %v5602 = vld [vmem:[%s2955 + $0x28] sm:$0xf]
        %v5603 = vld [vmem:[%s2955 + $0x2c] sm:$0xf]
        %v5604 = vld [vmem:[%s2955 + $0x30] sm:$0xf]
        %v5605 = vld [vmem:[%s2955 + $0x34] sm:$0xf]
        %v5606 = vld [vmem:[%s2955 + $0x38] sm:$0xf]
        %v5607 = vld [vmem:[%s2955 + $0x3c] sm:$0xf]
        %v5609 = vunpack.c.l.b16 %v5591
        %v5610 = vpack.c.b16 %v5075, %v5609
        %v5611 = vrot.slane %v5610, 3
        %v5612 = vrot.slane %v5094, 3
        %v5613 = vsel %vm2975, %v5611, %v5612
        %v5614 = vrot.slane %v5095, 3
        %v5615 = vsel %vm2975, %v5612, %v5614
        %v5616 = vrot.slane %v5096, 3
        %v5617 = vsel %vm2975, %v5614, %v5616
        %v5618 = vrot.slane %v5097, 3
        %v5619 = vsel %vm2975, %v5616, %v5618
        %v5620 = vrot.slane %v5098, 3
        %v5621 = vsel %vm2975, %v5618, %v5620
        %v5622 = vrot.slane %v5099, 3
        %v5623 = vsel %vm2975, %v5620, %v5622
        %v5624 = vrot.slane %v5100, 3
        %v5625 = vsel %vm2975, %v5622, %v5624
        %v5626 = vrot.slane %v5101, 3
        %v5627 = vsel %vm2975, %v5624, %v5626
        %v5628 = vrot.slane %v5321, 3
        %v5629 = vsel %vm2975, %v5626, %v5628
        %v5655 = vunpack.c.l.b16 %v5592
        %v5656 = vunpack.c.l.b16 %v5593
        %v5657 = vunpack.c.l.b16 %v5594
        %v5658 = vunpack.c.l.b16 %v5595
        %v5659 = vunpack.c.l.b16 %v5596
        %v5660 = vunpack.c.l.b16 %v5597
        %v5661 = vunpack.c.l.b16 %v5598
        %v5662 = vunpack.c.l.b16 %v5599
        %v5663 = vunpack.c.l.b16 %v5600
        %v5664 = vunpack.c.l.b16 %v5601
        %v5665 = vunpack.c.l.b16 %v5602
        %v5666 = vunpack.c.l.b16 %v5603
        %v5667 = vunpack.c.l.b16 %v5604
        %v5668 = vunpack.c.l.b16 %v5605
        %v5669 = vunpack.c.l.b16 %v5606
        %v5670 = vunpack.c.l.b16 %v5607
        %v5671 = vpack.c.b16 %v5656, %v5655
        %v5672 = vpack.c.b16 %v5658, %v5657
        %v5673 = vpack.c.b16 %v5660, %v5659
        %v5674 = vpack.c.b16 %v5662, %v5661
        %v5675 = vpack.c.b16 %v5664, %v5663
        %v5676 = vpack.c.b16 %v5666, %v5665
        %v5677 = vpack.c.b16 %v5668, %v5667
        %v5678 = vpack.c.b16 %v5670, %v5669
        %5687 = vmatprep.subr.bf16.mxu0 0
        %5688 = vmatpush1.bf16.msra.mxu0 %v5671
        %5689 = vmatprep.subr.bf16.mxu0 0
        %5690 = vmatpush1.bf16.msra.mxu0 %v5672
        %5691 = vmatprep.subr.bf16.mxu0 0
        %5692 = vmatpush1.bf16.msra.mxu0 %v5673
        %5693 = vmatprep.subr.bf16.mxu0 0
        %5694 = vmatpush1.bf16.msra.mxu0 %v5674
        %5695 = vmatprep.subr.bf16.mxu0 0
        %5696 = vmatpush1.bf16.msra.mxu0 %v5675
        %5697 = vmatprep.subr.bf16.mxu0 0
        %5698 = vmatpush1.bf16.msra.mxu0 %v5676
        %5699 = vmatprep.subr.bf16.mxu0 0
        %5700 = vmatpush1.bf16.msra.mxu0 %v5677
        %5701 = vmatprep.subr.bf16.mxu0 0
        %5702 = vmatpush1.bf16.msra.mxu0 %v5678
        %5703 = vmatprep.subr.bf16.mxu0 0
        %5704 = vmatpush1.bf16.msra.mxu0 0
        %5705 = vmatprep.subr.bf16.mxu0 0
        %5706 = vmatpush1.bf16.msra.mxu0 0
        %5707 = vmatprep.subr.bf16.mxu0 0
        %5708 = vmatpush1.bf16.msra.mxu0 0
        %5709 = vmatprep.subr.bf16.mxu0 0
        %5710 = vmatpush1.bf16.msra.mxu0 0
        %5711 = vmatprep.subr.bf16.mxu0 0
        %5712 = vmatpush1.bf16.msra.mxu0 0
        %5713 = vmatprep.subr.bf16.mxu0 0
        %5714 = vmatpush1.bf16.msra.mxu0 0
        %5715 = vmatprep.subr.bf16.mxu0 0
        %5716 = vmatpush1.bf16.msra.mxu0 0
        %5717 = vmatprep.subr.bf16.mxu0 0
        %5718 = vmatpush1.bf16.msra.mxu0 0
        %5719 = vmatprep.mubr.bf16.mxu0 0
        %5720 = vmatmul.mubr.bf16.gmra.mrb[0].mxu0 %v5613
        %v5721 = vpop.f32.mrb[0].mxu0
        %v5722 = vadd.f32 0.0, %v5721
        %v5723 = vpop.f32.mrb[0].mxu0
        %v5724 = vpop.f32.mrb[0].mxu0
        %v5725 = vadd.f32 0.0, %v5724
        %v5726 = vpop.f32.mrb[0].mxu0
        %5727 = vmatprep.mubr.bf16.mxu0 0
        %5728 = vmatmul.mubr.bf16.gmra.mrb[0].mxu0 %v5615
        %v5729 = vpop.f32.mrb[0].mxu0
        %v5730 = vadd.f32 0.0, %v5729
        %v5731 = vpop.f32.mrb[0].mxu0
        %v5732 = vpop.f32.mrb[0].mxu0
        %v5733 = vadd.f32 0.0, %v5732
        %v5734 = vpop.f32.mrb[0].mxu0
        %5735 = vmatprep.mubr.bf16.mxu0 0
        %5736 = vmatmul.mubr.bf16.gmra.mrb[0].mxu0 %v5617
        %v5737 = vpop.f32.mrb[0].mxu0
        %v5738 = vadd.f32 0.0, %v5737
        %v5739 = vpop.f32.mrb[0].mxu0
        %v5740 = vpop.f32.mrb[0].mxu0
        %v5741 = vadd.f32 0.0, %v5740
        %v5742 = vpop.f32.mrb[0].mxu0
        %5743 = vmatprep.mubr.bf16.mxu0 0
        %5744 = vmatmul.mubr.bf16.gmra.mrb[0].mxu0 %v5619
        %v5745 = vpop.f32.mrb[0].mxu0
        %v5746 = vadd.f32 0.0, %v5745
        %v5747 = vpop.f32.mrb[0].mxu0
        %v5748 = vpop.f32.mrb[0].mxu0
        %v5749 = vadd.f32 0.0, %v5748
        %v5750 = vpop.f32.mrb[0].mxu0
        %5751 = vmatprep.mubr.bf16.mxu0 0
        %5752 = vmatmul.mubr.bf16.gmra.mrb[0].mxu0 %v5621
        %v5753 = vpop.f32.mrb[0].mxu0
        %v5754 = vadd.f32 0.0, %v5753
        %v5755 = vpop.f32.mrb[0].mxu0
        %v5756 = vpop.f32.mrb[0].mxu0
        %v5757 = vadd.f32 0.0, %v5756
        %v5758 = vpop.f32.mrb[0].mxu0
        %5759 = vmatprep.mubr.bf16.mxu0 0
        %5760 = vmatmul.mubr.bf16.gmra.mrb[0].mxu0 %v5623
        %v5761 = vpop.f32.mrb[0].mxu0
        %v5762 = vadd.f32 0.0, %v5761
        %v5763 = vpop.f32.mrb[0].mxu0
        %v5764 = vpop.f32.mrb[0].mxu0
        %v5765 = vadd.f32 0.0, %v5764
        %v5766 = vpop.f32.mrb[0].mxu0
        %5767 = vmatprep.mubr.bf16.mxu0 0
        %5768 = vmatmul.mubr.bf16.gmra.mrb[0].mxu0 %v5625
        %v5769 = vpop.f32.mrb[0].mxu0
        %v5770 = vadd.f32 0.0, %v5769
        %v5771 = vpop.f32.mrb[0].mxu0
        %v5772 = vpop.f32.mrb[0].mxu0
        %v5773 = vadd.f32 0.0, %v5772
        %v5774 = vpop.f32.mrb[0].mxu0
        %5775 = vmatprep.mubr.bf16.mxu0 0
        %5776 = vmatmul.mubr.bf16.gmra.mrb[0].mxu0 %v5627
        %v5777 = vpop.f32.mrb[0].mxu0
        %v5778 = vadd.f32 0.0, %v5777
        %v5779 = vpop.f32.mrb[0].mxu0
        %v5780 = vpop.f32.mrb[0].mxu0
        %v5781 = vadd.f32 0.0, %v5780
        %v5782 = vpop.f32.mrb[0].mxu0
        %5783 = vmatprep.mubr.bf16.mxu0 0
        %5784 = vmatmul.mubr.bf16.gmra.mrb[0].mxu0 %v5629
        %v5785 = vpop.f32.mrb[0].mxu0
        %v5786 = vadd.f32 0.0, %v5785
        %v5787 = vpop.f32.mrb[0].mxu0
        %v5788 = vpop.f32.mrb[0].mxu0
        %v5789 = vadd.f32 0.0, %v5788
        %v5790 = vpop.f32.mrb[0].mxu0
        %5791 = vdwg.mxu0
        %v5792 = vadd.f32 %v5573, %v5722
        %v5793 = vadd.f32 %v5574, %v5725
        %v5794 = vadd.f32 %v5575, %v5730
        %v5795 = vadd.f32 %v5576, %v5733
        %v5796 = vadd.f32 %v5577, %v5738
        %v5797 = vadd.f32 %v5578, %v5741
        %v5798 = vadd.f32 %v5579, %v5746
        %v5799 = vadd.f32 %v5580, %v5749
        %v5800 = vadd.f32 %v5581, %v5754
        %v5801 = vadd.f32 %v5582, %v5757
        %v5802 = vadd.f32 %v5583, %v5762
        %v5803 = vadd.f32 %v5584, %v5765
        %v5804 = vadd.f32 %v5585, %v5770
        %v5805 = vadd.f32 %v5586, %v5773
        %v5806 = vadd.f32 %v5587, %v5778
        %v5807 = vadd.f32 %v5588, %v5781
        %v5808 = vadd.f32 %v5589, %v5786
        %v5809 = vadd.f32 %v5590, %v5789
        %v5810 = vadd.f32 %v5792, %v3179
        %v5811 = vadd.f32 %v5793, %v3179
        %v5812 = vadd.f32 %v5794, %v3179
        %v5813 = vadd.f32 %v5795, %v3179
        %v5814 = vadd.f32 %v5796, %v3179
        %v5815 = vadd.f32 %v5797, %v3179
        %v5816 = vadd.f32 %v5798, %v3179
        %v5817 = vadd.f32 %v5799, %v3179
        %v5818 = vadd.f32 %v5800, %v3179
        %v5819 = vadd.f32 %v5801, %v3179
        %v5820 = vadd.f32 %v5802, %v3179
        %v5821 = vadd.f32 %v5803, %v3179
        %v5822 = vadd.f32 %v5804, %v3179
        %v5823 = vadd.f32 %v5805, %v3179
        %v5824 = vadd.f32 %v5806, %v3179
        %v5825 = vadd.f32 %v5807, %v3179
        %v5826 = vadd.f32 %v5808, %v3179
        %v5827 = vadd.f32 %v5809, %v3179
        %v5828 = vmax.f32 %v5810, 0.0
        %v5829 = vmax.f32 %v5811, 0.0
        %v5830 = vmax.f32 %v5812, 0.0
        %v5831 = vmax.f32 %v5813, 0.0
        %v5832 = vmax.f32 %v5814, 0.0
        %v5833 = vmax.f32 %v5815, 0.0
        %v5834 = vmax.f32 %v5816, 0.0
        %v5835 = vmax.f32 %v5817, 0.0
        %v5836 = vmax.f32 %v5818, 0.0
        %v5837 = vmax.f32 %v5819, 0.0
        %v5838 = vmax.f32 %v5820, 0.0
        %v5839 = vmax.f32 %v5821, 0.0
        %v5840 = vmax.f32 %v5822, 0.0
        %v5841 = vmax.f32 %v5823, 0.0
        %v5842 = vmax.f32 %v5824, 0.0
        %v5843 = vmax.f32 %v5825, 0.0
        %v5844 = vmax.f32 %v5826, 0.0
        %v5845 = vmax.f32 %v5827, 0.0
        %v5846 = vsel %vm843, %v5828, 0.0
        %v5847 = vsel %vm844, %v5829, 0.0
        %v5848 = vsel %vm845, %v5830, 0.0
        %v5849 = vsel %vm846, %v5831, 0.0
        %v5850 = vsel %vm847, %v5832, 0.0
        %v5851 = vsel %vm848, %v5833, 0.0
        %v5852 = vsel %vm849, %v5834, 0.0
        %v5853 = vsel %vm850, %v5835, 0.0
        %v5854 = vsel %vm851, %v5836, 0.0
        %v5855 = vsel %vm852, %v5837, 0.0
        %v5856 = vsel %vm853, %v5838, 0.0
        %v5857 = vsel %vm854, %v5839, 0.0
        %v5858 = vsel %vm855, %v5840, 0.0
        %v5859 = vsel %vm856, %v5841, 0.0
        %v5860 = vsel %vm857, %v5842, 0.0
        %v5861 = vsel %vm858, %v5843, 0.0
        %v5862 = vsel %vm859, %v5844, 0.0
        %v5863 = vsel %vm860, %v5845, 0.0
        %v5864 = vpack.c.bf16 %v5847, %v5846
        %v5865 = vpack.c.bf16 %v5849, %v5848
        %v5866 = vpack.c.bf16 %v5851, %v5850
        %v5867 = vpack.c.bf16 %v5853, %v5852
        %v5868 = vpack.c.bf16 %v5855, %v5854
        %v5869 = vpack.c.bf16 %v5857, %v5856
        %v5870 = vpack.c.bf16 %v5859, %v5858
        %v5871 = vpack.c.bf16 %v5861, %v5860
        %v5872 = vpack.c.bf16 %v5863, %v5862
        %v5882 = vunpack.c.l.b16 %v5864
        %v5883 = vunpack.c.h.b16 %v5864
        %v5884 = vunpack.c.l.b16 %v5865
        %v5885 = vunpack.c.h.b16 %v5865
        %v5886 = vunpack.c.l.b16 %v5866
        %v5887 = vunpack.c.h.b16 %v5866
        %v5888 = vunpack.c.l.b16 %v5867
        %v5889 = vunpack.c.h.b16 %v5867
        %v5890 = vunpack.c.l.b16 %v5868
        %v5891 = vunpack.c.h.b16 %v5868
        %v5892 = vunpack.c.l.b16 %v5869
        %v5893 = vunpack.c.h.b16 %v5869
        %v5894 = vunpack.c.l.b16 %v5870
        %v5895 = vunpack.c.h.b16 %v5870
        %v5896 = vunpack.c.l.b16 %v5871
        %v5897 = vunpack.c.h.b16 %v5871
        %v5898 = vunpack.c.l.b16 %v5872
        %v5899 = vunpack.c.h.b16 %v5872
        %v5900 = vpack.c.b16 %v5882, %v5882
        %v5901 = vpack.c.b16 %v5883, %v5883
        %v5902 = vpack.c.b16 %v5884, %v5884
        %v5903 = vpack.c.b16 %v5885, %v5885
        %v5904 = vpack.c.b16 %v5886, %v5886
        %v5905 = vpack.c.b16 %v5887, %v5887
        %v5906 = vpack.c.b16 %v5888, %v5888
        %v5907 = vpack.c.b16 %v5889, %v5889
        %v5908 = vpack.c.b16 %v5890, %v5890
        %v5909 = vpack.c.b16 %v5891, %v5891
        %v5910 = vpack.c.b16 %v5892, %v5892
        %v5911 = vpack.c.b16 %v5893, %v5893
        %v5912 = vpack.c.b16 %v5894, %v5894
        %v5913 = vpack.c.b16 %v5895, %v5895
        %v5914 = vpack.c.b16 %v5896, %v5896
        %v5915 = vpack.c.b16 %v5897, %v5897
        %v5916 = vpack.c.b16 %v5898, %v5898
        %v5917 = vpack.c.b16 %v5899, %v5899
        %v5919 = vshrl.u32 %v5900, 16
        %v5921 = vrot.slane %v5919, 6
        %v5922 = vshll.u32 %v5900, 16
        %v5924 = vrot.slane %v5922, 7
        %v5925 = vor.u32 %v5921, %v5924
        %v5926 = vrot.slane %v5925, 4
        %v5928 = vshrl.u32 %v5901, 16
        %v5930 = vrot.slane %v5928, 6
        %v5931 = vshll.u32 %v5901, 16
        %v5933 = vrot.slane %v5931, 7
        %v5934 = vor.u32 %v5930, %v5933
        %v5935 = vsel %vm3290, %v5926, %v5934
        %v5936 = vrot.slane %v5934, 4
        %v5938 = vshrl.u32 %v5902, 16
        %v5940 = vrot.slane %v5938, 6
        %v5941 = vshll.u32 %v5902, 16
        %v5943 = vrot.slane %v5941, 7
        %v5944 = vor.u32 %v5940, %v5943
        %v5945 = vsel %vm3290, %v5936, %v5944
        %v5946 = vrot.slane %v5944, 4
        %v5948 = vshrl.u32 %v5903, 16
        %v5950 = vrot.slane %v5948, 6
        %v5951 = vshll.u32 %v5903, 16
        %v5953 = vrot.slane %v5951, 7
        %v5954 = vor.u32 %v5950, %v5953
        %v5955 = vsel %vm3290, %v5946, %v5954
        %v5956 = vrot.slane %v5954, 4
        %v5958 = vshrl.u32 %v5904, 16
        %v5960 = vrot.slane %v5958, 6
        %v5961 = vshll.u32 %v5904, 16
        %v5963 = vrot.slane %v5961, 7
        %v5964 = vor.u32 %v5960, %v5963
        %v5965 = vsel %vm3290, %v5956, %v5964
        %v5966 = vrot.slane %v5964, 4
        %v5968 = vshrl.u32 %v5905, 16
        %v5970 = vrot.slane %v5968, 6
        %v5971 = vshll.u32 %v5905, 16
        %v5973 = vrot.slane %v5971, 7
        %v5974 = vor.u32 %v5970, %v5973
        %v5975 = vsel %vm3290, %v5966, %v5974
        %v5976 = vrot.slane %v5974, 4
        %v5978 = vshrl.u32 %v5906, 16
        %v5980 = vrot.slane %v5978, 6
        %v5981 = vshll.u32 %v5906, 16
        %v5983 = vrot.slane %v5981, 7
        %v5984 = vor.u32 %v5980, %v5983
        %v5985 = vsel %vm3290, %v5976, %v5984
        %v5986 = vrot.slane %v5984, 4
        %v5988 = vshrl.u32 %v5907, 16
        %v5990 = vrot.slane %v5988, 6
        %v5991 = vshll.u32 %v5907, 16
        %v5993 = vrot.slane %v5991, 7
        %v5994 = vor.u32 %v5990, %v5993
        %v5995 = vsel %vm3290, %v5986, %v5994
        %v5996 = vrot.slane %v5994, 4
        %v5998 = vshrl.u32 %v5908, 16
        %v6000 = vrot.slane %v5998, 6
        %v6001 = vshll.u32 %v5908, 16
        %v6003 = vrot.slane %v6001, 7
        %v6004 = vor.u32 %v6000, %v6003
        %v6005 = vsel %vm3290, %v5996, %v6004
        %v6006 = vrot.slane %v6004, 4
        %v6008 = vshrl.u32 %v5909, 16
        %v6010 = vrot.slane %v6008, 6
        %v6011 = vshll.u32 %v5909, 16
        %v6013 = vrot.slane %v6011, 7
        %v6014 = vor.u32 %v6010, %v6013
        %v6015 = vsel %vm3290, %v6006, %v6014
        %v6016 = vrot.slane %v6014, 4
        %v6018 = vshrl.u32 %v5910, 16
        %v6020 = vrot.slane %v6018, 6
        %v6021 = vshll.u32 %v5910, 16
        %v6023 = vrot.slane %v6021, 7
        %v6024 = vor.u32 %v6020, %v6023
        %v6025 = vsel %vm3290, %v6016, %v6024
        %v6026 = vrot.slane %v6024, 4
        %v6028 = vshrl.u32 %v5911, 16
        %v6030 = vrot.slane %v6028, 6
        %v6031 = vshll.u32 %v5911, 16
        %v6033 = vrot.slane %v6031, 7
        %v6034 = vor.u32 %v6030, %v6033
        %v6035 = vsel %vm3290, %v6026, %v6034
        %v6036 = vrot.slane %v6034, 4
        %v6038 = vshrl.u32 %v5912, 16
        %v6040 = vrot.slane %v6038, 6
        %v6041 = vshll.u32 %v5912, 16
        %v6043 = vrot.slane %v6041, 7
        %v6044 = vor.u32 %v6040, %v6043
        %v6045 = vsel %vm3290, %v6036, %v6044
        %v6046 = vrot.slane %v6044, 4
        %v6048 = vshrl.u32 %v5913, 16
        %v6050 = vrot.slane %v6048, 6
        %v6051 = vshll.u32 %v5913, 16
        %v6053 = vrot.slane %v6051, 7
        %v6054 = vor.u32 %v6050, %v6053
        %v6055 = vsel %vm3290, %v6046, %v6054
        %v6056 = vrot.slane %v6054, 4
        %v6058 = vshrl.u32 %v5914, 16
        %v6060 = vrot.slane %v6058, 6
        %v6061 = vshll.u32 %v5914, 16
        %v6063 = vrot.slane %v6061, 7
        %v6064 = vor.u32 %v6060, %v6063
        %v6065 = vsel %vm3290, %v6056, %v6064
        %v6066 = vrot.slane %v6064, 4
        %v6068 = vshrl.u32 %v5915, 16
        %v6070 = vrot.slane %v6068, 6
        %v6071 = vshll.u32 %v5915, 16
        %v6073 = vrot.slane %v6071, 7
        %v6074 = vor.u32 %v6070, %v6073
        %v6075 = vsel %vm3290, %v6066, %v6074
        %v6076 = vrot.slane %v6074, 4
        %v6078 = vshrl.u32 %v5916, 16
        %v6080 = vrot.slane %v6078, 6
        %v6081 = vshll.u32 %v5916, 16
        %v6083 = vrot.slane %v6081, 7
        %v6084 = vor.u32 %v6080, %v6083
        %v6085 = vsel %vm3290, %v6076, %v6084
        %v6086 = vrot.slane %v6084, 4
        %v6088 = vshrl.u32 %v5917, 16
        %v6090 = vrot.slane %v6088, 6
        %v6091 = vshll.u32 %v5917, 16
        %v6093 = vrot.slane %v6091, 7
        %v6094 = vor.u32 %v6090, %v6093
        %v6095 = vsel %vm3290, %v6086, %v6094
        %v6096 = vrot.slane %v6094, 4
        %v6116 = vld [vmem:[#allocation3 + $0x50] sm:$0xe]
        %v6117 = vsel %vm530, %v5925, %v6116
        %6118 = vst [vmem:[#allocation3 + $0x50] sm:$0xe] %v6117
        %6119 = vst [vmem:[#allocation3 + $0x54] sm:$0xf] %v5935
        %6120 = vst [vmem:[#allocation3 + $0x58] sm:$0xf] %v5945
        %6121 = vst [vmem:[#allocation3 + $0x5c] sm:$0xf] %v5955
        %6122 = vst [vmem:[#allocation3 + $0x60] sm:$0xf] %v5965
        %6123 = vst [vmem:[#allocation3 + $0x64] sm:$0xf] %v5975
        %6124 = vst [vmem:[#allocation3 + $0x68] sm:$0xf] %v5985
        %6125 = vst [vmem:[#allocation3 + $0x6c] sm:$0xf] %v5995
        %6126 = vst [vmem:[#allocation3 + $0x70] sm:$0xf] %v6005
        %6127 = vst [vmem:[#allocation3 + $0x74] sm:$0xf] %v6015
        %6128 = vst [vmem:[#allocation3 + $0x78] sm:$0xf] %v6025
        %6129 = vst [vmem:[#allocation3 + $0x7c] sm:$0xf] %v6035
        %6130 = vst [vmem:[#allocation3 + $0x80] sm:$0xf] %v6045
        %6131 = vst [vmem:[#allocation3 + $0x84] sm:$0xf] %v6055
        %6132 = vst [vmem:[#allocation3 + $0x88] sm:$0xf] %v6065
        %6133 = vst [vmem:[#allocation3 + $0x8c] sm:$0xf] %v6075
        %6134 = vst [vmem:[#allocation3 + $0x90] sm:$0xf] %v6085
        %6135 = vst [vmem:[#allocation3 + $0x94] sm:$0xf] %v6095
        %v6136 = vld [vmem:[#allocation3 + $0x98] sm:$0x3]
        %v6137 = vsel %vm524, %v6096, %v6136
        %6138 = vst [vmem:[#allocation3 + $0x98] sm:$0x3] %v6137
        %v6139 = vld [vmem:[#allocation3] sm:$0xf]
        %v6140 = vld [vmem:[#allocation3 + $0x4] sm:$0xf]
        %v6141 = vld [vmem:[#allocation3 + $0x8] sm:$0xf]
        %v6142 = vld [vmem:[#allocation3 + $0xc] sm:$0xf]
        %v6143 = vld [vmem:[#allocation3 + $0x10] sm:$0xf]
        %v6144 = vld [vmem:[#allocation3 + $0x14] sm:$0xf]
        %v6145 = vld [vmem:[#allocation3 + $0x18] sm:$0xf]
        %v6146 = vld [vmem:[#allocation3 + $0x1c] sm:$0xf]
        %v6147 = vld [vmem:[#allocation3 + $0x20] sm:$0xf]
        %v6148 = vld [vmem:[#allocation3 + $0x24] sm:$0xf]
        %v6149 = vld [vmem:[#allocation3 + $0x28] sm:$0xf]
        %v6150 = vld [vmem:[#allocation3 + $0x2c] sm:$0xf]
        %v6151 = vld [vmem:[#allocation3 + $0x30] sm:$0xf]
        %v6152 = vld [vmem:[#allocation3 + $0x34] sm:$0xf]
        %v6153 = vld [vmem:[#allocation3 + $0x38] sm:$0xf]
        %v6154 = vld [vmem:[#allocation3 + $0x3c] sm:$0xf]
        %v6155 = vld [vmem:[#allocation3 + $0x40] sm:$0xf]
        %v6156 = vld [vmem:[#allocation3 + $0x44] sm:$0xf]
        %v6157 = vld [vmem:[#allocation9] sm:$0xf]
        %v6158 = vld [vmem:[#allocation9 + $0x4] sm:$0xf]
        %v6159 = vld [vmem:[#allocation9 + $0x8] sm:$0xf]
        %v6160 = vld [vmem:[#allocation9 + $0xc] sm:$0xf]
        %v6161 = vld [vmem:[#allocation9 + $0x10] sm:$0xf]
        %v6162 = vld [vmem:[#allocation9 + $0x14] sm:$0xf]
        %v6163 = vld [vmem:[#allocation9 + $0x18] sm:$0xf]
        %v6164 = vld [vmem:[#allocation9 + $0x1c] sm:$0xf]
        %v6165 = vld [vmem:[#allocation9 + $0x20] sm:$0xf]
        %v6166 = vld [vmem:[#allocation9 + $0x24] sm:$0xf]
        %v6167 = vld [vmem:[#allocation9 + $0x28] sm:$0xf]
        %v6168 = vld [vmem:[#allocation9 + $0x2c] sm:$0xf]
        %v6169 = vld [vmem:[#allocation9 + $0x30] sm:$0xf]
        %v6170 = vld [vmem:[#allocation9 + $0x34] sm:$0xf]
        %v6171 = vld [vmem:[#allocation9 + $0x38] sm:$0xf]
        %v6172 = vld [vmem:[#allocation9 + $0x3c] sm:$0xf]
        %v6173 = vld [vmem:[#allocation3 + $0x48] sm:$0x1]
        %s6174 = scalar_lea.vmem [#allocation9], 64
        %v6175 = vld [vmem:[%s6174] sm:$0xf]
        %v6176 = vld [vmem:[%s6174 + $0x4] sm:$0xf]
        %v6177 = vld [vmem:[%s6174 + $0x8] sm:$0xf]
        %v6178 = vld [vmem:[%s6174 + $0xc] sm:$0xf]
        %v6179 = vld [vmem:[%s6174 + $0x10] sm:$0xf]
        %v6180 = vld [vmem:[%s6174 + $0x14] sm:$0xf]
        %v6181 = vld [vmem:[%s6174 + $0x18] sm:$0xf]
        %v6182 = vld [vmem:[%s6174 + $0x1c] sm:$0xf]
        %v6183 = vld [vmem:[%s6174 + $0x20] sm:$0xf]
        %v6184 = vld [vmem:[%s6174 + $0x24] sm:$0xf]
        %v6185 = vld [vmem:[%s6174 + $0x28] sm:$0xf]
        %v6186 = vld [vmem:[%s6174 + $0x2c] sm:$0xf]
        %v6187 = vld [vmem:[%s6174 + $0x30] sm:$0xf]
        %v6188 = vld [vmem:[%s6174 + $0x34] sm:$0xf]
        %v6189 = vld [vmem:[%s6174 + $0x38] sm:$0xf]
        %v6190 = vld [vmem:[%s6174 + $0x3c] sm:$0xf]
        %v6210 = vunpack.c.l.b16 %v6139
        %v6211 = vunpack.c.l.b16 %v6140
        %v6212 = vunpack.c.l.b16 %v6141
        %v6213 = vunpack.c.l.b16 %v6142
        %v6214 = vunpack.c.l.b16 %v6143
        %v6215 = vunpack.c.l.b16 %v6144
        %v6216 = vunpack.c.l.b16 %v6145
        %v6217 = vunpack.c.l.b16 %v6146
        %v6218 = vunpack.c.l.b16 %v6147
        %v6219 = vunpack.c.l.b16 %v6148
        %v6220 = vunpack.c.l.b16 %v6149
        %v6221 = vunpack.c.l.b16 %v6150
        %v6222 = vunpack.c.l.b16 %v6151
        %v6223 = vunpack.c.l.b16 %v6152
        %v6224 = vunpack.c.l.b16 %v6153
        %v6225 = vunpack.c.l.b16 %v6154
        %v6226 = vunpack.c.l.b16 %v6155
        %v6227 = vunpack.c.l.b16 %v6156
        %v6228 = vunpack.c.l.b16 %v6173
        %v6229 = vpack.c.b16 %v6211, %v6210
        %v6230 = vpack.c.b16 %v6213, %v6212
        %v6231 = vpack.c.b16 %v6215, %v6214
        %v6232 = vpack.c.b16 %v6217, %v6216
        %v6233 = vpack.c.b16 %v6219, %v6218
        %v6234 = vpack.c.b16 %v6221, %v6220
        %v6235 = vpack.c.b16 %v6223, %v6222
        %v6236 = vpack.c.b16 %v6225, %v6224
        %v6237 = vpack.c.b16 %v6227, %v6226
        %v6238 = vpack.c.b16 %v6228, %v6228
        %v6240 = vshrl.u32 %v6229, 16
        %v6242 = vshll.u32 %v6229, 16
        %v6244 = vrot.slane %v6242, 1
        %v6245 = vor.u32 %v6240, %v6244
        %v6247 = vshll.u32 %v6230, 16
        %v6249 = vrot.slane %v6247, 1
        %v6250 = vsel %vm963, %v6245, %v6249
        %v6251 = vshrl.u32 %v6230, 16
        %v6253 = vor.u32 %v6251, %v6249
        %v6255 = vshll.u32 %v6231, 16
        %v6257 = vrot.slane %v6255, 1
        %v6258 = vsel %vm963, %v6253, %v6257
        %v6259 = vshrl.u32 %v6231, 16
        %v6261 = vor.u32 %v6259, %v6257
        %v6263 = vshll.u32 %v6232, 16
        %v6265 = vrot.slane %v6263, 1
        %v6266 = vsel %vm963, %v6261, %v6265
        %v6267 = vshrl.u32 %v6232, 16
        %v6269 = vor.u32 %v6267, %v6265
        %v6271 = vshll.u32 %v6233, 16
        %v6273 = vrot.slane %v6271, 1
        %v6274 = vsel %vm963, %v6269, %v6273
        %v6275 = vshrl.u32 %v6233, 16
        %v6277 = vor.u32 %v6275, %v6273
        %v6279 = vshll.u32 %v6234, 16
        %v6281 = vrot.slane %v6279, 1
        %v6282 = vsel %vm963, %v6277, %v6281
        %v6283 = vshrl.u32 %v6234, 16
        %v6285 = vor.u32 %v6283, %v6281
        %v6287 = vshll.u32 %v6235, 16
        %v6289 = vrot.slane %v6287, 1
        %v6290 = vsel %vm963, %v6285, %v6289
        %v6291 = vshrl.u32 %v6235, 16
        %v6293 = vor.u32 %v6291, %v6289
        %v6295 = vshll.u32 %v6236, 16
        %v6297 = vrot.slane %v6295, 1
        %v6298 = vsel %vm963, %v6293, %v6297
        %v6299 = vshrl.u32 %v6236, 16
        %v6301 = vor.u32 %v6299, %v6297
        %v6303 = vshll.u32 %v6237, 16
        %v6305 = vrot.slane %v6303, 1
        %v6306 = vsel %vm963, %v6301, %v6305
        %v6307 = vshrl.u32 %v6237, 16
        %v6309 = vor.u32 %v6307, %v6305
        %v6311 = vshll.u32 %v6238, 16
        %v6313 = vrot.slane %v6311, 1
        %v6314 = vsel %vm963, %v6309, %v6313
        %v6340 = vunpack.c.l.b16 %v6175
        %v6341 = vunpack.c.l.b16 %v6176
        %v6342 = vunpack.c.l.b16 %v6177
        %v6343 = vunpack.c.l.b16 %v6178
        %v6344 = vunpack.c.l.b16 %v6179
        %v6345 = vunpack.c.l.b16 %v6180
        %v6346 = vunpack.c.l.b16 %v6181
        %v6347 = vunpack.c.l.b16 %v6182
        %v6348 = vunpack.c.l.b16 %v6183
        %v6349 = vunpack.c.l.b16 %v6184
        %v6350 = vunpack.c.l.b16 %v6185
        %v6351 = vunpack.c.l.b16 %v6186
        %v6352 = vunpack.c.l.b16 %v6187
        %v6353 = vunpack.c.l.b16 %v6188
        %v6354 = vunpack.c.l.b16 %v6189
        %v6355 = vunpack.c.l.b16 %v6190
        %v6356 = vpack.c.b16 %v6341, %v6340
        %v6357 = vpack.c.b16 %v6343, %v6342
        %v6358 = vpack.c.b16 %v6345, %v6344
        %v6359 = vpack.c.b16 %v6347, %v6346
        %v6360 = vpack.c.b16 %v6349, %v6348
        %v6361 = vpack.c.b16 %v6351, %v6350
        %v6362 = vpack.c.b16 %v6353, %v6352
        %v6363 = vpack.c.b16 %v6355, %v6354
        %6372 = vmatprep.subr.bf16.mxu0 0
        %6373 = vmatpush1.bf16.msra.mxu0 %v6356
        %6374 = vmatprep.subr.bf16.mxu0 0
        %6375 = vmatpush1.bf16.msra.mxu0 %v6357
        %6376 = vmatprep.subr.bf16.mxu0 0
        %6377 = vmatpush1.bf16.msra.mxu0 %v6358
        %6378 = vmatprep.subr.bf16.mxu0 0
        %6379 = vmatpush1.bf16.msra.mxu0 %v6359
        %6380 = vmatprep.subr.bf16.mxu0 0
        %6381 = vmatpush1.bf16.msra.mxu0 %v6360
        %6382 = vmatprep.subr.bf16.mxu0 0
        %6383 = vmatpush1.bf16.msra.mxu0 %v6361
        %6384 = vmatprep.subr.bf16.mxu0 0
        %6385 = vmatpush1.bf16.msra.mxu0 %v6362
        %6386 = vmatprep.subr.bf16.mxu0 0
        %6387 = vmatpush1.bf16.msra.mxu0 %v6363
        %6388 = vmatprep.subr.bf16.mxu0 0
        %6389 = vmatpush1.bf16.msra.mxu0 0
        %6390 = vmatprep.subr.bf16.mxu0 0
        %6391 = vmatpush1.bf16.msra.mxu0 0
        %6392 = vmatprep.subr.bf16.mxu0 0
        %6393 = vmatpush1.bf16.msra.mxu0 0
        %6394 = vmatprep.subr.bf16.mxu0 0
        %6395 = vmatpush1.bf16.msra.mxu0 0
        %6396 = vmatprep.subr.bf16.mxu0 0
        %6397 = vmatpush1.bf16.msra.mxu0 0
        %6398 = vmatprep.subr.bf16.mxu0 0
        %6399 = vmatpush1.bf16.msra.mxu0 0
        %6400 = vmatprep.subr.bf16.mxu0 0
        %6401 = vmatpush1.bf16.msra.mxu0 0
        %6402 = vmatprep.subr.bf16.mxu0 0
        %6403 = vmatpush1.bf16.msra.mxu0 0
        %6404 = vmatprep.mubr.bf16.mxu0 0
        %6405 = vmatmul.mubr.bf16.gmra.mrb[0].mxu0 %v6250
        %v6406 = vpop.f32.mrb[0].mxu0
        %v6407 = vadd.f32 0.0, %v6406
        %v6408 = vpop.f32.mrb[0].mxu0
        %v6409 = vpop.f32.mrb[0].mxu0
        %v6410 = vadd.f32 0.0, %v6409
        %v6411 = vpop.f32.mrb[0].mxu0
        %6412 = vmatprep.mubr.bf16.mxu0 0
        %6413 = vmatmul.mubr.bf16.gmra.mrb[0].mxu0 %v6258
        %v6414 = vpop.f32.mrb[0].mxu0
        %v6415 = vadd.f32 0.0, %v6414
        %v6416 = vpop.f32.mrb[0].mxu0
        %v6417 = vpop.f32.mrb[0].mxu0
        %v6418 = vadd.f32 0.0, %v6417
        %v6419 = vpop.f32.mrb[0].mxu0
        %6420 = vmatprep.mubr.bf16.mxu0 0
        %6421 = vmatmul.mubr.bf16.gmra.mrb[0].mxu0 %v6266
        %v6422 = vpop.f32.mrb[0].mxu0
        %v6423 = vadd.f32 0.0, %v6422
        %v6424 = vpop.f32.mrb[0].mxu0
        %v6425 = vpop.f32.mrb[0].mxu0
        %v6426 = vadd.f32 0.0, %v6425
        %v6427 = vpop.f32.mrb[0].mxu0
        %6428 = vmatprep.mubr.bf16.mxu0 0
        %6429 = vmatmul.mubr.bf16.gmra.mrb[0].mxu0 %v6274
        %v6430 = vpop.f32.mrb[0].mxu0
        %v6431 = vadd.f32 0.0, %v6430
        %v6432 = vpop.f32.mrb[0].mxu0
        %v6433 = vpop.f32.mrb[0].mxu0
        %v6434 = vadd.f32 0.0, %v6433
        %v6435 = vpop.f32.mrb[0].mxu0
        %6436 = vmatprep.mubr.bf16.mxu0 0
        %6437 = vmatmul.mubr.bf16.gmra.mrb[0].mxu0 %v6282
        %v6438 = vpop.f32.mrb[0].mxu0
        %v6439 = vadd.f32 0.0, %v6438
        %v6440 = vpop.f32.mrb[0].mxu0
        %v6441 = vpop.f32.mrb[0].mxu0
        %v6442 = vadd.f32 0.0, %v6441
        %v6443 = vpop.f32.mrb[0].mxu0
        %6444 = vmatprep.mubr.bf16.mxu0 0
        %6445 = vmatmul.mubr.bf16.gmra.mrb[0].mxu0 %v6290
        %v6446 = vpop.f32.mrb[0].mxu0
        %v6447 = vadd.f32 0.0, %v6446
        %v6448 = vpop.f32.mrb[0].mxu0
        %v6449 = vpop.f32.mrb[0].mxu0
        %v6450 = vadd.f32 0.0, %v6449
        %v6451 = vpop.f32.mrb[0].mxu0
        %6452 = vmatprep.mubr.bf16.mxu0 0
        %6453 = vmatmul.mubr.bf16.gmra.mrb[0].mxu0 %v6298
        %v6454 = vpop.f32.mrb[0].mxu0
        %v6455 = vadd.f32 0.0, %v6454
        %v6456 = vpop.f32.mrb[0].mxu0
        %v6457 = vpop.f32.mrb[0].mxu0
        %v6458 = vadd.f32 0.0, %v6457
        %v6459 = vpop.f32.mrb[0].mxu0
        %6460 = vmatprep.mubr.bf16.mxu0 0
        %6461 = vmatmul.mubr.bf16.gmra.mrb[0].mxu0 %v6306
        %v6462 = vpop.f32.mrb[0].mxu0
        %v6463 = vadd.f32 0.0, %v6462
        %v6464 = vpop.f32.mrb[0].mxu0
        %v6465 = vpop.f32.mrb[0].mxu0
        %v6466 = vadd.f32 0.0, %v6465
        %v6467 = vpop.f32.mrb[0].mxu0
        %6468 = vmatprep.mubr.bf16.mxu0 0
        %6469 = vmatmul.mubr.bf16.gmra.mrb[0].mxu0 %v6314
        %v6470 = vpop.f32.mrb[0].mxu0
        %v6471 = vadd.f32 0.0, %v6470
        %v6472 = vpop.f32.mrb[0].mxu0
        %v6473 = vpop.f32.mrb[0].mxu0
        %v6474 = vadd.f32 0.0, %v6473
        %v6475 = vpop.f32.mrb[0].mxu0
        %6476 = vdwg.mxu0
        %v6502 = vunpack.c.l.b16 %v6157
        %v6503 = vunpack.c.l.b16 %v6158
        %v6504 = vunpack.c.l.b16 %v6159
        %v6505 = vunpack.c.l.b16 %v6160
        %v6506 = vunpack.c.l.b16 %v6161
        %v6507 = vunpack.c.l.b16 %v6162
        %v6508 = vunpack.c.l.b16 %v6163
        %v6509 = vunpack.c.l.b16 %v6164
        %v6510 = vunpack.c.l.b16 %v6165
        %v6511 = vunpack.c.l.b16 %v6166
        %v6512 = vunpack.c.l.b16 %v6167
        %v6513 = vunpack.c.l.b16 %v6168
        %v6514 = vunpack.c.l.b16 %v6169
        %v6515 = vunpack.c.l.b16 %v6170
        %v6516 = vunpack.c.l.b16 %v6171
        %v6517 = vunpack.c.l.b16 %v6172
        %v6518 = vpack.c.b16 %v6503, %v6502
        %v6519 = vpack.c.b16 %v6505, %v6504
        %v6520 = vpack.c.b16 %v6507, %v6506
        %v6521 = vpack.c.b16 %v6509, %v6508
        %v6522 = vpack.c.b16 %v6511, %v6510
        %v6523 = vpack.c.b16 %v6513, %v6512
        %v6524 = vpack.c.b16 %v6515, %v6514
        %v6525 = vpack.c.b16 %v6517, %v6516
        %6534 = vmatprep.subr.bf16.mxu0 0
        %6535 = vmatpush1.bf16.msra.mxu0 %v6518
        %6536 = vmatprep.subr.bf16.mxu0 0
        %6537 = vmatpush1.bf16.msra.mxu0 %v6519
        %6538 = vmatprep.subr.bf16.mxu0 0
        %6539 = vmatpush1.bf16.msra.mxu0 %v6520
        %6540 = vmatprep.subr.bf16.mxu0 0
        %6541 = vmatpush1.bf16.msra.mxu0 %v6521
        %6542 = vmatprep.subr.bf16.mxu0 0
        %6543 = vmatpush1.bf16.msra.mxu0 %v6522
        %6544 = vmatprep.subr.bf16.mxu0 0
        %6545 = vmatpush1.bf16.msra.mxu0 %v6523
        %6546 = vmatprep.subr.bf16.mxu0 0
        %6547 = vmatpush1.bf16.msra.mxu0 %v6524
        %6548 = vmatprep.subr.bf16.mxu0 0
        %6549 = vmatpush1.bf16.msra.mxu0 %v6525
        %6550 = vmatprep.subr.bf16.mxu0 0
        %6551 = vmatpush1.bf16.msra.mxu0 0
        %6552 = vmatprep.subr.bf16.mxu0 0
        %6553 = vmatpush1.bf16.msra.mxu0 0
        %6554 = vmatprep.subr.bf16.mxu0 0
        %6555 = vmatpush1.bf16.msra.mxu0 0
        %6556 = vmatprep.subr.bf16.mxu0 0
        %6557 = vmatpush1.bf16.msra.mxu0 0
        %6558 = vmatprep.subr.bf16.mxu0 0
        %6559 = vmatpush1.bf16.msra.mxu0 0
        %6560 = vmatprep.subr.bf16.mxu0 0
        %6561 = vmatpush1.bf16.msra.mxu0 0
        %6562 = vmatprep.subr.bf16.mxu0 0
        %6563 = vmatpush1.bf16.msra.mxu0 0
        %6564 = vmatprep.subr.bf16.mxu0 0
        %6565 = vmatpush1.bf16.msra.mxu0 0
        %6566 = vmatprep.mubr.bf16.mxu0 0
        %6567 = vmatmul.mubr.bf16.gmra.mrb[0].mxu0 %v6229
        %v6568 = vpop.f32.mrb[0].mxu0
        %v6569 = vadd.f32 %v6407, %v6568
        %v6570 = vpop.f32.mrb[0].mxu0
        %v6571 = vpop.f32.mrb[0].mxu0
        %v6572 = vadd.f32 %v6410, %v6571
        %v6573 = vpop.f32.mrb[0].mxu0
        %6574 = vmatprep.mubr.bf16.mxu0 0
        %6575 = vmatmul.mubr.bf16.gmra.mrb[0].mxu0 %v6230
        %v6576 = vpop.f32.mrb[0].mxu0
        %v6577 = vadd.f32 %v6415, %v6576
        %v6578 = vpop.f32.mrb[0].mxu0
        %v6579 = vpop.f32.mrb[0].mxu0
        %v6580 = vadd.f32 %v6418, %v6579
        %v6581 = vpop.f32.mrb[0].mxu0
        %6582 = vmatprep.mubr.bf16.mxu0 0
        %6583 = vmatmul.mubr.bf16.gmra.mrb[0].mxu0 %v6231
        %v6584 = vpop.f32.mrb[0].mxu0
        %v6585 = vadd.f32 %v6423, %v6584
        %v6586 = vpop.f32.mrb[0].mxu0
        %v6587 = vpop.f32.mrb[0].mxu0
        %v6588 = vadd.f32 %v6426, %v6587
        %v6589 = vpop.f32.mrb[0].mxu0
        %6590 = vmatprep.mubr.bf16.mxu0 0
        %6591 = vmatmul.mubr.bf16.gmra.mrb[0].mxu0 %v6232
        %v6592 = vpop.f32.mrb[0].mxu0
        %v6593 = vadd.f32 %v6431, %v6592
        %v6594 = vpop.f32.mrb[0].mxu0
        %v6595 = vpop.f32.mrb[0].mxu0
        %v6596 = vadd.f32 %v6434, %v6595
        %v6597 = vpop.f32.mrb[0].mxu0
        %6598 = vmatprep.mubr.bf16.mxu0 0
        %6599 = vmatmul.mubr.bf16.gmra.mrb[0].mxu0 %v6233
        %v6600 = vpop.f32.mrb[0].mxu0
        %v6601 = vadd.f32 %v6439, %v6600
        %v6602 = vpop.f32.mrb[0].mxu0
        %v6603 = vpop.f32.mrb[0].mxu0
        %v6604 = vadd.f32 %v6442, %v6603
        %v6605 = vpop.f32.mrb[0].mxu0
        %6606 = vmatprep.mubr.bf16.mxu0 0
        %6607 = vmatmul.mubr.bf16.gmra.mrb[0].mxu0 %v6234
        %v6608 = vpop.f32.mrb[0].mxu0
        %v6609 = vadd.f32 %v6447, %v6608
        %v6610 = vpop.f32.mrb[0].mxu0
        %v6611 = vpop.f32.mrb[0].mxu0
        %v6612 = vadd.f32 %v6450, %v6611
        %v6613 = vpop.f32.mrb[0].mxu0
        %6614 = vmatprep.mubr.bf16.mxu0 0
        %6615 = vmatmul.mubr.bf16.gmra.mrb[0].mxu0 %v6235
        %v6616 = vpop.f32.mrb[0].mxu0
        %v6617 = vadd.f32 %v6455, %v6616
        %v6618 = vpop.f32.mrb[0].mxu0
        %v6619 = vpop.f32.mrb[0].mxu0
        %v6620 = vadd.f32 %v6458, %v6619
        %v6621 = vpop.f32.mrb[0].mxu0
        %6622 = vmatprep.mubr.bf16.mxu0 0
        %6623 = vmatmul.mubr.bf16.gmra.mrb[0].mxu0 %v6236
        %v6624 = vpop.f32.mrb[0].mxu0
        %v6625 = vadd.f32 %v6463, %v6624
        %v6626 = vpop.f32.mrb[0].mxu0
        %v6627 = vpop.f32.mrb[0].mxu0
        %v6628 = vadd.f32 %v6466, %v6627
        %v6629 = vpop.f32.mrb[0].mxu0
        %6630 = vmatprep.mubr.bf16.mxu0 0
        %6631 = vmatmul.mubr.bf16.gmra.mrb[0].mxu0 %v6237
        %v6632 = vpop.f32.mrb[0].mxu0
        %v6633 = vadd.f32 %v6471, %v6632
        %v6634 = vpop.f32.mrb[0].mxu0
        %v6635 = vpop.f32.mrb[0].mxu0
        %v6636 = vadd.f32 %v6474, %v6635
        %v6637 = vpop.f32.mrb[0].mxu0
        %6638 = vdwg.mxu0
        %v6639 = vld [vmem:[#allocation3] sm:$0xe]
        %s6640 = scalar_lea.vmem [#allocation9], 128
        %v6641 = vld [vmem:[%s6640] sm:$0xf]
        %v6642 = vld [vmem:[%s6640 + $0x4] sm:$0xf]
        %v6643 = vld [vmem:[%s6640 + $0x8] sm:$0xf]
        %v6644 = vld [vmem:[%s6640 + $0xc] sm:$0xf]
        %v6645 = vld [vmem:[%s6640 + $0x10] sm:$0xf]
        %v6646 = vld [vmem:[%s6640 + $0x14] sm:$0xf]
        %v6647 = vld [vmem:[%s6640 + $0x18] sm:$0xf]
        %v6648 = vld [vmem:[%s6640 + $0x1c] sm:$0xf]
        %v6649 = vld [vmem:[%s6640 + $0x20] sm:$0xf]
        %v6650 = vld [vmem:[%s6640 + $0x24] sm:$0xf]
        %v6651 = vld [vmem:[%s6640 + $0x28] sm:$0xf]
        %v6652 = vld [vmem:[%s6640 + $0x2c] sm:$0xf]
        %v6653 = vld [vmem:[%s6640 + $0x30] sm:$0xf]
        %v6654 = vld [vmem:[%s6640 + $0x34] sm:$0xf]
        %v6655 = vld [vmem:[%s6640 + $0x38] sm:$0xf]
        %v6656 = vld [vmem:[%s6640 + $0x3c] sm:$0xf]
        %v6658 = vunpack.c.l.b16 %v6639
        %v6659 = vpack.c.b16 %v6211, %v6658
        %v6660 = vrot.slane %v6659, 1
        %v6661 = vrot.slane %v6230, 1
        %v6662 = vsel %vm1385, %v6660, %v6661
        %v6663 = vrot.slane %v6231, 1
        %v6664 = vsel %vm1385, %v6661, %v6663
        %v6665 = vrot.slane %v6232, 1
        %v6666 = vsel %vm1385, %v6663, %v6665
        %v6667 = vrot.slane %v6233, 1
        %v6668 = vsel %vm1385, %v6665, %v6667
        %v6669 = vrot.slane %v6234, 1
        %v6670 = vsel %vm1385, %v6667, %v6669
        %v6671 = vrot.slane %v6235, 1
        %v6672 = vsel %vm1385, %v6669, %v6671
        %v6673 = vrot.slane %v6236, 1
        %v6674 = vsel %vm1385, %v6671, %v6673
        %v6675 = vrot.slane %v6237, 1
        %v6676 = vsel %vm1385, %v6673, %v6675
        %v6677 = vrot.slane %v6238, 1
        %v6678 = vsel %vm1385, %v6675, %v6677
        %v6704 = vunpack.c.l.b16 %v6641
        %v6705 = vunpack.c.l.b16 %v6642
        %v6706 = vunpack.c.l.b16 %v6643
        %v6707 = vunpack.c.l.b16 %v6644
        %v6708 = vunpack.c.l.b16 %v6645
        %v6709 = vunpack.c.l.b16 %v6646
        %v6710 = vunpack.c.l.b16 %v6647
        %v6711 = vunpack.c.l.b16 %v6648
        %v6712 = vunpack.c.l.b16 %v6649
        %v6713 = vunpack.c.l.b16 %v6650
        %v6714 = vunpack.c.l.b16 %v6651
        %v6715 = vunpack.c.l.b16 %v6652
        %v6716 = vunpack.c.l.b16 %v6653
        %v6717 = vunpack.c.l.b16 %v6654
        %v6718 = vunpack.c.l.b16 %v6655
        %v6719 = vunpack.c.l.b16 %v6656
        %v6720 = vpack.c.b16 %v6705, %v6704
        %v6721 = vpack.c.b16 %v6707, %v6706
        %v6722 = vpack.c.b16 %v6709, %v6708
        %v6723 = vpack.c.b16 %v6711, %v6710
        %v6724 = vpack.c.b16 %v6713, %v6712
        %v6725 = vpack.c.b16 %v6715, %v6714
        %v6726 = vpack.c.b16 %v6717, %v6716
        %v6727 = vpack.c.b16 %v6719, %v6718
        %6736 = vmatprep.subr.bf16.mxu0 0
        %6737 = vmatpush1.bf16.msra.mxu0 %v6720
        %6738 = vmatprep.subr.bf16.mxu0 0
        %6739 = vmatpush1.bf16.msra.mxu0 %v6721
        %6740 = vmatprep.subr.bf16.mxu0 0
        %6741 = vmatpush1.bf16.msra.mxu0 %v6722
        %6742 = vmatprep.subr.bf16.mxu0 0
        %6743 = vmatpush1.bf16.msra.mxu0 %v6723
        %6744 = vmatprep.subr.bf16.mxu0 0
        %6745 = vmatpush1.bf16.msra.mxu0 %v6724
        %6746 = vmatprep.subr.bf16.mxu0 0
        %6747 = vmatpush1.bf16.msra.mxu0 %v6725
        %6748 = vmatprep.subr.bf16.mxu0 0
        %6749 = vmatpush1.bf16.msra.mxu0 %v6726
        %6750 = vmatprep.subr.bf16.mxu0 0
        %6751 = vmatpush1.bf16.msra.mxu0 %v6727
        %6752 = vmatprep.subr.bf16.mxu0 0
        %6753 = vmatpush1.bf16.msra.mxu0 0
        %6754 = vmatprep.subr.bf16.mxu0 0
        %6755 = vmatpush1.bf16.msra.mxu0 0
        %6756 = vmatprep.subr.bf16.mxu0 0
        %6757 = vmatpush1.bf16.msra.mxu0 0
        %6758 = vmatprep.subr.bf16.mxu0 0
        %6759 = vmatpush1.bf16.msra.mxu0 0
        %6760 = vmatprep.subr.bf16.mxu0 0
        %6761 = vmatpush1.bf16.msra.mxu0 0
        %6762 = vmatprep.subr.bf16.mxu0 0
        %6763 = vmatpush1.bf16.msra.mxu0 0
        %6764 = vmatprep.subr.bf16.mxu0 0
        %6765 = vmatpush1.bf16.msra.mxu0 0
        %6766 = vmatprep.subr.bf16.mxu0 0
        %6767 = vmatpush1.bf16.msra.mxu0 0
        %6768 = vmatprep.mubr.bf16.mxu0 0
        %6769 = vmatmul.mubr.bf16.gmra.mrb[0].mxu0 %v6662
        %v6770 = vpop.f32.mrb[0].mxu0
        %v6771 = vadd.f32 0.0, %v6770
        %v6772 = vpop.f32.mrb[0].mxu0
        %v6773 = vpop.f32.mrb[0].mxu0
        %v6774 = vadd.f32 0.0, %v6773
        %v6775 = vpop.f32.mrb[0].mxu0
        %6776 = vmatprep.mubr.bf16.mxu0 0
        %6777 = vmatmul.mubr.bf16.gmra.mrb[0].mxu0 %v6664
        %v6778 = vpop.f32.mrb[0].mxu0
        %v6779 = vadd.f32 0.0, %v6778
        %v6780 = vpop.f32.mrb[0].mxu0
        %v6781 = vpop.f32.mrb[0].mxu0
        %v6782 = vadd.f32 0.0, %v6781
        %v6783 = vpop.f32.mrb[0].mxu0
        %6784 = vmatprep.mubr.bf16.mxu0 0
        %6785 = vmatmul.mubr.bf16.gmra.mrb[0].mxu0 %v6666
        %v6786 = vpop.f32.mrb[0].mxu0
        %v6787 = vadd.f32 0.0, %v6786
        %v6788 = vpop.f32.mrb[0].mxu0
        %v6789 = vpop.f32.mrb[0].mxu0
        %v6790 = vadd.f32 0.0, %v6789
        %v6791 = vpop.f32.mrb[0].mxu0
        %6792 = vmatprep.mubr.bf16.mxu0 0
        %6793 = vmatmul.mubr.bf16.gmra.mrb[0].mxu0 %v6668
        %v6794 = vpop.f32.mrb[0].mxu0
        %v6795 = vadd.f32 0.0, %v6794
        %v6796 = vpop.f32.mrb[0].mxu0
        %v6797 = vpop.f32.mrb[0].mxu0
        %v6798 = vadd.f32 0.0, %v6797
        %v6799 = vpop.f32.mrb[0].mxu0
        %6800 = vmatprep.mubr.bf16.mxu0 0
        %6801 = vmatmul.mubr.bf16.gmra.mrb[0].mxu0 %v6670
        %v6802 = vpop.f32.mrb[0].mxu0
        %v6803 = vadd.f32 0.0, %v6802
        %v6804 = vpop.f32.mrb[0].mxu0
        %v6805 = vpop.f32.mrb[0].mxu0
        %v6806 = vadd.f32 0.0, %v6805
        %v6807 = vpop.f32.mrb[0].mxu0
        %6808 = vmatprep.mubr.bf16.mxu0 0
        %6809 = vmatmul.mubr.bf16.gmra.mrb[0].mxu0 %v6672
        %v6810 = vpop.f32.mrb[0].mxu0
        %v6811 = vadd.f32 0.0, %v6810
        %v6812 = vpop.f32.mrb[0].mxu0
        %v6813 = vpop.f32.mrb[0].mxu0
        %v6814 = vadd.f32 0.0, %v6813
        %v6815 = vpop.f32.mrb[0].mxu0
        %6816 = vmatprep.mubr.bf16.mxu0 0
        %6817 = vmatmul.mubr.bf16.gmra.mrb[0].mxu0 %v6674
        %v6818 = vpop.f32.mrb[0].mxu0
        %v6819 = vadd.f32 0.0, %v6818
        %v6820 = vpop.f32.mrb[0].mxu0
        %v6821 = vpop.f32.mrb[0].mxu0
        %v6822 = vadd.f32 0.0, %v6821
        %v6823 = vpop.f32.mrb[0].mxu0
        %6824 = vmatprep.mubr.bf16.mxu0 0
        %6825 = vmatmul.mubr.bf16.gmra.mrb[0].mxu0 %v6676
        %v6826 = vpop.f32.mrb[0].mxu0
        %v6827 = vadd.f32 0.0, %v6826
        %v6828 = vpop.f32.mrb[0].mxu0
        %v6829 = vpop.f32.mrb[0].mxu0
        %v6830 = vadd.f32 0.0, %v6829
        %v6831 = vpop.f32.mrb[0].mxu0
        %6832 = vmatprep.mubr.bf16.mxu0 0
        %6833 = vmatmul.mubr.bf16.gmra.mrb[0].mxu0 %v6678
        %v6834 = vpop.f32.mrb[0].mxu0
        %v6835 = vadd.f32 0.0, %v6834
        %v6836 = vpop.f32.mrb[0].mxu0
        %v6837 = vpop.f32.mrb[0].mxu0
        %v6838 = vadd.f32 0.0, %v6837
        %v6839 = vpop.f32.mrb[0].mxu0
        %6840 = vdwg.mxu0
        %v6841 = vadd.f32 %v6569, %v6771
        %v6842 = vadd.f32 %v6572, %v6774
        %v6843 = vadd.f32 %v6577, %v6779
        %v6844 = vadd.f32 %v6580, %v6782
        %v6845 = vadd.f32 %v6585, %v6787
        %v6846 = vadd.f32 %v6588, %v6790
        %v6847 = vadd.f32 %v6593, %v6795
        %v6848 = vadd.f32 %v6596, %v6798
        %v6849 = vadd.f32 %v6601, %v6803
        %v6850 = vadd.f32 %v6604, %v6806
        %v6851 = vadd.f32 %v6609, %v6811
        %v6852 = vadd.f32 %v6612, %v6814
        %v6853 = vadd.f32 %v6617, %v6819
        %v6854 = vadd.f32 %v6620, %v6822
        %v6855 = vadd.f32 %v6625, %v6827
        %v6856 = vadd.f32 %v6628, %v6830
        %v6857 = vadd.f32 %v6633, %v6835
        %v6858 = vadd.f32 %v6636, %v6838
        %v6859 = vld [vmem:[#allocation3 + $0x8] sm:$0xe]
        %v6860 = vld [vmem:[#allocation3 + $0xc] sm:$0xf]
        %v6861 = vld [vmem:[#allocation3 + $0x10] sm:$0xf]
        %v6862 = vld [vmem:[#allocation3 + $0x14] sm:$0xf]
        %v6863 = vld [vmem:[#allocation3 + $0x18] sm:$0xf]
        %v6864 = vld [vmem:[#allocation3 + $0x1c] sm:$0xf]
        %v6865 = vld [vmem:[#allocation3 + $0x20] sm:$0xf]
        %v6866 = vld [vmem:[#allocation3 + $0x24] sm:$0xf]
        %v6867 = vld [vmem:[#allocation3 + $0x28] sm:$0xf]
        %v6868 = vld [vmem:[#allocation3 + $0x2c] sm:$0xf]
        %v6869 = vld [vmem:[#allocation3 + $0x30] sm:$0xf]
        %v6870 = vld [vmem:[#allocation3 + $0x34] sm:$0xf]
        %v6871 = vld [vmem:[#allocation3 + $0x38] sm:$0xf]
        %v6872 = vld [vmem:[#allocation3 + $0x3c] sm:$0xf]
        %v6873 = vld [vmem:[#allocation3 + $0x40] sm:$0xf]
        %v6874 = vld [vmem:[#allocation3 + $0x44] sm:$0xf]
        %v6875 = vld [vmem:[#allocation3 + $0x48] sm:$0xf]
        %v6876 = vld [vmem:[#allocation3 + $0x4c] sm:$0xf]
        %v6877 = vld [vmem:[#allocation3 + $0x50] sm:$0x1]
        %s6878 = scalar_lea.vmem [#allocation9], 192
        %v6879 = vld [vmem:[%s6878] sm:$0xf]
        %v6880 = vld [vmem:[%s6878 + $0x4] sm:$0xf]
        %v6881 = vld [vmem:[%s6878 + $0x8] sm:$0xf]
        %v6882 = vld [vmem:[%s6878 + $0xc] sm:$0xf]
        %v6883 = vld [vmem:[%s6878 + $0x10] sm:$0xf]
        %v6884 = vld [vmem:[%s6878 + $0x14] sm:$0xf]
        %v6885 = vld [vmem:[%s6878 + $0x18] sm:$0xf]
        %v6886 = vld [vmem:[%s6878 + $0x1c] sm:$0xf]
        %v6887 = vld [vmem:[%s6878 + $0x20] sm:$0xf]
        %v6888 = vld [vmem:[%s6878 + $0x24] sm:$0xf]
        %v6889 = vld [vmem:[%s6878 + $0x28] sm:$0xf]
        %v6890 = vld [vmem:[%s6878 + $0x2c] sm:$0xf]
        %v6891 = vld [vmem:[%s6878 + $0x30] sm:$0xf]
        %v6892 = vld [vmem:[%s6878 + $0x34] sm:$0xf]
        %v6893 = vld [vmem:[%s6878 + $0x38] sm:$0xf]
        %v6894 = vld [vmem:[%s6878 + $0x3c] sm:$0xf]
        %v6914 = vunpack.c.l.b16 %v6859
        %v6915 = vunpack.c.l.b16 %v6860
        %v6916 = vunpack.c.l.b16 %v6861
        %v6917 = vunpack.c.l.b16 %v6862
        %v6918 = vunpack.c.l.b16 %v6863
        %v6919 = vunpack.c.l.b16 %v6864
        %v6920 = vunpack.c.l.b16 %v6865
        %v6921 = vunpack.c.l.b16 %v6866
        %v6922 = vunpack.c.l.b16 %v6867
        %v6923 = vunpack.c.l.b16 %v6868
        %v6924 = vunpack.c.l.b16 %v6869
        %v6925 = vunpack.c.l.b16 %v6870
        %v6926 = vunpack.c.l.b16 %v6871
        %v6927 = vunpack.c.l.b16 %v6872
        %v6928 = vunpack.c.l.b16 %v6873
        %v6929 = vunpack.c.l.b16 %v6874
        %v6930 = vunpack.c.l.b16 %v6875
        %v6931 = vunpack.c.l.b16 %v6876
        %v6932 = vunpack.c.l.b16 %v6877
        %v6933 = vpack.c.b16 %v6915, %v6914
        %v6934 = vpack.c.b16 %v6917, %v6916
        %v6935 = vpack.c.b16 %v6919, %v6918
        %v6936 = vpack.c.b16 %v6921, %v6920
        %v6937 = vpack.c.b16 %v6923, %v6922
        %v6938 = vpack.c.b16 %v6925, %v6924
        %v6939 = vpack.c.b16 %v6927, %v6926
        %v6940 = vpack.c.b16 %v6929, %v6928
        %v6941 = vpack.c.b16 %v6931, %v6930
        %v6942 = vpack.c.b16 %v6932, %v6932
        %v6943 = vrot.slane %v6933, 1
        %v6944 = vrot.slane %v6934, 1
        %v6945 = vsel %vm1385, %v6943, %v6944
        %v6946 = vrot.slane %v6935, 1
        %v6947 = vsel %vm1385, %v6944, %v6946
        %v6948 = vrot.slane %v6936, 1
        %v6949 = vsel %vm1385, %v6946, %v6948
        %v6950 = vrot.slane %v6937, 1
        %v6951 = vsel %vm1385, %v6948, %v6950
        %v6952 = vrot.slane %v6938, 1
        %v6953 = vsel %vm1385, %v6950, %v6952
        %v6954 = vrot.slane %v6939, 1
        %v6955 = vsel %vm1385, %v6952, %v6954
        %v6956 = vrot.slane %v6940, 1
        %v6957 = vsel %vm1385, %v6954, %v6956
        %v6958 = vrot.slane %v6941, 1
        %v6959 = vsel %vm1385, %v6956, %v6958
        %v6960 = vrot.slane %v6942, 1
        %v6961 = vsel %vm1385, %v6958, %v6960
        %v6987 = vunpack.c.l.b16 %v6879
        %v6988 = vunpack.c.l.b16 %v6880
        %v6989 = vunpack.c.l.b16 %v6881
        %v6990 = vunpack.c.l.b16 %v6882
        %v6991 = vunpack.c.l.b16 %v6883
        %v6992 = vunpack.c.l.b16 %v6884
        %v6993 = vunpack.c.l.b16 %v6885
        %v6994 = vunpack.c.l.b16 %v6886
        %v6995 = vunpack.c.l.b16 %v6887
        %v6996 = vunpack.c.l.b16 %v6888
        %v6997 = vunpack.c.l.b16 %v6889
        %v6998 = vunpack.c.l.b16 %v6890
        %v6999 = vunpack.c.l.b16 %v6891
        %v7000 = vunpack.c.l.b16 %v6892
        %v7001 = vunpack.c.l.b16 %v6893
        %v7002 = vunpack.c.l.b16 %v6894
        %v7003 = vpack.c.b16 %v6988, %v6987
        %v7004 = vpack.c.b16 %v6990, %v6989
        %v7005 = vpack.c.b16 %v6992, %v6991
        %v7006 = vpack.c.b16 %v6994, %v6993
        %v7007 = vpack.c.b16 %v6996, %v6995
        %v7008 = vpack.c.b16 %v6998, %v6997
        %v7009 = vpack.c.b16 %v7000, %v6999
        %v7010 = vpack.c.b16 %v7002, %v7001
        %7019 = vmatprep.subr.bf16.mxu0 0
        %7020 = vmatpush1.bf16.msra.mxu0 %v7003
        %7021 = vmatprep.subr.bf16.mxu0 0
        %7022 = vmatpush1.bf16.msra.mxu0 %v7004
        %7023 = vmatprep.subr.bf16.mxu0 0
        %7024 = vmatpush1.bf16.msra.mxu0 %v7005
        %7025 = vmatprep.subr.bf16.mxu0 0
        %7026 = vmatpush1.bf16.msra.mxu0 %v7006
        %7027 = vmatprep.subr.bf16.mxu0 0
        %7028 = vmatpush1.bf16.msra.mxu0 %v7007
        %7029 = vmatprep.subr.bf16.mxu0 0
        %7030 = vmatpush1.bf16.msra.mxu0 %v7008
        %7031 = vmatprep.subr.bf16.mxu0 0
        %7032 = vmatpush1.bf16.msra.mxu0 %v7009
        %7033 = vmatprep.subr.bf16.mxu0 0
        %7034 = vmatpush1.bf16.msra.mxu0 %v7010
        %7035 = vmatprep.subr.bf16.mxu0 0
        %7036 = vmatpush1.bf16.msra.mxu0 0
        %7037 = vmatprep.subr.bf16.mxu0 0
        %7038 = vmatpush1.bf16.msra.mxu0 0
        %7039 = vmatprep.subr.bf16.mxu0 0
        %7040 = vmatpush1.bf16.msra.mxu0 0
        %7041 = vmatprep.subr.bf16.mxu0 0
        %7042 = vmatpush1.bf16.msra.mxu0 0
        %7043 = vmatprep.subr.bf16.mxu0 0
        %7044 = vmatpush1.bf16.msra.mxu0 0
        %7045 = vmatprep.subr.bf16.mxu0 0
        %7046 = vmatpush1.bf16.msra.mxu0 0
        %7047 = vmatprep.subr.bf16.mxu0 0
        %7048 = vmatpush1.bf16.msra.mxu0 0
        %7049 = vmatprep.subr.bf16.mxu0 0
        %7050 = vmatpush1.bf16.msra.mxu0 0
        %7051 = vmatprep.mubr.bf16.mxu0 0
        %7052 = vmatmul.mubr.bf16.gmra.mrb[0].mxu0 %v6945
        %v7053 = vpop.f32.mrb[0].mxu0
        %v7054 = vadd.f32 0.0, %v7053
        %v7055 = vpop.f32.mrb[0].mxu0
        %v7056 = vpop.f32.mrb[0].mxu0
        %v7057 = vadd.f32 0.0, %v7056
        %v7058 = vpop.f32.mrb[0].mxu0
        %7059 = vmatprep.mubr.bf16.mxu0 0
        %7060 = vmatmul.mubr.bf16.gmra.mrb[0].mxu0 %v6947
        %v7061 = vpop.f32.mrb[0].mxu0
        %v7062 = vadd.f32 0.0, %v7061
        %v7063 = vpop.f32.mrb[0].mxu0
        %v7064 = vpop.f32.mrb[0].mxu0
        %v7065 = vadd.f32 0.0, %v7064
        %v7066 = vpop.f32.mrb[0].mxu0
        %7067 = vmatprep.mubr.bf16.mxu0 0
        %7068 = vmatmul.mubr.bf16.gmra.mrb[0].mxu0 %v6949
        %v7069 = vpop.f32.mrb[0].mxu0
        %v7070 = vadd.f32 0.0, %v7069
        %v7071 = vpop.f32.mrb[0].mxu0
        %v7072 = vpop.f32.mrb[0].mxu0
        %v7073 = vadd.f32 0.0, %v7072
        %v7074 = vpop.f32.mrb[0].mxu0
        %7075 = vmatprep.mubr.bf16.mxu0 0
        %7076 = vmatmul.mubr.bf16.gmra.mrb[0].mxu0 %v6951
        %v7077 = vpop.f32.mrb[0].mxu0
        %v7078 = vadd.f32 0.0, %v7077
        %v7079 = vpop.f32.mrb[0].mxu0
        %v7080 = vpop.f32.mrb[0].mxu0
        %v7081 = vadd.f32 0.0, %v7080
        %v7082 = vpop.f32.mrb[0].mxu0
        %7083 = vmatprep.mubr.bf16.mxu0 0
        %7084 = vmatmul.mubr.bf16.gmra.mrb[0].mxu0 %v6953
        %v7085 = vpop.f32.mrb[0].mxu0
        %v7086 = vadd.f32 0.0, %v7085
        %v7087 = vpop.f32.mrb[0].mxu0
        %v7088 = vpop.f32.mrb[0].mxu0
        %v7089 = vadd.f32 0.0, %v7088
        %v7090 = vpop.f32.mrb[0].mxu0
        %7091 = vmatprep.mubr.bf16.mxu0 0
        %7092 = vmatmul.mubr.bf16.gmra.mrb[0].mxu0 %v6955
        %v7093 = vpop.f32.mrb[0].mxu0
        %v7094 = vadd.f32 0.0, %v7093
        %v7095 = vpop.f32.mrb[0].mxu0
        %v7096 = vpop.f32.mrb[0].mxu0
        %v7097 = vadd.f32 0.0, %v7096
        %v7098 = vpop.f32.mrb[0].mxu0
        %7099 = vmatprep.mubr.bf16.mxu0 0
        %7100 = vmatmul.mubr.bf16.gmra.mrb[0].mxu0 %v6957
        %v7101 = vpop.f32.mrb[0].mxu0
        %v7102 = vadd.f32 0.0, %v7101
        %v7103 = vpop.f32.mrb[0].mxu0
        %v7104 = vpop.f32.mrb[0].mxu0
        %v7105 = vadd.f32 0.0, %v7104
        %v7106 = vpop.f32.mrb[0].mxu0
        %7107 = vmatprep.mubr.bf16.mxu0 0
        %7108 = vmatmul.mubr.bf16.gmra.mrb[0].mxu0 %v6959
        %v7109 = vpop.f32.mrb[0].mxu0
        %v7110 = vadd.f32 0.0, %v7109
        %v7111 = vpop.f32.mrb[0].mxu0
        %v7112 = vpop.f32.mrb[0].mxu0
        %v7113 = vadd.f32 0.0, %v7112
        %v7114 = vpop.f32.mrb[0].mxu0
        %7115 = vmatprep.mubr.bf16.mxu0 0
        %7116 = vmatmul.mubr.bf16.gmra.mrb[0].mxu0 %v6961
        %v7117 = vpop.f32.mrb[0].mxu0
        %v7118 = vadd.f32 0.0, %v7117
        %v7119 = vpop.f32.mrb[0].mxu0
        %v7120 = vpop.f32.mrb[0].mxu0
        %v7121 = vadd.f32 0.0, %v7120
        %v7122 = vpop.f32.mrb[0].mxu0
        %7123 = vdwg.mxu0
        %v7124 = vadd.f32 %v6841, %v7054
        %v7125 = vadd.f32 %v6842, %v7057
        %v7126 = vadd.f32 %v6843, %v7062
        %v7127 = vadd.f32 %v6844, %v7065
        %v7128 = vadd.f32 %v6845, %v7070
        %v7129 = vadd.f32 %v6846, %v7073
        %v7130 = vadd.f32 %v6847, %v7078
        %v7131 = vadd.f32 %v6848, %v7081
        %v7132 = vadd.f32 %v6849, %v7086
        %v7133 = vadd.f32 %v6850, %v7089
        %v7134 = vadd.f32 %v6851, %v7094
        %v7135 = vadd.f32 %v6852, %v7097
        %v7136 = vadd.f32 %v6853, %v7102
        %v7137 = vadd.f32 %v6854, %v7105
        %v7138 = vadd.f32 %v6855, %v7110
        %v7139 = vadd.f32 %v6856, %v7113
        %v7140 = vadd.f32 %v6857, %v7118
        %v7141 = vadd.f32 %v6858, %v7121
        %v7142 = vld [vmem:[#allocation3 + $0x50] sm:$0x3]
        %s7143 = scalar_lea.vmem [#allocation9], 256
        %v7144 = vld [vmem:[%s7143] sm:$0xf]
        %v7145 = vld [vmem:[%s7143 + $0x4] sm:$0xf]
        %v7146 = vld [vmem:[%s7143 + $0x8] sm:$0xf]
        %v7147 = vld [vmem:[%s7143 + $0xc] sm:$0xf]
        %v7148 = vld [vmem:[%s7143 + $0x10] sm:$0xf]
        %v7149 = vld [vmem:[%s7143 + $0x14] sm:$0xf]
        %v7150 = vld [vmem:[%s7143 + $0x18] sm:$0xf]
        %v7151 = vld [vmem:[%s7143 + $0x1c] sm:$0xf]
        %v7152 = vld [vmem:[%s7143 + $0x20] sm:$0xf]
        %v7153 = vld [vmem:[%s7143 + $0x24] sm:$0xf]
        %v7154 = vld [vmem:[%s7143 + $0x28] sm:$0xf]
        %v7155 = vld [vmem:[%s7143 + $0x2c] sm:$0xf]
        %v7156 = vld [vmem:[%s7143 + $0x30] sm:$0xf]
        %v7157 = vld [vmem:[%s7143 + $0x34] sm:$0xf]
        %v7158 = vld [vmem:[%s7143 + $0x38] sm:$0xf]
        %v7159 = vld [vmem:[%s7143 + $0x3c] sm:$0xf]
        %v7161 = vunpack.c.l.b16 %v7142
        %v7162 = vpack.c.b16 %v7161, %v7161
        %v7164 = vshrl.u32 %v6933, 16
        %v7166 = vrot.slane %v7164, 1
        %v7167 = vshll.u32 %v6933, 16
        %v7169 = vrot.slane %v7167, 2
        %v7170 = vor.u32 %v7166, %v7169
        %v7172 = vshrl.u32 %v6934, 16
        %v7174 = vrot.slane %v7172, 1
        %v7175 = vshll.u32 %v6934, 16
        %v7177 = vrot.slane %v7175, 2
        %v7178 = vor.u32 %v7174, %v7177
        %v7179 = vsel %vm1889, %v7170, %v7178
        %v7181 = vshrl.u32 %v6935, 16
        %v7183 = vrot.slane %v7181, 1
        %v7184 = vshll.u32 %v6935, 16
        %v7186 = vrot.slane %v7184, 2
        %v7187 = vor.u32 %v7183, %v7186
        %v7188 = vsel %vm1889, %v7178, %v7187
        %v7190 = vshrl.u32 %v6936, 16
        %v7192 = vrot.slane %v7190, 1
        %v7193 = vshll.u32 %v6936, 16
        %v7195 = vrot.slane %v7193, 2
        %v7196 = vor.u32 %v7192, %v7195
        %v7197 = vsel %vm1889, %v7187, %v7196
        %v7199 = vshrl.u32 %v6937, 16
        %v7201 = vrot.slane %v7199, 1
        %v7202 = vshll.u32 %v6937, 16
        %v7204 = vrot.slane %v7202, 2
        %v7205 = vor.u32 %v7201, %v7204
        %v7206 = vsel %vm1889, %v7196, %v7205
        %v7208 = vshrl.u32 %v6938, 16
        %v7210 = vrot.slane %v7208, 1
        %v7211 = vshll.u32 %v6938, 16
        %v7213 = vrot.slane %v7211, 2
        %v7214 = vor.u32 %v7210, %v7213
        %v7215 = vsel %vm1889, %v7205, %v7214
        %v7217 = vshrl.u32 %v6939, 16
        %v7219 = vrot.slane %v7217, 1
        %v7220 = vshll.u32 %v6939, 16
        %v7222 = vrot.slane %v7220, 2
        %v7223 = vor.u32 %v7219, %v7222
        %v7224 = vsel %vm1889, %v7214, %v7223
        %v7226 = vshrl.u32 %v6940, 16
        %v7228 = vrot.slane %v7226, 1
        %v7229 = vshll.u32 %v6940, 16
        %v7231 = vrot.slane %v7229, 2
        %v7232 = vor.u32 %v7228, %v7231
        %v7233 = vsel %vm1889, %v7223, %v7232
        %v7235 = vshrl.u32 %v6941, 16
        %v7237 = vrot.slane %v7235, 1
        %v7238 = vshll.u32 %v6941, 16
        %v7240 = vrot.slane %v7238, 2
        %v7241 = vor.u32 %v7237, %v7240
        %v7242 = vsel %vm1889, %v7232, %v7241
        %v7244 = vshrl.u32 %v7162, 16
        %v7246 = vrot.slane %v7244, 1
        %v7247 = vshll.u32 %v7162, 16
        %v7249 = vrot.slane %v7247, 2
        %v7250 = vor.u32 %v7246, %v7249
        %v7251 = vsel %vm1889, %v7241, %v7250
        %v7277 = vunpack.c.l.b16 %v7144
        %v7278 = vunpack.c.l.b16 %v7145
        %v7279 = vunpack.c.l.b16 %v7146
        %v7280 = vunpack.c.l.b16 %v7147
        %v7281 = vunpack.c.l.b16 %v7148
        %v7282 = vunpack.c.l.b16 %v7149
        %v7283 = vunpack.c.l.b16 %v7150
        %v7284 = vunpack.c.l.b16 %v7151
        %v7285 = vunpack.c.l.b16 %v7152
        %v7286 = vunpack.c.l.b16 %v7153
        %v7287 = vunpack.c.l.b16 %v7154
        %v7288 = vunpack.c.l.b16 %v7155
        %v7289 = vunpack.c.l.b16 %v7156
        %v7290 = vunpack.c.l.b16 %v7157
        %v7291 = vunpack.c.l.b16 %v7158
        %v7292 = vunpack.c.l.b16 %v7159
        %v7293 = vpack.c.b16 %v7278, %v7277
        %v7294 = vpack.c.b16 %v7280, %v7279
        %v7295 = vpack.c.b16 %v7282, %v7281
        %v7296 = vpack.c.b16 %v7284, %v7283
        %v7297 = vpack.c.b16 %v7286, %v7285
        %v7298 = vpack.c.b16 %v7288, %v7287
        %v7299 = vpack.c.b16 %v7290, %v7289
        %v7300 = vpack.c.b16 %v7292, %v7291
        %7309 = vmatprep.subr.bf16.mxu0 0
        %7310 = vmatpush1.bf16.msra.mxu0 %v7293
        %7311 = vmatprep.subr.bf16.mxu0 0
        %7312 = vmatpush1.bf16.msra.mxu0 %v7294
        %7313 = vmatprep.subr.bf16.mxu0 0
        %7314 = vmatpush1.bf16.msra.mxu0 %v7295
        %7315 = vmatprep.subr.bf16.mxu0 0
        %7316 = vmatpush1.bf16.msra.mxu0 %v7296
        %7317 = vmatprep.subr.bf16.mxu0 0
        %7318 = vmatpush1.bf16.msra.mxu0 %v7297
        %7319 = vmatprep.subr.bf16.mxu0 0
        %7320 = vmatpush1.bf16.msra.mxu0 %v7298
        %7321 = vmatprep.subr.bf16.mxu0 0
        %7322 = vmatpush1.bf16.msra.mxu0 %v7299
        %7323 = vmatprep.subr.bf16.mxu0 0
        %7324 = vmatpush1.bf16.msra.mxu0 %v7300
        %7325 = vmatprep.subr.bf16.mxu0 0
        %7326 = vmatpush1.bf16.msra.mxu0 0
        %7327 = vmatprep.subr.bf16.mxu0 0
        %7328 = vmatpush1.bf16.msra.mxu0 0
        %7329 = vmatprep.subr.bf16.mxu0 0
        %7330 = vmatpush1.bf16.msra.mxu0 0
        %7331 = vmatprep.subr.bf16.mxu0 0
        %7332 = vmatpush1.bf16.msra.mxu0 0
        %7333 = vmatprep.subr.bf16.mxu0 0
        %7334 = vmatpush1.bf16.msra.mxu0 0
        %7335 = vmatprep.subr.bf16.mxu0 0
        %7336 = vmatpush1.bf16.msra.mxu0 0
        %7337 = vmatprep.subr.bf16.mxu0 0
        %7338 = vmatpush1.bf16.msra.mxu0 0
        %7339 = vmatprep.subr.bf16.mxu0 0
        %7340 = vmatpush1.bf16.msra.mxu0 0
        %7341 = vmatprep.mubr.bf16.mxu0 0
        %7342 = vmatmul.mubr.bf16.gmra.mrb[0].mxu0 %v7179
        %v7343 = vpop.f32.mrb[0].mxu0
        %v7344 = vadd.f32 0.0, %v7343
        %v7345 = vpop.f32.mrb[0].mxu0
        %v7346 = vpop.f32.mrb[0].mxu0
        %v7347 = vadd.f32 0.0, %v7346
        %v7348 = vpop.f32.mrb[0].mxu0
        %7349 = vmatprep.mubr.bf16.mxu0 0
        %7350 = vmatmul.mubr.bf16.gmra.mrb[0].mxu0 %v7188
        %v7351 = vpop.f32.mrb[0].mxu0
        %v7352 = vadd.f32 0.0, %v7351
        %v7353 = vpop.f32.mrb[0].mxu0
        %v7354 = vpop.f32.mrb[0].mxu0
        %v7355 = vadd.f32 0.0, %v7354
        %v7356 = vpop.f32.mrb[0].mxu0
        %7357 = vmatprep.mubr.bf16.mxu0 0
        %7358 = vmatmul.mubr.bf16.gmra.mrb[0].mxu0 %v7197
        %v7359 = vpop.f32.mrb[0].mxu0
        %v7360 = vadd.f32 0.0, %v7359
        %v7361 = vpop.f32.mrb[0].mxu0
        %v7362 = vpop.f32.mrb[0].mxu0
        %v7363 = vadd.f32 0.0, %v7362
        %v7364 = vpop.f32.mrb[0].mxu0
        %7365 = vmatprep.mubr.bf16.mxu0 0
        %7366 = vmatmul.mubr.bf16.gmra.mrb[0].mxu0 %v7206
        %v7367 = vpop.f32.mrb[0].mxu0
        %v7368 = vadd.f32 0.0, %v7367
        %v7369 = vpop.f32.mrb[0].mxu0
        %v7370 = vpop.f32.mrb[0].mxu0
        %v7371 = vadd.f32 0.0, %v7370
        %v7372 = vpop.f32.mrb[0].mxu0
        %7373 = vmatprep.mubr.bf16.mxu0 0
        %7374 = vmatmul.mubr.bf16.gmra.mrb[0].mxu0 %v7215
        %v7375 = vpop.f32.mrb[0].mxu0
        %v7376 = vadd.f32 0.0, %v7375
        %v7377 = vpop.f32.mrb[0].mxu0
        %v7378 = vpop.f32.mrb[0].mxu0
        %v7379 = vadd.f32 0.0, %v7378
        %v7380 = vpop.f32.mrb[0].mxu0
        %7381 = vmatprep.mubr.bf16.mxu0 0
        %7382 = vmatmul.mubr.bf16.gmra.mrb[0].mxu0 %v7224
        %v7383 = vpop.f32.mrb[0].mxu0
        %v7384 = vadd.f32 0.0, %v7383
        %v7385 = vpop.f32.mrb[0].mxu0
        %v7386 = vpop.f32.mrb[0].mxu0
        %v7387 = vadd.f32 0.0, %v7386
        %v7388 = vpop.f32.mrb[0].mxu0
        %7389 = vmatprep.mubr.bf16.mxu0 0
        %7390 = vmatmul.mubr.bf16.gmra.mrb[0].mxu0 %v7233
        %v7391 = vpop.f32.mrb[0].mxu0
        %v7392 = vadd.f32 0.0, %v7391
        %v7393 = vpop.f32.mrb[0].mxu0
        %v7394 = vpop.f32.mrb[0].mxu0
        %v7395 = vadd.f32 0.0, %v7394
        %v7396 = vpop.f32.mrb[0].mxu0
        %7397 = vmatprep.mubr.bf16.mxu0 0
        %7398 = vmatmul.mubr.bf16.gmra.mrb[0].mxu0 %v7242
        %v7399 = vpop.f32.mrb[0].mxu0
        %v7400 = vadd.f32 0.0, %v7399
        %v7401 = vpop.f32.mrb[0].mxu0
        %v7402 = vpop.f32.mrb[0].mxu0
        %v7403 = vadd.f32 0.0, %v7402
        %v7404 = vpop.f32.mrb[0].mxu0
        %7405 = vmatprep.mubr.bf16.mxu0 0
        %7406 = vmatmul.mubr.bf16.gmra.mrb[0].mxu0 %v7251
        %v7407 = vpop.f32.mrb[0].mxu0
        %v7408 = vadd.f32 0.0, %v7407
        %v7409 = vpop.f32.mrb[0].mxu0
        %v7410 = vpop.f32.mrb[0].mxu0
        %v7411 = vadd.f32 0.0, %v7410
        %v7412 = vpop.f32.mrb[0].mxu0
        %7413 = vdwg.mxu0
        %v7414 = vadd.f32 %v7124, %v7344
        %v7415 = vadd.f32 %v7125, %v7347
        %v7416 = vadd.f32 %v7126, %v7352
        %v7417 = vadd.f32 %v7127, %v7355
        %v7418 = vadd.f32 %v7128, %v7360
        %v7419 = vadd.f32 %v7129, %v7363
        %v7420 = vadd.f32 %v7130, %v7368
        %v7421 = vadd.f32 %v7131, %v7371
        %v7422 = vadd.f32 %v7132, %v7376
        %v7423 = vadd.f32 %v7133, %v7379
        %v7424 = vadd.f32 %v7134, %v7384
        %v7425 = vadd.f32 %v7135, %v7387
        %v7426 = vadd.f32 %v7136, %v7392
        %v7427 = vadd.f32 %v7137, %v7395
        %v7428 = vadd.f32 %v7138, %v7400
        %v7429 = vadd.f32 %v7139, %v7403
        %v7430 = vadd.f32 %v7140, %v7408
        %v7431 = vadd.f32 %v7141, %v7411
        %v7432 = vld [vmem:[#allocation3 + $0x8] sm:$0xc]
        %s7433 = scalar_lea.vmem [#allocation9], 320
        %v7434 = vld [vmem:[%s7433] sm:$0xf]
        %v7435 = vld [vmem:[%s7433 + $0x4] sm:$0xf]
        %v7436 = vld [vmem:[%s7433 + $0x8] sm:$0xf]
        %v7437 = vld [vmem:[%s7433 + $0xc] sm:$0xf]
        %v7438 = vld [vmem:[%s7433 + $0x10] sm:$0xf]
        %v7439 = vld [vmem:[%s7433 + $0x14] sm:$0xf]
        %v7440 = vld [vmem:[%s7433 + $0x18] sm:$0xf]
        %v7441 = vld [vmem:[%s7433 + $0x1c] sm:$0xf]
        %v7442 = vld [vmem:[%s7433 + $0x20] sm:$0xf]
        %v7443 = vld [vmem:[%s7433 + $0x24] sm:$0xf]
        %v7444 = vld [vmem:[%s7433 + $0x28] sm:$0xf]
        %v7445 = vld [vmem:[%s7433 + $0x2c] sm:$0xf]
        %v7446 = vld [vmem:[%s7433 + $0x30] sm:$0xf]
        %v7447 = vld [vmem:[%s7433 + $0x34] sm:$0xf]
        %v7448 = vld [vmem:[%s7433 + $0x38] sm:$0xf]
        %v7449 = vld [vmem:[%s7433 + $0x3c] sm:$0xf]
        %v7451 = vunpack.c.l.b16 %v7432
        %v7452 = vpack.c.b16 %v6915, %v7451
        %v7453 = vrot.slane %v7452, 2
        %v7454 = vrot.slane %v6934, 2
        %v7455 = vsel %vm2180, %v7453, %v7454
        %v7456 = vrot.slane %v6935, 2
        %v7457 = vsel %vm2180, %v7454, %v7456
        %v7458 = vrot.slane %v6936, 2
        %v7459 = vsel %vm2180, %v7456, %v7458
        %v7460 = vrot.slane %v6937, 2
        %v7461 = vsel %vm2180, %v7458, %v7460
        %v7462 = vrot.slane %v6938, 2
        %v7463 = vsel %vm2180, %v7460, %v7462
        %v7464 = vrot.slane %v6939, 2
        %v7465 = vsel %vm2180, %v7462, %v7464
        %v7466 = vrot.slane %v6940, 2
        %v7467 = vsel %vm2180, %v7464, %v7466
        %v7468 = vrot.slane %v6941, 2
        %v7469 = vsel %vm2180, %v7466, %v7468
        %v7470 = vrot.slane %v7162, 2
        %v7471 = vsel %vm2180, %v7468, %v7470
        %v7497 = vunpack.c.l.b16 %v7434
        %v7498 = vunpack.c.l.b16 %v7435
        %v7499 = vunpack.c.l.b16 %v7436
        %v7500 = vunpack.c.l.b16 %v7437
        %v7501 = vunpack.c.l.b16 %v7438
        %v7502 = vunpack.c.l.b16 %v7439
        %v7503 = vunpack.c.l.b16 %v7440
        %v7504 = vunpack.c.l.b16 %v7441
        %v7505 = vunpack.c.l.b16 %v7442
        %v7506 = vunpack.c.l.b16 %v7443
        %v7507 = vunpack.c.l.b16 %v7444
        %v7508 = vunpack.c.l.b16 %v7445
        %v7509 = vunpack.c.l.b16 %v7446
        %v7510 = vunpack.c.l.b16 %v7447
        %v7511 = vunpack.c.l.b16 %v7448
        %v7512 = vunpack.c.l.b16 %v7449
        %v7513 = vpack.c.b16 %v7498, %v7497
        %v7514 = vpack.c.b16 %v7500, %v7499
        %v7515 = vpack.c.b16 %v7502, %v7501
        %v7516 = vpack.c.b16 %v7504, %v7503
        %v7517 = vpack.c.b16 %v7506, %v7505
        %v7518 = vpack.c.b16 %v7508, %v7507
        %v7519 = vpack.c.b16 %v7510, %v7509
        %v7520 = vpack.c.b16 %v7512, %v7511
        %7529 = vmatprep.subr.bf16.mxu0 0
        %7530 = vmatpush1.bf16.msra.mxu0 %v7513
        %7531 = vmatprep.subr.bf16.mxu0 0
        %7532 = vmatpush1.bf16.msra.mxu0 %v7514
        %7533 = vmatprep.subr.bf16.mxu0 0
        %7534 = vmatpush1.bf16.msra.mxu0 %v7515
        %7535 = vmatprep.subr.bf16.mxu0 0
        %7536 = vmatpush1.bf16.msra.mxu0 %v7516
        %7537 = vmatprep.subr.bf16.mxu0 0
        %7538 = vmatpush1.bf16.msra.mxu0 %v7517
        %7539 = vmatprep.subr.bf16.mxu0 0
        %7540 = vmatpush1.bf16.msra.mxu0 %v7518
        %7541 = vmatprep.subr.bf16.mxu0 0
        %7542 = vmatpush1.bf16.msra.mxu0 %v7519
        %7543 = vmatprep.subr.bf16.mxu0 0
        %7544 = vmatpush1.bf16.msra.mxu0 %v7520
        %7545 = vmatprep.subr.bf16.mxu0 0
        %7546 = vmatpush1.bf16.msra.mxu0 0
        %7547 = vmatprep.subr.bf16.mxu0 0
        %7548 = vmatpush1.bf16.msra.mxu0 0
        %7549 = vmatprep.subr.bf16.mxu0 0
        %7550 = vmatpush1.bf16.msra.mxu0 0
        %7551 = vmatprep.subr.bf16.mxu0 0
        %7552 = vmatpush1.bf16.msra.mxu0 0
        %7553 = vmatprep.subr.bf16.mxu0 0
        %7554 = vmatpush1.bf16.msra.mxu0 0
        %7555 = vmatprep.subr.bf16.mxu0 0
        %7556 = vmatpush1.bf16.msra.mxu0 0
        %7557 = vmatprep.subr.bf16.mxu0 0
        %7558 = vmatpush1.bf16.msra.mxu0 0
        %7559 = vmatprep.subr.bf16.mxu0 0
        %7560 = vmatpush1.bf16.msra.mxu0 0
        %7561 = vmatprep.mubr.bf16.mxu0 0
        %7562 = vmatmul.mubr.bf16.gmra.mrb[0].mxu0 %v7455
        %v7563 = vpop.f32.mrb[0].mxu0
        %v7564 = vadd.f32 0.0, %v7563
        %v7565 = vpop.f32.mrb[0].mxu0
        %v7566 = vpop.f32.mrb[0].mxu0
        %v7567 = vadd.f32 0.0, %v7566
        %v7568 = vpop.f32.mrb[0].mxu0
        %7569 = vmatprep.mubr.bf16.mxu0 0
        %7570 = vmatmul.mubr.bf16.gmra.mrb[0].mxu0 %v7457
        %v7571 = vpop.f32.mrb[0].mxu0
        %v7572 = vadd.f32 0.0, %v7571
        %v7573 = vpop.f32.mrb[0].mxu0
        %v7574 = vpop.f32.mrb[0].mxu0
        %v7575 = vadd.f32 0.0, %v7574
        %v7576 = vpop.f32.mrb[0].mxu0
        %7577 = vmatprep.mubr.bf16.mxu0 0
        %7578 = vmatmul.mubr.bf16.gmra.mrb[0].mxu0 %v7459
        %v7579 = vpop.f32.mrb[0].mxu0
        %v7580 = vadd.f32 0.0, %v7579
        %v7581 = vpop.f32.mrb[0].mxu0
        %v7582 = vpop.f32.mrb[0].mxu0
        %v7583 = vadd.f32 0.0, %v7582
        %v7584 = vpop.f32.mrb[0].mxu0
        %7585 = vmatprep.mubr.bf16.mxu0 0
        %7586 = vmatmul.mubr.bf16.gmra.mrb[0].mxu0 %v7461
        %v7587 = vpop.f32.mrb[0].mxu0
        %v7588 = vadd.f32 0.0, %v7587
        %v7589 = vpop.f32.mrb[0].mxu0
        %v7590 = vpop.f32.mrb[0].mxu0
        %v7591 = vadd.f32 0.0, %v7590
        %v7592 = vpop.f32.mrb[0].mxu0
        %7593 = vmatprep.mubr.bf16.mxu0 0
        %7594 = vmatmul.mubr.bf16.gmra.mrb[0].mxu0 %v7463
        %v7595 = vpop.f32.mrb[0].mxu0
        %v7596 = vadd.f32 0.0, %v7595
        %v7597 = vpop.f32.mrb[0].mxu0
        %v7598 = vpop.f32.mrb[0].mxu0
        %v7599 = vadd.f32 0.0, %v7598
        %v7600 = vpop.f32.mrb[0].mxu0
        %7601 = vmatprep.mubr.bf16.mxu0 0
        %7602 = vmatmul.mubr.bf16.gmra.mrb[0].mxu0 %v7465
        %v7603 = vpop.f32.mrb[0].mxu0
        %v7604 = vadd.f32 0.0, %v7603
        %v7605 = vpop.f32.mrb[0].mxu0
        %v7606 = vpop.f32.mrb[0].mxu0
        %v7607 = vadd.f32 0.0, %v7606
        %v7608 = vpop.f32.mrb[0].mxu0
        %7609 = vmatprep.mubr.bf16.mxu0 0
        %7610 = vmatmul.mubr.bf16.gmra.mrb[0].mxu0 %v7467
        %v7611 = vpop.f32.mrb[0].mxu0
        %v7612 = vadd.f32 0.0, %v7611
        %v7613 = vpop.f32.mrb[0].mxu0
        %v7614 = vpop.f32.mrb[0].mxu0
        %v7615 = vadd.f32 0.0, %v7614
        %v7616 = vpop.f32.mrb[0].mxu0
        %7617 = vmatprep.mubr.bf16.mxu0 0
        %7618 = vmatmul.mubr.bf16.gmra.mrb[0].mxu0 %v7469
        %v7619 = vpop.f32.mrb[0].mxu0
        %v7620 = vadd.f32 0.0, %v7619
        %v7621 = vpop.f32.mrb[0].mxu0
        %v7622 = vpop.f32.mrb[0].mxu0
        %v7623 = vadd.f32 0.0, %v7622
        %v7624 = vpop.f32.mrb[0].mxu0
        %7625 = vmatprep.mubr.bf16.mxu0 0
        %7626 = vmatmul.mubr.bf16.gmra.mrb[0].mxu0 %v7471
        %v7627 = vpop.f32.mrb[0].mxu0
        %v7628 = vadd.f32 0.0, %v7627
        %v7629 = vpop.f32.mrb[0].mxu0
        %v7630 = vpop.f32.mrb[0].mxu0
        %v7631 = vadd.f32 0.0, %v7630
        %v7632 = vpop.f32.mrb[0].mxu0
        %7633 = vdwg.mxu0
        %v7634 = vadd.f32 %v7414, %v7564
        %v7635 = vadd.f32 %v7415, %v7567
        %v7636 = vadd.f32 %v7416, %v7572
        %v7637 = vadd.f32 %v7417, %v7575
        %v7638 = vadd.f32 %v7418, %v7580
        %v7639 = vadd.f32 %v7419, %v7583
        %v7640 = vadd.f32 %v7420, %v7588
        %v7641 = vadd.f32 %v7421, %v7591
        %v7642 = vadd.f32 %v7422, %v7596
        %v7643 = vadd.f32 %v7423, %v7599
        %v7644 = vadd.f32 %v7424, %v7604
        %v7645 = vadd.f32 %v7425, %v7607
        %v7646 = vadd.f32 %v7426, %v7612
        %v7647 = vadd.f32 %v7427, %v7615
        %v7648 = vadd.f32 %v7428, %v7620
        %v7649 = vadd.f32 %v7429, %v7623
        %v7650 = vadd.f32 %v7430, %v7628
        %v7651 = vadd.f32 %v7431, %v7631
        %v7652 = vld [vmem:[#allocation3 + $0x10] sm:$0xc]
        %v7653 = vld [vmem:[#allocation3 + $0x14] sm:$0xf]
        %v7654 = vld [vmem:[#allocation3 + $0x18] sm:$0xf]
        %v7655 = vld [vmem:[#allocation3 + $0x1c] sm:$0xf]
        %v7656 = vld [vmem:[#allocation3 + $0x20] sm:$0xf]
        %v7657 = vld [vmem:[#allocation3 + $0x24] sm:$0xf]
        %v7658 = vld [vmem:[#allocation3 + $0x28] sm:$0xf]
        %v7659 = vld [vmem:[#allocation3 + $0x2c] sm:$0xf]
        %v7660 = vld [vmem:[#allocation3 + $0x30] sm:$0xf]
        %v7661 = vld [vmem:[#allocation3 + $0x34] sm:$0xf]
        %v7662 = vld [vmem:[#allocation3 + $0x38] sm:$0xf]
        %v7663 = vld [vmem:[#allocation3 + $0x3c] sm:$0xf]
        %v7664 = vld [vmem:[#allocation3 + $0x40] sm:$0xf]
        %v7665 = vld [vmem:[#allocation3 + $0x44] sm:$0xf]
        %v7666 = vld [vmem:[#allocation3 + $0x48] sm:$0xf]
        %v7667 = vld [vmem:[#allocation3 + $0x4c] sm:$0xf]
        %v7668 = vld [vmem:[#allocation3 + $0x50] sm:$0xf]
        %v7669 = vld [vmem:[#allocation3 + $0x54] sm:$0xf]
        %v7670 = vld [vmem:[#allocation3 + $0x58] sm:$0x3]
        %s7671 = scalar_lea.vmem [#allocation9], 384
        %v7672 = vld [vmem:[%s7671] sm:$0xf]
        %v7673 = vld [vmem:[%s7671 + $0x4] sm:$0xf]
        %v7674 = vld [vmem:[%s7671 + $0x8] sm:$0xf]
        %v7675 = vld [vmem:[%s7671 + $0xc] sm:$0xf]
        %v7676 = vld [vmem:[%s7671 + $0x10] sm:$0xf]
        %v7677 = vld [vmem:[%s7671 + $0x14] sm:$0xf]
        %v7678 = vld [vmem:[%s7671 + $0x18] sm:$0xf]
        %v7679 = vld [vmem:[%s7671 + $0x1c] sm:$0xf]
        %v7680 = vld [vmem:[%s7671 + $0x20] sm:$0xf]
        %v7681 = vld [vmem:[%s7671 + $0x24] sm:$0xf]
        %v7682 = vld [vmem:[%s7671 + $0x28] sm:$0xf]
        %v7683 = vld [vmem:[%s7671 + $0x2c] sm:$0xf]
        %v7684 = vld [vmem:[%s7671 + $0x30] sm:$0xf]
        %v7685 = vld [vmem:[%s7671 + $0x34] sm:$0xf]
        %v7686 = vld [vmem:[%s7671 + $0x38] sm:$0xf]
        %v7687 = vld [vmem:[%s7671 + $0x3c] sm:$0xf]
        %v7707 = vunpack.c.l.b16 %v7652
        %v7708 = vunpack.c.l.b16 %v7653
        %v7709 = vunpack.c.l.b16 %v7654
        %v7710 = vunpack.c.l.b16 %v7655
        %v7711 = vunpack.c.l.b16 %v7656
        %v7712 = vunpack.c.l.b16 %v7657
        %v7713 = vunpack.c.l.b16 %v7658
        %v7714 = vunpack.c.l.b16 %v7659
        %v7715 = vunpack.c.l.b16 %v7660
        %v7716 = vunpack.c.l.b16 %v7661
        %v7717 = vunpack.c.l.b16 %v7662
        %v7718 = vunpack.c.l.b16 %v7663
        %v7719 = vunpack.c.l.b16 %v7664
        %v7720 = vunpack.c.l.b16 %v7665
        %v7721 = vunpack.c.l.b16 %v7666
        %v7722 = vunpack.c.l.b16 %v7667
        %v7723 = vunpack.c.l.b16 %v7668
        %v7724 = vunpack.c.l.b16 %v7669
        %v7725 = vunpack.c.l.b16 %v7670
        %v7726 = vpack.c.b16 %v7708, %v7707
        %v7727 = vpack.c.b16 %v7710, %v7709
        %v7728 = vpack.c.b16 %v7712, %v7711
        %v7729 = vpack.c.b16 %v7714, %v7713
        %v7730 = vpack.c.b16 %v7716, %v7715
        %v7731 = vpack.c.b16 %v7718, %v7717
        %v7732 = vpack.c.b16 %v7720, %v7719
        %v7733 = vpack.c.b16 %v7722, %v7721
        %v7734 = vpack.c.b16 %v7724, %v7723
        %v7735 = vpack.c.b16 %v7725, %v7725
        %v7736 = vrot.slane %v7726, 2
        %v7737 = vrot.slane %v7727, 2
        %v7738 = vsel %vm2180, %v7736, %v7737
        %v7739 = vrot.slane %v7728, 2
        %v7740 = vsel %vm2180, %v7737, %v7739
        %v7741 = vrot.slane %v7729, 2
        %v7742 = vsel %vm2180, %v7739, %v7741
        %v7743 = vrot.slane %v7730, 2
        %v7744 = vsel %vm2180, %v7741, %v7743
        %v7745 = vrot.slane %v7731, 2
        %v7746 = vsel %vm2180, %v7743, %v7745
        %v7747 = vrot.slane %v7732, 2
        %v7748 = vsel %vm2180, %v7745, %v7747
        %v7749 = vrot.slane %v7733, 2
        %v7750 = vsel %vm2180, %v7747, %v7749
        %v7751 = vrot.slane %v7734, 2
        %v7752 = vsel %vm2180, %v7749, %v7751
        %v7753 = vrot.slane %v7735, 2
        %v7754 = vsel %vm2180, %v7751, %v7753
        %v7780 = vunpack.c.l.b16 %v7672
        %v7781 = vunpack.c.l.b16 %v7673
        %v7782 = vunpack.c.l.b16 %v7674
        %v7783 = vunpack.c.l.b16 %v7675
        %v7784 = vunpack.c.l.b16 %v7676
        %v7785 = vunpack.c.l.b16 %v7677
        %v7786 = vunpack.c.l.b16 %v7678
        %v7787 = vunpack.c.l.b16 %v7679
        %v7788 = vunpack.c.l.b16 %v7680
        %v7789 = vunpack.c.l.b16 %v7681
        %v7790 = vunpack.c.l.b16 %v7682
        %v7791 = vunpack.c.l.b16 %v7683
        %v7792 = vunpack.c.l.b16 %v7684
        %v7793 = vunpack.c.l.b16 %v7685
        %v7794 = vunpack.c.l.b16 %v7686
        %v7795 = vunpack.c.l.b16 %v7687
        %v7796 = vpack.c.b16 %v7781, %v7780
        %v7797 = vpack.c.b16 %v7783, %v7782
        %v7798 = vpack.c.b16 %v7785, %v7784
        %v7799 = vpack.c.b16 %v7787, %v7786
        %v7800 = vpack.c.b16 %v7789, %v7788
        %v7801 = vpack.c.b16 %v7791, %v7790
        %v7802 = vpack.c.b16 %v7793, %v7792
        %v7803 = vpack.c.b16 %v7795, %v7794
        %7812 = vmatprep.subr.bf16.mxu0 0
        %7813 = vmatpush1.bf16.msra.mxu0 %v7796
        %7814 = vmatprep.subr.bf16.mxu0 0
        %7815 = vmatpush1.bf16.msra.mxu0 %v7797
        %7816 = vmatprep.subr.bf16.mxu0 0
        %7817 = vmatpush1.bf16.msra.mxu0 %v7798
        %7818 = vmatprep.subr.bf16.mxu0 0
        %7819 = vmatpush1.bf16.msra.mxu0 %v7799
        %7820 = vmatprep.subr.bf16.mxu0 0
        %7821 = vmatpush1.bf16.msra.mxu0 %v7800
        %7822 = vmatprep.subr.bf16.mxu0 0
        %7823 = vmatpush1.bf16.msra.mxu0 %v7801
        %7824 = vmatprep.subr.bf16.mxu0 0
        %7825 = vmatpush1.bf16.msra.mxu0 %v7802
        %7826 = vmatprep.subr.bf16.mxu0 0
        %7827 = vmatpush1.bf16.msra.mxu0 %v7803
        %7828 = vmatprep.subr.bf16.mxu0 0
        %7829 = vmatpush1.bf16.msra.mxu0 0
        %7830 = vmatprep.subr.bf16.mxu0 0
        %7831 = vmatpush1.bf16.msra.mxu0 0
        %7832 = vmatprep.subr.bf16.mxu0 0
        %7833 = vmatpush1.bf16.msra.mxu0 0
        %7834 = vmatprep.subr.bf16.mxu0 0
        %7835 = vmatpush1.bf16.msra.mxu0 0
        %7836 = vmatprep.subr.bf16.mxu0 0
        %7837 = vmatpush1.bf16.msra.mxu0 0
        %7838 = vmatprep.subr.bf16.mxu0 0
        %7839 = vmatpush1.bf16.msra.mxu0 0
        %7840 = vmatprep.subr.bf16.mxu0 0
        %7841 = vmatpush1.bf16.msra.mxu0 0
        %7842 = vmatprep.subr.bf16.mxu0 0
        %7843 = vmatpush1.bf16.msra.mxu0 0
        %7844 = vmatprep.mubr.bf16.mxu0 0
        %7845 = vmatmul.mubr.bf16.gmra.mrb[0].mxu0 %v7738
        %v7846 = vpop.f32.mrb[0].mxu0
        %v7847 = vadd.f32 0.0, %v7846
        %v7848 = vpop.f32.mrb[0].mxu0
        %v7849 = vpop.f32.mrb[0].mxu0
        %v7850 = vadd.f32 0.0, %v7849
        %v7851 = vpop.f32.mrb[0].mxu0
        %7852 = vmatprep.mubr.bf16.mxu0 0
        %7853 = vmatmul.mubr.bf16.gmra.mrb[0].mxu0 %v7740
        %v7854 = vpop.f32.mrb[0].mxu0
        %v7855 = vadd.f32 0.0, %v7854
        %v7856 = vpop.f32.mrb[0].mxu0
        %v7857 = vpop.f32.mrb[0].mxu0
        %v7858 = vadd.f32 0.0, %v7857
        %v7859 = vpop.f32.mrb[0].mxu0
        %7860 = vmatprep.mubr.bf16.mxu0 0
        %7861 = vmatmul.mubr.bf16.gmra.mrb[0].mxu0 %v7742
        %v7862 = vpop.f32.mrb[0].mxu0
        %v7863 = vadd.f32 0.0, %v7862
        %v7864 = vpop.f32.mrb[0].mxu0
        %v7865 = vpop.f32.mrb[0].mxu0
        %v7866 = vadd.f32 0.0, %v7865
        %v7867 = vpop.f32.mrb[0].mxu0
        %7868 = vmatprep.mubr.bf16.mxu0 0
        %7869 = vmatmul.mubr.bf16.gmra.mrb[0].mxu0 %v7744
        %v7870 = vpop.f32.mrb[0].mxu0
        %v7871 = vadd.f32 0.0, %v7870
        %v7872 = vpop.f32.mrb[0].mxu0
        %v7873 = vpop.f32.mrb[0].mxu0
        %v7874 = vadd.f32 0.0, %v7873
        %v7875 = vpop.f32.mrb[0].mxu0
        %7876 = vmatprep.mubr.bf16.mxu0 0
        %7877 = vmatmul.mubr.bf16.gmra.mrb[0].mxu0 %v7746
        %v7878 = vpop.f32.mrb[0].mxu0
        %v7879 = vadd.f32 0.0, %v7878
        %v7880 = vpop.f32.mrb[0].mxu0
        %v7881 = vpop.f32.mrb[0].mxu0
        %v7882 = vadd.f32 0.0, %v7881
        %v7883 = vpop.f32.mrb[0].mxu0
        %7884 = vmatprep.mubr.bf16.mxu0 0
        %7885 = vmatmul.mubr.bf16.gmra.mrb[0].mxu0 %v7748
        %v7886 = vpop.f32.mrb[0].mxu0
        %v7887 = vadd.f32 0.0, %v7886
        %v7888 = vpop.f32.mrb[0].mxu0
        %v7889 = vpop.f32.mrb[0].mxu0
        %v7890 = vadd.f32 0.0, %v7889
        %v7891 = vpop.f32.mrb[0].mxu0
        %7892 = vmatprep.mubr.bf16.mxu0 0
        %7893 = vmatmul.mubr.bf16.gmra.mrb[0].mxu0 %v7750
        %v7894 = vpop.f32.mrb[0].mxu0
        %v7895 = vadd.f32 0.0, %v7894
        %v7896 = vpop.f32.mrb[0].mxu0
        %v7897 = vpop.f32.mrb[0].mxu0
        %v7898 = vadd.f32 0.0, %v7897
        %v7899 = vpop.f32.mrb[0].mxu0
        %7900 = vmatprep.mubr.bf16.mxu0 0
        %7901 = vmatmul.mubr.bf16.gmra.mrb[0].mxu0 %v7752
        %v7902 = vpop.f32.mrb[0].mxu0
        %v7903 = vadd.f32 0.0, %v7902
        %v7904 = vpop.f32.mrb[0].mxu0
        %v7905 = vpop.f32.mrb[0].mxu0
        %v7906 = vadd.f32 0.0, %v7905
        %v7907 = vpop.f32.mrb[0].mxu0
        %7908 = vmatprep.mubr.bf16.mxu0 0
        %7909 = vmatmul.mubr.bf16.gmra.mrb[0].mxu0 %v7754
        %v7910 = vpop.f32.mrb[0].mxu0
        %v7911 = vadd.f32 0.0, %v7910
        %v7912 = vpop.f32.mrb[0].mxu0
        %v7913 = vpop.f32.mrb[0].mxu0
        %v7914 = vadd.f32 0.0, %v7913
        %v7915 = vpop.f32.mrb[0].mxu0
        %7916 = vdwg.mxu0
        %v7917 = vadd.f32 %v7634, %v7847
        %v7918 = vadd.f32 %v7635, %v7850
        %v7919 = vadd.f32 %v7636, %v7855
        %v7920 = vadd.f32 %v7637, %v7858
        %v7921 = vadd.f32 %v7638, %v7863
        %v7922 = vadd.f32 %v7639, %v7866
        %v7923 = vadd.f32 %v7640, %v7871
        %v7924 = vadd.f32 %v7641, %v7874
        %v7925 = vadd.f32 %v7642, %v7879
        %v7926 = vadd.f32 %v7643, %v7882
        %v7927 = vadd.f32 %v7644, %v7887
        %v7928 = vadd.f32 %v7645, %v7890
        %v7929 = vadd.f32 %v7646, %v7895
        %v7930 = vadd.f32 %v7647, %v7898
        %v7931 = vadd.f32 %v7648, %v7903
        %v7932 = vadd.f32 %v7649, %v7906
        %v7933 = vadd.f32 %v7650, %v7911
        %v7934 = vadd.f32 %v7651, %v7914
        %v7935 = vld [vmem:[#allocation3 + $0x58] sm:$0x7]
        %s7936 = scalar_lea.vmem [#allocation9], 448
        %v7937 = vld [vmem:[%s7936] sm:$0xf]
        %v7938 = vld [vmem:[%s7936 + $0x4] sm:$0xf]
        %v7939 = vld [vmem:[%s7936 + $0x8] sm:$0xf]
        %v7940 = vld [vmem:[%s7936 + $0xc] sm:$0xf]
        %v7941 = vld [vmem:[%s7936 + $0x10] sm:$0xf]
        %v7942 = vld [vmem:[%s7936 + $0x14] sm:$0xf]
        %v7943 = vld [vmem:[%s7936 + $0x18] sm:$0xf]
        %v7944 = vld [vmem:[%s7936 + $0x1c] sm:$0xf]
        %v7945 = vld [vmem:[%s7936 + $0x20] sm:$0xf]
        %v7946 = vld [vmem:[%s7936 + $0x24] sm:$0xf]
        %v7947 = vld [vmem:[%s7936 + $0x28] sm:$0xf]
        %v7948 = vld [vmem:[%s7936 + $0x2c] sm:$0xf]
        %v7949 = vld [vmem:[%s7936 + $0x30] sm:$0xf]
        %v7950 = vld [vmem:[%s7936 + $0x34] sm:$0xf]
        %v7951 = vld [vmem:[%s7936 + $0x38] sm:$0xf]
        %v7952 = vld [vmem:[%s7936 + $0x3c] sm:$0xf]
        %v7954 = vunpack.c.l.b16 %v7935
        %v7955 = vpack.c.b16 %v7954, %v7954
        %v7957 = vshrl.u32 %v7726, 16
        %v7959 = vrot.slane %v7957, 2
        %v7960 = vshll.u32 %v7726, 16
        %v7962 = vrot.slane %v7960, 3
        %v7963 = vor.u32 %v7959, %v7962
        %v7965 = vshrl.u32 %v7727, 16
        %v7967 = vrot.slane %v7965, 2
        %v7968 = vshll.u32 %v7727, 16
        %v7970 = vrot.slane %v7968, 3
        %v7971 = vor.u32 %v7967, %v7970
        %v7972 = vsel %vm2684, %v7963, %v7971
        %v7974 = vshrl.u32 %v7728, 16
        %v7976 = vrot.slane %v7974, 2
        %v7977 = vshll.u32 %v7728, 16
        %v7979 = vrot.slane %v7977, 3
        %v7980 = vor.u32 %v7976, %v7979
        %v7981 = vsel %vm2684, %v7971, %v7980
        %v7983 = vshrl.u32 %v7729, 16
        %v7985 = vrot.slane %v7983, 2
        %v7986 = vshll.u32 %v7729, 16
        %v7988 = vrot.slane %v7986, 3
        %v7989 = vor.u32 %v7985, %v7988
        %v7990 = vsel %vm2684, %v7980, %v7989
        %v7992 = vshrl.u32 %v7730, 16
        %v7994 = vrot.slane %v7992, 2
        %v7995 = vshll.u32 %v7730, 16
        %v7997 = vrot.slane %v7995, 3
        %v7998 = vor.u32 %v7994, %v7997
        %v7999 = vsel %vm2684, %v7989, %v7998
        %v8001 = vshrl.u32 %v7731, 16
        %v8003 = vrot.slane %v8001, 2
        %v8004 = vshll.u32 %v7731, 16
        %v8006 = vrot.slane %v8004, 3
        %v8007 = vor.u32 %v8003, %v8006
        %v8008 = vsel %vm2684, %v7998, %v8007
        %v8010 = vshrl.u32 %v7732, 16
        %v8012 = vrot.slane %v8010, 2
        %v8013 = vshll.u32 %v7732, 16
        %v8015 = vrot.slane %v8013, 3
        %v8016 = vor.u32 %v8012, %v8015
        %v8017 = vsel %vm2684, %v8007, %v8016
        %v8019 = vshrl.u32 %v7733, 16
        %v8021 = vrot.slane %v8019, 2
        %v8022 = vshll.u32 %v7733, 16
        %v8024 = vrot.slane %v8022, 3
        %v8025 = vor.u32 %v8021, %v8024
        %v8026 = vsel %vm2684, %v8016, %v8025
        %v8028 = vshrl.u32 %v7734, 16
        %v8030 = vrot.slane %v8028, 2
        %v8031 = vshll.u32 %v7734, 16
        %v8033 = vrot.slane %v8031, 3
        %v8034 = vor.u32 %v8030, %v8033
        %v8035 = vsel %vm2684, %v8025, %v8034
        %v8037 = vshrl.u32 %v7955, 16
        %v8039 = vrot.slane %v8037, 2
        %v8040 = vshll.u32 %v7955, 16
        %v8042 = vrot.slane %v8040, 3
        %v8043 = vor.u32 %v8039, %v8042
        %v8044 = vsel %vm2684, %v8034, %v8043
        %v8070 = vunpack.c.l.b16 %v7937
        %v8071 = vunpack.c.l.b16 %v7938
        %v8072 = vunpack.c.l.b16 %v7939
        %v8073 = vunpack.c.l.b16 %v7940
        %v8074 = vunpack.c.l.b16 %v7941
        %v8075 = vunpack.c.l.b16 %v7942
        %v8076 = vunpack.c.l.b16 %v7943
        %v8077 = vunpack.c.l.b16 %v7944
        %v8078 = vunpack.c.l.b16 %v7945
        %v8079 = vunpack.c.l.b16 %v7946
        %v8080 = vunpack.c.l.b16 %v7947
        %v8081 = vunpack.c.l.b16 %v7948
        %v8082 = vunpack.c.l.b16 %v7949
        %v8083 = vunpack.c.l.b16 %v7950
        %v8084 = vunpack.c.l.b16 %v7951
        %v8085 = vunpack.c.l.b16 %v7952
        %v8086 = vpack.c.b16 %v8071, %v8070
        %v8087 = vpack.c.b16 %v8073, %v8072
        %v8088 = vpack.c.b16 %v8075, %v8074
        %v8089 = vpack.c.b16 %v8077, %v8076
        %v8090 = vpack.c.b16 %v8079, %v8078
        %v8091 = vpack.c.b16 %v8081, %v8080
        %v8092 = vpack.c.b16 %v8083, %v8082
        %v8093 = vpack.c.b16 %v8085, %v8084
        %8102 = vmatprep.subr.bf16.mxu0 0
        %8103 = vmatpush1.bf16.msra.mxu0 %v8086
        %8104 = vmatprep.subr.bf16.mxu0 0
        %8105 = vmatpush1.bf16.msra.mxu0 %v8087
        %8106 = vmatprep.subr.bf16.mxu0 0
        %8107 = vmatpush1.bf16.msra.mxu0 %v8088
        %8108 = vmatprep.subr.bf16.mxu0 0
        %8109 = vmatpush1.bf16.msra.mxu0 %v8089
        %8110 = vmatprep.subr.bf16.mxu0 0
        %8111 = vmatpush1.bf16.msra.mxu0 %v8090
        %8112 = vmatprep.subr.bf16.mxu0 0
        %8113 = vmatpush1.bf16.msra.mxu0 %v8091
        %8114 = vmatprep.subr.bf16.mxu0 0
        %8115 = vmatpush1.bf16.msra.mxu0 %v8092
        %8116 = vmatprep.subr.bf16.mxu0 0
        %8117 = vmatpush1.bf16.msra.mxu0 %v8093
        %8118 = vmatprep.subr.bf16.mxu0 0
        %8119 = vmatpush1.bf16.msra.mxu0 0
        %8120 = vmatprep.subr.bf16.mxu0 0
        %8121 = vmatpush1.bf16.msra.mxu0 0
        %8122 = vmatprep.subr.bf16.mxu0 0
        %8123 = vmatpush1.bf16.msra.mxu0 0
        %8124 = vmatprep.subr.bf16.mxu0 0
        %8125 = vmatpush1.bf16.msra.mxu0 0
        %8126 = vmatprep.subr.bf16.mxu0 0
        %8127 = vmatpush1.bf16.msra.mxu0 0
        %8128 = vmatprep.subr.bf16.mxu0 0
        %8129 = vmatpush1.bf16.msra.mxu0 0
        %8130 = vmatprep.subr.bf16.mxu0 0
        %8131 = vmatpush1.bf16.msra.mxu0 0
        %8132 = vmatprep.subr.bf16.mxu0 0
        %8133 = vmatpush1.bf16.msra.mxu0 0
        %8134 = vmatprep.mubr.bf16.mxu0 0
        %8135 = vmatmul.mubr.bf16.gmra.mrb[0].mxu0 %v7972
        %v8136 = vpop.f32.mrb[0].mxu0
        %v8137 = vadd.f32 0.0, %v8136
        %v8138 = vpop.f32.mrb[0].mxu0
        %v8139 = vpop.f32.mrb[0].mxu0
        %v8140 = vadd.f32 0.0, %v8139
        %v8141 = vpop.f32.mrb[0].mxu0
        %8142 = vmatprep.mubr.bf16.mxu0 0
        %8143 = vmatmul.mubr.bf16.gmra.mrb[0].mxu0 %v7981
        %v8144 = vpop.f32.mrb[0].mxu0
        %v8145 = vadd.f32 0.0, %v8144
        %v8146 = vpop.f32.mrb[0].mxu0
        %v8147 = vpop.f32.mrb[0].mxu0
        %v8148 = vadd.f32 0.0, %v8147
        %v8149 = vpop.f32.mrb[0].mxu0
        %8150 = vmatprep.mubr.bf16.mxu0 0
        %8151 = vmatmul.mubr.bf16.gmra.mrb[0].mxu0 %v7990
        %v8152 = vpop.f32.mrb[0].mxu0
        %v8153 = vadd.f32 0.0, %v8152
        %v8154 = vpop.f32.mrb[0].mxu0
        %v8155 = vpop.f32.mrb[0].mxu0
        %v8156 = vadd.f32 0.0, %v8155
        %v8157 = vpop.f32.mrb[0].mxu0
        %8158 = vmatprep.mubr.bf16.mxu0 0
        %8159 = vmatmul.mubr.bf16.gmra.mrb[0].mxu0 %v7999
        %v8160 = vpop.f32.mrb[0].mxu0
        %v8161 = vadd.f32 0.0, %v8160
        %v8162 = vpop.f32.mrb[0].mxu0
        %v8163 = vpop.f32.mrb[0].mxu0
        %v8164 = vadd.f32 0.0, %v8163
        %v8165 = vpop.f32.mrb[0].mxu0
        %8166 = vmatprep.mubr.bf16.mxu0 0
        %8167 = vmatmul.mubr.bf16.gmra.mrb[0].mxu0 %v8008
        %v8168 = vpop.f32.mrb[0].mxu0
        %v8169 = vadd.f32 0.0, %v8168
        %v8170 = vpop.f32.mrb[0].mxu0
        %v8171 = vpop.f32.mrb[0].mxu0
        %v8172 = vadd.f32 0.0, %v8171
        %v8173 = vpop.f32.mrb[0].mxu0
        %8174 = vmatprep.mubr.bf16.mxu0 0
        %8175 = vmatmul.mubr.bf16.gmra.mrb[0].mxu0 %v8017
        %v8176 = vpop.f32.mrb[0].mxu0
        %v8177 = vadd.f32 0.0, %v8176
        %v8178 = vpop.f32.mrb[0].mxu0
        %v8179 = vpop.f32.mrb[0].mxu0
        %v8180 = vadd.f32 0.0, %v8179
        %v8181 = vpop.f32.mrb[0].mxu0
        %8182 = vmatprep.mubr.bf16.mxu0 0
        %8183 = vmatmul.mubr.bf16.gmra.mrb[0].mxu0 %v8026
        %v8184 = vpop.f32.mrb[0].mxu0
        %v8185 = vadd.f32 0.0, %v8184
        %v8186 = vpop.f32.mrb[0].mxu0
        %v8187 = vpop.f32.mrb[0].mxu0
        %v8188 = vadd.f32 0.0, %v8187
        %v8189 = vpop.f32.mrb[0].mxu0
        %8190 = vmatprep.mubr.bf16.mxu0 0
        %8191 = vmatmul.mubr.bf16.gmra.mrb[0].mxu0 %v8035
        %v8192 = vpop.f32.mrb[0].mxu0
        %v8193 = vadd.f32 0.0, %v8192
        %v8194 = vpop.f32.mrb[0].mxu0
        %v8195 = vpop.f32.mrb[0].mxu0
        %v8196 = vadd.f32 0.0, %v8195
        %v8197 = vpop.f32.mrb[0].mxu0
        %8198 = vmatprep.mubr.bf16.mxu0 0
        %8199 = vmatmul.mubr.bf16.gmra.mrb[0].mxu0 %v8044
        %v8200 = vpop.f32.mrb[0].mxu0
        %v8201 = vadd.f32 0.0, %v8200
        %v8202 = vpop.f32.mrb[0].mxu0
        %v8203 = vpop.f32.mrb[0].mxu0
        %v8204 = vadd.f32 0.0, %v8203
        %v8205 = vpop.f32.mrb[0].mxu0
        %8206 = vdwg.mxu0
        %v8207 = vadd.f32 %v7917, %v8137
        %v8208 = vadd.f32 %v7918, %v8140
        %v8209 = vadd.f32 %v7919, %v8145
        %v8210 = vadd.f32 %v7920, %v8148
        %v8211 = vadd.f32 %v7921, %v8153
        %v8212 = vadd.f32 %v7922, %v8156
        %v8213 = vadd.f32 %v7923, %v8161
        %v8214 = vadd.f32 %v7924, %v8164
        %v8215 = vadd.f32 %v7925, %v8169
        %v8216 = vadd.f32 %v7926, %v8172
        %v8217 = vadd.f32 %v7927, %v8177
        %v8218 = vadd.f32 %v7928, %v8180
        %v8219 = vadd.f32 %v7929, %v8185
        %v8220 = vadd.f32 %v7930, %v8188
        %v8221 = vadd.f32 %v7931, %v8193
        %v8222 = vadd.f32 %v7932, %v8196
        %v8223 = vadd.f32 %v7933, %v8201
        %v8224 = vadd.f32 %v7934, %v8204
        %v8225 = vld [vmem:[#allocation3 + $0x10] sm:$0x8]
        %s8226 = scalar_lea.vmem [#allocation9], 512
        %v8227 = vld [vmem:[%s8226] sm:$0xf]
        %v8228 = vld [vmem:[%s8226 + $0x4] sm:$0xf]
        %v8229 = vld [vmem:[%s8226 + $0x8] sm:$0xf]
        %v8230 = vld [vmem:[%s8226 + $0xc] sm:$0xf]
        %v8231 = vld [vmem:[%s8226 + $0x10] sm:$0xf]
        %v8232 = vld [vmem:[%s8226 + $0x14] sm:$0xf]
        %v8233 = vld [vmem:[%s8226 + $0x18] sm:$0xf]
        %v8234 = vld [vmem:[%s8226 + $0x1c] sm:$0xf]
        %v8235 = vld [vmem:[%s8226 + $0x20] sm:$0xf]
        %v8236 = vld [vmem:[%s8226 + $0x24] sm:$0xf]
        %v8237 = vld [vmem:[%s8226 + $0x28] sm:$0xf]
        %v8238 = vld [vmem:[%s8226 + $0x2c] sm:$0xf]
        %v8239 = vld [vmem:[%s8226 + $0x30] sm:$0xf]
        %v8240 = vld [vmem:[%s8226 + $0x34] sm:$0xf]
        %v8241 = vld [vmem:[%s8226 + $0x38] sm:$0xf]
        %v8242 = vld [vmem:[%s8226 + $0x3c] sm:$0xf]
        %v8244 = vunpack.c.l.b16 %v8225
        %v8245 = vpack.c.b16 %v7708, %v8244
        %v8246 = vrot.slane %v8245, 3
        %v8247 = vrot.slane %v7727, 3
        %v8248 = vsel %vm2975, %v8246, %v8247
        %v8249 = vrot.slane %v7728, 3
        %v8250 = vsel %vm2975, %v8247, %v8249
        %v8251 = vrot.slane %v7729, 3
        %v8252 = vsel %vm2975, %v8249, %v8251
        %v8253 = vrot.slane %v7730, 3
        %v8254 = vsel %vm2975, %v8251, %v8253
        %v8255 = vrot.slane %v7731, 3
        %v8256 = vsel %vm2975, %v8253, %v8255
        %v8257 = vrot.slane %v7732, 3
        %v8258 = vsel %vm2975, %v8255, %v8257
        %v8259 = vrot.slane %v7733, 3
        %v8260 = vsel %vm2975, %v8257, %v8259
        %v8261 = vrot.slane %v7734, 3
        %v8262 = vsel %vm2975, %v8259, %v8261
        %v8263 = vrot.slane %v7955, 3
        %v8264 = vsel %vm2975, %v8261, %v8263
        %v8290 = vunpack.c.l.b16 %v8227
        %v8291 = vunpack.c.l.b16 %v8228
        %v8292 = vunpack.c.l.b16 %v8229
        %v8293 = vunpack.c.l.b16 %v8230
        %v8294 = vunpack.c.l.b16 %v8231
        %v8295 = vunpack.c.l.b16 %v8232
        %v8296 = vunpack.c.l.b16 %v8233
        %v8297 = vunpack.c.l.b16 %v8234
        %v8298 = vunpack.c.l.b16 %v8235
        %v8299 = vunpack.c.l.b16 %v8236
        %v8300 = vunpack.c.l.b16 %v8237
        %v8301 = vunpack.c.l.b16 %v8238
        %v8302 = vunpack.c.l.b16 %v8239
        %v8303 = vunpack.c.l.b16 %v8240
        %v8304 = vunpack.c.l.b16 %v8241
        %v8305 = vunpack.c.l.b16 %v8242
        %v8306 = vpack.c.b16 %v8291, %v8290
        %v8307 = vpack.c.b16 %v8293, %v8292
        %v8308 = vpack.c.b16 %v8295, %v8294
        %v8309 = vpack.c.b16 %v8297, %v8296
        %v8310 = vpack.c.b16 %v8299, %v8298
        %v8311 = vpack.c.b16 %v8301, %v8300
        %v8312 = vpack.c.b16 %v8303, %v8302
        %v8313 = vpack.c.b16 %v8305, %v8304
        %8322 = vmatprep.subr.bf16.mxu0 0
        %8323 = vmatpush1.bf16.msra.mxu0 %v8306
        %8324 = vmatprep.subr.bf16.mxu0 0
        %8325 = vmatpush1.bf16.msra.mxu0 %v8307
        %8326 = vmatprep.subr.bf16.mxu0 0
        %8327 = vmatpush1.bf16.msra.mxu0 %v8308
        %8328 = vmatprep.subr.bf16.mxu0 0
        %8329 = vmatpush1.bf16.msra.mxu0 %v8309
        %8330 = vmatprep.subr.bf16.mxu0 0
        %8331 = vmatpush1.bf16.msra.mxu0 %v8310
        %8332 = vmatprep.subr.bf16.mxu0 0
        %8333 = vmatpush1.bf16.msra.mxu0 %v8311
        %8334 = vmatprep.subr.bf16.mxu0 0
        %8335 = vmatpush1.bf16.msra.mxu0 %v8312
        %8336 = vmatprep.subr.bf16.mxu0 0
        %8337 = vmatpush1.bf16.msra.mxu0 %v8313
        %8338 = vmatprep.subr.bf16.mxu0 0
        %8339 = vmatpush1.bf16.msra.mxu0 0
        %8340 = vmatprep.subr.bf16.mxu0 0
        %8341 = vmatpush1.bf16.msra.mxu0 0
        %8342 = vmatprep.subr.bf16.mxu0 0
        %8343 = vmatpush1.bf16.msra.mxu0 0
        %8344 = vmatprep.subr.bf16.mxu0 0
        %8345 = vmatpush1.bf16.msra.mxu0 0
        %8346 = vmatprep.subr.bf16.mxu0 0
        %8347 = vmatpush1.bf16.msra.mxu0 0
        %8348 = vmatprep.subr.bf16.mxu0 0
        %8349 = vmatpush1.bf16.msra.mxu0 0
        %8350 = vmatprep.subr.bf16.mxu0 0
        %8351 = vmatpush1.bf16.msra.mxu0 0
        %8352 = vmatprep.subr.bf16.mxu0 0
        %8353 = vmatpush1.bf16.msra.mxu0 0
        %8354 = vmatprep.mubr.bf16.mxu0 0
        %8355 = vmatmul.mubr.bf16.gmra.mrb[0].mxu0 %v8248
        %v8356 = vpop.f32.mrb[0].mxu0
        %v8357 = vadd.f32 0.0, %v8356
        %v8358 = vpop.f32.mrb[0].mxu0
        %v8359 = vpop.f32.mrb[0].mxu0
        %v8360 = vadd.f32 0.0, %v8359
        %v8361 = vpop.f32.mrb[0].mxu0
        %8362 = vmatprep.mubr.bf16.mxu0 0
        %8363 = vmatmul.mubr.bf16.gmra.mrb[0].mxu0 %v8250
        %v8364 = vpop.f32.mrb[0].mxu0
        %v8365 = vadd.f32 0.0, %v8364
        %v8366 = vpop.f32.mrb[0].mxu0
        %v8367 = vpop.f32.mrb[0].mxu0
        %v8368 = vadd.f32 0.0, %v8367
        %v8369 = vpop.f32.mrb[0].mxu0
        %8370 = vmatprep.mubr.bf16.mxu0 0
        %8371 = vmatmul.mubr.bf16.gmra.mrb[0].mxu0 %v8252
        %v8372 = vpop.f32.mrb[0].mxu0
        %v8373 = vadd.f32 0.0, %v8372
        %v8374 = vpop.f32.mrb[0].mxu0
        %v8375 = vpop.f32.mrb[0].mxu0
        %v8376 = vadd.f32 0.0, %v8375
        %v8377 = vpop.f32.mrb[0].mxu0
        %8378 = vmatprep.mubr.bf16.mxu0 0
        %8379 = vmatmul.mubr.bf16.gmra.mrb[0].mxu0 %v8254
        %v8380 = vpop.f32.mrb[0].mxu0
        %v8381 = vadd.f32 0.0, %v8380
        %v8382 = vpop.f32.mrb[0].mxu0
        %v8383 = vpop.f32.mrb[0].mxu0
        %v8384 = vadd.f32 0.0, %v8383
        %v8385 = vpop.f32.mrb[0].mxu0
        %8386 = vmatprep.mubr.bf16.mxu0 0
        %8387 = vmatmul.mubr.bf16.gmra.mrb[0].mxu0 %v8256
        %v8388 = vpop.f32.mrb[0].mxu0
        %v8389 = vadd.f32 0.0, %v8388
        %v8390 = vpop.f32.mrb[0].mxu0
        %v8391 = vpop.f32.mrb[0].mxu0
        %v8392 = vadd.f32 0.0, %v8391
        %v8393 = vpop.f32.mrb[0].mxu0
        %8394 = vmatprep.mubr.bf16.mxu0 0
        %8395 = vmatmul.mubr.bf16.gmra.mrb[0].mxu0 %v8258
        %v8396 = vpop.f32.mrb[0].mxu0
        %v8397 = vadd.f32 0.0, %v8396
        %v8398 = vpop.f32.mrb[0].mxu0
        %v8399 = vpop.f32.mrb[0].mxu0
        %v8400 = vadd.f32 0.0, %v8399
        %v8401 = vpop.f32.mrb[0].mxu0
        %8402 = vmatprep.mubr.bf16.mxu0 0
        %8403 = vmatmul.mubr.bf16.gmra.mrb[0].mxu0 %v8260
        %v8404 = vpop.f32.mrb[0].mxu0
        %v8405 = vadd.f32 0.0, %v8404
        %v8406 = vpop.f32.mrb[0].mxu0
        %v8407 = vpop.f32.mrb[0].mxu0
        %v8408 = vadd.f32 0.0, %v8407
        %v8409 = vpop.f32.mrb[0].mxu0
        %8410 = vmatprep.mubr.bf16.mxu0 0
        %8411 = vmatmul.mubr.bf16.gmra.mrb[0].mxu0 %v8262
        %v8412 = vpop.f32.mrb[0].mxu0
        %v8413 = vadd.f32 0.0, %v8412
        %v8414 = vpop.f32.mrb[0].mxu0
        %v8415 = vpop.f32.mrb[0].mxu0
        %v8416 = vadd.f32 0.0, %v8415
        %v8417 = vpop.f32.mrb[0].mxu0
        %8418 = vmatprep.mubr.bf16.mxu0 0
        %8419 = vmatmul.mubr.bf16.gmra.mrb[0].mxu0 %v8264
        %v8420 = vpop.f32.mrb[0].mxu0
        %v8421 = vadd.f32 0.0, %v8420
        %v8422 = vpop.f32.mrb[0].mxu0
        %v8423 = vpop.f32.mrb[0].mxu0
        %v8424 = vadd.f32 0.0, %v8423
        %v8425 = vpop.f32.mrb[0].mxu0
        %8426 = vdwg.mxu0
        %v8427 = vadd.f32 %v8207, %v8357
        %v8428 = vadd.f32 %v8208, %v8360
        %v8429 = vadd.f32 %v8209, %v8365
        %v8430 = vadd.f32 %v8210, %v8368
        %v8431 = vadd.f32 %v8211, %v8373
        %v8432 = vadd.f32 %v8212, %v8376
        %v8433 = vadd.f32 %v8213, %v8381
        %v8434 = vadd.f32 %v8214, %v8384
        %v8435 = vadd.f32 %v8215, %v8389
        %v8436 = vadd.f32 %v8216, %v8392
        %v8437 = vadd.f32 %v8217, %v8397
        %v8438 = vadd.f32 %v8218, %v8400
        %v8439 = vadd.f32 %v8219, %v8405
        %v8440 = vadd.f32 %v8220, %v8408
        %v8441 = vadd.f32 %v8221, %v8413
        %v8442 = vadd.f32 %v8222, %v8416
        %v8443 = vadd.f32 %v8223, %v8421
        %v8444 = vadd.f32 %v8224, %v8424
        %v8445 = vld [vmem:[%s237 + $0x13] sm:$0xff]
        %v8446 = vld [vmem:[%s237 + $0x1b] sm:$0xff]
        %v8447 = vld [vmem:[%s237 + $0x23] sm:$0xff]
        %v8448 = vld [vmem:[%s237 + $0x2b] sm:$0xff]
        %v8449 = vld [vmem:[%s237 + $0x33] sm:$0xff]
        %v8450 = vld [vmem:[%s237 + $0x3b] sm:$0xff]
        %v8451 = vld [vmem:[%s237 + $0x43] sm:$0xff]
        %v8452 = vld [vmem:[%s237 + $0x4b] sm:$0xff]
        %v8453 = vld [vmem:[%s237 + $0x53] sm:$0xff]
        %v8454 = vld [vmem:[%s237 + $0x5b] sm:$0xff]
        %v8455 = vld [vmem:[%s237 + $0x63] sm:$0xff]
        %v8456 = vld [vmem:[%s237 + $0x6b] sm:$0xff]
        %v8457 = vld [vmem:[%s237 + $0x73] sm:$0xff]
        %v8458 = vld [vmem:[%s237 + $0x7b] sm:$0xff]
        %v8459 = vld [vmem:[%s237 + $0x83] sm:$0xff]
        %v8460 = vld [vmem:[%s237 + $0x8b] sm:$0xff]
        %v8461 = vld [vmem:[%s237 + $0x93] sm:$0xff]
        %v8462 = vld [vmem:[%s237 + $0x9b] sm:$0xff]
        %v8464 = vlaneseq
        %v8465 = vshrl.u32 %v8464, 7
        %v8466 = vsub.s32 0, %v8465
        %v8467 = vrot.slane %v862, %v8466
        %v8469 = vadd.f32 %v8427, %v8467
        %v8470 = vadd.f32 %v8428, %v8467
        %v8471 = vadd.f32 %v8429, %v8467
        %v8472 = vadd.f32 %v8430, %v8467
        %v8473 = vadd.f32 %v8431, %v8467
        %v8474 = vadd.f32 %v8432, %v8467
        %v8475 = vadd.f32 %v8433, %v8467
        %v8476 = vadd.f32 %v8434, %v8467
        %v8477 = vadd.f32 %v8435, %v8467
        %v8478 = vadd.f32 %v8436, %v8467
        %v8479 = vadd.f32 %v8437, %v8467
        %v8480 = vadd.f32 %v8438, %v8467
        %v8481 = vadd.f32 %v8439, %v8467
        %v8482 = vadd.f32 %v8440, %v8467
        %v8483 = vadd.f32 %v8441, %v8467
        %v8484 = vadd.f32 %v8442, %v8467
        %v8485 = vadd.f32 %v8443, %v8467
        %v8486 = vadd.f32 %v8444, %v8467
        %v8487 = vadd.f32 %v8469, %v8445
        %v8488 = vadd.f32 %v8470, %v8446
        %v8489 = vadd.f32 %v8471, %v8447
        %v8490 = vadd.f32 %v8472, %v8448
        %v8491 = vadd.f32 %v8473, %v8449
        %v8492 = vadd.f32 %v8474, %v8450
        %v8493 = vadd.f32 %v8475, %v8451
        %v8494 = vadd.f32 %v8476, %v8452
        %v8495 = vadd.f32 %v8477, %v8453
        %v8496 = vadd.f32 %v8478, %v8454
        %v8497 = vadd.f32 %v8479, %v8455
        %v8498 = vadd.f32 %v8480, %v8456
        %v8499 = vadd.f32 %v8481, %v8457
        %v8500 = vadd.f32 %v8482, %v8458
        %v8501 = vadd.f32 %v8483, %v8459
        %v8502 = vadd.f32 %v8484, %v8460
        %v8503 = vadd.f32 %v8485, %v8461
        %v8504 = vadd.f32 %v8486, %v8462
        %v8505 = vmax.f32 %v8487, 0.0
        %v8506 = vmax.f32 %v8488, 0.0
        %v8507 = vmax.f32 %v8489, 0.0
        %v8508 = vmax.f32 %v8490, 0.0
        %v8509 = vmax.f32 %v8491, 0.0
        %v8510 = vmax.f32 %v8492, 0.0
        %v8511 = vmax.f32 %v8493, 0.0
        %v8512 = vmax.f32 %v8494, 0.0
        %v8513 = vmax.f32 %v8495, 0.0
        %v8514 = vmax.f32 %v8496, 0.0
        %v8515 = vmax.f32 %v8497, 0.0
        %v8516 = vmax.f32 %v8498, 0.0
        %v8517 = vmax.f32 %v8499, 0.0
        %v8518 = vmax.f32 %v8500, 0.0
        %v8519 = vmax.f32 %v8501, 0.0
        %v8520 = vmax.f32 %v8502, 0.0
        %v8521 = vmax.f32 %v8503, 0.0
        %v8522 = vmax.f32 %v8504, 0.0
        %8523 = vst [vmem:[%s271] sm:$0xff] %v8505
        %8524 = vst [vmem:[%s271 + $0x8] sm:$0xff] %v8506
        %8525 = vst [vmem:[%s271 + $0x10] sm:$0xff] %v8507
        %8526 = vst [vmem:[%s271 + $0x18] sm:$0xff] %v8508
        %8527 = vst [vmem:[%s271 + $0x20] sm:$0xff] %v8509
        %8528 = vst [vmem:[%s271 + $0x28] sm:$0xff] %v8510
        %8529 = vst [vmem:[%s271 + $0x30] sm:$0xff] %v8511
        %8530 = vst [vmem:[%s271 + $0x38] sm:$0xff] %v8512
        %8531 = vst [vmem:[%s271 + $0x40] sm:$0xff] %v8513
        %8532 = vst [vmem:[%s271 + $0x48] sm:$0xff] %v8514
        %8533 = vst [vmem:[%s271 + $0x50] sm:$0xff] %v8515
        %8534 = vst [vmem:[%s271 + $0x58] sm:$0xff] %v8516
        %8535 = vst [vmem:[%s271 + $0x60] sm:$0xff] %v8517
        %8536 = vst [vmem:[%s271 + $0x68] sm:$0xff] %v8518
        %8537 = vst [vmem:[%s271 + $0x70] sm:$0xff] %v8519
        %8538 = vst [vmem:[%s271 + $0x78] sm:$0xff] %v8520
        %8539 = vst [vmem:[%s271 + $0x80] sm:$0xff] %v8521
        %8540 = vst [vmem:[%s271 + $0x88] sm:$0xff] %v8522
        %v8541 = vld [vmem:[#allocation3 + $0x48] sm:$0xf]
        %v8542 = vld [vmem:[#allocation3 + $0x4c] sm:$0xf]
        %v8543 = vld [vmem:[#allocation3 + $0x50] sm:$0xf]
        %v8544 = vld [vmem:[#allocation3 + $0x54] sm:$0xf]
        %v8545 = vld [vmem:[#allocation3 + $0x58] sm:$0xf]
        %v8546 = vld [vmem:[#allocation3 + $0x5c] sm:$0xf]
        %v8547 = vld [vmem:[#allocation3 + $0x60] sm:$0xf]
        %v8548 = vld [vmem:[#allocation3 + $0x64] sm:$0xf]
        %v8549 = vld [vmem:[#allocation3 + $0x68] sm:$0xf]
        %v8550 = vld [vmem:[#allocation3 + $0x6c] sm:$0xf]
        %v8551 = vld [vmem:[#allocation3 + $0x70] sm:$0xf]
        %v8552 = vld [vmem:[#allocation3 + $0x74] sm:$0xf]
        %v8553 = vld [vmem:[#allocation3 + $0x78] sm:$0xf]
        %v8554 = vld [vmem:[#allocation3 + $0x7c] sm:$0xf]
        %v8555 = vld [vmem:[#allocation3 + $0x80] sm:$0xf]
        %v8556 = vld [vmem:[#allocation3 + $0x84] sm:$0xf]
        %v8557 = vld [vmem:[#allocation3 + $0x88] sm:$0xf]
        %v8558 = vld [vmem:[#allocation3 + $0x8c] sm:$0xf]
        %v8559 = vld [vmem:[#allocation9] sm:$0xf]
        %v8560 = vld [vmem:[#allocation9 + $0x4] sm:$0xf]
        %v8561 = vld [vmem:[#allocation9 + $0x8] sm:$0xf]
        %v8562 = vld [vmem:[#allocation9 + $0xc] sm:$0xf]
        %v8563 = vld [vmem:[#allocation9 + $0x10] sm:$0xf]
        %v8564 = vld [vmem:[#allocation9 + $0x14] sm:$0xf]
        %v8565 = vld [vmem:[#allocation9 + $0x18] sm:$0xf]
        %v8566 = vld [vmem:[#allocation9 + $0x1c] sm:$0xf]
        %v8567 = vld [vmem:[#allocation9 + $0x20] sm:$0xf]
        %v8568 = vld [vmem:[#allocation9 + $0x24] sm:$0xf]
        %v8569 = vld [vmem:[#allocation9 + $0x28] sm:$0xf]
        %v8570 = vld [vmem:[#allocation9 + $0x2c] sm:$0xf]
        %v8571 = vld [vmem:[#allocation9 + $0x30] sm:$0xf]
        %v8572 = vld [vmem:[#allocation9 + $0x34] sm:$0xf]
        %v8573 = vld [vmem:[#allocation9 + $0x38] sm:$0xf]
        %v8574 = vld [vmem:[#allocation9 + $0x3c] sm:$0xf]
        %v8575 = vld [vmem:[#allocation3 + $0x90] sm:$0x1]
        %v8576 = vld [vmem:[%s6174] sm:$0xf]
        %v8577 = vld [vmem:[%s6174 + $0x4] sm:$0xf]
        %v8578 = vld [vmem:[%s6174 + $0x8] sm:$0xf]
        %v8579 = vld [vmem:[%s6174 + $0xc] sm:$0xf]
        %v8580 = vld [vmem:[%s6174 + $0x10] sm:$0xf]
        %v8581 = vld [vmem:[%s6174 + $0x14] sm:$0xf]
        %v8582 = vld [vmem:[%s6174 + $0x18] sm:$0xf]
        %v8583 = vld [vmem:[%s6174 + $0x1c] sm:$0xf]
        %v8584 = vld [vmem:[%s6174 + $0x20] sm:$0xf]
        %v8585 = vld [vmem:[%s6174 + $0x24] sm:$0xf]
        %v8586 = vld [vmem:[%s6174 + $0x28] sm:$0xf]
        %v8587 = vld [vmem:[%s6174 + $0x2c] sm:$0xf]
        %v8588 = vld [vmem:[%s6174 + $0x30] sm:$0xf]
        %v8589 = vld [vmem:[%s6174 + $0x34] sm:$0xf]
        %v8590 = vld [vmem:[%s6174 + $0x38] sm:$0xf]
        %v8591 = vld [vmem:[%s6174 + $0x3c] sm:$0xf]
        %v8611 = vunpack.c.l.b16 %v8541
        %v8612 = vunpack.c.l.b16 %v8542
        %v8613 = vunpack.c.l.b16 %v8543
        %v8614 = vunpack.c.l.b16 %v8544
        %v8615 = vunpack.c.l.b16 %v8545
        %v8616 = vunpack.c.l.b16 %v8546
        %v8617 = vunpack.c.l.b16 %v8547
        %v8618 = vunpack.c.l.b16 %v8548
        %v8619 = vunpack.c.l.b16 %v8549
        %v8620 = vunpack.c.l.b16 %v8550
        %v8621 = vunpack.c.l.b16 %v8551
        %v8622 = vunpack.c.l.b16 %v8552
        %v8623 = vunpack.c.l.b16 %v8553
        %v8624 = vunpack.c.l.b16 %v8554
        %v8625 = vunpack.c.l.b16 %v8555
        %v8626 = vunpack.c.l.b16 %v8556
        %v8627 = vunpack.c.l.b16 %v8557
        %v8628 = vunpack.c.l.b16 %v8558
        %v8629 = vunpack.c.l.b16 %v8575
        %v8630 = vpack.c.b16 %v8612, %v8611
        %v8631 = vpack.c.b16 %v8614, %v8613
        %v8632 = vpack.c.b16 %v8616, %v8615
        %v8633 = vpack.c.b16 %v8618, %v8617
        %v8634 = vpack.c.b16 %v8620, %v8619
        %v8635 = vpack.c.b16 %v8622, %v8621
        %v8636 = vpack.c.b16 %v8624, %v8623
        %v8637 = vpack.c.b16 %v8626, %v8625
        %v8638 = vpack.c.b16 %v8628, %v8627
        %v8639 = vpack.c.b16 %v8629, %v8629
        %v8641 = vshrl.u32 %v8630, 16
        %v8643 = vshll.u32 %v8630, 16
        %v8645 = vrot.slane %v8643, 1
        %v8646 = vor.u32 %v8641, %v8645
        %v8648 = vshll.u32 %v8631, 16
        %v8650 = vrot.slane %v8648, 1
        %v8651 = vsel %vm963, %v8646, %v8650
        %v8652 = vshrl.u32 %v8631, 16
        %v8654 = vor.u32 %v8652, %v8650
        %v8656 = vshll.u32 %v8632, 16
        %v8658 = vrot.slane %v8656, 1
        %v8659 = vsel %vm963, %v8654, %v8658
        %v8660 = vshrl.u32 %v8632, 16
        %v8662 = vor.u32 %v8660, %v8658
        %v8664 = vshll.u32 %v8633, 16
        %v8666 = vrot.slane %v8664, 1
        %v8667 = vsel %vm963, %v8662, %v8666
        %v8668 = vshrl.u32 %v8633, 16
        %v8670 = vor.u32 %v8668, %v8666
        %v8672 = vshll.u32 %v8634, 16
        %v8674 = vrot.slane %v8672, 1
        %v8675 = vsel %vm963, %v8670, %v8674
        %v8676 = vshrl.u32 %v8634, 16
        %v8678 = vor.u32 %v8676, %v8674
        %v8680 = vshll.u32 %v8635, 16
        %v8682 = vrot.slane %v8680, 1
        %v8683 = vsel %vm963, %v8678, %v8682
        %v8684 = vshrl.u32 %v8635, 16
        %v8686 = vor.u32 %v8684, %v8682
        %v8688 = vshll.u32 %v8636, 16
        %v8690 = vrot.slane %v8688, 1
        %v8691 = vsel %vm963, %v8686, %v8690
        %v8692 = vshrl.u32 %v8636, 16
        %v8694 = vor.u32 %v8692, %v8690
        %v8696 = vshll.u32 %v8637, 16
        %v8698 = vrot.slane %v8696, 1
        %v8699 = vsel %vm963, %v8694, %v8698
        %v8700 = vshrl.u32 %v8637, 16
        %v8702 = vor.u32 %v8700, %v8698
        %v8704 = vshll.u32 %v8638, 16
        %v8706 = vrot.slane %v8704, 1
        %v8707 = vsel %vm963, %v8702, %v8706
        %v8708 = vshrl.u32 %v8638, 16
        %v8710 = vor.u32 %v8708, %v8706
        %v8712 = vshll.u32 %v8639, 16
        %v8714 = vrot.slane %v8712, 1
        %v8715 = vsel %vm963, %v8710, %v8714
        %v8741 = vunpack.c.l.b16 %v8576
        %v8742 = vunpack.c.l.b16 %v8577
        %v8743 = vunpack.c.l.b16 %v8578
        %v8744 = vunpack.c.l.b16 %v8579
        %v8745 = vunpack.c.l.b16 %v8580
        %v8746 = vunpack.c.l.b16 %v8581
        %v8747 = vunpack.c.l.b16 %v8582
        %v8748 = vunpack.c.l.b16 %v8583
        %v8749 = vunpack.c.l.b16 %v8584
        %v8750 = vunpack.c.l.b16 %v8585
        %v8751 = vunpack.c.l.b16 %v8586
        %v8752 = vunpack.c.l.b16 %v8587
        %v8753 = vunpack.c.l.b16 %v8588
        %v8754 = vunpack.c.l.b16 %v8589
        %v8755 = vunpack.c.l.b16 %v8590
        %v8756 = vunpack.c.l.b16 %v8591
        %v8757 = vpack.c.b16 %v8742, %v8741
        %v8758 = vpack.c.b16 %v8744, %v8743
        %v8759 = vpack.c.b16 %v8746, %v8745
        %v8760 = vpack.c.b16 %v8748, %v8747
        %v8761 = vpack.c.b16 %v8750, %v8749
        %v8762 = vpack.c.b16 %v8752, %v8751
        %v8763 = vpack.c.b16 %v8754, %v8753
        %v8764 = vpack.c.b16 %v8756, %v8755
        %8773 = vmatprep.subr.bf16.mxu0 0
        %8774 = vmatpush1.bf16.msra.mxu0 %v8757
        %8775 = vmatprep.subr.bf16.mxu0 0
        %8776 = vmatpush1.bf16.msra.mxu0 %v8758
        %8777 = vmatprep.subr.bf16.mxu0 0
        %8778 = vmatpush1.bf16.msra.mxu0 %v8759
        %8779 = vmatprep.subr.bf16.mxu0 0
        %8780 = vmatpush1.bf16.msra.mxu0 %v8760
        %8781 = vmatprep.subr.bf16.mxu0 0
        %8782 = vmatpush1.bf16.msra.mxu0 %v8761
        %8783 = vmatprep.subr.bf16.mxu0 0
        %8784 = vmatpush1.bf16.msra.mxu0 %v8762
        %8785 = vmatprep.subr.bf16.mxu0 0
        %8786 = vmatpush1.bf16.msra.mxu0 %v8763
        %8787 = vmatprep.subr.bf16.mxu0 0
        %8788 = vmatpush1.bf16.msra.mxu0 %v8764
        %8789 = vmatprep.subr.bf16.mxu0 0
        %8790 = vmatpush1.bf16.msra.mxu0 0
        %8791 = vmatprep.subr.bf16.mxu0 0
        %8792 = vmatpush1.bf16.msra.mxu0 0
        %8793 = vmatprep.subr.bf16.mxu0 0
        %8794 = vmatpush1.bf16.msra.mxu0 0
        %8795 = vmatprep.subr.bf16.mxu0 0
        %8796 = vmatpush1.bf16.msra.mxu0 0
        %8797 = vmatprep.subr.bf16.mxu0 0
        %8798 = vmatpush1.bf16.msra.mxu0 0
        %8799 = vmatprep.subr.bf16.mxu0 0
        %8800 = vmatpush1.bf16.msra.mxu0 0
        %8801 = vmatprep.subr.bf16.mxu0 0
        %8802 = vmatpush1.bf16.msra.mxu0 0
        %8803 = vmatprep.subr.bf16.mxu0 0
        %8804 = vmatpush1.bf16.msra.mxu0 0
        %8805 = vmatprep.mubr.bf16.mxu0 0
        %8806 = vmatmul.mubr.bf16.gmra.mrb[0].mxu0 %v8651
        %v8807 = vpop.f32.mrb[0].mxu0
        %v8808 = vadd.f32 0.0, %v8807
        %v8809 = vpop.f32.mrb[0].mxu0
        %v8810 = vpop.f32.mrb[0].mxu0
        %v8811 = vadd.f32 0.0, %v8810
        %v8812 = vpop.f32.mrb[0].mxu0
        %8813 = vmatprep.mubr.bf16.mxu0 0
        %8814 = vmatmul.mubr.bf16.gmra.mrb[0].mxu0 %v8659
        %v8815 = vpop.f32.mrb[0].mxu0
        %v8816 = vadd.f32 0.0, %v8815
        %v8817 = vpop.f32.mrb[0].mxu0
        %v8818 = vpop.f32.mrb[0].mxu0
        %v8819 = vadd.f32 0.0, %v8818
        %v8820 = vpop.f32.mrb[0].mxu0
        %8821 = vmatprep.mubr.bf16.mxu0 0
        %8822 = vmatmul.mubr.bf16.gmra.mrb[0].mxu0 %v8667
        %v8823 = vpop.f32.mrb[0].mxu0
        %v8824 = vadd.f32 0.0, %v8823
        %v8825 = vpop.f32.mrb[0].mxu0
        %v8826 = vpop.f32.mrb[0].mxu0
        %v8827 = vadd.f32 0.0, %v8826
        %v8828 = vpop.f32.mrb[0].mxu0
        %8829 = vmatprep.mubr.bf16.mxu0 0
        %8830 = vmatmul.mubr.bf16.gmra.mrb[0].mxu0 %v8675
        %v8831 = vpop.f32.mrb[0].mxu0
        %v8832 = vadd.f32 0.0, %v8831
        %v8833 = vpop.f32.mrb[0].mxu0
        %v8834 = vpop.f32.mrb[0].mxu0
        %v8835 = vadd.f32 0.0, %v8834
        %v8836 = vpop.f32.mrb[0].mxu0
        %8837 = vmatprep.mubr.bf16.mxu0 0
        %8838 = vmatmul.mubr.bf16.gmra.mrb[0].mxu0 %v8683
        %v8839 = vpop.f32.mrb[0].mxu0
        %v8840 = vadd.f32 0.0, %v8839
        %v8841 = vpop.f32.mrb[0].mxu0
        %v8842 = vpop.f32.mrb[0].mxu0
        %v8843 = vadd.f32 0.0, %v8842
        %v8844 = vpop.f32.mrb[0].mxu0
        %8845 = vmatprep.mubr.bf16.mxu0 0
        %8846 = vmatmul.mubr.bf16.gmra.mrb[0].mxu0 %v8691
        %v8847 = vpop.f32.mrb[0].mxu0
        %v8848 = vadd.f32 0.0, %v8847
        %v8849 = vpop.f32.mrb[0].mxu0
        %v8850 = vpop.f32.mrb[0].mxu0
        %v8851 = vadd.f32 0.0, %v8850
        %v8852 = vpop.f32.mrb[0].mxu0
        %8853 = vmatprep.mubr.bf16.mxu0 0
        %8854 = vmatmul.mubr.bf16.gmra.mrb[0].mxu0 %v8699
        %v8855 = vpop.f32.mrb[0].mxu0
        %v8856 = vadd.f32 0.0, %v8855
        %v8857 = vpop.f32.mrb[0].mxu0
        %v8858 = vpop.f32.mrb[0].mxu0
        %v8859 = vadd.f32 0.0, %v8858
        %v8860 = vpop.f32.mrb[0].mxu0
        %8861 = vmatprep.mubr.bf16.mxu0 0
        %8862 = vmatmul.mubr.bf16.gmra.mrb[0].mxu0 %v8707
        %v8863 = vpop.f32.mrb[0].mxu0
        %v8864 = vadd.f32 0.0, %v8863
        %v8865 = vpop.f32.mrb[0].mxu0
        %v8866 = vpop.f32.mrb[0].mxu0
        %v8867 = vadd.f32 0.0, %v8866
        %v8868 = vpop.f32.mrb[0].mxu0
        %8869 = vmatprep.mubr.bf16.mxu0 0
        %8870 = vmatmul.mubr.bf16.gmra.mrb[0].mxu0 %v8715
        %v8871 = vpop.f32.mrb[0].mxu0
        %v8872 = vadd.f32 0.0, %v8871
        %v8873 = vpop.f32.mrb[0].mxu0
        %v8874 = vpop.f32.mrb[0].mxu0
        %v8875 = vadd.f32 0.0, %v8874
        %v8876 = vpop.f32.mrb[0].mxu0
        %8877 = vdwg.mxu0
        %v8903 = vunpack.c.l.b16 %v8559
        %v8904 = vunpack.c.l.b16 %v8560
        %v8905 = vunpack.c.l.b16 %v8561
        %v8906 = vunpack.c.l.b16 %v8562
        %v8907 = vunpack.c.l.b16 %v8563
        %v8908 = vunpack.c.l.b16 %v8564
        %v8909 = vunpack.c.l.b16 %v8565
        %v8910 = vunpack.c.l.b16 %v8566
        %v8911 = vunpack.c.l.b16 %v8567
        %v8912 = vunpack.c.l.b16 %v8568
        %v8913 = vunpack.c.l.b16 %v8569
        %v8914 = vunpack.c.l.b16 %v8570
        %v8915 = vunpack.c.l.b16 %v8571
        %v8916 = vunpack.c.l.b16 %v8572
        %v8917 = vunpack.c.l.b16 %v8573
        %v8918 = vunpack.c.l.b16 %v8574
        %v8919 = vpack.c.b16 %v8904, %v8903
        %v8920 = vpack.c.b16 %v8906, %v8905
        %v8921 = vpack.c.b16 %v8908, %v8907
        %v8922 = vpack.c.b16 %v8910, %v8909
        %v8923 = vpack.c.b16 %v8912, %v8911
        %v8924 = vpack.c.b16 %v8914, %v8913
        %v8925 = vpack.c.b16 %v8916, %v8915
        %v8926 = vpack.c.b16 %v8918, %v8917
        %8935 = vmatprep.subr.bf16.mxu0 0
        %8936 = vmatpush1.bf16.msra.mxu0 %v8919
        %8937 = vmatprep.subr.bf16.mxu0 0
        %8938 = vmatpush1.bf16.msra.mxu0 %v8920
        %8939 = vmatprep.subr.bf16.mxu0 0
        %8940 = vmatpush1.bf16.msra.mxu0 %v8921
        %8941 = vmatprep.subr.bf16.mxu0 0
        %8942 = vmatpush1.bf16.msra.mxu0 %v8922
        %8943 = vmatprep.subr.bf16.mxu0 0
        %8944 = vmatpush1.bf16.msra.mxu0 %v8923
        %8945 = vmatprep.subr.bf16.mxu0 0
        %8946 = vmatpush1.bf16.msra.mxu0 %v8924
        %8947 = vmatprep.subr.bf16.mxu0 0
        %8948 = vmatpush1.bf16.msra.mxu0 %v8925
        %8949 = vmatprep.subr.bf16.mxu0 0
        %8950 = vmatpush1.bf16.msra.mxu0 %v8926
        %8951 = vmatprep.subr.bf16.mxu0 0
        %8952 = vmatpush1.bf16.msra.mxu0 0
        %8953 = vmatprep.subr.bf16.mxu0 0
        %8954 = vmatpush1.bf16.msra.mxu0 0
        %8955 = vmatprep.subr.bf16.mxu0 0
        %8956 = vmatpush1.bf16.msra.mxu0 0
        %8957 = vmatprep.subr.bf16.mxu0 0
        %8958 = vmatpush1.bf16.msra.mxu0 0
        %8959 = vmatprep.subr.bf16.mxu0 0
        %8960 = vmatpush1.bf16.msra.mxu0 0
        %8961 = vmatprep.subr.bf16.mxu0 0
        %8962 = vmatpush1.bf16.msra.mxu0 0
        %8963 = vmatprep.subr.bf16.mxu0 0
        %8964 = vmatpush1.bf16.msra.mxu0 0
        %8965 = vmatprep.subr.bf16.mxu0 0
        %8966 = vmatpush1.bf16.msra.mxu0 0
        %8967 = vmatprep.mubr.bf16.mxu0 0
        %8968 = vmatmul.mubr.bf16.gmra.mrb[0].mxu0 %v8630
        %v8969 = vpop.f32.mrb[0].mxu0
        %v8970 = vadd.f32 %v8808, %v8969
        %v8971 = vpop.f32.mrb[0].mxu0
        %v8972 = vpop.f32.mrb[0].mxu0
        %v8973 = vadd.f32 %v8811, %v8972
        %v8974 = vpop.f32.mrb[0].mxu0
        %8975 = vmatprep.mubr.bf16.mxu0 0
        %8976 = vmatmul.mubr.bf16.gmra.mrb[0].mxu0 %v8631
        %v8977 = vpop.f32.mrb[0].mxu0
        %v8978 = vadd.f32 %v8816, %v8977
        %v8979 = vpop.f32.mrb[0].mxu0
        %v8980 = vpop.f32.mrb[0].mxu0
        %v8981 = vadd.f32 %v8819, %v8980
        %v8982 = vpop.f32.mrb[0].mxu0
        %8983 = vmatprep.mubr.bf16.mxu0 0
        %8984 = vmatmul.mubr.bf16.gmra.mrb[0].mxu0 %v8632
        %v8985 = vpop.f32.mrb[0].mxu0
        %v8986 = vadd.f32 %v8824, %v8985
        %v8987 = vpop.f32.mrb[0].mxu0
        %v8988 = vpop.f32.mrb[0].mxu0
        %v8989 = vadd.f32 %v8827, %v8988
        %v8990 = vpop.f32.mrb[0].mxu0
        %8991 = vmatprep.mubr.bf16.mxu0 0
        %8992 = vmatmul.mubr.bf16.gmra.mrb[0].mxu0 %v8633
        %v8993 = vpop.f32.mrb[0].mxu0
        %v8994 = vadd.f32 %v8832, %v8993
        %v8995 = vpop.f32.mrb[0].mxu0
        %v8996 = vpop.f32.mrb[0].mxu0
        %v8997 = vadd.f32 %v8835, %v8996
        %v8998 = vpop.f32.mrb[0].mxu0
        %8999 = vmatprep.mubr.bf16.mxu0 0
        %9000 = vmatmul.mubr.bf16.gmra.mrb[0].mxu0 %v8634
        %v9001 = vpop.f32.mrb[0].mxu0
        %v9002 = vadd.f32 %v8840, %v9001
        %v9003 = vpop.f32.mrb[0].mxu0
        %v9004 = vpop.f32.mrb[0].mxu0
        %v9005 = vadd.f32 %v8843, %v9004
        %v9006 = vpop.f32.mrb[0].mxu0
        %9007 = vmatprep.mubr.bf16.mxu0 0
        %9008 = vmatmul.mubr.bf16.gmra.mrb[0].mxu0 %v8635
        %v9009 = vpop.f32.mrb[0].mxu0
        %v9010 = vadd.f32 %v8848, %v9009
        %v9011 = vpop.f32.mrb[0].mxu0
        %v9012 = vpop.f32.mrb[0].mxu0
        %v9013 = vadd.f32 %v8851, %v9012
        %v9014 = vpop.f32.mrb[0].mxu0
        %9015 = vmatprep.mubr.bf16.mxu0 0
        %9016 = vmatmul.mubr.bf16.gmra.mrb[0].mxu0 %v8636
        %v9017 = vpop.f32.mrb[0].mxu0
        %v9018 = vadd.f32 %v8856, %v9017
        %v9019 = vpop.f32.mrb[0].mxu0
        %v9020 = vpop.f32.mrb[0].mxu0
        %v9021 = vadd.f32 %v8859, %v9020
        %v9022 = vpop.f32.mrb[0].mxu0
        %9023 = vmatprep.mubr.bf16.mxu0 0
        %9024 = vmatmul.mubr.bf16.gmra.mrb[0].mxu0 %v8637
        %v9025 = vpop.f32.mrb[0].mxu0
        %v9026 = vadd.f32 %v8864, %v9025
        %v9027 = vpop.f32.mrb[0].mxu0
        %v9028 = vpop.f32.mrb[0].mxu0
        %v9029 = vadd.f32 %v8867, %v9028
        %v9030 = vpop.f32.mrb[0].mxu0
        %9031 = vmatprep.mubr.bf16.mxu0 0
        %9032 = vmatmul.mubr.bf16.gmra.mrb[0].mxu0 %v8638
        %v9033 = vpop.f32.mrb[0].mxu0
        %v9034 = vadd.f32 %v8872, %v9033
        %v9035 = vpop.f32.mrb[0].mxu0
        %v9036 = vpop.f32.mrb[0].mxu0
        %v9037 = vadd.f32 %v8875, %v9036
        %v9038 = vpop.f32.mrb[0].mxu0
        %9039 = vdwg.mxu0
        %v9040 = vld [vmem:[#allocation3 + $0x48] sm:$0xe]
        %v9041 = vld [vmem:[%s6640] sm:$0xf]
        %v9042 = vld [vmem:[%s6640 + $0x4] sm:$0xf]
        %v9043 = vld [vmem:[%s6640 + $0x8] sm:$0xf]
        %v9044 = vld [vmem:[%s6640 + $0xc] sm:$0xf]
        %v9045 = vld [vmem:[%s6640 + $0x10] sm:$0xf]
        %v9046 = vld [vmem:[%s6640 + $0x14] sm:$0xf]
        %v9047 = vld [vmem:[%s6640 + $0x18] sm:$0xf]
        %v9048 = vld [vmem:[%s6640 + $0x1c] sm:$0xf]
        %v9049 = vld [vmem:[%s6640 + $0x20] sm:$0xf]
        %v9050 = vld [vmem:[%s6640 + $0x24] sm:$0xf]
        %v9051 = vld [vmem:[%s6640 + $0x28] sm:$0xf]
        %v9052 = vld [vmem:[%s6640 + $0x2c] sm:$0xf]
        %v9053 = vld [vmem:[%s6640 + $0x30] sm:$0xf]
        %v9054 = vld [vmem:[%s6640 + $0x34] sm:$0xf]
        %v9055 = vld [vmem:[%s6640 + $0x38] sm:$0xf]
        %v9056 = vld [vmem:[%s6640 + $0x3c] sm:$0xf]
        %v9058 = vunpack.c.l.b16 %v9040
        %v9059 = vpack.c.b16 %v8612, %v9058
        %v9060 = vrot.slane %v9059, 1
        %v9061 = vrot.slane %v8631, 1
        %v9062 = vsel %vm1385, %v9060, %v9061
        %v9063 = vrot.slane %v8632, 1
        %v9064 = vsel %vm1385, %v9061, %v9063
        %v9065 = vrot.slane %v8633, 1
        %v9066 = vsel %vm1385, %v9063, %v9065
        %v9067 = vrot.slane %v8634, 1
        %v9068 = vsel %vm1385, %v9065, %v9067
        %v9069 = vrot.slane %v8635, 1
        %v9070 = vsel %vm1385, %v9067, %v9069
        %v9071 = vrot.slane %v8636, 1
        %v9072 = vsel %vm1385, %v9069, %v9071
        %v9073 = vrot.slane %v8637, 1
        %v9074 = vsel %vm1385, %v9071, %v9073
        %v9075 = vrot.slane %v8638, 1
        %v9076 = vsel %vm1385, %v9073, %v9075
        %v9077 = vrot.slane %v8639, 1
        %v9078 = vsel %vm1385, %v9075, %v9077
        %v9104 = vunpack.c.l.b16 %v9041
        %v9105 = vunpack.c.l.b16 %v9042
        %v9106 = vunpack.c.l.b16 %v9043
        %v9107 = vunpack.c.l.b16 %v9044
        %v9108 = vunpack.c.l.b16 %v9045
        %v9109 = vunpack.c.l.b16 %v9046
        %v9110 = vunpack.c.l.b16 %v9047
        %v9111 = vunpack.c.l.b16 %v9048
        %v9112 = vunpack.c.l.b16 %v9049
        %v9113 = vunpack.c.l.b16 %v9050
        %v9114 = vunpack.c.l.b16 %v9051
        %v9115 = vunpack.c.l.b16 %v9052
        %v9116 = vunpack.c.l.b16 %v9053
        %v9117 = vunpack.c.l.b16 %v9054
        %v9118 = vunpack.c.l.b16 %v9055
        %v9119 = vunpack.c.l.b16 %v9056
        %v9120 = vpack.c.b16 %v9105, %v9104
        %v9121 = vpack.c.b16 %v9107, %v9106
        %v9122 = vpack.c.b16 %v9109, %v9108
        %v9123 = vpack.c.b16 %v9111, %v9110
        %v9124 = vpack.c.b16 %v9113, %v9112
        %v9125 = vpack.c.b16 %v9115, %v9114
        %v9126 = vpack.c.b16 %v9117, %v9116
        %v9127 = vpack.c.b16 %v9119, %v9118
        %9136 = vmatprep.subr.bf16.mxu0 0
        %9137 = vmatpush1.bf16.msra.mxu0 %v9120
        %9138 = vmatprep.subr.bf16.mxu0 0
        %9139 = vmatpush1.bf16.msra.mxu0 %v9121
        %9140 = vmatprep.subr.bf16.mxu0 0
        %9141 = vmatpush1.bf16.msra.mxu0 %v9122
        %9142 = vmatprep.subr.bf16.mxu0 0
        %9143 = vmatpush1.bf16.msra.mxu0 %v9123
        %9144 = vmatprep.subr.bf16.mxu0 0
        %9145 = vmatpush1.bf16.msra.mxu0 %v9124
        %9146 = vmatprep.subr.bf16.mxu0 0
        %9147 = vmatpush1.bf16.msra.mxu0 %v9125
        %9148 = vmatprep.subr.bf16.mxu0 0
        %9149 = vmatpush1.bf16.msra.mxu0 %v9126
        %9150 = vmatprep.subr.bf16.mxu0 0
        %9151 = vmatpush1.bf16.msra.mxu0 %v9127
        %9152 = vmatprep.subr.bf16.mxu0 0
        %9153 = vmatpush1.bf16.msra.mxu0 0
        %9154 = vmatprep.subr.bf16.mxu0 0
        %9155 = vmatpush1.bf16.msra.mxu0 0
        %9156 = vmatprep.subr.bf16.mxu0 0
        %9157 = vmatpush1.bf16.msra.mxu0 0
        %9158 = vmatprep.subr.bf16.mxu0 0
        %9159 = vmatpush1.bf16.msra.mxu0 0
        %9160 = vmatprep.subr.bf16.mxu0 0
        %9161 = vmatpush1.bf16.msra.mxu0 0
        %9162 = vmatprep.subr.bf16.mxu0 0
        %9163 = vmatpush1.bf16.msra.mxu0 0
        %9164 = vmatprep.subr.bf16.mxu0 0
        %9165 = vmatpush1.bf16.msra.mxu0 0
        %9166 = vmatprep.subr.bf16.mxu0 0
        %9167 = vmatpush1.bf16.msra.mxu0 0
        %9168 = vmatprep.mubr.bf16.mxu0 0
        %9169 = vmatmul.mubr.bf16.gmra.mrb[0].mxu0 %v9062
        %v9170 = vpop.f32.mrb[0].mxu0
        %v9171 = vadd.f32 0.0, %v9170
        %v9172 = vpop.f32.mrb[0].mxu0
        %v9173 = vpop.f32.mrb[0].mxu0
        %v9174 = vadd.f32 0.0, %v9173
        %v9175 = vpop.f32.mrb[0].mxu0
        %9176 = vmatprep.mubr.bf16.mxu0 0
        %9177 = vmatmul.mubr.bf16.gmra.mrb[0].mxu0 %v9064
        %v9178 = vpop.f32.mrb[0].mxu0
        %v9179 = vadd.f32 0.0, %v9178
        %v9180 = vpop.f32.mrb[0].mxu0
        %v9181 = vpop.f32.mrb[0].mxu0
        %v9182 = vadd.f32 0.0, %v9181
        %v9183 = vpop.f32.mrb[0].mxu0
        %9184 = vmatprep.mubr.bf16.mxu0 0
        %9185 = vmatmul.mubr.bf16.gmra.mrb[0].mxu0 %v9066
        %v9186 = vpop.f32.mrb[0].mxu0
        %v9187 = vadd.f32 0.0, %v9186
        %v9188 = vpop.f32.mrb[0].mxu0
        %v9189 = vpop.f32.mrb[0].mxu0
        %v9190 = vadd.f32 0.0, %v9189
        %v9191 = vpop.f32.mrb[0].mxu0
        %9192 = vmatprep.mubr.bf16.mxu0 0
        %9193 = vmatmul.mubr.bf16.gmra.mrb[0].mxu0 %v9068
        %v9194 = vpop.f32.mrb[0].mxu0
        %v9195 = vadd.f32 0.0, %v9194
        %v9196 = vpop.f32.mrb[0].mxu0
        %v9197 = vpop.f32.mrb[0].mxu0
        %v9198 = vadd.f32 0.0, %v9197
        %v9199 = vpop.f32.mrb[0].mxu0
        %9200 = vmatprep.mubr.bf16.mxu0 0
        %9201 = vmatmul.mubr.bf16.gmra.mrb[0].mxu0 %v9070
        %v9202 = vpop.f32.mrb[0].mxu0
        %v9203 = vadd.f32 0.0, %v9202
        %v9204 = vpop.f32.mrb[0].mxu0
        %v9205 = vpop.f32.mrb[0].mxu0
        %v9206 = vadd.f32 0.0, %v9205
        %v9207 = vpop.f32.mrb[0].mxu0
        %9208 = vmatprep.mubr.bf16.mxu0 0
        %9209 = vmatmul.mubr.bf16.gmra.mrb[0].mxu0 %v9072
        %v9210 = vpop.f32.mrb[0].mxu0
        %v9211 = vadd.f32 0.0, %v9210
        %v9212 = vpop.f32.mrb[0].mxu0
        %v9213 = vpop.f32.mrb[0].mxu0
        %v9214 = vadd.f32 0.0, %v9213
        %v9215 = vpop.f32.mrb[0].mxu0
        %9216 = vmatprep.mubr.bf16.mxu0 0
        %9217 = vmatmul.mubr.bf16.gmra.mrb[0].mxu0 %v9074
        %v9218 = vpop.f32.mrb[0].mxu0
        %v9219 = vadd.f32 0.0, %v9218
        %v9220 = vpop.f32.mrb[0].mxu0
        %v9221 = vpop.f32.mrb[0].mxu0
        %v9222 = vadd.f32 0.0, %v9221
        %v9223 = vpop.f32.mrb[0].mxu0
        %9224 = vmatprep.mubr.bf16.mxu0 0
        %9225 = vmatmul.mubr.bf16.gmra.mrb[0].mxu0 %v9076
        %v9226 = vpop.f32.mrb[0].mxu0
        %v9227 = vadd.f32 0.0, %v9226
        %v9228 = vpop.f32.mrb[0].mxu0
        %v9229 = vpop.f32.mrb[0].mxu0
        %v9230 = vadd.f32 0.0, %v9229
        %v9231 = vpop.f32.mrb[0].mxu0
        %9232 = vmatprep.mubr.bf16.mxu0 0
        %9233 = vmatmul.mubr.bf16.gmra.mrb[0].mxu0 %v9078
        %v9234 = vpop.f32.mrb[0].mxu0
        %v9235 = vadd.f32 0.0, %v9234
        %v9236 = vpop.f32.mrb[0].mxu0
        %v9237 = vpop.f32.mrb[0].mxu0
        %v9238 = vadd.f32 0.0, %v9237
        %v9239 = vpop.f32.mrb[0].mxu0
        %9240 = vdwg.mxu0
        %v9241 = vadd.f32 %v8970, %v9171
        %v9242 = vadd.f32 %v8973, %v9174
        %v9243 = vadd.f32 %v8978, %v9179
        %v9244 = vadd.f32 %v8981, %v9182
        %v9245 = vadd.f32 %v8986, %v9187
        %v9246 = vadd.f32 %v8989, %v9190
        %v9247 = vadd.f32 %v8994, %v9195
        %v9248 = vadd.f32 %v8997, %v9198
        %v9249 = vadd.f32 %v9002, %v9203
        %v9250 = vadd.f32 %v9005, %v9206
        %v9251 = vadd.f32 %v9010, %v9211
        %v9252 = vadd.f32 %v9013, %v9214
        %v9253 = vadd.f32 %v9018, %v9219
        %v9254 = vadd.f32 %v9021, %v9222
        %v9255 = vadd.f32 %v9026, %v9227
        %v9256 = vadd.f32 %v9029, %v9230
        %v9257 = vadd.f32 %v9034, %v9235
        %v9258 = vadd.f32 %v9037, %v9238
        %v9259 = vld [vmem:[#allocation3 + $0x50] sm:$0xe]
        %v9260 = vld [vmem:[#allocation3 + $0x54] sm:$0xf]
        %v9261 = vld [vmem:[#allocation3 + $0x58] sm:$0xf]
        %v9262 = vld [vmem:[#allocation3 + $0x5c] sm:$0xf]
        %v9263 = vld [vmem:[#allocation3 + $0x60] sm:$0xf]
        %v9264 = vld [vmem:[#allocation3 + $0x64] sm:$0xf]
        %v9265 = vld [vmem:[#allocation3 + $0x68] sm:$0xf]
        %v9266 = vld [vmem:[#allocation3 + $0x6c] sm:$0xf]
        %v9267 = vld [vmem:[#allocation3 + $0x70] sm:$0xf]
        %v9268 = vld [vmem:[#allocation3 + $0x74] sm:$0xf]
        %v9269 = vld [vmem:[#allocation3 + $0x78] sm:$0xf]
        %v9270 = vld [vmem:[#allocation3 + $0x7c] sm:$0xf]
        %v9271 = vld [vmem:[#allocation3 + $0x80] sm:$0xf]
        %v9272 = vld [vmem:[#allocation3 + $0x84] sm:$0xf]
        %v9273 = vld [vmem:[#allocation3 + $0x88] sm:$0xf]
        %v9274 = vld [vmem:[#allocation3 + $0x8c] sm:$0xf]
        %v9275 = vld [vmem:[#allocation3 + $0x90] sm:$0xf]
        %v9276 = vld [vmem:[#allocation3 + $0x94] sm:$0xf]
        %v9277 = vld [vmem:[#allocation3 + $0x98] sm:$0x1]
        %v9278 = vld [vmem:[%s6878] sm:$0xf]
        %v9279 = vld [vmem:[%s6878 + $0x4] sm:$0xf]
        %v9280 = vld [vmem:[%s6878 + $0x8] sm:$0xf]
        %v9281 = vld [vmem:[%s6878 + $0xc] sm:$0xf]
        %v9282 = vld [vmem:[%s6878 + $0x10] sm:$0xf]
        %v9283 = vld [vmem:[%s6878 + $0x14] sm:$0xf]
        %v9284 = vld [vmem:[%s6878 + $0x18] sm:$0xf]
        %v9285 = vld [vmem:[%s6878 + $0x1c] sm:$0xf]
        %v9286 = vld [vmem:[%s6878 + $0x20] sm:$0xf]
        %v9287 = vld [vmem:[%s6878 + $0x24] sm:$0xf]
        %v9288 = vld [vmem:[%s6878 + $0x28] sm:$0xf]
        %v9289 = vld [vmem:[%s6878 + $0x2c] sm:$0xf]
        %v9290 = vld [vmem:[%s6878 + $0x30] sm:$0xf]
        %v9291 = vld [vmem:[%s6878 + $0x34] sm:$0xf]
        %v9292 = vld [vmem:[%s6878 + $0x38] sm:$0xf]
        %v9293 = vld [vmem:[%s6878 + $0x3c] sm:$0xf]
        %v9313 = vunpack.c.l.b16 %v9259
        %v9314 = vunpack.c.l.b16 %v9260
        %v9315 = vunpack.c.l.b16 %v9261
        %v9316 = vunpack.c.l.b16 %v9262
        %v9317 = vunpack.c.l.b16 %v9263
        %v9318 = vunpack.c.l.b16 %v9264
        %v9319 = vunpack.c.l.b16 %v9265
        %v9320 = vunpack.c.l.b16 %v9266
        %v9321 = vunpack.c.l.b16 %v9267
        %v9322 = vunpack.c.l.b16 %v9268
        %v9323 = vunpack.c.l.b16 %v9269
        %v9324 = vunpack.c.l.b16 %v9270
        %v9325 = vunpack.c.l.b16 %v9271
        %v9326 = vunpack.c.l.b16 %v9272
        %v9327 = vunpack.c.l.b16 %v9273
        %v9328 = vunpack.c.l.b16 %v9274
        %v9329 = vunpack.c.l.b16 %v9275
        %v9330 = vunpack.c.l.b16 %v9276
        %v9331 = vunpack.c.l.b16 %v9277
        %v9332 = vpack.c.b16 %v9314, %v9313
        %v9333 = vpack.c.b16 %v9316, %v9315
        %v9334 = vpack.c.b16 %v9318, %v9317
        %v9335 = vpack.c.b16 %v9320, %v9319
        %v9336 = vpack.c.b16 %v9322, %v9321
        %v9337 = vpack.c.b16 %v9324, %v9323
        %v9338 = vpack.c.b16 %v9326, %v9325
        %v9339 = vpack.c.b16 %v9328, %v9327
        %v9340 = vpack.c.b16 %v9330, %v9329
        %v9341 = vpack.c.b16 %v9331, %v9331
        %v9342 = vrot.slane %v9332, 1
        %v9343 = vrot.slane %v9333, 1
        %v9344 = vsel %vm1385, %v9342, %v9343
        %v9345 = vrot.slane %v9334, 1
        %v9346 = vsel %vm1385, %v9343, %v9345
        %v9347 = vrot.slane %v9335, 1
        %v9348 = vsel %vm1385, %v9345, %v9347
        %v9349 = vrot.slane %v9336, 1
        %v9350 = vsel %vm1385, %v9347, %v9349
        %v9351 = vrot.slane %v9337, 1
        %v9352 = vsel %vm1385, %v9349, %v9351
        %v9353 = vrot.slane %v9338, 1
        %v9354 = vsel %vm1385, %v9351, %v9353
        %v9355 = vrot.slane %v9339, 1
        %v9356 = vsel %vm1385, %v9353, %v9355
        %v9357 = vrot.slane %v9340, 1
        %v9358 = vsel %vm1385, %v9355, %v9357
        %v9359 = vrot.slane %v9341, 1
        %v9360 = vsel %vm1385, %v9357, %v9359
        %v9386 = vunpack.c.l.b16 %v9278
        %v9387 = vunpack.c.l.b16 %v9279
        %v9388 = vunpack.c.l.b16 %v9280
        %v9389 = vunpack.c.l.b16 %v9281
        %v9390 = vunpack.c.l.b16 %v9282
        %v9391 = vunpack.c.l.b16 %v9283
        %v9392 = vunpack.c.l.b16 %v9284
        %v9393 = vunpack.c.l.b16 %v9285
        %v9394 = vunpack.c.l.b16 %v9286
        %v9395 = vunpack.c.l.b16 %v9287
        %v9396 = vunpack.c.l.b16 %v9288
        %v9397 = vunpack.c.l.b16 %v9289
        %v9398 = vunpack.c.l.b16 %v9290
        %v9399 = vunpack.c.l.b16 %v9291
        %v9400 = vunpack.c.l.b16 %v9292
        %v9401 = vunpack.c.l.b16 %v9293
        %v9402 = vpack.c.b16 %v9387, %v9386
        %v9403 = vpack.c.b16 %v9389, %v9388
        %v9404 = vpack.c.b16 %v9391, %v9390
        %v9405 = vpack.c.b16 %v9393, %v9392
        %v9406 = vpack.c.b16 %v9395, %v9394
        %v9407 = vpack.c.b16 %v9397, %v9396
        %v9408 = vpack.c.b16 %v9399, %v9398
        %v9409 = vpack.c.b16 %v9401, %v9400
        %9418 = vmatprep.subr.bf16.mxu0 0
        %9419 = vmatpush1.bf16.msra.mxu0 %v9402
        %9420 = vmatprep.subr.bf16.mxu0 0
        %9421 = vmatpush1.bf16.msra.mxu0 %v9403
        %9422 = vmatprep.subr.bf16.mxu0 0
        %9423 = vmatpush1.bf16.msra.mxu0 %v9404
        %9424 = vmatprep.subr.bf16.mxu0 0
        %9425 = vmatpush1.bf16.msra.mxu0 %v9405
        %9426 = vmatprep.subr.bf16.mxu0 0
        %9427 = vmatpush1.bf16.msra.mxu0 %v9406
        %9428 = vmatprep.subr.bf16.mxu0 0
        %9429 = vmatpush1.bf16.msra.mxu0 %v9407
        %9430 = vmatprep.subr.bf16.mxu0 0
        %9431 = vmatpush1.bf16.msra.mxu0 %v9408
        %9432 = vmatprep.subr.bf16.mxu0 0
        %9433 = vmatpush1.bf16.msra.mxu0 %v9409
        %9434 = vmatprep.subr.bf16.mxu0 0
        %9435 = vmatpush1.bf16.msra.mxu0 0
        %9436 = vmatprep.subr.bf16.mxu0 0
        %9437 = vmatpush1.bf16.msra.mxu0 0
        %9438 = vmatprep.subr.bf16.mxu0 0
        %9439 = vmatpush1.bf16.msra.mxu0 0
        %9440 = vmatprep.subr.bf16.mxu0 0
        %9441 = vmatpush1.bf16.msra.mxu0 0
        %9442 = vmatprep.subr.bf16.mxu0 0
        %9443 = vmatpush1.bf16.msra.mxu0 0
        %9444 = vmatprep.subr.bf16.mxu0 0
        %9445 = vmatpush1.bf16.msra.mxu0 0
        %9446 = vmatprep.subr.bf16.mxu0 0
        %9447 = vmatpush1.bf16.msra.mxu0 0
        %9448 = vmatprep.subr.bf16.mxu0 0
        %9449 = vmatpush1.bf16.msra.mxu0 0
        %9450 = vmatprep.mubr.bf16.mxu0 0
        %9451 = vmatmul.mubr.bf16.gmra.mrb[0].mxu0 %v9344
        %v9452 = vpop.f32.mrb[0].mxu0
        %v9453 = vadd.f32 0.0, %v9452
        %v9454 = vpop.f32.mrb[0].mxu0
        %v9455 = vpop.f32.mrb[0].mxu0
        %v9456 = vadd.f32 0.0, %v9455
        %v9457 = vpop.f32.mrb[0].mxu0
        %9458 = vmatprep.mubr.bf16.mxu0 0
        %9459 = vmatmul.mubr.bf16.gmra.mrb[0].mxu0 %v9346
        %v9460 = vpop.f32.mrb[0].mxu0
        %v9461 = vadd.f32 0.0, %v9460
        %v9462 = vpop.f32.mrb[0].mxu0
        %v9463 = vpop.f32.mrb[0].mxu0
        %v9464 = vadd.f32 0.0, %v9463
        %v9465 = vpop.f32.mrb[0].mxu0
        %9466 = vmatprep.mubr.bf16.mxu0 0
        %9467 = vmatmul.mubr.bf16.gmra.mrb[0].mxu0 %v9348
        %v9468 = vpop.f32.mrb[0].mxu0
        %v9469 = vadd.f32 0.0, %v9468
        %v9470 = vpop.f32.mrb[0].mxu0
        %v9471 = vpop.f32.mrb[0].mxu0
        %v9472 = vadd.f32 0.0, %v9471
        %v9473 = vpop.f32.mrb[0].mxu0
        %9474 = vmatprep.mubr.bf16.mxu0 0
        %9475 = vmatmul.mubr.bf16.gmra.mrb[0].mxu0 %v9350
        %v9476 = vpop.f32.mrb[0].mxu0
        %v9477 = vadd.f32 0.0, %v9476
        %v9478 = vpop.f32.mrb[0].mxu0
        %v9479 = vpop.f32.mrb[0].mxu0
        %v9480 = vadd.f32 0.0, %v9479
        %v9481 = vpop.f32.mrb[0].mxu0
        %9482 = vmatprep.mubr.bf16.mxu0 0
        %9483 = vmatmul.mubr.bf16.gmra.mrb[0].mxu0 %v9352
        %v9484 = vpop.f32.mrb[0].mxu0
        %v9485 = vadd.f32 0.0, %v9484
        %v9486 = vpop.f32.mrb[0].mxu0
        %v9487 = vpop.f32.mrb[0].mxu0
        %v9488 = vadd.f32 0.0, %v9487
        %v9489 = vpop.f32.mrb[0].mxu0
        %9490 = vmatprep.mubr.bf16.mxu0 0
        %9491 = vmatmul.mubr.bf16.gmra.mrb[0].mxu0 %v9354
        %v9492 = vpop.f32.mrb[0].mxu0
        %v9493 = vadd.f32 0.0, %v9492
        %v9494 = vpop.f32.mrb[0].mxu0
        %v9495 = vpop.f32.mrb[0].mxu0
        %v9496 = vadd.f32 0.0, %v9495
        %v9497 = vpop.f32.mrb[0].mxu0
        %9498 = vmatprep.mubr.bf16.mxu0 0
        %9499 = vmatmul.mubr.bf16.gmra.mrb[0].mxu0 %v9356
        %v9500 = vpop.f32.mrb[0].mxu0
        %v9501 = vadd.f32 0.0, %v9500
        %v9502 = vpop.f32.mrb[0].mxu0
        %v9503 = vpop.f32.mrb[0].mxu0
        %v9504 = vadd.f32 0.0, %v9503
        %v9505 = vpop.f32.mrb[0].mxu0
        %9506 = vmatprep.mubr.bf16.mxu0 0
        %9507 = vmatmul.mubr.bf16.gmra.mrb[0].mxu0 %v9358
        %v9508 = vpop.f32.mrb[0].mxu0
        %v9509 = vadd.f32 0.0, %v9508
        %v9510 = vpop.f32.mrb[0].mxu0
        %v9511 = vpop.f32.mrb[0].mxu0
        %v9512 = vadd.f32 0.0, %v9511
        %v9513 = vpop.f32.mrb[0].mxu0
        %9514 = vmatprep.mubr.bf16.mxu0 0
        %9515 = vmatmul.mubr.bf16.gmra.mrb[0].mxu0 %v9360
        %v9516 = vpop.f32.mrb[0].mxu0
        %v9517 = vadd.f32 0.0, %v9516
        %v9518 = vpop.f32.mrb[0].mxu0
        %v9519 = vpop.f32.mrb[0].mxu0
        %v9520 = vadd.f32 0.0, %v9519
        %v9521 = vpop.f32.mrb[0].mxu0
        %9522 = vdwg.mxu0
        %v9523 = vadd.f32 %v9241, %v9453
        %v9524 = vadd.f32 %v9242, %v9456
        %v9525 = vadd.f32 %v9243, %v9461
        %v9526 = vadd.f32 %v9244, %v9464
        %v9527 = vadd.f32 %v9245, %v9469
        %v9528 = vadd.f32 %v9246, %v9472
        %v9529 = vadd.f32 %v9247, %v9477
        %v9530 = vadd.f32 %v9248, %v9480
        %v9531 = vadd.f32 %v9249, %v9485
        %v9532 = vadd.f32 %v9250, %v9488
        %v9533 = vadd.f32 %v9251, %v9493
        %v9534 = vadd.f32 %v9252, %v9496
        %v9535 = vadd.f32 %v9253, %v9501
        %v9536 = vadd.f32 %v9254, %v9504
        %v9537 = vadd.f32 %v9255, %v9509
        %v9538 = vadd.f32 %v9256, %v9512
        %v9539 = vadd.f32 %v9257, %v9517
        %v9540 = vadd.f32 %v9258, %v9520
        %v9541 = vld [vmem:[#allocation3 + $0x98] sm:$0x3]
        %v9542 = vld [vmem:[%s7143] sm:$0xf]
        %v9543 = vld [vmem:[%s7143 + $0x4] sm:$0xf]
        %v9544 = vld [vmem:[%s7143 + $0x8] sm:$0xf]
        %v9545 = vld [vmem:[%s7143 + $0xc] sm:$0xf]
        %v9546 = vld [vmem:[%s7143 + $0x10] sm:$0xf]
        %v9547 = vld [vmem:[%s7143 + $0x14] sm:$0xf]
        %v9548 = vld [vmem:[%s7143 + $0x18] sm:$0xf]
        %v9549 = vld [vmem:[%s7143 + $0x1c] sm:$0xf]
        %v9550 = vld [vmem:[%s7143 + $0x20] sm:$0xf]
        %v9551 = vld [vmem:[%s7143 + $0x24] sm:$0xf]
        %v9552 = vld [vmem:[%s7143 + $0x28] sm:$0xf]
        %v9553 = vld [vmem:[%s7143 + $0x2c] sm:$0xf]
        %v9554 = vld [vmem:[%s7143 + $0x30] sm:$0xf]
        %v9555 = vld [vmem:[%s7143 + $0x34] sm:$0xf]
        %v9556 = vld [vmem:[%s7143 + $0x38] sm:$0xf]
        %v9557 = vld [vmem:[%s7143 + $0x3c] sm:$0xf]
        %v9559 = vunpack.c.l.b16 %v9541
        %v9560 = vpack.c.b16 %v9559, %v9559
        %v9562 = vshrl.u32 %v9332, 16
        %v9564 = vrot.slane %v9562, 1
        %v9565 = vshll.u32 %v9332, 16
        %v9567 = vrot.slane %v9565, 2
        %v9568 = vor.u32 %v9564, %v9567
        %v9570 = vshrl.u32 %v9333, 16
        %v9572 = vrot.slane %v9570, 1
        %v9573 = vshll.u32 %v9333, 16
        %v9575 = vrot.slane %v9573, 2
        %v9576 = vor.u32 %v9572, %v9575
        %v9577 = vsel %vm1889, %v9568, %v9576
        %v9579 = vshrl.u32 %v9334, 16
        %v9581 = vrot.slane %v9579, 1
        %v9582 = vshll.u32 %v9334, 16
        %v9584 = vrot.slane %v9582, 2
        %v9585 = vor.u32 %v9581, %v9584
        %v9586 = vsel %vm1889, %v9576, %v9585
        %v9588 = vshrl.u32 %v9335, 16
        %v9590 = vrot.slane %v9588, 1
        %v9591 = vshll.u32 %v9335, 16
        %v9593 = vrot.slane %v9591, 2
        %v9594 = vor.u32 %v9590, %v9593
        %v9595 = vsel %vm1889, %v9585, %v9594
        %v9597 = vshrl.u32 %v9336, 16
        %v9599 = vrot.slane %v9597, 1
        %v9600 = vshll.u32 %v9336, 16
        %v9602 = vrot.slane %v9600, 2
        %v9603 = vor.u32 %v9599, %v9602
        %v9604 = vsel %vm1889, %v9594, %v9603
        %v9606 = vshrl.u32 %v9337, 16
        %v9608 = vrot.slane %v9606, 1
        %v9609 = vshll.u32 %v9337, 16
        %v9611 = vrot.slane %v9609, 2
        %v9612 = vor.u32 %v9608, %v9611
        %v9613 = vsel %vm1889, %v9603, %v9612
        %v9615 = vshrl.u32 %v9338, 16
        %v9617 = vrot.slane %v9615, 1
        %v9618 = vshll.u32 %v9338, 16
        %v9620 = vrot.slane %v9618, 2
        %v9621 = vor.u32 %v9617, %v9620
        %v9622 = vsel %vm1889, %v9612, %v9621
        %v9624 = vshrl.u32 %v9339, 16
        %v9626 = vrot.slane %v9624, 1
        %v9627 = vshll.u32 %v9339, 16
        %v9629 = vrot.slane %v9627, 2
        %v9630 = vor.u32 %v9626, %v9629
        %v9631 = vsel %vm1889, %v9621, %v9630
        %v9633 = vshrl.u32 %v9340, 16
        %v9635 = vrot.slane %v9633, 1
        %v9636 = vshll.u32 %v9340, 16
        %v9638 = vrot.slane %v9636, 2
        %v9639 = vor.u32 %v9635, %v9638
        %v9640 = vsel %vm1889, %v9630, %v9639
        %v9642 = vshrl.u32 %v9560, 16
        %v9644 = vrot.slane %v9642, 1
        %v9645 = vshll.u32 %v9560, 16
        %v9647 = vrot.slane %v9645, 2
        %v9648 = vor.u32 %v9644, %v9647
        %v9649 = vsel %vm1889, %v9639, %v9648
        %v9675 = vunpack.c.l.b16 %v9542
        %v9676 = vunpack.c.l.b16 %v9543
        %v9677 = vunpack.c.l.b16 %v9544
        %v9678 = vunpack.c.l.b16 %v9545
        %v9679 = vunpack.c.l.b16 %v9546
        %v9680 = vunpack.c.l.b16 %v9547
        %v9681 = vunpack.c.l.b16 %v9548
        %v9682 = vunpack.c.l.b16 %v9549
        %v9683 = vunpack.c.l.b16 %v9550
        %v9684 = vunpack.c.l.b16 %v9551
        %v9685 = vunpack.c.l.b16 %v9552
        %v9686 = vunpack.c.l.b16 %v9553
        %v9687 = vunpack.c.l.b16 %v9554
        %v9688 = vunpack.c.l.b16 %v9555
        %v9689 = vunpack.c.l.b16 %v9556
        %v9690 = vunpack.c.l.b16 %v9557
        %v9691 = vpack.c.b16 %v9676, %v9675
        %v9692 = vpack.c.b16 %v9678, %v9677
        %v9693 = vpack.c.b16 %v9680, %v9679
        %v9694 = vpack.c.b16 %v9682, %v9681
        %v9695 = vpack.c.b16 %v9684, %v9683
        %v9696 = vpack.c.b16 %v9686, %v9685
        %v9697 = vpack.c.b16 %v9688, %v9687
        %v9698 = vpack.c.b16 %v9690, %v9689
        %9707 = vmatprep.subr.bf16.mxu0 0
        %9708 = vmatpush1.bf16.msra.mxu0 %v9691
        %9709 = vmatprep.subr.bf16.mxu0 0
        %9710 = vmatpush1.bf16.msra.mxu0 %v9692
        %9711 = vmatprep.subr.bf16.mxu0 0
        %9712 = vmatpush1.bf16.msra.mxu0 %v9693
        %9713 = vmatprep.subr.bf16.mxu0 0
        %9714 = vmatpush1.bf16.msra.mxu0 %v9694
        %9715 = vmatprep.subr.bf16.mxu0 0
        %9716 = vmatpush1.bf16.msra.mxu0 %v9695
        %9717 = vmatprep.subr.bf16.mxu0 0
        %9718 = vmatpush1.bf16.msra.mxu0 %v9696
        %9719 = vmatprep.subr.bf16.mxu0 0
        %9720 = vmatpush1.bf16.msra.mxu0 %v9697
        %9721 = vmatprep.subr.bf16.mxu0 0
        %9722 = vmatpush1.bf16.msra.mxu0 %v9698
        %9723 = vmatprep.subr.bf16.mxu0 0
        %9724 = vmatpush1.bf16.msra.mxu0 0
        %9725 = vmatprep.subr.bf16.mxu0 0
        %9726 = vmatpush1.bf16.msra.mxu0 0
        %9727 = vmatprep.subr.bf16.mxu0 0
        %9728 = vmatpush1.bf16.msra.mxu0 0
        %9729 = vmatprep.subr.bf16.mxu0 0
        %9730 = vmatpush1.bf16.msra.mxu0 0
        %9731 = vmatprep.subr.bf16.mxu0 0
        %9732 = vmatpush1.bf16.msra.mxu0 0
        %9733 = vmatprep.subr.bf16.mxu0 0
        %9734 = vmatpush1.bf16.msra.mxu0 0
        %9735 = vmatprep.subr.bf16.mxu0 0
        %9736 = vmatpush1.bf16.msra.mxu0 0
        %9737 = vmatprep.subr.bf16.mxu0 0
        %9738 = vmatpush1.bf16.msra.mxu0 0
        %9739 = vmatprep.mubr.bf16.mxu0 0
        %9740 = vmatmul.mubr.bf16.gmra.mrb[0].mxu0 %v9577
        %v9741 = vpop.f32.mrb[0].mxu0
        %v9742 = vadd.f32 0.0, %v9741
        %v9743 = vpop.f32.mrb[0].mxu0
        %v9744 = vpop.f32.mrb[0].mxu0
        %v9745 = vadd.f32 0.0, %v9744
        %v9746 = vpop.f32.mrb[0].mxu0
        %9747 = vmatprep.mubr.bf16.mxu0 0
        %9748 = vmatmul.mubr.bf16.gmra.mrb[0].mxu0 %v9586
        %v9749 = vpop.f32.mrb[0].mxu0
        %v9750 = vadd.f32 0.0, %v9749
        %v9751 = vpop.f32.mrb[0].mxu0
        %v9752 = vpop.f32.mrb[0].mxu0
        %v9753 = vadd.f32 0.0, %v9752
        %v9754 = vpop.f32.mrb[0].mxu0
        %9755 = vmatprep.mubr.bf16.mxu0 0
        %9756 = vmatmul.mubr.bf16.gmra.mrb[0].mxu0 %v9595
        %v9757 = vpop.f32.mrb[0].mxu0
        %v9758 = vadd.f32 0.0, %v9757
        %v9759 = vpop.f32.mrb[0].mxu0
        %v9760 = vpop.f32.mrb[0].mxu0
        %v9761 = vadd.f32 0.0, %v9760
        %v9762 = vpop.f32.mrb[0].mxu0
        %9763 = vmatprep.mubr.bf16.mxu0 0
        %9764 = vmatmul.mubr.bf16.gmra.mrb[0].mxu0 %v9604
        %v9765 = vpop.f32.mrb[0].mxu0
        %v9766 = vadd.f32 0.0, %v9765
        %v9767 = vpop.f32.mrb[0].mxu0
        %v9768 = vpop.f32.mrb[0].mxu0
        %v9769 = vadd.f32 0.0, %v9768
        %v9770 = vpop.f32.mrb[0].mxu0
        %9771 = vmatprep.mubr.bf16.mxu0 0
        %9772 = vmatmul.mubr.bf16.gmra.mrb[0].mxu0 %v9613
        %v9773 = vpop.f32.mrb[0].mxu0
        %v9774 = vadd.f32 0.0, %v9773
        %v9775 = vpop.f32.mrb[0].mxu0
        %v9776 = vpop.f32.mrb[0].mxu0
        %v9777 = vadd.f32 0.0, %v9776
        %v9778 = vpop.f32.mrb[0].mxu0
        %9779 = vmatprep.mubr.bf16.mxu0 0
        %9780 = vmatmul.mubr.bf16.gmra.mrb[0].mxu0 %v9622
        %v9781 = vpop.f32.mrb[0].mxu0
        %v9782 = vadd.f32 0.0, %v9781
        %v9783 = vpop.f32.mrb[0].mxu0
        %v9784 = vpop.f32.mrb[0].mxu0
        %v9785 = vadd.f32 0.0, %v9784
        %v9786 = vpop.f32.mrb[0].mxu0
        %9787 = vmatprep.mubr.bf16.mxu0 0
        %9788 = vmatmul.mubr.bf16.gmra.mrb[0].mxu0 %v9631
        %v9789 = vpop.f32.mrb[0].mxu0
        %v9790 = vadd.f32 0.0, %v9789
        %v9791 = vpop.f32.mrb[0].mxu0
        %v9792 = vpop.f32.mrb[0].mxu0
        %v9793 = vadd.f32 0.0, %v9792
        %v9794 = vpop.f32.mrb[0].mxu0
        %9795 = vmatprep.mubr.bf16.mxu0 0
        %9796 = vmatmul.mubr.bf16.gmra.mrb[0].mxu0 %v9640
        %v9797 = vpop.f32.mrb[0].mxu0
        %v9798 = vadd.f32 0.0, %v9797
        %v9799 = vpop.f32.mrb[0].mxu0
        %v9800 = vpop.f32.mrb[0].mxu0
        %v9801 = vadd.f32 0.0, %v9800
        %v9802 = vpop.f32.mrb[0].mxu0
        %9803 = vmatprep.mubr.bf16.mxu0 0
        %9804 = vmatmul.mubr.bf16.gmra.mrb[0].mxu0 %v9649
        %v9805 = vpop.f32.mrb[0].mxu0
        %v9806 = vadd.f32 0.0, %v9805
        %v9807 = vpop.f32.mrb[0].mxu0
        %v9808 = vpop.f32.mrb[0].mxu0
        %v9809 = vadd.f32 0.0, %v9808
        %v9810 = vpop.f32.mrb[0].mxu0
        %9811 = vdwg.mxu0
        %v9812 = vadd.f32 %v9523, %v9742
        %v9813 = vadd.f32 %v9524, %v9745
        %v9814 = vadd.f32 %v9525, %v9750
        %v9815 = vadd.f32 %v9526, %v9753
        %v9816 = vadd.f32 %v9527, %v9758
        %v9817 = vadd.f32 %v9528, %v9761
        %v9818 = vadd.f32 %v9529, %v9766
        %v9819 = vadd.f32 %v9530, %v9769
        %v9820 = vadd.f32 %v9531, %v9774
        %v9821 = vadd.f32 %v9532, %v9777
        %v9822 = vadd.f32 %v9533, %v9782
        %v9823 = vadd.f32 %v9534, %v9785
        %v9824 = vadd.f32 %v9535, %v9790
        %v9825 = vadd.f32 %v9536, %v9793
        %v9826 = vadd.f32 %v9537, %v9798
        %v9827 = vadd.f32 %v9538, %v9801
        %v9828 = vadd.f32 %v9539, %v9806
        %v9829 = vadd.f32 %v9540, %v9809
        %v9830 = vld [vmem:[#allocation3 + $0x50] sm:$0xc]
        %v9831 = vld [vmem:[%s7433] sm:$0xf]
        %v9832 = vld [vmem:[%s7433 + $0x4] sm:$0xf]
        %v9833 = vld [vmem:[%s7433 + $0x8] sm:$0xf]
        %v9834 = vld [vmem:[%s7433 + $0xc] sm:$0xf]
        %v9835 = vld [vmem:[%s7433 + $0x10] sm:$0xf]
        %v9836 = vld [vmem:[%s7433 + $0x14] sm:$0xf]
        %v9837 = vld [vmem:[%s7433 + $0x18] sm:$0xf]
        %v9838 = vld [vmem:[%s7433 + $0x1c] sm:$0xf]
        %v9839 = vld [vmem:[%s7433 + $0x20] sm:$0xf]
        %v9840 = vld [vmem:[%s7433 + $0x24] sm:$0xf]
        %v9841 = vld [vmem:[%s7433 + $0x28] sm:$0xf]
        %v9842 = vld [vmem:[%s7433 + $0x2c] sm:$0xf]
        %v9843 = vld [vmem:[%s7433 + $0x30] sm:$0xf]
        %v9844 = vld [vmem:[%s7433 + $0x34] sm:$0xf]
        %v9845 = vld [vmem:[%s7433 + $0x38] sm:$0xf]
        %v9846 = vld [vmem:[%s7433 + $0x3c] sm:$0xf]
        %v9848 = vunpack.c.l.b16 %v9830
        %v9849 = vpack.c.b16 %v9314, %v9848
        %v9850 = vrot.slane %v9849, 2
        %v9851 = vrot.slane %v9333, 2
        %v9852 = vsel %vm2180, %v9850, %v9851
        %v9853 = vrot.slane %v9334, 2
        %v9854 = vsel %vm2180, %v9851, %v9853
        %v9855 = vrot.slane %v9335, 2
        %v9856 = vsel %vm2180, %v9853, %v9855
        %v9857 = vrot.slane %v9336, 2
        %v9858 = vsel %vm2180, %v9855, %v9857
        %v9859 = vrot.slane %v9337, 2
        %v9860 = vsel %vm2180, %v9857, %v9859
        %v9861 = vrot.slane %v9338, 2
        %v9862 = vsel %vm2180, %v9859, %v9861
        %v9863 = vrot.slane %v9339, 2
        %v9864 = vsel %vm2180, %v9861, %v9863
        %v9865 = vrot.slane %v9340, 2
        %v9866 = vsel %vm2180, %v9863, %v9865
        %v9867 = vrot.slane %v9560, 2
        %v9868 = vsel %vm2180, %v9865, %v9867
        %v9894 = vunpack.c.l.b16 %v9831
        %v9895 = vunpack.c.l.b16 %v9832
        %v9896 = vunpack.c.l.b16 %v9833
        %v9897 = vunpack.c.l.b16 %v9834
        %v9898 = vunpack.c.l.b16 %v9835
        %v9899 = vunpack.c.l.b16 %v9836
        %v9900 = vunpack.c.l.b16 %v9837
        %v9901 = vunpack.c.l.b16 %v9838
        %v9902 = vunpack.c.l.b16 %v9839
        %v9903 = vunpack.c.l.b16 %v9840
        %v9904 = vunpack.c.l.b16 %v9841
        %v9905 = vunpack.c.l.b16 %v9842
        %v9906 = vunpack.c.l.b16 %v9843
        %v9907 = vunpack.c.l.b16 %v9844
        %v9908 = vunpack.c.l.b16 %v9845
        %v9909 = vunpack.c.l.b16 %v9846
        %v9910 = vpack.c.b16 %v9895, %v9894
        %v9911 = vpack.c.b16 %v9897, %v9896
        %v9912 = vpack.c.b16 %v9899, %v9898
        %v9913 = vpack.c.b16 %v9901, %v9900
        %v9914 = vpack.c.b16 %v9903, %v9902
        %v9915 = vpack.c.b16 %v9905, %v9904
        %v9916 = vpack.c.b16 %v9907, %v9906
        %v9917 = vpack.c.b16 %v9909, %v9908
        %9926 = vmatprep.subr.bf16.mxu0 0
        %9927 = vmatpush1.bf16.msra.mxu0 %v9910
        %9928 = vmatprep.subr.bf16.mxu0 0
        %9929 = vmatpush1.bf16.msra.mxu0 %v9911
        %9930 = vmatprep.subr.bf16.mxu0 0
        %9931 = vmatpush1.bf16.msra.mxu0 %v9912
        %9932 = vmatprep.subr.bf16.mxu0 0
        %9933 = vmatpush1.bf16.msra.mxu0 %v9913
        %9934 = vmatprep.subr.bf16.mxu0 0
        %9935 = vmatpush1.bf16.msra.mxu0 %v9914
        %9936 = vmatprep.subr.bf16.mxu0 0
        %9937 = vmatpush1.bf16.msra.mxu0 %v9915
        %9938 = vmatprep.subr.bf16.mxu0 0
        %9939 = vmatpush1.bf16.msra.mxu0 %v9916
        %9940 = vmatprep.subr.bf16.mxu0 0
        %9941 = vmatpush1.bf16.msra.mxu0 %v9917
        %9942 = vmatprep.subr.bf16.mxu0 0
        %9943 = vmatpush1.bf16.msra.mxu0 0
        %9944 = vmatprep.subr.bf16.mxu0 0
        %9945 = vmatpush1.bf16.msra.mxu0 0
        %9946 = vmatprep.subr.bf16.mxu0 0
        %9947 = vmatpush1.bf16.msra.mxu0 0
        %9948 = vmatprep.subr.bf16.mxu0 0
        %9949 = vmatpush1.bf16.msra.mxu0 0
        %9950 = vmatprep.subr.bf16.mxu0 0
        %9951 = vmatpush1.bf16.msra.mxu0 0
        %9952 = vmatprep.subr.bf16.mxu0 0
        %9953 = vmatpush1.bf16.msra.mxu0 0
        %9954 = vmatprep.subr.bf16.mxu0 0
        %9955 = vmatpush1.bf16.msra.mxu0 0
        %9956 = vmatprep.subr.bf16.mxu0 0
        %9957 = vmatpush1.bf16.msra.mxu0 0
        %9958 = vmatprep.mubr.bf16.mxu0 0
        %9959 = vmatmul.mubr.bf16.gmra.mrb[0].mxu0 %v9852
        %v9960 = vpop.f32.mrb[0].mxu0
        %v9961 = vadd.f32 0.0, %v9960
        %v9962 = vpop.f32.mrb[0].mxu0
        %v9963 = vpop.f32.mrb[0].mxu0
        %v9964 = vadd.f32 0.0, %v9963
        %v9965 = vpop.f32.mrb[0].mxu0
        %9966 = vmatprep.mubr.bf16.mxu0 0
        %9967 = vmatmul.mubr.bf16.gmra.mrb[0].mxu0 %v9854
        %v9968 = vpop.f32.mrb[0].mxu0
        %v9969 = vadd.f32 0.0, %v9968
        %v9970 = vpop.f32.mrb[0].mxu0
        %v9971 = vpop.f32.mrb[0].mxu0
        %v9972 = vadd.f32 0.0, %v9971
        %v9973 = vpop.f32.mrb[0].mxu0
        %9974 = vmatprep.mubr.bf16.mxu0 0
        %9975 = vmatmul.mubr.bf16.gmra.mrb[0].mxu0 %v9856
        %v9976 = vpop.f32.mrb[0].mxu0
        %v9977 = vadd.f32 0.0, %v9976
        %v9978 = vpop.f32.mrb[0].mxu0
        %v9979 = vpop.f32.mrb[0].mxu0
        %v9980 = vadd.f32 0.0, %v9979
        %v9981 = vpop.f32.mrb[0].mxu0
        %9982 = vmatprep.mubr.bf16.mxu0 0
        %9983 = vmatmul.mubr.bf16.gmra.mrb[0].mxu0 %v9858
        %v9984 = vpop.f32.mrb[0].mxu0
        %v9985 = vadd.f32 0.0, %v9984
        %v9986 = vpop.f32.mrb[0].mxu0
        %v9987 = vpop.f32.mrb[0].mxu0
        %v9988 = vadd.f32 0.0, %v9987
        %v9989 = vpop.f32.mrb[0].mxu0
        %9990 = vmatprep.mubr.bf16.mxu0 0
        %9991 = vmatmul.mubr.bf16.gmra.mrb[0].mxu0 %v9860
        %v9992 = vpop.f32.mrb[0].mxu0
        %v9993 = vadd.f32 0.0, %v9992
        %v9994 = vpop.f32.mrb[0].mxu0
        %v9995 = vpop.f32.mrb[0].mxu0
        %v9996 = vadd.f32 0.0, %v9995
        %v9997 = vpop.f32.mrb[0].mxu0
        %9998 = vmatprep.mubr.bf16.mxu0 0
        %9999 = vmatmul.mubr.bf16.gmra.mrb[0].mxu0 %v9862
        %v10000 = vpop.f32.mrb[0].mxu0
        %v10001 = vadd.f32 0.0, %v10000
        %v10002 = vpop.f32.mrb[0].mxu0
        %v10003 = vpop.f32.mrb[0].mxu0
        %v10004 = vadd.f32 0.0, %v10003
        %v10005 = vpop.f32.mrb[0].mxu0
        %10006 = vmatprep.mubr.bf16.mxu0 0
        %10007 = vmatmul.mubr.bf16.gmra.mrb[0].mxu0 %v9864
        %v10008 = vpop.f32.mrb[0].mxu0
        %v10009 = vadd.f32 0.0, %v10008
        %v10010 = vpop.f32.mrb[0].mxu0
        %v10011 = vpop.f32.mrb[0].mxu0
        %v10012 = vadd.f32 0.0, %v10011
        %v10013 = vpop.f32.mrb[0].mxu0
        %10014 = vmatprep.mubr.bf16.mxu0 0
        %10015 = vmatmul.mubr.bf16.gmra.mrb[0].mxu0 %v9866
        %v10016 = vpop.f32.mrb[0].mxu0
        %v10017 = vadd.f32 0.0, %v10016
        %v10018 = vpop.f32.mrb[0].mxu0
        %v10019 = vpop.f32.mrb[0].mxu0
        %v10020 = vadd.f32 0.0, %v10019
        %v10021 = vpop.f32.mrb[0].mxu0
        %10022 = vmatprep.mubr.bf16.mxu0 0
        %10023 = vmatmul.mubr.bf16.gmra.mrb[0].mxu0 %v9868
        %v10024 = vpop.f32.mrb[0].mxu0
        %v10025 = vadd.f32 0.0, %v10024
        %v10026 = vpop.f32.mrb[0].mxu0
        %v10027 = vpop.f32.mrb[0].mxu0
        %v10028 = vadd.f32 0.0, %v10027
        %v10029 = vpop.f32.mrb[0].mxu0
        %10030 = vdwg.mxu0
        %v10031 = vadd.f32 %v9812, %v9961
        %v10032 = vadd.f32 %v9813, %v9964
        %v10033 = vadd.f32 %v9814, %v9969
        %v10034 = vadd.f32 %v9815, %v9972
        %v10035 = vadd.f32 %v9816, %v9977
        %v10036 = vadd.f32 %v9817, %v9980
        %v10037 = vadd.f32 %v9818, %v9985
        %v10038 = vadd.f32 %v9819, %v9988
        %v10039 = vadd.f32 %v9820, %v9993
        %v10040 = vadd.f32 %v9821, %v9996
        %v10041 = vadd.f32 %v9822, %v10001
        %v10042 = vadd.f32 %v9823, %v10004
        %v10043 = vadd.f32 %v9824, %v10009
        %v10044 = vadd.f32 %v9825, %v10012
        %v10045 = vadd.f32 %v9826, %v10017
        %v10046 = vadd.f32 %v9827, %v10020
        %v10047 = vadd.f32 %v9828, %v10025
        %v10048 = vadd.f32 %v9829, %v10028
        %v10049 = vld [vmem:[#allocation3 + $0x58] sm:$0xc]
        %v10050 = vld [vmem:[#allocation3 + $0x5c] sm:$0xf]
        %v10051 = vld [vmem:[#allocation3 + $0x60] sm:$0xf]
        %v10052 = vld [vmem:[#allocation3 + $0x64] sm:$0xf]
        %v10053 = vld [vmem:[#allocation3 + $0x68] sm:$0xf]
        %v10054 = vld [vmem:[#allocation3 + $0x6c] sm:$0xf]
        %v10055 = vld [vmem:[#allocation3 + $0x70] sm:$0xf]
        %v10056 = vld [vmem:[#allocation3 + $0x74] sm:$0xf]
        %v10057 = vld [vmem:[#allocation3 + $0x78] sm:$0xf]
        %v10058 = vld [vmem:[#allocation3 + $0x7c] sm:$0xf]
        %v10059 = vld [vmem:[#allocation3 + $0x80] sm:$0xf]
        %v10060 = vld [vmem:[#allocation3 + $0x84] sm:$0xf]
        %v10061 = vld [vmem:[#allocation3 + $0x88] sm:$0xf]
        %v10062 = vld [vmem:[#allocation3 + $0x8c] sm:$0xf]
        %v10063 = vld [vmem:[#allocation3 + $0x90] sm:$0xf]
        %v10064 = vld [vmem:[#allocation3 + $0x94] sm:$0xf]
        %v10065 = vld [vmem:[#allocation3 + $0x98] sm:$0xf]
        %v10066 = vld [vmem:[#allocation3 + $0x9c] sm:$0xf]
        %v10067 = vld [vmem:[#allocation3 + $0xa0] sm:$0x3]
        %v10068 = vld [vmem:[%s7671] sm:$0xf]
        %v10069 = vld [vmem:[%s7671 + $0x4] sm:$0xf]
        %v10070 = vld [vmem:[%s7671 + $0x8] sm:$0xf]
        %v10071 = vld [vmem:[%s7671 + $0xc] sm:$0xf]
        %v10072 = vld [vmem:[%s7671 + $0x10] sm:$0xf]
        %v10073 = vld [vmem:[%s7671 + $0x14] sm:$0xf]
        %v10074 = vld [vmem:[%s7671 + $0x18] sm:$0xf]
        %v10075 = vld [vmem:[%s7671 + $0x1c] sm:$0xf]
        %v10076 = vld [vmem:[%s7671 + $0x20] sm:$0xf]
        %v10077 = vld [vmem:[%s7671 + $0x24] sm:$0xf]
        %v10078 = vld [vmem:[%s7671 + $0x28] sm:$0xf]
        %v10079 = vld [vmem:[%s7671 + $0x2c] sm:$0xf]
        %v10080 = vld [vmem:[%s7671 + $0x30] sm:$0xf]
        %v10081 = vld [vmem:[%s7671 + $0x34] sm:$0xf]
        %v10082 = vld [vmem:[%s7671 + $0x38] sm:$0xf]
        %v10083 = vld [vmem:[%s7671 + $0x3c] sm:$0xf]
        %v10103 = vunpack.c.l.b16 %v10049
        %v10104 = vunpack.c.l.b16 %v10050
        %v10105 = vunpack.c.l.b16 %v10051
        %v10106 = vunpack.c.l.b16 %v10052
        %v10107 = vunpack.c.l.b16 %v10053
        %v10108 = vunpack.c.l.b16 %v10054
        %v10109 = vunpack.c.l.b16 %v10055
        %v10110 = vunpack.c.l.b16 %v10056
        %v10111 = vunpack.c.l.b16 %v10057
        %v10112 = vunpack.c.l.b16 %v10058
        %v10113 = vunpack.c.l.b16 %v10059
        %v10114 = vunpack.c.l.b16 %v10060
        %v10115 = vunpack.c.l.b16 %v10061
        %v10116 = vunpack.c.l.b16 %v10062
        %v10117 = vunpack.c.l.b16 %v10063
        %v10118 = vunpack.c.l.b16 %v10064
        %v10119 = vunpack.c.l.b16 %v10065
        %v10120 = vunpack.c.l.b16 %v10066
        %v10121 = vunpack.c.l.b16 %v10067
        %v10122 = vpack.c.b16 %v10104, %v10103
        %v10123 = vpack.c.b16 %v10106, %v10105
        %v10124 = vpack.c.b16 %v10108, %v10107
        %v10125 = vpack.c.b16 %v10110, %v10109
        %v10126 = vpack.c.b16 %v10112, %v10111
        %v10127 = vpack.c.b16 %v10114, %v10113
        %v10128 = vpack.c.b16 %v10116, %v10115
        %v10129 = vpack.c.b16 %v10118, %v10117
        %v10130 = vpack.c.b16 %v10120, %v10119
        %v10131 = vpack.c.b16 %v10121, %v10121
        %v10132 = vrot.slane %v10122, 2
        %v10133 = vrot.slane %v10123, 2
        %v10134 = vsel %vm2180, %v10132, %v10133
        %v10135 = vrot.slane %v10124, 2
        %v10136 = vsel %vm2180, %v10133, %v10135
        %v10137 = vrot.slane %v10125, 2
        %v10138 = vsel %vm2180, %v10135, %v10137
        %v10139 = vrot.slane %v10126, 2
        %v10140 = vsel %vm2180, %v10137, %v10139
        %v10141 = vrot.slane %v10127, 2
        %v10142 = vsel %vm2180, %v10139, %v10141
        %v10143 = vrot.slane %v10128, 2
        %v10144 = vsel %vm2180, %v10141, %v10143
        %v10145 = vrot.slane %v10129, 2
        %v10146 = vsel %vm2180, %v10143, %v10145
        %v10147 = vrot.slane %v10130, 2
        %v10148 = vsel %vm2180, %v10145, %v10147
        %v10149 = vrot.slane %v10131, 2
        %v10150 = vsel %vm2180, %v10147, %v10149
        %v10176 = vunpack.c.l.b16 %v10068
        %v10177 = vunpack.c.l.b16 %v10069
        %v10178 = vunpack.c.l.b16 %v10070
        %v10179 = vunpack.c.l.b16 %v10071
        %v10180 = vunpack.c.l.b16 %v10072
        %v10181 = vunpack.c.l.b16 %v10073
        %v10182 = vunpack.c.l.b16 %v10074
        %v10183 = vunpack.c.l.b16 %v10075
        %v10184 = vunpack.c.l.b16 %v10076
        %v10185 = vunpack.c.l.b16 %v10077
        %v10186 = vunpack.c.l.b16 %v10078
        %v10187 = vunpack.c.l.b16 %v10079
        %v10188 = vunpack.c.l.b16 %v10080
        %v10189 = vunpack.c.l.b16 %v10081
        %v10190 = vunpack.c.l.b16 %v10082
        %v10191 = vunpack.c.l.b16 %v10083
        %v10192 = vpack.c.b16 %v10177, %v10176
        %v10193 = vpack.c.b16 %v10179, %v10178
        %v10194 = vpack.c.b16 %v10181, %v10180
        %v10195 = vpack.c.b16 %v10183, %v10182
        %v10196 = vpack.c.b16 %v10185, %v10184
        %v10197 = vpack.c.b16 %v10187, %v10186
        %v10198 = vpack.c.b16 %v10189, %v10188
        %v10199 = vpack.c.b16 %v10191, %v10190
        %10208 = vmatprep.subr.bf16.mxu0 0
        %10209 = vmatpush1.bf16.msra.mxu0 %v10192
        %10210 = vmatprep.subr.bf16.mxu0 0
        %10211 = vmatpush1.bf16.msra.mxu0 %v10193
        %10212 = vmatprep.subr.bf16.mxu0 0
        %10213 = vmatpush1.bf16.msra.mxu0 %v10194
        %10214 = vmatprep.subr.bf16.mxu0 0
        %10215 = vmatpush1.bf16.msra.mxu0 %v10195
        %10216 = vmatprep.subr.bf16.mxu0 0
        %10217 = vmatpush1.bf16.msra.mxu0 %v10196
        %10218 = vmatprep.subr.bf16.mxu0 0
        %10219 = vmatpush1.bf16.msra.mxu0 %v10197
        %10220 = vmatprep.subr.bf16.mxu0 0
        %10221 = vmatpush1.bf16.msra.mxu0 %v10198
        %10222 = vmatprep.subr.bf16.mxu0 0
        %10223 = vmatpush1.bf16.msra.mxu0 %v10199
        %10224 = vmatprep.subr.bf16.mxu0 0
        %10225 = vmatpush1.bf16.msra.mxu0 0
        %10226 = vmatprep.subr.bf16.mxu0 0
        %10227 = vmatpush1.bf16.msra.mxu0 0
        %10228 = vmatprep.subr.bf16.mxu0 0
        %10229 = vmatpush1.bf16.msra.mxu0 0
        %10230 = vmatprep.subr.bf16.mxu0 0
        %10231 = vmatpush1.bf16.msra.mxu0 0
        %10232 = vmatprep.subr.bf16.mxu0 0
        %10233 = vmatpush1.bf16.msra.mxu0 0
        %10234 = vmatprep.subr.bf16.mxu0 0
        %10235 = vmatpush1.bf16.msra.mxu0 0
        %10236 = vmatprep.subr.bf16.mxu0 0
        %10237 = vmatpush1.bf16.msra.mxu0 0
        %10238 = vmatprep.subr.bf16.mxu0 0
        %10239 = vmatpush1.bf16.msra.mxu0 0
        %10240 = vmatprep.mubr.bf16.mxu0 0
        %10241 = vmatmul.mubr.bf16.gmra.mrb[0].mxu0 %v10134
        %v10242 = vpop.f32.mrb[0].mxu0
        %v10243 = vadd.f32 0.0, %v10242
        %v10244 = vpop.f32.mrb[0].mxu0
        %v10245 = vpop.f32.mrb[0].mxu0
        %v10246 = vadd.f32 0.0, %v10245
        %v10247 = vpop.f32.mrb[0].mxu0
        %10248 = vmatprep.mubr.bf16.mxu0 0
        %10249 = vmatmul.mubr.bf16.gmra.mrb[0].mxu0 %v10136
        %v10250 = vpop.f32.mrb[0].mxu0
        %v10251 = vadd.f32 0.0, %v10250
        %v10252 = vpop.f32.mrb[0].mxu0
        %v10253 = vpop.f32.mrb[0].mxu0
        %v10254 = vadd.f32 0.0, %v10253
        %v10255 = vpop.f32.mrb[0].mxu0
        %10256 = vmatprep.mubr.bf16.mxu0 0
        %10257 = vmatmul.mubr.bf16.gmra.mrb[0].mxu0 %v10138
        %v10258 = vpop.f32.mrb[0].mxu0
        %v10259 = vadd.f32 0.0, %v10258
        %v10260 = vpop.f32.mrb[0].mxu0
        %v10261 = vpop.f32.mrb[0].mxu0
        %v10262 = vadd.f32 0.0, %v10261
        %v10263 = vpop.f32.mrb[0].mxu0
        %10264 = vmatprep.mubr.bf16.mxu0 0
        %10265 = vmatmul.mubr.bf16.gmra.mrb[0].mxu0 %v10140
        %v10266 = vpop.f32.mrb[0].mxu0
        %v10267 = vadd.f32 0.0, %v10266
        %v10268 = vpop.f32.mrb[0].mxu0
        %v10269 = vpop.f32.mrb[0].mxu0
        %v10270 = vadd.f32 0.0, %v10269
        %v10271 = vpop.f32.mrb[0].mxu0
        %10272 = vmatprep.mubr.bf16.mxu0 0
        %10273 = vmatmul.mubr.bf16.gmra.mrb[0].mxu0 %v10142
        %v10274 = vpop.f32.mrb[0].mxu0
        %v10275 = vadd.f32 0.0, %v10274
        %v10276 = vpop.f32.mrb[0].mxu0
        %v10277 = vpop.f32.mrb[0].mxu0
        %v10278 = vadd.f32 0.0, %v10277
        %v10279 = vpop.f32.mrb[0].mxu0
        %10280 = vmatprep.mubr.bf16.mxu0 0
        %10281 = vmatmul.mubr.bf16.gmra.mrb[0].mxu0 %v10144
        %v10282 = vpop.f32.mrb[0].mxu0
        %v10283 = vadd.f32 0.0, %v10282
        %v10284 = vpop.f32.mrb[0].mxu0
        %v10285 = vpop.f32.mrb[0].mxu0
        %v10286 = vadd.f32 0.0, %v10285
        %v10287 = vpop.f32.mrb[0].mxu0
        %10288 = vmatprep.mubr.bf16.mxu0 0
        %10289 = vmatmul.mubr.bf16.gmra.mrb[0].mxu0 %v10146
        %v10290 = vpop.f32.mrb[0].mxu0
        %v10291 = vadd.f32 0.0, %v10290
        %v10292 = vpop.f32.mrb[0].mxu0
        %v10293 = vpop.f32.mrb[0].mxu0
        %v10294 = vadd.f32 0.0, %v10293
        %v10295 = vpop.f32.mrb[0].mxu0
        %10296 = vmatprep.mubr.bf16.mxu0 0
        %10297 = vmatmul.mubr.bf16.gmra.mrb[0].mxu0 %v10148
        %v10298 = vpop.f32.mrb[0].mxu0
        %v10299 = vadd.f32 0.0, %v10298
        %v10300 = vpop.f32.mrb[0].mxu0
        %v10301 = vpop.f32.mrb[0].mxu0
        %v10302 = vadd.f32 0.0, %v10301
        %v10303 = vpop.f32.mrb[0].mxu0
        %10304 = vmatprep.mubr.bf16.mxu0 0
        %10305 = vmatmul.mubr.bf16.gmra.mrb[0].mxu0 %v10150
        %v10306 = vpop.f32.mrb[0].mxu0
        %v10307 = vadd.f32 0.0, %v10306
        %v10308 = vpop.f32.mrb[0].mxu0
        %v10309 = vpop.f32.mrb[0].mxu0
        %v10310 = vadd.f32 0.0, %v10309
        %v10311 = vpop.f32.mrb[0].mxu0
        %10312 = vdwg.mxu0
        %v10313 = vadd.f32 %v10031, %v10243
        %v10314 = vadd.f32 %v10032, %v10246
        %v10315 = vadd.f32 %v10033, %v10251
        %v10316 = vadd.f32 %v10034, %v10254
        %v10317 = vadd.f32 %v10035, %v10259
        %v10318 = vadd.f32 %v10036, %v10262
        %v10319 = vadd.f32 %v10037, %v10267
        %v10320 = vadd.f32 %v10038, %v10270
        %v10321 = vadd.f32 %v10039, %v10275
        %v10322 = vadd.f32 %v10040, %v10278
        %v10323 = vadd.f32 %v10041, %v10283
        %v10324 = vadd.f32 %v10042, %v10286
        %v10325 = vadd.f32 %v10043, %v10291
        %v10326 = vadd.f32 %v10044, %v10294
        %v10327 = vadd.f32 %v10045, %v10299
        %v10328 = vadd.f32 %v10046, %v10302
        %v10329 = vadd.f32 %v10047, %v10307
        %v10330 = vadd.f32 %v10048, %v10310
        %v10331 = vld [vmem:[#allocation3 + $0xa0] sm:$0x7]
        %v10332 = vld [vmem:[%s7936] sm:$0xf]
        %v10333 = vld [vmem:[%s7936 + $0x4] sm:$0xf]
        %v10334 = vld [vmem:[%s7936 + $0x8] sm:$0xf]
        %v10335 = vld [vmem:[%s7936 + $0xc] sm:$0xf]
        %v10336 = vld [vmem:[%s7936 + $0x10] sm:$0xf]
        %v10337 = vld [vmem:[%s7936 + $0x14] sm:$0xf]
        %v10338 = vld [vmem:[%s7936 + $0x18] sm:$0xf]
        %v10339 = vld [vmem:[%s7936 + $0x1c] sm:$0xf]
        %v10340 = vld [vmem:[%s7936 + $0x20] sm:$0xf]
        %v10341 = vld [vmem:[%s7936 + $0x24] sm:$0xf]
        %v10342 = vld [vmem:[%s7936 + $0x28] sm:$0xf]
        %v10343 = vld [vmem:[%s7936 + $0x2c] sm:$0xf]
        %v10344 = vld [vmem:[%s7936 + $0x30] sm:$0xf]
        %v10345 = vld [vmem:[%s7936 + $0x34] sm:$0xf]
        %v10346 = vld [vmem:[%s7936 + $0x38] sm:$0xf]
        %v10347 = vld [vmem:[%s7936 + $0x3c] sm:$0xf]
        %v10349 = vunpack.c.l.b16 %v10331
        %v10350 = vpack.c.b16 %v10349, %v10349
        %v10352 = vshrl.u32 %v10122, 16
        %v10354 = vrot.slane %v10352, 2
        %v10355 = vshll.u32 %v10122, 16
        %v10357 = vrot.slane %v10355, 3
        %v10358 = vor.u32 %v10354, %v10357
        %v10360 = vshrl.u32 %v10123, 16
        %v10362 = vrot.slane %v10360, 2
        %v10363 = vshll.u32 %v10123, 16
        %v10365 = vrot.slane %v10363, 3
        %v10366 = vor.u32 %v10362, %v10365
        %v10367 = vsel %vm2684, %v10358, %v10366
        %v10369 = vshrl.u32 %v10124, 16
        %v10371 = vrot.slane %v10369, 2
        %v10372 = vshll.u32 %v10124, 16
        %v10374 = vrot.slane %v10372, 3
        %v10375 = vor.u32 %v10371, %v10374
        %v10376 = vsel %vm2684, %v10366, %v10375
        %v10378 = vshrl.u32 %v10125, 16
        %v10380 = vrot.slane %v10378, 2
        %v10381 = vshll.u32 %v10125, 16
        %v10383 = vrot.slane %v10381, 3
        %v10384 = vor.u32 %v10380, %v10383
        %v10385 = vsel %vm2684, %v10375, %v10384
        %v10387 = vshrl.u32 %v10126, 16
        %v10389 = vrot.slane %v10387, 2
        %v10390 = vshll.u32 %v10126, 16
        %v10392 = vrot.slane %v10390, 3
        %v10393 = vor.u32 %v10389, %v10392
        %v10394 = vsel %vm2684, %v10384, %v10393
        %v10396 = vshrl.u32 %v10127, 16
        %v10398 = vrot.slane %v10396, 2
        %v10399 = vshll.u32 %v10127, 16
        %v10401 = vrot.slane %v10399, 3
        %v10402 = vor.u32 %v10398, %v10401
        %v10403 = vsel %vm2684, %v10393, %v10402
        %v10405 = vshrl.u32 %v10128, 16
        %v10407 = vrot.slane %v10405, 2
        %v10408 = vshll.u32 %v10128, 16
        %v10410 = vrot.slane %v10408, 3
        %v10411 = vor.u32 %v10407, %v10410
        %v10412 = vsel %vm2684, %v10402, %v10411
        %v10414 = vshrl.u32 %v10129, 16
        %v10416 = vrot.slane %v10414, 2
        %v10417 = vshll.u32 %v10129, 16
        %v10419 = vrot.slane %v10417, 3
        %v10420 = vor.u32 %v10416, %v10419
        %v10421 = vsel %vm2684, %v10411, %v10420
        %v10423 = vshrl.u32 %v10130, 16
        %v10425 = vrot.slane %v10423, 2
        %v10426 = vshll.u32 %v10130, 16
        %v10428 = vrot.slane %v10426, 3
        %v10429 = vor.u32 %v10425, %v10428
        %v10430 = vsel %vm2684, %v10420, %v10429
        %v10432 = vshrl.u32 %v10350, 16
        %v10434 = vrot.slane %v10432, 2
        %v10435 = vshll.u32 %v10350, 16
        %v10437 = vrot.slane %v10435, 3
        %v10438 = vor.u32 %v10434, %v10437
        %v10439 = vsel %vm2684, %v10429, %v10438
        %v10465 = vunpack.c.l.b16 %v10332
        %v10466 = vunpack.c.l.b16 %v10333
        %v10467 = vunpack.c.l.b16 %v10334
        %v10468 = vunpack.c.l.b16 %v10335
        %v10469 = vunpack.c.l.b16 %v10336
        %v10470 = vunpack.c.l.b16 %v10337
        %v10471 = vunpack.c.l.b16 %v10338
        %v10472 = vunpack.c.l.b16 %v10339
        %v10473 = vunpack.c.l.b16 %v10340
        %v10474 = vunpack.c.l.b16 %v10341
        %v10475 = vunpack.c.l.b16 %v10342
        %v10476 = vunpack.c.l.b16 %v10343
        %v10477 = vunpack.c.l.b16 %v10344
        %v10478 = vunpack.c.l.b16 %v10345
        %v10479 = vunpack.c.l.b16 %v10346
        %v10480 = vunpack.c.l.b16 %v10347
        %v10481 = vpack.c.b16 %v10466, %v10465
        %v10482 = vpack.c.b16 %v10468, %v10467
        %v10483 = vpack.c.b16 %v10470, %v10469
        %v10484 = vpack.c.b16 %v10472, %v10471
        %v10485 = vpack.c.b16 %v10474, %v10473
        %v10486 = vpack.c.b16 %v10476, %v10475
        %v10487 = vpack.c.b16 %v10478, %v10477
        %v10488 = vpack.c.b16 %v10480, %v10479
        %10497 = vmatprep.subr.bf16.mxu0 0
        %10498 = vmatpush1.bf16.msra.mxu0 %v10481
        %10499 = vmatprep.subr.bf16.mxu0 0
        %10500 = vmatpush1.bf16.msra.mxu0 %v10482
        %10501 = vmatprep.subr.bf16.mxu0 0
        %10502 = vmatpush1.bf16.msra.mxu0 %v10483
        %10503 = vmatprep.subr.bf16.mxu0 0
        %10504 = vmatpush1.bf16.msra.mxu0 %v10484
        %10505 = vmatprep.subr.bf16.mxu0 0
        %10506 = vmatpush1.bf16.msra.mxu0 %v10485
        %10507 = vmatprep.subr.bf16.mxu0 0
        %10508 = vmatpush1.bf16.msra.mxu0 %v10486
        %10509 = vmatprep.subr.bf16.mxu0 0
        %10510 = vmatpush1.bf16.msra.mxu0 %v10487
        %10511 = vmatprep.subr.bf16.mxu0 0
        %10512 = vmatpush1.bf16.msra.mxu0 %v10488
        %10513 = vmatprep.subr.bf16.mxu0 0
        %10514 = vmatpush1.bf16.msra.mxu0 0
        %10515 = vmatprep.subr.bf16.mxu0 0
        %10516 = vmatpush1.bf16.msra.mxu0 0
        %10517 = vmatprep.subr.bf16.mxu0 0
        %10518 = vmatpush1.bf16.msra.mxu0 0
        %10519 = vmatprep.subr.bf16.mxu0 0
        %10520 = vmatpush1.bf16.msra.mxu0 0
        %10521 = vmatprep.subr.bf16.mxu0 0
        %10522 = vmatpush1.bf16.msra.mxu0 0
        %10523 = vmatprep.subr.bf16.mxu0 0
        %10524 = vmatpush1.bf16.msra.mxu0 0
        %10525 = vmatprep.subr.bf16.mxu0 0
        %10526 = vmatpush1.bf16.msra.mxu0 0
        %10527 = vmatprep.subr.bf16.mxu0 0
        %10528 = vmatpush1.bf16.msra.mxu0 0
        %10529 = vmatprep.mubr.bf16.mxu0 0
        %10530 = vmatmul.mubr.bf16.gmra.mrb[0].mxu0 %v10367
        %v10531 = vpop.f32.mrb[0].mxu0
        %v10532 = vadd.f32 0.0, %v10531
        %v10533 = vpop.f32.mrb[0].mxu0
        %v10534 = vpop.f32.mrb[0].mxu0
        %v10535 = vadd.f32 0.0, %v10534
        %v10536 = vpop.f32.mrb[0].mxu0
        %10537 = vmatprep.mubr.bf16.mxu0 0
        %10538 = vmatmul.mubr.bf16.gmra.mrb[0].mxu0 %v10376
        %v10539 = vpop.f32.mrb[0].mxu0
        %v10540 = vadd.f32 0.0, %v10539
        %v10541 = vpop.f32.mrb[0].mxu0
        %v10542 = vpop.f32.mrb[0].mxu0
        %v10543 = vadd.f32 0.0, %v10542
        %v10544 = vpop.f32.mrb[0].mxu0
        %10545 = vmatprep.mubr.bf16.mxu0 0
        %10546 = vmatmul.mubr.bf16.gmra.mrb[0].mxu0 %v10385
        %v10547 = vpop.f32.mrb[0].mxu0
        %v10548 = vadd.f32 0.0, %v10547
        %v10549 = vpop.f32.mrb[0].mxu0
        %v10550 = vpop.f32.mrb[0].mxu0
        %v10551 = vadd.f32 0.0, %v10550
        %v10552 = vpop.f32.mrb[0].mxu0
        %10553 = vmatprep.mubr.bf16.mxu0 0
        %10554 = vmatmul.mubr.bf16.gmra.mrb[0].mxu0 %v10394
        %v10555 = vpop.f32.mrb[0].mxu0
        %v10556 = vadd.f32 0.0, %v10555
        %v10557 = vpop.f32.mrb[0].mxu0
        %v10558 = vpop.f32.mrb[0].mxu0
        %v10559 = vadd.f32 0.0, %v10558
        %v10560 = vpop.f32.mrb[0].mxu0
        %10561 = vmatprep.mubr.bf16.mxu0 0
        %10562 = vmatmul.mubr.bf16.gmra.mrb[0].mxu0 %v10403
        %v10563 = vpop.f32.mrb[0].mxu0
        %v10564 = vadd.f32 0.0, %v10563
        %v10565 = vpop.f32.mrb[0].mxu0
        %v10566 = vpop.f32.mrb[0].mxu0
        %v10567 = vadd.f32 0.0, %v10566
        %v10568 = vpop.f32.mrb[0].mxu0
        %10569 = vmatprep.mubr.bf16.mxu0 0
        %10570 = vmatmul.mubr.bf16.gmra.mrb[0].mxu0 %v10412
        %v10571 = vpop.f32.mrb[0].mxu0
        %v10572 = vadd.f32 0.0, %v10571
        %v10573 = vpop.f32.mrb[0].mxu0
        %v10574 = vpop.f32.mrb[0].mxu0
        %v10575 = vadd.f32 0.0, %v10574
        %v10576 = vpop.f32.mrb[0].mxu0
        %10577 = vmatprep.mubr.bf16.mxu0 0
        %10578 = vmatmul.mubr.bf16.gmra.mrb[0].mxu0 %v10421
        %v10579 = vpop.f32.mrb[0].mxu0
        %v10580 = vadd.f32 0.0, %v10579
        %v10581 = vpop.f32.mrb[0].mxu0
        %v10582 = vpop.f32.mrb[0].mxu0
        %v10583 = vadd.f32 0.0, %v10582
        %v10584 = vpop.f32.mrb[0].mxu0
        %10585 = vmatprep.mubr.bf16.mxu0 0
        %10586 = vmatmul.mubr.bf16.gmra.mrb[0].mxu0 %v10430
        %v10587 = vpop.f32.mrb[0].mxu0
        %v10588 = vadd.f32 0.0, %v10587
        %v10589 = vpop.f32.mrb[0].mxu0
        %v10590 = vpop.f32.mrb[0].mxu0
        %v10591 = vadd.f32 0.0, %v10590
        %v10592 = vpop.f32.mrb[0].mxu0
        %10593 = vmatprep.mubr.bf16.mxu0 0
        %10594 = vmatmul.mubr.bf16.gmra.mrb[0].mxu0 %v10439
        %v10595 = vpop.f32.mrb[0].mxu0
        %v10596 = vadd.f32 0.0, %v10595
        %v10597 = vpop.f32.mrb[0].mxu0
        %v10598 = vpop.f32.mrb[0].mxu0
        %v10599 = vadd.f32 0.0, %v10598
        %v10600 = vpop.f32.mrb[0].mxu0
        %10601 = vdwg.mxu0
        %v10602 = vadd.f32 %v10313, %v10532
        %v10603 = vadd.f32 %v10314, %v10535
        %v10604 = vadd.f32 %v10315, %v10540
        %v10605 = vadd.f32 %v10316, %v10543
        %v10606 = vadd.f32 %v10317, %v10548
        %v10607 = vadd.f32 %v10318, %v10551
        %v10608 = vadd.f32 %v10319, %v10556
        %v10609 = vadd.f32 %v10320, %v10559
        %v10610 = vadd.f32 %v10321, %v10564
        %v10611 = vadd.f32 %v10322, %v10567
        %v10612 = vadd.f32 %v10323, %v10572
        %v10613 = vadd.f32 %v10324, %v10575
        %v10614 = vadd.f32 %v10325, %v10580
        %v10615 = vadd.f32 %v10326, %v10583
        %v10616 = vadd.f32 %v10327, %v10588
        %v10617 = vadd.f32 %v10328, %v10591
        %v10618 = vadd.f32 %v10329, %v10596
        %v10619 = vadd.f32 %v10330, %v10599
        %v10620 = vld [vmem:[#allocation3 + $0x58] sm:$0x8]
        %v10621 = vld [vmem:[%s8226] sm:$0xf]
        %v10622 = vld [vmem:[%s8226 + $0x4] sm:$0xf]
        %v10623 = vld [vmem:[%s8226 + $0x8] sm:$0xf]
        %v10624 = vld [vmem:[%s8226 + $0xc] sm:$0xf]
        %v10625 = vld [vmem:[%s8226 + $0x10] sm:$0xf]
        %v10626 = vld [vmem:[%s8226 + $0x14] sm:$0xf]
        %v10627 = vld [vmem:[%s8226 + $0x18] sm:$0xf]
        %v10628 = vld [vmem:[%s8226 + $0x1c] sm:$0xf]
        %v10629 = vld [vmem:[%s8226 + $0x20] sm:$0xf]
        %v10630 = vld [vmem:[%s8226 + $0x24] sm:$0xf]
        %v10631 = vld [vmem:[%s8226 + $0x28] sm:$0xf]
        %v10632 = vld [vmem:[%s8226 + $0x2c] sm:$0xf]
        %v10633 = vld [vmem:[%s8226 + $0x30] sm:$0xf]
        %v10634 = vld [vmem:[%s8226 + $0x34] sm:$0xf]
        %v10635 = vld [vmem:[%s8226 + $0x38] sm:$0xf]
        %v10636 = vld [vmem:[%s8226 + $0x3c] sm:$0xf]
        %v10638 = vunpack.c.l.b16 %v10620
        %v10639 = vpack.c.b16 %v10104, %v10638
        %v10640 = vrot.slane %v10639, 3
        %v10641 = vrot.slane %v10123, 3
        %v10642 = vsel %vm2975, %v10640, %v10641
        %v10643 = vrot.slane %v10124, 3
        %v10644 = vsel %vm2975, %v10641, %v10643
        %v10645 = vrot.slane %v10125, 3
        %v10646 = vsel %vm2975, %v10643, %v10645
        %v10647 = vrot.slane %v10126, 3
        %v10648 = vsel %vm2975, %v10645, %v10647
        %v10649 = vrot.slane %v10127, 3
        %v10650 = vsel %vm2975, %v10647, %v10649
        %v10651 = vrot.slane %v10128, 3
        %v10652 = vsel %vm2975, %v10649, %v10651
        %v10653 = vrot.slane %v10129, 3
        %v10654 = vsel %vm2975, %v10651, %v10653
        %v10655 = vrot.slane %v10130, 3
        %v10656 = vsel %vm2975, %v10653, %v10655
        %v10657 = vrot.slane %v10350, 3
        %v10658 = vsel %vm2975, %v10655, %v10657
        %v10684 = vunpack.c.l.b16 %v10621
        %v10685 = vunpack.c.l.b16 %v10622
        %v10686 = vunpack.c.l.b16 %v10623
        %v10687 = vunpack.c.l.b16 %v10624
        %v10688 = vunpack.c.l.b16 %v10625
        %v10689 = vunpack.c.l.b16 %v10626
        %v10690 = vunpack.c.l.b16 %v10627
        %v10691 = vunpack.c.l.b16 %v10628
        %v10692 = vunpack.c.l.b16 %v10629
        %v10693 = vunpack.c.l.b16 %v10630
        %v10694 = vunpack.c.l.b16 %v10631
        %v10695 = vunpack.c.l.b16 %v10632
        %v10696 = vunpack.c.l.b16 %v10633
        %v10697 = vunpack.c.l.b16 %v10634
        %v10698 = vunpack.c.l.b16 %v10635
        %v10699 = vunpack.c.l.b16 %v10636
        %v10700 = vpack.c.b16 %v10685, %v10684
        %v10701 = vpack.c.b16 %v10687, %v10686
        %v10702 = vpack.c.b16 %v10689, %v10688
        %v10703 = vpack.c.b16 %v10691, %v10690
        %v10704 = vpack.c.b16 %v10693, %v10692
        %v10705 = vpack.c.b16 %v10695, %v10694
        %v10706 = vpack.c.b16 %v10697, %v10696
        %v10707 = vpack.c.b16 %v10699, %v10698
        %10716 = vmatprep.subr.bf16.mxu0 0
        %10717 = vmatpush1.bf16.msra.mxu0 %v10700
        %10718 = vmatprep.subr.bf16.mxu0 0
        %10719 = vmatpush1.bf16.msra.mxu0 %v10701
        %10720 = vmatprep.subr.bf16.mxu0 0
        %10721 = vmatpush1.bf16.msra.mxu0 %v10702
        %10722 = vmatprep.subr.bf16.mxu0 0
        %10723 = vmatpush1.bf16.msra.mxu0 %v10703
        %10724 = vmatprep.subr.bf16.mxu0 0
        %10725 = vmatpush1.bf16.msra.mxu0 %v10704
        %10726 = vmatprep.subr.bf16.mxu0 0
        %10727 = vmatpush1.bf16.msra.mxu0 %v10705
        %10728 = vmatprep.subr.bf16.mxu0 0
        %10729 = vmatpush1.bf16.msra.mxu0 %v10706
        %10730 = vmatprep.subr.bf16.mxu0 0
        %10731 = vmatpush1.bf16.msra.mxu0 %v10707
        %10732 = vmatprep.subr.bf16.mxu0 0
        %10733 = vmatpush1.bf16.msra.mxu0 0
        %10734 = vmatprep.subr.bf16.mxu0 0
        %10735 = vmatpush1.bf16.msra.mxu0 0
        %10736 = vmatprep.subr.bf16.mxu0 0
        %10737 = vmatpush1.bf16.msra.mxu0 0
        %10738 = vmatprep.subr.bf16.mxu0 0
        %10739 = vmatpush1.bf16.msra.mxu0 0
        %10740 = vmatprep.subr.bf16.mxu0 0
        %10741 = vmatpush1.bf16.msra.mxu0 0
        %10742 = vmatprep.subr.bf16.mxu0 0
        %10743 = vmatpush1.bf16.msra.mxu0 0
        %10744 = vmatprep.subr.bf16.mxu0 0
        %10745 = vmatpush1.bf16.msra.mxu0 0
        %10746 = vmatprep.subr.bf16.mxu0 0
        %10747 = vmatpush1.bf16.msra.mxu0 0
        %10748 = vmatprep.mubr.bf16.mxu0 0
        %10749 = vmatmul.mubr.bf16.gmra.mrb[0].mxu0 %v10642
        %v10750 = vpop.f32.mrb[0].mxu0
        %v10751 = vadd.f32 0.0, %v10750
        %v10752 = vpop.f32.mrb[0].mxu0
        %v10753 = vpop.f32.mrb[0].mxu0
        %v10754 = vadd.f32 0.0, %v10753
        %v10755 = vpop.f32.mrb[0].mxu0
        %10756 = vmatprep.mubr.bf16.mxu0 0
        %10757 = vmatmul.mubr.bf16.gmra.mrb[0].mxu0 %v10644
        %v10758 = vpop.f32.mrb[0].mxu0
        %v10759 = vadd.f32 0.0, %v10758
        %v10760 = vpop.f32.mrb[0].mxu0
        %v10761 = vpop.f32.mrb[0].mxu0
        %v10762 = vadd.f32 0.0, %v10761
        %v10763 = vpop.f32.mrb[0].mxu0
        %10764 = vmatprep.mubr.bf16.mxu0 0
        %10765 = vmatmul.mubr.bf16.gmra.mrb[0].mxu0 %v10646
        %v10766 = vpop.f32.mrb[0].mxu0
        %v10767 = vadd.f32 0.0, %v10766
        %v10768 = vpop.f32.mrb[0].mxu0
        %v10769 = vpop.f32.mrb[0].mxu0
        %v10770 = vadd.f32 0.0, %v10769
        %v10771 = vpop.f32.mrb[0].mxu0
        %10772 = vmatprep.mubr.bf16.mxu0 0
        %10773 = vmatmul.mubr.bf16.gmra.mrb[0].mxu0 %v10648
        %v10774 = vpop.f32.mrb[0].mxu0
        %v10775 = vadd.f32 0.0, %v10774
        %v10776 = vpop.f32.mrb[0].mxu0
        %v10777 = vpop.f32.mrb[0].mxu0
        %v10778 = vadd.f32 0.0, %v10777
        %v10779 = vpop.f32.mrb[0].mxu0
        %10780 = vmatprep.mubr.bf16.mxu0 0
        %10781 = vmatmul.mubr.bf16.gmra.mrb[0].mxu0 %v10650
        %v10782 = vpop.f32.mrb[0].mxu0
        %v10783 = vadd.f32 0.0, %v10782
        %v10784 = vpop.f32.mrb[0].mxu0
        %v10785 = vpop.f32.mrb[0].mxu0
        %v10786 = vadd.f32 0.0, %v10785
        %v10787 = vpop.f32.mrb[0].mxu0
        %10788 = vmatprep.mubr.bf16.mxu0 0
        %10789 = vmatmul.mubr.bf16.gmra.mrb[0].mxu0 %v10652
        %v10790 = vpop.f32.mrb[0].mxu0
        %v10791 = vadd.f32 0.0, %v10790
        %v10792 = vpop.f32.mrb[0].mxu0
        %v10793 = vpop.f32.mrb[0].mxu0
        %v10794 = vadd.f32 0.0, %v10793
        %v10795 = vpop.f32.mrb[0].mxu0
        %10796 = vmatprep.mubr.bf16.mxu0 0
        %10797 = vmatmul.mubr.bf16.gmra.mrb[0].mxu0 %v10654
        %v10798 = vpop.f32.mrb[0].mxu0
        %v10799 = vadd.f32 0.0, %v10798
        %v10800 = vpop.f32.mrb[0].mxu0
        %v10801 = vpop.f32.mrb[0].mxu0
        %v10802 = vadd.f32 0.0, %v10801
        %v10803 = vpop.f32.mrb[0].mxu0
        %10804 = vmatprep.mubr.bf16.mxu0 0
        %10805 = vmatmul.mubr.bf16.gmra.mrb[0].mxu0 %v10656
        %v10806 = vpop.f32.mrb[0].mxu0
        %v10807 = vadd.f32 0.0, %v10806
        %v10808 = vpop.f32.mrb[0].mxu0
        %v10809 = vpop.f32.mrb[0].mxu0
        %v10810 = vadd.f32 0.0, %v10809
        %v10811 = vpop.f32.mrb[0].mxu0
        %10812 = vmatprep.mubr.bf16.mxu0 0
        %10813 = vmatmul.mubr.bf16.gmra.mrb[0].mxu0 %v10658
        %v10814 = vpop.f32.mrb[0].mxu0
        %v10815 = vadd.f32 0.0, %v10814
        %v10816 = vpop.f32.mrb[0].mxu0
        %v10817 = vpop.f32.mrb[0].mxu0
        %v10818 = vadd.f32 0.0, %v10817
        %v10819 = vpop.f32.mrb[0].mxu0
        %10820 = vdwg.mxu0
        %v10821 = vadd.f32 %v10602, %v10751
        %v10822 = vadd.f32 %v10603, %v10754
        %v10823 = vadd.f32 %v10604, %v10759
        %v10824 = vadd.f32 %v10605, %v10762
        %v10825 = vadd.f32 %v10606, %v10767
        %v10826 = vadd.f32 %v10607, %v10770
        %v10827 = vadd.f32 %v10608, %v10775
        %v10828 = vadd.f32 %v10609, %v10778
        %v10829 = vadd.f32 %v10610, %v10783
        %v10830 = vadd.f32 %v10611, %v10786
        %v10831 = vadd.f32 %v10612, %v10791
        %v10832 = vadd.f32 %v10613, %v10794
        %v10833 = vadd.f32 %v10614, %v10799
        %v10834 = vadd.f32 %v10615, %v10802
        %v10835 = vadd.f32 %v10616, %v10807
        %v10836 = vadd.f32 %v10617, %v10810
        %v10837 = vadd.f32 %v10618, %v10815
        %v10838 = vadd.f32 %v10619, %v10818
        %v10839 = vld [vmem:[%s237 + $0xa3] sm:$0xff]
        %v10840 = vld [vmem:[%s237 + $0xab] sm:$0xff]
        %v10841 = vld [vmem:[%s237 + $0xb3] sm:$0xff]
        %v10842 = vld [vmem:[%s237 + $0xbb] sm:$0xff]
        %v10843 = vld [vmem:[%s237 + $0xc3] sm:$0xff]
        %v10844 = vld [vmem:[%s237 + $0xcb] sm:$0xff]
        %v10845 = vld [vmem:[%s237 + $0xd3] sm:$0xff]
        %v10846 = vld [vmem:[%s237 + $0xdb] sm:$0xff]
        %v10847 = vld [vmem:[%s237 + $0xe3] sm:$0xff]
        %v10848 = vld [vmem:[%s237 + $0xeb] sm:$0xff]
        %v10849 = vld [vmem:[%s237 + $0xf3] sm:$0xff]
        %v10850 = vld [vmem:[%s237 + $0xfb] sm:$0xff]
        %v10851 = vld [vmem:[%s237 + $0x103] sm:$0xff]
        %v10852 = vld [vmem:[%s237 + $0x10b] sm:$0xff]
        %v10853 = vld [vmem:[%s237 + $0x113] sm:$0xff]
        %v10854 = vld [vmem:[%s237 + $0x11b] sm:$0xff]
        %v10855 = vld [vmem:[%s237 + $0x123] sm:$0xff]
        %v10856 = vld [vmem:[%s237 + $0x12b] sm:$0xff]
        %v10857 = vadd.f32 %v10821, %v8467
        %v10858 = vadd.f32 %v10822, %v8467
        %v10859 = vadd.f32 %v10823, %v8467
        %v10860 = vadd.f32 %v10824, %v8467
        %v10861 = vadd.f32 %v10825, %v8467
        %v10862 = vadd.f32 %v10826, %v8467
        %v10863 = vadd.f32 %v10827, %v8467
        %v10864 = vadd.f32 %v10828, %v8467
        %v10865 = vadd.f32 %v10829, %v8467
        %v10866 = vadd.f32 %v10830, %v8467
        %v10867 = vadd.f32 %v10831, %v8467
        %v10868 = vadd.f32 %v10832, %v8467
        %v10869 = vadd.f32 %v10833, %v8467
        %v10870 = vadd.f32 %v10834, %v8467
        %v10871 = vadd.f32 %v10835, %v8467
        %v10872 = vadd.f32 %v10836, %v8467
        %v10873 = vadd.f32 %v10837, %v8467
        %v10874 = vadd.f32 %v10838, %v8467
        %v10875 = vadd.f32 %v10857, %v10839
        %v10876 = vadd.f32 %v10858, %v10840
        %v10877 = vadd.f32 %v10859, %v10841
        %v10878 = vadd.f32 %v10860, %v10842
        %v10879 = vadd.f32 %v10861, %v10843
        %v10880 = vadd.f32 %v10862, %v10844
        %v10881 = vadd.f32 %v10863, %v10845
        %v10882 = vadd.f32 %v10864, %v10846
        %v10883 = vadd.f32 %v10865, %v10847
        %v10884 = vadd.f32 %v10866, %v10848
        %v10885 = vadd.f32 %v10867, %v10849
        %v10886 = vadd.f32 %v10868, %v10850
        %v10887 = vadd.f32 %v10869, %v10851
        %v10888 = vadd.f32 %v10870, %v10852
        %v10889 = vadd.f32 %v10871, %v10853
        %v10890 = vadd.f32 %v10872, %v10854
        %v10891 = vadd.f32 %v10873, %v10855
        %v10892 = vadd.f32 %v10874, %v10856
        %v10893 = vmax.f32 %v10875, 0.0
        %v10894 = vmax.f32 %v10876, 0.0
        %v10895 = vmax.f32 %v10877, 0.0
        %v10896 = vmax.f32 %v10878, 0.0
        %v10897 = vmax.f32 %v10879, 0.0
        %v10898 = vmax.f32 %v10880, 0.0
        %v10899 = vmax.f32 %v10881, 0.0
        %v10900 = vmax.f32 %v10882, 0.0
        %v10901 = vmax.f32 %v10883, 0.0
        %v10902 = vmax.f32 %v10884, 0.0
        %v10903 = vmax.f32 %v10885, 0.0
        %v10904 = vmax.f32 %v10886, 0.0
        %v10905 = vmax.f32 %v10887, 0.0
        %v10906 = vmax.f32 %v10888, 0.0
        %v10907 = vmax.f32 %v10889, 0.0
        %v10908 = vmax.f32 %v10890, 0.0
        %v10909 = vmax.f32 %v10891, 0.0
        %v10910 = vmax.f32 %v10892, 0.0
        %10911 = vst [vmem:[%s271 + $0x90] sm:$0xff] %v10893
        %10912 = vst [vmem:[%s271 + $0x98] sm:$0xff] %v10894
        %10913 = vst [vmem:[%s271 + $0xa0] sm:$0xff] %v10895
        %10914 = vst [vmem:[%s271 + $0xa8] sm:$0xff] %v10896
        %10915 = vst [vmem:[%s271 + $0xb0] sm:$0xff] %v10897
        %10916 = vst [vmem:[%s271 + $0xb8] sm:$0xff] %v10898
        %10917 = vst [vmem:[%s271 + $0xc0] sm:$0xff] %v10899
        %10918 = vst [vmem:[%s271 + $0xc8] sm:$0xff] %v10900
        %10919 = vst [vmem:[%s271 + $0xd0] sm:$0xff] %v10901
        %10920 = vst [vmem:[%s271 + $0xd8] sm:$0xff] %v10902
        %10921 = vst [vmem:[%s271 + $0xe0] sm:$0xff] %v10903
        %10922 = vst [vmem:[%s271 + $0xe8] sm:$0xff] %v10904
        %10923 = vst [vmem:[%s271 + $0xf0] sm:$0xff] %v10905
        %10924 = vst [vmem:[%s271 + $0xf8] sm:$0xff] %v10906
        %10925 = vst [vmem:[%s271 + $0x100] sm:$0xff] %v10907
        %10926 = vst [vmem:[%s271 + $0x108] sm:$0xff] %v10908
        %10927 = vst [vmem:[%s271 + $0x110] sm:$0xff] %v10909
        %10928 = vst [vmem:[%s271 + $0x118] sm:$0xff] %v10910
        %s10929 = sand.u32 %s141, 1
        %s10930 = scalar_lea.sflag [#allocation6], %s10929
        %s10931 = sand.u32 %s141, 1
        %s10932 = smul.addr %s10931, 288
        %s10933 = scalar_lea.vmem [#allocation10], %s10932
        // Predicated region
        $region53: #{tpu_custom_call.1} parent=39 // pred_check
          %p10934 = pneg %p151
        $region54: #{tpu_custom_call.1} parent=39 // pred_check_branch
          %10936 = sbr.rel (%p10934) target = $region56
        $region55: #{tpu_custom_call.1} parent=39 // pred_region
          %s10938 = ssub.s32 4608, 4608
          %10939 = vsyncadd %s10930, %s10938
          %s10940 = smul.addr %s23, 36
          %s10941 = smul.addr %s10940, 128
          %s10942 = scalar_lea.hbm %s5, %s10941
          %s10943 = sshll.u32 %s10933, 4
          %s10944 = int_to_ptr.vmem [resolvable:$true] %s10943
          %10949 = dma.vmem_to_hbm [thread:$0]  %s10944, 4608, %s10942, %s10930, 128, 128, 8
        $region56: #{tpu_custom_call.1} parent=39 // pred_fallthru
          _
      $region40: #{tpu_custom_call.1} parent=5 // pred_fallthru
        _
      %p10950 = scmp.le.s32.totalorder 2, %s18
      // Predicated region
      $region57: #{tpu_custom_call.1} parent=5 // pred_check
        %p10951 = pneg %p10950
      $region58: #{tpu_custom_call.1} parent=5 // pred_check_branch
        %10953 = sbr.rel (%p10951) target = $region60
      $region59: #{tpu_custom_call.1} parent=5 // pred_region
        %s10954 = ssub.s32 %s18, 2
        // Predicated region
        $region61: #{tpu_custom_call.1} parent=59 // pred_check
          %p10955 = pneg %p157
        $region62: #{tpu_custom_call.1} parent=59 // pred_check_branch
          %10957 = sbr.rel (%p10955) target = $region64
        $region63: #{tpu_custom_call.1} parent=59 // pred_region
          %s10958 = sand.u32 %s142, 1
          %s10959 = scalar_lea.sflag [#allocation6], %s10958
          %s10960 = sand.u32 %s142, 1
          %s10961 = smul.addr %s10960, 288
          %s10962 = scalar_lea.vmem [#allocation10], %s10961
          %10963 = dma.done %s10959, 4608
        $region64: #{tpu_custom_call.1} parent=59 // pred_fallthru
          _
      $region60: #{tpu_custom_call.1} parent=5 // pred_fallthru
        _
    $region6: #{tpu_custom_call.1} parent=1 // loop_footer
      %s22 = sadd.s32 1, %s18
    $region7: #{tpu_custom_call.1} parent=1 // loop_footer_branch
      %17 = sbr.rel target = $region3
    $region8: #{tpu_custom_call.1} parent=1 // loop_exit
      _
    %10964 = vsyncpa [#allocation5], 1
    %s10965 = scalar_lea.sflag [#allocation5], 1
    %10966 = vsyncpa %s10965, 1
    %10967 = vsyncpa [#allocation8], 1
    %10968 = vsyncpa [#allocation6], 1
    %s10969 = scalar_lea.sflag [#allocation6], 1
    %10970 = vsyncpa %s10969, 1

</llo_original>
